<compile_context>
chip_gen: v7x
topology: tpu7x:2x2x1
jax: 0.10.0
libtpu: 0.0.40
codegen_flags: <defaults>
</compile_context>

<pallas_src>
import functools
import math

import jax
import jax.numpy as jnp
from jax.experimental import pallas as pl
from jax.experimental.pallas import tpu as pltpu

RING = 2                 # zero ring width stored around every activation
DEFAULT_TILE = 2048      # flattened pixels per grid step (tunable per chip)


# ---------------------------------------------------------------------------
# Small helpers
# ---------------------------------------------------------------------------
def _round_up(a, b):
    return (a + b - 1) // b * b


def _choose_tile(length, tile):
    return max(8, _round_up(min(tile, length), 8))


def _cparams():
    return pltpu.CompilerParams(
        dimension_semantics=("parallel", "parallel"),
        vmem_limit_bytes=48 * 1024 * 1024,  # explicit budget, safe on v5e/v6e/v7x
    )


def _im2col_patch(band, length, wp):
    """band: (length + 2*(wp+1), Cin) -> patch (length, 9*Cin).

    Tap (dy, dx) of output pixel i sits at band[i + dy*wp + dx]; the nine taps
    are whole-tile shifted slices concatenated along lanes, so the conv for
    the tile becomes one big matmul.
    """
    return jnp.concatenate(
        [band[dy * wp + dx: dy * wp + dx + length]
         for dy in range(3) for dx in range(3)],
        axis=-1,
    )


# ---------------------------------------------------------------------------
# Pallas kernels
# ---------------------------------------------------------------------------
def _conv3x3_kernel(x_ref, h_ref, m_ref, w_ref, b_ref, o_ref, *, wp, relu):
    # x_ref: (1, Lt, Cin) bf16 tile of flattened pixels
    # h_ref: (1, 1, 2*(wp+1), Cin) halo sideband (wp+1 pixels before + after)
    # m_ref: (Lt, 1) f32 validity mask (zeros on the padding ring)
    # w_ref: (9*Cin, Cout) bf16, b_ref: (1, Cout) f32, o_ref: (1, Lt, Cout) bf16
    lt = x_ref.shape[1]
    d = wp + 1
    band = jnp.concatenate([h_ref[0, 0, :d], x_ref[0], h_ref[0, 0, d:]], axis=0)
    patch = _im2col_patch(band, lt, wp)
    acc = jnp.dot(patch, w_ref[...], preferred_element_type=jnp.float32)
    acc = acc + b_ref[0].astype(jnp.float32)
    if relu:
        acc = jnp.maximum(acc, 0.0)
    o_ref[0] = (acc * m_ref[...]).astype(o_ref.dtype)


def _conv3x3_res_kernel(x_ref, h_ref, m_ref, r_ref, w_ref, b_ref, o_ref, *,
                        wp, res_scale):
    # out = (conv3x3(x) + b) * res_scale + residual   (f32 epilogue)
    lt = x_ref.shape[1]
    d = wp + 1
    band = jnp.concatenate([h_ref[0, 0, :d], x_ref[0], h_ref[0, 0, d:]], axis=0)
    patch = _im2col_patch(band, lt, wp)
    acc = jnp.dot(patch, w_ref[...], preferred_element_type=jnp.float32)
    acc = (acc + b_ref[0].astype(jnp.float32)) * res_scale
    acc = acc + r_ref[0].astype(jnp.float32)
    o_ref[0] = (acc * m_ref[...]).astype(o_ref.dtype)


def _resblock_kernel(x_ref, h_ref, m_ref, w1_ref, b1_ref, w2_ref, b2_ref,
                     o_ref, *, wp, res_scale):
    # Fused ResBlock: out = (conv2(relu(conv1(x)+b1)) + b2) * res_scale + x
    # The conv1 activation for the tile (extended by wp+1 on each side) lives
    # only in VMEM / vregs, halving HBM traffic vs two separate convs.
    lt = x_ref.shape[1]
    d = wp + 1
    dd = 2 * d
    band = jnp.concatenate([h_ref[0, 0, :dd], x_ref[0], h_ref[0, 0, dd:]], axis=0)

    # stage 1: conv1 + bias + ReLU over the extended range [-d, lt + d)
    p1 = _im2col_patch(band, lt + 2 * d, wp)
    y = jnp.dot(p1, w1_ref[...], preferred_element_type=jnp.float32)
    y = jnp.maximum(y + b1_ref[0].astype(jnp.float32), 0.0).astype(x_ref.dtype)

    # stage 2: conv2 + bias, scale, skip add, mask off the padding ring
    p2 = _im2col_patch(y, lt, wp)
    acc = jnp.dot(p2, w2_ref[...], preferred_element_type=jnp.float32)
    acc = (acc + b2_ref[0].astype(jnp.float32)) * res_scale
    acc = acc + x_ref[0].astype(jnp.float32)
    o_ref[0] = (acc * m_ref[...]).astype(o_ref.dtype)


# ---------------------------------------------------------------------------
# Wrapper-side layout helpers (XLA glue)
# ---------------------------------------------------------------------------
def embed_nhwc(x):
    """(N, H, W, C) -> (N, (H+2R)*(W+2R), C) with a zero ring of width RING."""
    n, h, w, c = x.shape
    xp = jnp.pad(x, ((0, 0), (RING, RING), (RING, RING), (0, 0)))
    return xp.reshape(n, (h + 2 * RING) * (w + 2 * RING), c)


def extract_nhwc(a, h, w):
    n, _, c = a.shape
    hp, wp = h + 2 * RING, w + 2 * RING
    img = a.reshape(n, hp, wp, c)
    return img[:, RING:RING + h, RING:RING + w, :]


def pixel_shuffle_nhwc(x, r):
    """NHWC equivalent of nn.PixelShuffle(r) (pure layout op)."""
    n, h, w, c = x.shape
    co = c // (r * r)
    x = x.reshape(n, h, w, co, r, r)
    x = x.transpose(0, 1, 4, 2, 5, 3)
    return x.reshape(n, h * r, w * r, co)


def _ring_mask(h, w, lp):
    """(lp, 1) f32 mask: 1 on true pixels, 0 on the ring / length padding."""
    hp, wp = h + 2 * RING, w + 2 * RING
    idx = jnp.arange(lp)
    row = idx // wp
    col = idx % wp
    valid = ((idx < hp * wp)
             & (row >= RING) & (row < RING + h)
             & (col >= RING) & (col < RING + w))
    return valid.astype(jnp.float32)[:, None]


def _flat_halo(a, lt, n_tiles, d):
    """Sideband of d pixels before + d after every tile: (N, n_tiles, 2d, C)."""
    ah = jnp.pad(a, ((0, 0), (d, d), (0, 0)))
    parts = []
    for t in range(n_tiles):
        before = ah[:, t * lt: t * lt + d]
        after = ah[:, d + (t + 1) * lt: d + (t + 1) * lt + d]
        parts.append(jnp.concatenate([before, after], axis=1))
    return jnp.stack(parts, axis=1)


# ---------------------------------------------------------------------------
# pallas_call wrappers
# ---------------------------------------------------------------------------
def conv3x3_flat(a, h, w, weight, bias, *, relu=False, residual=None,
                 res_scale=1.0, tile=DEFAULT_TILE):
    """3x3 'same' conv on ring-padded flattened activations.

    a: (N, Hp*Wp, Cin) bf16, weight: (9*Cin, Cout) bf16, bias: (1, Cout) f32.
    Returns (N, Hp*Wp, Cout) bf16 with the padding ring zeroed.
    """
    n, l0, cin = a.shape
    hp, wp = h + 2 * RING, w + 2 * RING
    assert l0 == hp * wp
    cout = weight.shape[-1]

    lt = _choose_tile(l0, tile)
    lp = _round_up(l0, lt)
    n_tiles = lp // lt
    d = wp + 1

    ap = jnp.pad(a, ((0, 0), (0, lp - l0), (0, 0)))
    halo = _flat_halo(ap, lt, n_tiles, d)
    mask = _ring_mask(h, w, lp)

    in_specs = [
        pl.BlockSpec((1, lt, cin), lambda i, t: (i, t, 0)),
        pl.BlockSpec((1, 1, 2 * d, cin), lambda i, t: (i, t, 0, 0)),
        pl.BlockSpec((lt, 1), lambda i, t: (t, 0)),
    ]
    args = [ap, halo, mask]

    if residual is None:
        kernel = functools.partial(_conv3x3_kernel, wp=wp, relu=relu)
    else:
        r = residual
        if lp != l0:
            r = jnp.pad(r, ((0, 0), (0, lp - l0), (0, 0)))
        in_specs.append(pl.BlockSpec((1, lt, cout), lambda i, t: (i, t, 0)))
        args.append(r)
        kernel = functools.partial(_conv3x3_res_kernel, wp=wp,
                                   res_scale=res_scale)

    in_specs += [
        pl.BlockSpec(weight.shape, lambda i, t: (0, 0)),
        pl.BlockSpec(bias.shape, lambda i, t: (0, 0)),
    ]
    args += [weight, bias]

    out = pl.pallas_call(
        kernel,
        grid=(n, n_tiles),
        in_specs=in_specs,
        out_specs=pl.BlockSpec((1, lt, cout), lambda i, t: (i, t, 0)),
        out_shape=jax.ShapeDtypeStruct((n, lp, cout), a.dtype),
        compiler_params=_cparams(),
    )(*args)
    if lp != l0:
        out = out[:, :l0]
    return out


def resblock_flat(a, h, w, p1, p2, *, res_scale, tile=DEFAULT_TILE):
    """Fused EDSR ResBlock on ring-padded flattened activations."""
    n, l0, c = a.shape
    hp, wp = h + 2 * RING, w + 2 * RING
    assert l0 == hp * wp
    w1, b1 = p1
    w2, b2 = p2

    lt = _choose_tile(l0, tile)
    lp = _round_up(l0, lt)
    n_tiles = lp // lt
    d = wp + 1

    ap = jnp.pad(a, ((0, 0), (0, lp - l0), (0, 0)))
    halo = _flat_halo(ap, lt, n_tiles, 2 * d)
    mask = _ring_mask(h, w, lp)

    out = pl.pallas_call(
        functools.partial(_resblock_kernel, wp=wp, res_scale=res_scale),
        grid=(n, n_tiles),
        in_specs=[
            pl.BlockSpec((1, lt, c), lambda i, t: (i, t, 0)),
            pl.BlockSpec((1, 1, 4 * d, c), lambda i, t: (i, t, 0, 0)),
            pl.BlockSpec((lt, 1), lambda i, t: (t, 0)),
            pl.BlockSpec(w1.shape, lambda i, t: (0, 0)),
            pl.BlockSpec(b1.shape, lambda i, t: (0, 0)),
            pl.BlockSpec(w2.shape, lambda i, t: (0, 0)),
            pl.BlockSpec(b2.shape, lambda i, t: (0, 0)),
        ],
        out_specs=pl.BlockSpec((1, lt, c), lambda i, t: (i, t, 0)),
        out_shape=jax.ShapeDtypeStruct((n, lp, c), a.dtype),
        compiler_params=_cparams(),
    )(ap, halo, mask, w1, b1, w2, b2)
    if lp != l0:
        out = out[:, :l0]
    return out


# ---------------------------------------------------------------------------
# Parameter construction (deterministic, in-script; no checkpoint loading)
# ---------------------------------------------------------------------------
def _conv_params(key, cin, cout):
    kw, kb = jax.random.split(key)
    wgt = jax.random.normal(kw, (3, 3, cin, cout), jnp.float32) * 0.05
    b = jax.random.normal(kb, (cout,), jnp.float32) * 0.01
    # weights packed as (9*Cin, Cout) in (dy, dx, cin) order, bf16 for the MXU
    return (wgt.reshape(9 * cin, cout).astype(jnp.bfloat16),
            b.reshape(1, cout).astype(jnp.float32))


def make_edsr_params(key, *, n_resblocks, scale, n_feats, n_channels):
    keys = iter(jax.random.split(key, 8 + 3 * n_resblocks))
    params = {}
    params["head"] = _conv_params(next(keys), n_channels, n_feats)
    params["body_blocks"] = []
    for _ in range(n_resblocks):
        params["body_blocks"].append({
            "conv1": _conv_params(next(keys), n_feats, n_feats),
            "conv2": _conv_params(next(keys), n_feats, n_feats),
        })
    params["body_tail"] = _conv_params(next(keys), n_feats, n_feats)
    assert scale & (scale - 1) == 0, "only power-of-two scales implemented here"
    params["up_convs"] = [_conv_params(next(keys), n_feats, 4 * n_feats)
                          for _ in range(int(math.log2(scale)))]
    params["tail"] = _conv_params(next(keys), n_feats, n_channels)
    return params


# ---------------------------------------------------------------------------
# EDSR forward (matches EDSR.forward(x, meta_data); meta_data is unused there)
# ---------------------------------------------------------------------------
def edsr_forward(x, params, *, res_scale, tile=DEFAULT_TILE):
    """x: (B, T, C, H, W) f32 -> (B, T, C, H*scale, W*scale) f32."""
    b, t, c, h, w = x.shape
    xt = x.reshape(b * t, c, h, w).transpose(0, 2, 3, 1).astype(jnp.bfloat16)
    a = embed_nhwc(xt)

    h0 = conv3x3_flat(a, h, w, *params["head"], tile=tile)

    res = h0
    for blk in params["body_blocks"]:
        res = resblock_flat(res, h, w, blk["conv1"], blk["conv2"],
                            res_scale=res_scale, tile=tile)
    res = conv3x3_flat(res, h, w, *params["body_tail"],
                       residual=h0, res_scale=1.0, tile=tile)

    up, hc, wc = res, h, w
    for uw, ub in params["up_convs"]:
        up = conv3x3_flat(up, hc, wc, uw, ub, tile=tile)
        # TODO(synk): fuse PixelShuffle into the upsampler conv's output
        # index_map instead of round-tripping through XLA reshape/transpose.
        img = pixel_shuffle_nhwc(extract_nhwc(up, hc, wc), 2)
        hc, wc = hc * 2, wc * 2
        up = embed_nhwc(img)

    y = conv3x3_flat(up, hc, wc, *params["tail"], tile=tile)
    y = extract_nhwc(y, hc, wc).astype(jnp.float32)
    return y.transpose(0, 3, 1, 2).reshape(b, t, c, hc, wc)


# ---------------------------------------------------------------------------
# Pure-JAX reference (for correctness checking only)
# ---------------------------------------------------------------------------
def _ref_conv(x, w_packed, b_packed, relu=False):
    cout = w_packed.shape[-1]
    cin = w_packed.shape[0] // 9
    wgt = w_packed.astype(jnp.float32).reshape(3, 3, cin, cout)
    y = jax.lax.conv_general_dilated(
        x, wgt, window_strides=(1, 1), padding="SAME",
        dimension_numbers=("NHWC", "HWIO", "NHWC"),
        precision=jax.lax.Precision.HIGHEST)
    y = y + b_packed[0].astype(jnp.float32)
    return jnp.maximum(y, 0.0) if relu else y


def edsr_reference(x, params, *, res_scale):
    b, t, c, h, w = x.shape
    xt = x.reshape(b * t, c, h, w).transpose(0, 2, 3, 1)
    xt = xt.astype(jnp.bfloat16).astype(jnp.float32)
    h0 = _ref_conv(xt, *params["head"])
    res = h0
    for blk in params["body_blocks"]:
        y = _ref_conv(res, *blk["conv1"], relu=True)
        res = _ref_conv(y, *blk["conv2"]) * res_scale + res
    res = _ref_conv(res, *params["body_tail"]) + h0
    up = res
    for uw, ub in params["up_convs"]:
        up = pixel_shuffle_nhwc(_ref_conv(up, uw, ub), 2)
    y = _ref_conv(up, *params["tail"])
    hs, ws = y.shape[1], y.shape[2]
    return y.transpose(0, 3, 1, 2).reshape(b, t, c, hs, ws)


# ---------------------------------------------------------------------------
if __name__ == "__main__":
    B, T, C, H, W = 2, 2, 4, 16, 16
    n_resblocks, scale, n_feats, res_scale = 2, 2, 16, 0.1

    key = jax.random.PRNGKey(0)
    k_x, k_p = jax.random.split(key)
    x = jax.random.normal(k_x, (B, T, C, H, W), jnp.float32)
    params = make_edsr_params(k_p, n_resblocks=n_resblocks, scale=scale,
                              n_feats=n_feats, n_channels=C)

    # small tile so the demo exercises the multi-tile / halo / padding paths
    fwd = jax.jit(functools.partial(edsr_forward, res_scale=res_scale, tile=128))
    out = jax.block_until_ready(fwd(x, params))

    assert out.shape == (B, T, C, H * scale, W * scale), out.shape
    assert out.dtype == jnp.float32
    assert bool(jnp.all(jnp.isfinite(out)))

    ref = edsr_reference(x, params, res_scale=res_scale)
    err = float(jnp.max(jnp.abs(out - ref)))
    assert err < 0.1, f"max abs err vs reference: {err}"
    print("KERNEL_OK")
</pallas_src>

<mosaic_0001>
module attributes {stable_mosaic.version = 11 : i64} {
  func.func @_conv3x3_kernel(%arg0: i32, %arg1: i32, %arg2: memref<1x128x4xbf16, #tpu.memory_space<vmem>>, %arg3: memref<1x1x42x4xbf16, #tpu.memory_space<vmem>>, %arg4: memref<128x1xf32, #tpu.memory_space<vmem>>, %arg5: memref<36x16xbf16, #tpu.memory_space<vmem>>, %arg6: memref<1x16xf32, #tpu.memory_space<vmem>>, %arg7: memref<1x128x16xbf16, #tpu.memory_space<vmem>>) attributes {dimension_semantics = [#tpu.dimension_semantics<parallel>, #tpu.dimension_semantics<parallel>], iteration_bounds = array<i64: 4, 4>, scalar_prefetch = 0 : i64, scratch_operands = 0 : i64, tpu.core_type = #tpu.core_type<tc>, window_params = [{transform_indices = @transform_0, window_bounds = array<i64: 1, 128, 4>}, {transform_indices = @transform_1, window_bounds = array<i64: 1, 1, 42, 4>}, {transform_indices = @transform_2, window_bounds = array<i64: 128, 1>}, {pipeline_mode = #tpu.pipeline_mode<synchronous>, transform_indices = @transform_3, window_bounds = array<i64: 36, 16>}, {pipeline_mode = #tpu.pipeline_mode<synchronous>, transform_indices = @transform_4, window_bounds = array<i64: 1, 16>}, {transform_indices = @transform_5, window_bounds = array<i64: 1, 128, 16>}]} {
    %c0 = arith.constant 0 : index
    %c0_0 = arith.constant 0 : index
    %c0_1 = arith.constant 0 : index
    %c0_2 = arith.constant 0 : index
    %0 = vector.load %arg3[%c0, %c0_0, %c0_1, %c0_2] : memref<1x1x42x4xbf16, #tpu.memory_space<vmem>>, vector<1x1x21x4xbf16>
    %1 = vector.shape_cast %0 : vector<1x1x21x4xbf16> to vector<21x4xbf16>
    %c0_3 = arith.constant 0 : index
    %c0_4 = arith.constant 0 : index
    %c0_5 = arith.constant 0 : index
    %2 = vector.load %arg2[%c0_3, %c0_4, %c0_5] : memref<1x128x4xbf16, #tpu.memory_space<vmem>>, vector<1x128x4xbf16>
    %3 = vector.shape_cast %2 : vector<1x128x4xbf16> to vector<128x4xbf16>
    %c0_6 = arith.constant 0 : index
    %c0_7 = arith.constant 0 : index
    %c21 = arith.constant 21 : index
    %c0_8 = arith.constant 0 : index
    %4 = vector.load %arg3[%c0_6, %c0_7, %c21, %c0_8] : memref<1x1x42x4xbf16, #tpu.memory_space<vmem>>, vector<1x1x21x4xbf16>
    %5 = vector.shape_cast %4 : vector<1x1x21x4xbf16> to vector<21x4xbf16>
    %6 = tpu.concatenate %1, %3, %5 in 0 : vector<21x4xbf16>, vector<128x4xbf16>, vector<21x4xbf16> -> vector<170x4xbf16>
    %7 = vector.extract_strided_slice %6 {offsets = [0, 0], sizes = [128, 4], strides = [1, 1]} : vector<170x4xbf16> to vector<128x4xbf16>
    %8 = vector.extract_strided_slice %6 {offsets = [1, 0], sizes = [128, 4], strides = [1, 1]} : vector<170x4xbf16> to vector<128x4xbf16>
    %9 = vector.extract_strided_slice %6 {offsets = [2, 0], sizes = [128, 4], strides = [1, 1]} : vector<170x4xbf16> to vector<128x4xbf16>
    %10 = vector.extract_strided_slice %6 {offsets = [20, 0], sizes = [128, 4], strides = [1, 1]} : vector<170x4xbf16> to vector<128x4xbf16>
    %11 = vector.extract_strided_slice %6 {offsets = [21, 0], sizes = [128, 4], strides = [1, 1]} : vector<170x4xbf16> to vector<128x4xbf16>
    %12 = vector.extract_strided_slice %6 {offsets = [22, 0], sizes = [128, 4], strides = [1, 1]} : vector<170x4xbf16> to vector<128x4xbf16>
    %13 = vector.extract_strided_slice %6 {offsets = [40, 0], sizes = [128, 4], strides = [1, 1]} : vector<170x4xbf16> to vector<128x4xbf16>
    %14 = vector.extract_strided_slice %6 {offsets = [41, 0], sizes = [128, 4], strides = [1, 1]} : vector<170x4xbf16> to vector<128x4xbf16>
    %15 = vector.extract_strided_slice %6 {offsets = [42, 0], sizes = [128, 4], strides = [1, 1]} : vector<170x4xbf16> to vector<128x4xbf16>
    %16 = tpu.concatenate %7, %8, %9, %10, %11, %12, %13, %14, %15 in 1 : vector<128x4xbf16>, vector<128x4xbf16>, vector<128x4xbf16>, vector<128x4xbf16>, vector<128x4xbf16>, vector<128x4xbf16>, vector<128x4xbf16>, vector<128x4xbf16>, vector<128x4xbf16> -> vector<128x36xbf16>
    %c0_9 = arith.constant 0 : index
    %c0_10 = arith.constant 0 : index
    %17 = vector.load %arg5[%c0_9, %c0_10] : memref<36x16xbf16, #tpu.memory_space<vmem>>, vector<36x16xbf16>
    %cst = arith.constant dense<0.000000e+00> : vector<128x16xf32>
    %18 = tpu.matmul %16, %17, %cst {dimension_numbers = #tpu.dot_dimension_numbers<[1], [0], [0], [1], [0, 0, 1, 1], [], []>} : vector<128x36xbf16>, vector<36x16xbf16>, vector<128x16xf32> -> vector<128x16xf32>
    %c0_11 = arith.constant 0 : index
    %c0_12 = arith.constant 0 : index
    %19 = vector.load %arg6[%c0_11, %c0_12] : memref<1x16xf32, #tpu.memory_space<vmem>>, vector<1x16xf32>
    %20 = vector.shape_cast %19 : vector<1x16xf32> to vector<16xf32>
    %21 = vector.shape_cast %20 : vector<16xf32> to vector<1x16xf32>
    %22 = vector.broadcast %21 : vector<1x16xf32> to vector<128x16xf32>
    %23 = arith.addf %18, %22 : vector<128x16xf32>
    %c0_13 = arith.constant 0 : index
    %c0_14 = arith.constant 0 : index
    %24 = vector.load %arg4[%c0_13, %c0_14] : memref<128x1xf32, #tpu.memory_space<vmem>>, vector<128x1xf32>
    %25 = vector.broadcast %24 : vector<128x1xf32> to vector<128x16xf32>
    %26 = arith.mulf %23, %25 : vector<128x16xf32>
    %27 = arith.truncf %26 : vector<128x16xf32> to vector<128x16xbf16>
    %c0_15 = arith.constant 0 : index
    %c0_16 = arith.constant 0 : index
    %c0_17 = arith.constant 0 : index
    %28 = vector.load %arg7[%c0_15, %c0_16, %c0_17] : memref<1x128x16xbf16, #tpu.memory_space<vmem>>, vector<1x128x16xbf16>
    %29 = vector.shape_cast %28 : vector<1x128x16xbf16> to vector<128x16xbf16>
    %30 = vector.shape_cast %27 : vector<128x16xbf16> to vector<1x128x16xbf16>
    tpu.vector_store %arg7[%c0_15, %c0_16, %c0_17], %30 {strides = array<i32>} : memref<1x128x16xbf16, #tpu.memory_space<vmem>>, vector<1x128x16xbf16>,
    return
  }
  func.func @transform_0(%arg0: i32, %arg1: i32) -> (i32, i32, i32) {
    %c0_i32 = arith.constant 0 : i32
    %c0_i32_0 = arith.constant 0 : i32
    return %arg0, %arg1, %c0_i32 : i32, i32, i32
  }
  func.func @transform_1(%arg0: i32, %arg1: i32) -> (i32, i32, i32, i32) {
    %c0_i32 = arith.constant 0 : i32
    %c0_i32_0 = arith.constant 0 : i32
    %c0_i32_1 = arith.constant 0 : i32
    return %arg0, %arg1, %c0_i32, %c0_i32_0 : i32, i32, i32, i32
  }
  func.func @transform_2(%arg0: i32, %arg1: i32) -> (i32, i32) {
    %c0_i32 = arith.constant 0 : i32
    %c0_i32_0 = arith.constant 0 : i32
    return %arg1, %c0_i32 : i32, i32
  }
  func.func @transform_3(%arg0: i32, %arg1: i32) -> (i32, i32) {
    %c0_i32 = arith.constant 0 : i32
    %c0_i32_0 = arith.constant 0 : i32
    %c0_i32_1 = arith.constant 0 : i32
    return %c0_i32, %c0_i32_0 : i32, i32
  }
  func.func @transform_4(%arg0: i32, %arg1: i32) -> (i32, i32) {
    %c0_i32 = arith.constant 0 : i32
    %c0_i32_0 = arith.constant 0 : i32
    %c0_i32_1 = arith.constant 0 : i32
    return %c0_i32, %c0_i32_0 : i32, i32
  }
  func.func @transform_5(%arg0: i32, %arg1: i32) -> (i32, i32, i32) {
    %c0_i32 = arith.constant 0 : i32
    %c0_i32_0 = arith.constant 0 : i32
    return %arg0, %arg1, %c0_i32 : i32, i32, i32
  }
}

module attributes {stable_mosaic.version = 11 : i64} {
  func.func @_resblock_kernel(%arg0: i32, %arg1: i32, %arg2: memref<1x128x16xbf16, #tpu.memory_space<vmem>>, %arg3: memref<1x1x84x16xbf16, #tpu.memory_space<vmem>>, %arg4: memref<128x1xf32, #tpu.memory_space<vmem>>, %arg5: memref<144x16xbf16, #tpu.memory_space<vmem>>, %arg6: memref<1x16xf32, #tpu.memory_space<vmem>>, %arg7: memref<144x16xbf16, #tpu.memory_space<vmem>>, %arg8: memref<1x16xf32, #tpu.memory_space<vmem>>, %arg9: memref<1x128x16xbf16, #tpu.memory_space<vmem>>) attributes {dimension_semantics = [#tpu.dimension_semantics<parallel>, #tpu.dimension_semantics<parallel>], iteration_bounds = array<i64: 4, 4>, scalar_prefetch = 0 : i64, scratch_operands = 0 : i64, tpu.core_type = #tpu.core_type<tc>, window_params = [{transform_indices = @transform_0, window_bounds = array<i64: 1, 128, 16>}, {transform_indices = @transform_1, window_bounds = array<i64: 1, 1, 84, 16>}, {transform_indices = @transform_2, window_bounds = array<i64: 128, 1>}, {pipeline_mode = #tpu.pipeline_mode<synchronous>, transform_indices = @transform_3, window_bounds = array<i64: 144, 16>}, {pipeline_mode = #tpu.pipeline_mode<synchronous>, transform_indices = @transform_4, window_bounds = array<i64: 1, 16>}, {pipeline_mode = #tpu.pipeline_mode<synchronous>, transform_indices = @transform_5, window_bounds = array<i64: 144, 16>}, {pipeline_mode = #tpu.pipeline_mode<synchronous>, transform_indices = @transform_6, window_bounds = array<i64: 1, 16>}, {transform_indices = @transform_7, window_bounds = array<i64: 1, 128, 16>}]} {
    %c0 = arith.constant 0 : index
    %c0_0 = arith.constant 0 : index
    %c0_1 = arith.constant 0 : index
    %c0_2 = arith.constant 0 : index
    %0 = vector.load %arg3[%c0, %c0_0, %c0_1, %c0_2] : memref<1x1x84x16xbf16, #tpu.memory_space<vmem>>, vector<1x1x42x16xbf16>
    %1 = vector.shape_cast %0 : vector<1x1x42x16xbf16> to vector<42x16xbf16>
    %c0_3 = arith.constant 0 : index
    %c0_4 = arith.constant 0 : index
    %c0_5 = arith.constant 0 : index
    %2 = vector.load %arg2[%c0_3, %c0_4, %c0_5] : memref<1x128x16xbf16, #tpu.memory_space<vmem>>, vector<1x128x16xbf16>
    %3 = vector.shape_cast %2 : vector<1x128x16xbf16> to vector<128x16xbf16>
    %c0_6 = arith.constant 0 : index
    %c0_7 = arith.constant 0 : index
    %c42 = arith.constant 42 : index
    %c0_8 = arith.constant 0 : index
    %4 = vector.load %arg3[%c0_6, %c0_7, %c42, %c0_8] : memref<1x1x84x16xbf16, #tpu.memory_space<vmem>>, vector<1x1x42x16xbf16>
    %5 = vector.shape_cast %4 : vector<1x1x42x16xbf16> to vector<42x16xbf16>
    %6 = tpu.concatenate %1, %3, %5 in 0 : vector<42x16xbf16>, vector<128x16xbf16>, vector<42x16xbf16> -> vector<212x16xbf16>
    %7 = vector.extract_strided_slice %6 {offsets = [0, 0], sizes = [170, 16], strides = [1, 1]} : vector<212x16xbf16> to vector<170x16xbf16>
    %8 = vector.extract_strided_slice %6 {offsets = [1, 0], sizes = [170, 16], strides = [1, 1]} : vector<212x16xbf16> to vector<170x16xbf16>
    %9 = vector.extract_strided_slice %6 {offsets = [2, 0], sizes = [170, 16], strides = [1, 1]} : vector<212x16xbf16> to vector<170x16xbf16>
    %10 = vector.extract_strided_slice %6 {offsets = [20, 0], sizes = [170, 16], strides = [1, 1]} : vector<212x16xbf16> to vector<170x16xbf16>
    %11 = vector.extract_strided_slice %6 {offsets = [21, 0], sizes = [170, 16], strides = [1, 1]} : vector<212x16xbf16> to vector<170x16xbf16>
    %12 = vector.extract_strided_slice %6 {offsets = [22, 0], sizes = [170, 16], strides = [1, 1]} : vector<212x16xbf16> to vector<170x16xbf16>
    %13 = vector.extract_strided_slice %6 {offsets = [40, 0], sizes = [170, 16], strides = [1, 1]} : vector<212x16xbf16> to vector<170x16xbf16>
    %14 = vector.extract_strided_slice %6 {offsets = [41, 0], sizes = [170, 16], strides = [1, 1]} : vector<212x16xbf16> to vector<170x16xbf16>
    %15 = vector.extract_strided_slice %6 {offsets = [42, 0], sizes = [170, 16], strides = [1, 1]} : vector<212x16xbf16> to vector<170x16xbf16>
    %16 = tpu.concatenate %7, %8, %9, %10, %11, %12, %13, %14, %15 in 1 : vector<170x16xbf16>, vector<170x16xbf16>, vector<170x16xbf16>, vector<170x16xbf16>, vector<170x16xbf16>, vector<170x16xbf16>, vector<170x16xbf16>, vector<170x16xbf16>, vector<170x16xbf16> -> vector<170x144xbf16>
    %c0_9 = arith.constant 0 : index
    %c0_10 = arith.constant 0 : index
    %17 = vector.load %arg5[%c0_9, %c0_10] : memref<144x16xbf16, #tpu.memory_space<vmem>>, vector<144x16xbf16>
    %cst = arith.constant dense<0.000000e+00> : vector<170x16xf32>
    %18 = tpu.matmul %16, %17, %cst {dimension_numbers = #tpu.dot_dimension_numbers<[1], [0], [0], [1], [0, 0, 1, 1], [], []>} : vector<170x144xbf16>, vector<144x16xbf16>, vector<170x16xf32> -> vector<170x16xf32>
    %c0_11 = arith.constant 0 : index
    %c0_12 = arith.constant 0 : index
    %19 = vector.load %arg6[%c0_11, %c0_12] : memref<1x16xf32, #tpu.memory_space<vmem>>, vector<1x16xf32>
    %20 = vector.shape_cast %19 : vector<1x16xf32> to vector<16xf32>
    %21 = vector.shape_cast %20 : vector<16xf32> to vector<1x16xf32>
    %22 = vector.broadcast %21 : vector<1x16xf32> to vector<170x16xf32>
    %23 = arith.addf %18, %22 : vector<170x16xf32>
    %cst_13 = arith.constant 0.000000e+00 : f32
    %24 = vector.broadcast %cst_13 : f32 to vector<170x16xf32>
    %25 = arith.maximumf %23, %24 : vector<170x16xf32>
    %26 = arith.truncf %25 : vector<170x16xf32> to vector<170x16xbf16>
    %27 = vector.extract_strided_slice %26 {offsets = [0, 0], sizes = [128, 16], strides = [1, 1]} : vector<170x16xbf16> to vector<128x16xbf16>
    %28 = vector.extract_strided_slice %26 {offsets = [1, 0], sizes = [128, 16], strides = [1, 1]} : vector<170x16xbf16> to vector<128x16xbf16>
    %29 = vector.extract_strided_slice %26 {offsets = [2, 0], sizes = [128, 16], strides = [1, 1]} : vector<170x16xbf16> to vector<128x16xbf16>
    %30 = vector.extract_strided_slice %26 {offsets = [20, 0], sizes = [128, 16], strides = [1, 1]} : vector<170x16xbf16> to vector<128x16xbf16>
    %31 = vector.extract_strided_slice %26 {offsets = [21, 0], sizes = [128, 16], strides = [1, 1]} : vector<170x16xbf16> to vector<128x16xbf16>
    %32 = vector.extract_strided_slice %26 {offsets = [22, 0], sizes = [128, 16], strides = [1, 1]} : vector<170x16xbf16> to vector<128x16xbf16>
    %33 = vector.extract_strided_slice %26 {offsets = [40, 0], sizes = [128, 16], strides = [1, 1]} : vector<170x16xbf16> to vector<128x16xbf16>
    %34 = vector.extract_strided_slice %26 {offsets = [41, 0], sizes = [128, 16], strides = [1, 1]} : vector<170x16xbf16> to vector<128x16xbf16>
    %35 = vector.extract_strided_slice %26 {offsets = [42, 0], sizes = [128, 16], strides = [1, 1]} : vector<170x16xbf16> to vector<128x16xbf16>
    %36 = tpu.concatenate %27, %28, %29, %30, %31, %32, %33, %34, %35 in 1 : vector<128x16xbf16>, vector<128x16xbf16>, vector<128x16xbf16>, vector<128x16xbf16>, vector<128x16xbf16>, vector<128x16xbf16>, vector<128x16xbf16>, vector<128x16xbf16>, vector<128x16xbf16> -> vector<128x144xbf16>
    %c0_14 = arith.constant 0 : index
    %c0_15 = arith.constant 0 : index
    %37 = vector.load %arg7[%c0_14, %c0_15] : memref<144x16xbf16, #tpu.memory_space<vmem>>, vector<144x16xbf16>
    %cst_16 = arith.constant dense<0.000000e+00> : vector<128x16xf32>
    %38 = tpu.matmul %36, %37, %cst_16 {dimension_numbers = #tpu.dot_dimension_numbers<[1], [0], [0], [1], [0, 0, 1, 1], [], []>} : vector<128x144xbf16>, vector<144x16xbf16>, vector<128x16xf32> -> vector<128x16xf32>
    %c0_17 = arith.constant 0 : index
    %c0_18 = arith.constant 0 : index
    %39 = vector.load %arg8[%c0_17, %c0_18] : memref<1x16xf32, #tpu.memory_space<vmem>>, vector<1x16xf32>
    %40 = vector.shape_cast %39 : vector<1x16xf32> to vector<16xf32>
    %41 = vector.shape_cast %40 : vector<16xf32> to vector<1x16xf32>
    %42 = vector.broadcast %41 : vector<1x16xf32> to vector<128x16xf32>
    %43 = arith.addf %38, %42 : vector<128x16xf32>
    %cst_19 = arith.constant 1.000000e-01 : f32
    %44 = vector.broadcast %cst_19 : f32 to vector<128x16xf32>
    %45 = arith.mulf %43, %44 : vector<128x16xf32>
    %c0_20 = arith.constant 0 : index
    %c0_21 = arith.constant 0 : index
    %c0_22 = arith.constant 0 : index
    %46 = vector.load %arg2[%c0_20, %c0_21, %c0_22] : memref<1x128x16xbf16, #tpu.memory_space<vmem>>, vector<1x128x16xbf16>
    %47 = vector.shape_cast %46 : vector<1x128x16xbf16> to vector<128x16xbf16>
    %48 = arith.extf %47 : vector<128x16xbf16> to vector<128x16xf32>
    %49 = arith.addf %45, %48 : vector<128x16xf32>
    %c0_23 = arith.constant 0 : index
    %c0_24 = arith.constant 0 : index
    %50 = vector.load %arg4[%c0_23, %c0_24] : memref<128x1xf32, #tpu.memory_space<vmem>>, vector<128x1xf32>
    %51 = vector.broadcast %50 : vector<128x1xf32> to vector<128x16xf32>
    %52 = arith.mulf %49, %51 : vector<128x16xf32>
    %53 = arith.truncf %52 : vector<128x16xf32> to vector<128x16xbf16>
    %c0_25 = arith.constant 0 : index
    %c0_26 = arith.constant 0 : index
    %c0_27 = arith.constant 0 : index
    %54 = vector.load %arg9[%c0_25, %c0_26, %c0_27] : memref<1x128x16xbf16, #tpu.memory_space<vmem>>, vector<1x128x16xbf16>
    %55 = vector.shape_cast %54 : vector<1x128x16xbf16> to vector<128x16xbf16>
    %56 = vector.shape_cast %53 : vector<128x16xbf16> to vector<1x128x16xbf16>
    tpu.vector_store %arg9[%c0_25, %c0_26, %c0_27], %56 {strides = array<i32>} : memref<1x128x16xbf16, #tpu.memory_space<vmem>>, vector<1x128x16xbf16>,
    return
  }
  func.func @transform_0(%arg0: i32, %arg1: i32) -> (i32, i32, i32) {
    %c0_i32 = arith.constant 0 : i32
    %c0_i32_0 = arith.constant 0 : i32
    return %arg0, %arg1, %c0_i32 : i32, i32, i32
  }
  func.func @transform_1(%arg0: i32, %arg1: i32) -> (i32, i32, i32, i32) {
    %c0_i32 = arith.constant 0 : i32
    %c0_i32_0 = arith.constant 0 : i32
    %c0_i32_1 = arith.constant 0 : i32
    return %arg0, %arg1, %c0_i32, %c0_i32_0 : i32, i32, i32, i32
  }
  func.func @transform_2(%arg0: i32, %arg1: i32) -> (i32, i32) {
    %c0_i32 = arith.constant 0 : i32
    %c0_i32_0 = arith.constant 0 : i32
    return %arg1, %c0_i32 : i32, i32
  }
  func.func @transform_3(%arg0: i32, %arg1: i32) -> (i32, i32) {
    %c0_i32 = arith.constant 0 : i32
    %c0_i32_0 = arith.constant 0 : i32
    %c0_i32_1 = arith.constant 0 : i32
    return %c0_i32, %c0_i32_0 : i32, i32
  }
  func.func @transform_4(%arg0: i32, %arg1: i32) -> (i32, i32) {
    %c0_i32 = arith.constant 0 : i32
    %c0_i32_0 = arith.constant 0 : i32
    %c0_i32_1 = arith.constant 0 : i32
    return %c0_i32, %c0_i32_0 : i32, i32
  }
  func.func @transform_5(%arg0: i32, %arg1: i32) -> (i32, i32) {
    %c0_i32 = arith.constant 0 : i32
    %c0_i32_0 = arith.constant 0 : i32
    %c0_i32_1 = arith.constant 0 : i32
    return %c0_i32, %c0_i32_0 : i32, i32
  }
  func.func @transform_6(%arg0: i32, %arg1: i32) -> (i32, i32) {
    %c0_i32 = arith.constant 0 : i32
    %c0_i32_0 = arith.constant 0 : i32
    %c0_i32_1 = arith.constant 0 : i32
    return %c0_i32, %c0_i32_0 : i32, i32
  }
  func.func @transform_7(%arg0: i32, %arg1: i32) -> (i32, i32, i32) {
    %c0_i32 = arith.constant 0 : i32
    %c0_i32_0 = arith.constant 0 : i32
    return %arg0, %arg1, %c0_i32 : i32, i32, i32
  }
}

module attributes {stable_mosaic.version = 11 : i64} {
  func.func @_conv3x3_res_kernel(%arg0: i32, %arg1: i32, %arg2: memref<1x128x16xbf16, #tpu.memory_space<vmem>>, %arg3: memref<1x1x42x16xbf16, #tpu.memory_space<vmem>>, %arg4: memref<128x1xf32, #tpu.memory_space<vmem>>, %arg5: memref<1x128x16xbf16, #tpu.memory_space<vmem>>, %arg6: memref<144x16xbf16, #tpu.memory_space<vmem>>, %arg7: memref<1x16xf32, #tpu.memory_space<vmem>>, %arg8: memref<1x128x16xbf16, #tpu.memory_space<vmem>>) attributes {dimension_semantics = [#tpu.dimension_semantics<parallel>, #tpu.dimension_semantics<parallel>], iteration_bounds = array<i64: 4, 4>, scalar_prefetch = 0 : i64, scratch_operands = 0 : i64, tpu.core_type = #tpu.core_type<tc>, window_params = [{transform_indices = @transform_0, window_bounds = array<i64: 1, 128, 16>}, {transform_indices = @transform_1, window_bounds = array<i64: 1, 1, 42, 16>}, {transform_indices = @transform_2, window_bounds = array<i64: 128, 1>}, {transform_indices = @transform_3, window_bounds = array<i64: 1, 128, 16>}, {pipeline_mode = #tpu.pipeline_mode<synchronous>, transform_indices = @transform_4, window_bounds = array<i64: 144, 16>}, {pipeline_mode = #tpu.pipeline_mode<synchronous>, transform_indices = @transform_5, window_bounds = array<i64: 1, 16>}, {transform_indices = @transform_6, window_bounds = array<i64: 1, 128, 16>}]} {
    %c0 = arith.constant 0 : index
    %c0_0 = arith.constant 0 : index
    %c0_1 = arith.constant 0 : index
    %c0_2 = arith.constant 0 : index
    %0 = vector.load %arg3[%c0, %c0_0, %c0_1, %c0_2] : memref<1x1x42x16xbf16, #tpu.memory_space<vmem>>, vector<1x1x21x16xbf16>
    %1 = vector.shape_cast %0 : vector<1x1x21x16xbf16> to vector<21x16xbf16>
    %c0_3 = arith.constant 0 : index
    %c0_4 = arith.constant 0 : index
    %c0_5 = arith.constant 0 : index
    %2 = vector.load %arg2[%c0_3, %c0_4, %c0_5] : memref<1x128x16xbf16, #tpu.memory_space<vmem>>, vector<1x128x16xbf16>
    %3 = vector.shape_cast %2 : vector<1x128x16xbf16> to vector<128x16xbf16>
    %c0_6 = arith.constant 0 : index
    %c0_7 = arith.constant 0 : index
    %c21 = arith.constant 21 : index
    %c0_8 = arith.constant 0 : index
    %4 = vector.load %arg3[%c0_6, %c0_7, %c21, %c0_8] : memref<1x1x42x16xbf16, #tpu.memory_space<vmem>>, vector<1x1x21x16xbf16>
    %5 = vector.shape_cast %4 : vector<1x1x21x16xbf16> to vector<21x16xbf16>
    %6 = tpu.concatenate %1, %3, %5 in 0 : vector<21x16xbf16>, vector<128x16xbf16>, vector<21x16xbf16> -> vector<170x16xbf16>
    %7 = vector.extract_strided_slice %6 {offsets = [0, 0], sizes = [128, 16], strides = [1, 1]} : vector<170x16xbf16> to vector<128x16xbf16>
    %8 = vector.extract_strided_slice %6 {offsets = [1, 0], sizes = [128, 16], strides = [1, 1]} : vector<170x16xbf16> to vector<128x16xbf16>
    %9 = vector.extract_strided_slice %6 {offsets = [2, 0], sizes = [128, 16], strides = [1, 1]} : vector<170x16xbf16> to vector<128x16xbf16>
    %10 = vector.extract_strided_slice %6 {offsets = [20, 0], sizes = [128, 16], strides = [1, 1]} : vector<170x16xbf16> to vector<128x16xbf16>
    %11 = vector.extract_strided_slice %6 {offsets = [21, 0], sizes = [128, 16], strides = [1, 1]} : vector<170x16xbf16> to vector<128x16xbf16>
    %12 = vector.extract_strided_slice %6 {offsets = [22, 0], sizes = [128, 16], strides = [1, 1]} : vector<170x16xbf16> to vector<128x16xbf16>
    %13 = vector.extract_strided_slice %6 {offsets = [40, 0], sizes = [128, 16], strides = [1, 1]} : vector<170x16xbf16> to vector<128x16xbf16>
    %14 = vector.extract_strided_slice %6 {offsets = [41, 0], sizes = [128, 16], strides = [1, 1]} : vector<170x16xbf16> to vector<128x16xbf16>
    %15 = vector.extract_strided_slice %6 {offsets = [42, 0], sizes = [128, 16], strides = [1, 1]} : vector<170x16xbf16> to vector<128x16xbf16>
    %16 = tpu.concatenate %7, %8, %9, %10, %11, %12, %13, %14, %15 in 1 : vector<128x16xbf16>, vector<128x16xbf16>, vector<128x16xbf16>, vector<128x16xbf16>, vector<128x16xbf16>, vector<128x16xbf16>, vector<128x16xbf16>, vector<128x16xbf16>, vector<128x16xbf16> -> vector<128x144xbf16>
    %c0_9 = arith.constant 0 : index
    %c0_10 = arith.constant 0 : index
    %17 = vector.load %arg6[%c0_9, %c0_10] : memref<144x16xbf16, #tpu.memory_space<vmem>>, vector<144x16xbf16>
    %cst = arith.constant dense<0.000000e+00> : vector<128x16xf32>
    %18 = tpu.matmul %16, %17, %cst {dimension_numbers = #tpu.dot_dimension_numbers<[1], [0], [0], [1], [0, 0, 1, 1], [], []>} : vector<128x144xbf16>, vector<144x16xbf16>, vector<128x16xf32> -> vector<128x16xf32>
    %c0_11 = arith.constant 0 : index
    %c0_12 = arith.constant 0 : index
    %19 = vector.load %arg7[%c0_11, %c0_12] : memref<1x16xf32, #tpu.memory_space<vmem>>, vector<1x16xf32>
    %20 = vector.shape_cast %19 : vector<1x16xf32> to vector<16xf32>
    %21 = vector.shape_cast %20 : vector<16xf32> to vector<1x16xf32>
    %22 = vector.broadcast %21 : vector<1x16xf32> to vector<128x16xf32>
    %23 = arith.addf %18, %22 : vector<128x16xf32>
    %cst_13 = arith.constant 1.000000e+00 : f32
    %24 = vector.broadcast %cst_13 : f32 to vector<128x16xf32>
    %25 = arith.mulf %23, %24 : vector<128x16xf32>
    %c0_14 = arith.constant 0 : index
    %c0_15 = arith.constant 0 : index
    %c0_16 = arith.constant 0 : index
    %26 = vector.load %arg5[%c0_14, %c0_15, %c0_16] : memref<1x128x16xbf16, #tpu.memory_space<vmem>>, vector<1x128x16xbf16>
    %27 = vector.shape_cast %26 : vector<1x128x16xbf16> to vector<128x16xbf16>
    %28 = arith.extf %27 : vector<128x16xbf16> to vector<128x16xf32>
    %29 = arith.addf %25, %28 : vector<128x16xf32>
    %c0_17 = arith.constant 0 : index
    %c0_18 = arith.constant 0 : index
    %30 = vector.load %arg4[%c0_17, %c0_18] : memref<128x1xf32, #tpu.memory_space<vmem>>, vector<128x1xf32>
    %31 = vector.broadcast %30 : vector<128x1xf32> to vector<128x16xf32>
    %32 = arith.mulf %29, %31 : vector<128x16xf32>
    %33 = arith.truncf %32 : vector<128x16xf32> to vector<128x16xbf16>
    %c0_19 = arith.constant 0 : index
    %c0_20 = arith.constant 0 : index
    %c0_21 = arith.constant 0 : index
    %34 = vector.load %arg8[%c0_19, %c0_20, %c0_21] : memref<1x128x16xbf16, #tpu.memory_space<vmem>>, vector<1x128x16xbf16>
    %35 = vector.shape_cast %34 : vector<1x128x16xbf16> to vector<128x16xbf16>
    %36 = vector.shape_cast %33 : vector<128x16xbf16> to vector<1x128x16xbf16>
    tpu.vector_store %arg8[%c0_19, %c0_20, %c0_21], %36 {strides = array<i32>} : memref<1x128x16xbf16, #tpu.memory_space<vmem>>, vector<1x128x16xbf16>,
    return
  }
  func.func @transform_0(%arg0: i32, %arg1: i32) -> (i32, i32, i32) {
    %c0_i32 = arith.constant 0 : i32
    %c0_i32_0 = arith.constant 0 : i32
    return %arg0, %arg1, %c0_i32 : i32, i32, i32
  }
  func.func @transform_1(%arg0: i32, %arg1: i32) -> (i32, i32, i32, i32) {
    %c0_i32 = arith.constant 0 : i32
    %c0_i32_0 = arith.constant 0 : i32
    %c0_i32_1 = arith.constant 0 : i32
    return %arg0, %arg1, %c0_i32, %c0_i32_0 : i32, i32, i32, i32
  }
  func.func @transform_2(%arg0: i32, %arg1: i32) -> (i32, i32) {
    %c0_i32 = arith.constant 0 : i32
    %c0_i32_0 = arith.constant 0 : i32
    return %arg1, %c0_i32 : i32, i32
  }
  func.func @transform_3(%arg0: i32, %arg1: i32) -> (i32, i32, i32) {
    %c0_i32 = arith.constant 0 : i32
    %c0_i32_0 = arith.constant 0 : i32
    return %arg0, %arg1, %c0_i32 : i32, i32, i32
  }
  func.func @transform_4(%arg0: i32, %arg1: i32) -> (i32, i32) {
    %c0_i32 = arith.constant 0 : i32
    %c0_i32_0 = arith.constant 0 : i32
    %c0_i32_1 = arith.constant 0 : i32
    return %c0_i32, %c0_i32_0 : i32, i32
  }
  func.func @transform_5(%arg0: i32, %arg1: i32) -> (i32, i32) {
    %c0_i32 = arith.constant 0 : i32
    %c0_i32_0 = arith.constant 0 : i32
    %c0_i32_1 = arith.constant 0 : i32
    return %c0_i32, %c0_i32_0 : i32, i32
  }
  func.func @transform_6(%arg0: i32, %arg1: i32) -> (i32, i32, i32) {
    %c0_i32 = arith.constant 0 : i32
    %c0_i32_0 = arith.constant 0 : i32
    return %arg0, %arg1, %c0_i32 : i32, i32, i32
  }
}

module attributes {stable_mosaic.version = 11 : i64} {
  func.func @_conv3x3_kernel(%arg0: i32, %arg1: i32, %arg2: memref<1x128x16xbf16, #tpu.memory_space<vmem>>, %arg3: memref<1x1x42x16xbf16, #tpu.memory_space<vmem>>, %arg4: memref<128x1xf32, #tpu.memory_space<vmem>>, %arg5: memref<144x64xbf16, #tpu.memory_space<vmem>>, %arg6: memref<1x64xf32, #tpu.memory_space<vmem>>, %arg7: memref<1x128x64xbf16, #tpu.memory_space<vmem>>) attributes {dimension_semantics = [#tpu.dimension_semantics<parallel>, #tpu.dimension_semantics<parallel>], iteration_bounds = array<i64: 4, 4>, scalar_prefetch = 0 : i64, scratch_operands = 0 : i64, tpu.core_type = #tpu.core_type<tc>, window_params = [{transform_indices = @transform_0, window_bounds = array<i64: 1, 128, 16>}, {transform_indices = @transform_1, window_bounds = array<i64: 1, 1, 42, 16>}, {transform_indices = @transform_2, window_bounds = array<i64: 128, 1>}, {pipeline_mode = #tpu.pipeline_mode<synchronous>, transform_indices = @transform_3, window_bounds = array<i64: 144, 64>}, {pipeline_mode = #tpu.pipeline_mode<synchronous>, transform_indices = @transform_4, window_bounds = array<i64: 1, 64>}, {transform_indices = @transform_5, window_bounds = array<i64: 1, 128, 64>}]} {
    %c0 = arith.constant 0 : index
    %c0_0 = arith.constant 0 : index
    %c0_1 = arith.constant 0 : index
    %c0_2 = arith.constant 0 : index
    %0 = vector.load %arg3[%c0, %c0_0, %c0_1, %c0_2] : memref<1x1x42x16xbf16, #tpu.memory_space<vmem>>, vector<1x1x21x16xbf16>
    %1 = vector.shape_cast %0 : vector<1x1x21x16xbf16> to vector<21x16xbf16>
    %c0_3 = arith.constant 0 : index
    %c0_4 = arith.constant 0 : index
    %c0_5 = arith.constant 0 : index
    %2 = vector.load %arg2[%c0_3, %c0_4, %c0_5] : memref<1x128x16xbf16, #tpu.memory_space<vmem>>, vector<1x128x16xbf16>
    %3 = vector.shape_cast %2 : vector<1x128x16xbf16> to vector<128x16xbf16>
    %c0_6 = arith.constant 0 : index
    %c0_7 = arith.constant 0 : index
    %c21 = arith.constant 21 : index
    %c0_8 = arith.constant 0 : index
    %4 = vector.load %arg3[%c0_6, %c0_7, %c21, %c0_8] : memref<1x1x42x16xbf16, #tpu.memory_space<vmem>>, vector<1x1x21x16xbf16>
    %5 = vector.shape_cast %4 : vector<1x1x21x16xbf16> to vector<21x16xbf16>
    %6 = tpu.concatenate %1, %3, %5 in 0 : vector<21x16xbf16>, vector<128x16xbf16>, vector<21x16xbf16> -> vector<170x16xbf16>
    %7 = vector.extract_strided_slice %6 {offsets = [0, 0], sizes = [128, 16], strides = [1, 1]} : vector<170x16xbf16> to vector<128x16xbf16>
    %8 = vector.extract_strided_slice %6 {offsets = [1, 0], sizes = [128, 16], strides = [1, 1]} : vector<170x16xbf16> to vector<128x16xbf16>
    %9 = vector.extract_strided_slice %6 {offsets = [2, 0], sizes = [128, 16], strides = [1, 1]} : vector<170x16xbf16> to vector<128x16xbf16>
    %10 = vector.extract_strided_slice %6 {offsets = [20, 0], sizes = [128, 16], strides = [1, 1]} : vector<170x16xbf16> to vector<128x16xbf16>
    %11 = vector.extract_strided_slice %6 {offsets = [21, 0], sizes = [128, 16], strides = [1, 1]} : vector<170x16xbf16> to vector<128x16xbf16>
    %12 = vector.extract_strided_slice %6 {offsets = [22, 0], sizes = [128, 16], strides = [1, 1]} : vector<170x16xbf16> to vector<128x16xbf16>
    %13 = vector.extract_strided_slice %6 {offsets = [40, 0], sizes = [128, 16], strides = [1, 1]} : vector<170x16xbf16> to vector<128x16xbf16>
    %14 = vector.extract_strided_slice %6 {offsets = [41, 0], sizes = [128, 16], strides = [1, 1]} : vector<170x16xbf16> to vector<128x16xbf16>
    %15 = vector.extract_strided_slice %6 {offsets = [42, 0], sizes = [128, 16], strides = [1, 1]} : vector<170x16xbf16> to vector<128x16xbf16>
    %16 = tpu.concatenate %7, %8, %9, %10, %11, %12, %13, %14, %15 in 1 : vector<128x16xbf16>, vector<128x16xbf16>, vector<128x16xbf16>, vector<128x16xbf16>, vector<128x16xbf16>, vector<128x16xbf16>, vector<128x16xbf16>, vector<128x16xbf16>, vector<128x16xbf16> -> vector<128x144xbf16>
    %c0_9 = arith.constant 0 : index
    %c0_10 = arith.constant 0 : index
    %17 = vector.load %arg5[%c0_9, %c0_10] : memref<144x64xbf16, #tpu.memory_space<vmem>>, vector<144x64xbf16>
    %cst = arith.constant dense<0.000000e+00> : vector<128x64xf32>
    %18 = tpu.matmul %16, %17, %cst {dimension_numbers = #tpu.dot_dimension_numbers<[1], [0], [0], [1], [0, 0, 1, 1], [], []>} : vector<128x144xbf16>, vector<144x64xbf16>, vector<128x64xf32> -> vector<128x64xf32>
    %c0_11 = arith.constant 0 : index
    %c0_12 = arith.constant 0 : index
    %19 = vector.load %arg6[%c0_11, %c0_12] : memref<1x64xf32, #tpu.memory_space<vmem>>, vector<1x64xf32>
    %20 = vector.shape_cast %19 : vector<1x64xf32> to vector<64xf32>
    %21 = vector.shape_cast %20 : vector<64xf32> to vector<1x64xf32>
    %22 = vector.broadcast %21 : vector<1x64xf32> to vector<128x64xf32>
    %23 = arith.addf %18, %22 : vector<128x64xf32>
    %c0_13 = arith.constant 0 : index
    %c0_14 = arith.constant 0 : index
    %24 = vector.load %arg4[%c0_13, %c0_14] : memref<128x1xf32, #tpu.memory_space<vmem>>, vector<128x1xf32>
    %25 = vector.broadcast %24 : vector<128x1xf32> to vector<128x64xf32>
    %26 = arith.mulf %23, %25 : vector<128x64xf32>
    %27 = arith.truncf %26 : vector<128x64xf32> to vector<128x64xbf16>
    %c0_15 = arith.constant 0 : index
    %c0_16 = arith.constant 0 : index
    %c0_17 = arith.constant 0 : index
    %28 = vector.load %arg7[%c0_15, %c0_16, %c0_17] : memref<1x128x64xbf16, #tpu.memory_space<vmem>>, vector<1x128x64xbf16>
    %29 = vector.shape_cast %28 : vector<1x128x64xbf16> to vector<128x64xbf16>
    %30 = vector.shape_cast %27 : vector<128x64xbf16> to vector<1x128x64xbf16>
    tpu.vector_store %arg7[%c0_15, %c0_16, %c0_17], %30 {strides = array<i32>} : memref<1x128x64xbf16, #tpu.memory_space<vmem>>, vector<1x128x64xbf16>,
    return
  }
  func.func @transform_0(%arg0: i32, %arg1: i32) -> (i32, i32, i32) {
    %c0_i32 = arith.constant 0 : i32
    %c0_i32_0 = arith.constant 0 : i32
    return %arg0, %arg1, %c0_i32 : i32, i32, i32
  }
  func.func @transform_1(%arg0: i32, %arg1: i32) -> (i32, i32, i32, i32) {
    %c0_i32 = arith.constant 0 : i32
    %c0_i32_0 = arith.constant 0 : i32
    %c0_i32_1 = arith.constant 0 : i32
    return %arg0, %arg1, %c0_i32, %c0_i32_0 : i32, i32, i32, i32
  }
  func.func @transform_2(%arg0: i32, %arg1: i32) -> (i32, i32) {
    %c0_i32 = arith.constant 0 : i32
    %c0_i32_0 = arith.constant 0 : i32
    return %arg1, %c0_i32 : i32, i32
  }
  func.func @transform_3(%arg0: i32, %arg1: i32) -> (i32, i32) {
    %c0_i32 = arith.constant 0 : i32
    %c0_i32_0 = arith.constant 0 : i32
    %c0_i32_1 = arith.constant 0 : i32
    return %c0_i32, %c0_i32_0 : i32, i32
  }
  func.func @transform_4(%arg0: i32, %arg1: i32) -> (i32, i32) {
    %c0_i32 = arith.constant 0 : i32
    %c0_i32_0 = arith.constant 0 : i32
    %c0_i32_1 = arith.constant 0 : i32
    return %c0_i32, %c0_i32_0 : i32, i32
  }
  func.func @transform_5(%arg0: i32, %arg1: i32) -> (i32, i32, i32) {
    %c0_i32 = arith.constant 0 : i32
    %c0_i32_0 = arith.constant 0 : i32
    return %arg0, %arg1, %c0_i32 : i32, i32, i32
  }
}

module attributes {stable_mosaic.version = 11 : i64} {
  func.func @_conv3x3_kernel(%arg0: i32, %arg1: i32, %arg2: memref<1x128x16xbf16, #tpu.memory_space<vmem>>, %arg3: memref<1x1x74x16xbf16, #tpu.memory_space<vmem>>, %arg4: memref<128x1xf32, #tpu.memory_space<vmem>>, %arg5: memref<144x4xbf16, #tpu.memory_space<vmem>>, %arg6: memref<1x4xf32, #tpu.memory_space<vmem>>, %arg7: memref<1x128x4xbf16, #tpu.memory_space<vmem>>) attributes {dimension_semantics = [#tpu.dimension_semantics<parallel>, #tpu.dimension_semantics<parallel>], iteration_bounds = array<i64: 4, 11>, scalar_prefetch = 0 : i64, scratch_operands = 0 : i64, tpu.core_type = #tpu.core_type<tc>, window_params = [{transform_indices = @transform_0, window_bounds = array<i64: 1, 128, 16>}, {transform_indices = @transform_1, window_bounds = array<i64: 1, 1, 74, 16>}, {transform_indices = @transform_2, window_bounds = array<i64: 128, 1>}, {pipeline_mode = #tpu.pipeline_mode<synchronous>, transform_indices = @transform_3, window_bounds = array<i64: 144, 4>}, {pipeline_mode = #tpu.pipeline_mode<synchronous>, transform_indices = @transform_4, window_bounds = array<i64: 1, 4>}, {transform_indices = @transform_5, window_bounds = array<i64: 1, 128, 4>}]} {
    %c0 = arith.constant 0 : index
    %c0_0 = arith.constant 0 : index
    %c0_1 = arith.constant 0 : index
    %c0_2 = arith.constant 0 : index
    %0 = vector.load %arg3[%c0, %c0_0, %c0_1, %c0_2] : memref<1x1x74x16xbf16, #tpu.memory_space<vmem>>, vector<1x1x37x16xbf16>
    %1 = vector.shape_cast %0 : vector<1x1x37x16xbf16> to vector<37x16xbf16>
    %c0_3 = arith.constant 0 : index
    %c0_4 = arith.constant 0 : index
    %c0_5 = arith.constant 0 : index
    %2 = vector.load %arg2[%c0_3, %c0_4, %c0_5] : memref<1x128x16xbf16, #tpu.memory_space<vmem>>, vector<1x128x16xbf16>
    %3 = vector.shape_cast %2 : vector<1x128x16xbf16> to vector<128x16xbf16>
    %c0_6 = arith.constant 0 : index
    %c0_7 = arith.constant 0 : index
    %c37 = arith.constant 37 : index
    %c0_8 = arith.constant 0 : index
    %4 = vector.load %arg3[%c0_6, %c0_7, %c37, %c0_8] : memref<1x1x74x16xbf16, #tpu.memory_space<vmem>>, vector<1x1x37x16xbf16>
    %5 = vector.shape_cast %4 : vector<1x1x37x16xbf16> to vector<37x16xbf16>
    %6 = tpu.concatenate %1, %3, %5 in 0 : vector<37x16xbf16>, vector<128x16xbf16>, vector<37x16xbf16> -> vector<202x16xbf16>
    %7 = vector.extract_strided_slice %6 {offsets = [0, 0], sizes = [128, 16], strides = [1, 1]} : vector<202x16xbf16> to vector<128x16xbf16>
    %8 = vector.extract_strided_slice %6 {offsets = [1, 0], sizes = [128, 16], strides = [1, 1]} : vector<202x16xbf16> to vector<128x16xbf16>
    %9 = vector.extract_strided_slice %6 {offsets = [2, 0], sizes = [128, 16], strides = [1, 1]} : vector<202x16xbf16> to vector<128x16xbf16>
    %10 = vector.extract_strided_slice %6 {offsets = [36, 0], sizes = [128, 16], strides = [1, 1]} : vector<202x16xbf16> to vector<128x16xbf16>
    %11 = vector.extract_strided_slice %6 {offsets = [37, 0], sizes = [128, 16], strides = [1, 1]} : vector<202x16xbf16> to vector<128x16xbf16>
    %12 = vector.extract_strided_slice %6 {offsets = [38, 0], sizes = [128, 16], strides = [1, 1]} : vector<202x16xbf16> to vector<128x16xbf16>
    %13 = vector.extract_strided_slice %6 {offsets = [72, 0], sizes = [128, 16], strides = [1, 1]} : vector<202x16xbf16> to vector<128x16xbf16>
    %14 = vector.extract_strided_slice %6 {offsets = [73, 0], sizes = [128, 16], strides = [1, 1]} : vector<202x16xbf16> to vector<128x16xbf16>
    %15 = vector.extract_strided_slice %6 {offsets = [74, 0], sizes = [128, 16], strides = [1, 1]} : vector<202x16xbf16> to vector<128x16xbf16>
    %16 = tpu.concatenate %7, %8, %9, %10, %11, %12, %13, %14, %15 in 1 : vector<128x16xbf16>, vector<128x16xbf16>, vector<128x16xbf16>, vector<128x16xbf16>, vector<128x16xbf16>, vector<128x16xbf16>, vector<128x16xbf16>, vector<128x16xbf16>, vector<128x16xbf16> -> vector<128x144xbf16>
    %c0_9 = arith.constant 0 : index
    %c0_10 = arith.constant 0 : index
    %17 = vector.load %arg5[%c0_9, %c0_10] : memref<144x4xbf16, #tpu.memory_space<vmem>>, vector<144x4xbf16>
    %cst = arith.constant dense<0.000000e+00> : vector<128x4xf32>
    %18 = tpu.matmul %16, %17, %cst {dimension_numbers = #tpu.dot_dimension_numbers<[1], [0], [0], [1], [0, 0, 1, 1], [], []>} : vector<128x144xbf16>, vector<144x4xbf16>, vector<128x4xf32> -> vector<128x4xf32>
    %c0_11 = arith.constant 0 : index
    %c0_12 = arith.constant 0 : index
    %19 = vector.load %arg6[%c0_11, %c0_12] : memref<1x4xf32, #tpu.memory_space<vmem>>, vector<1x4xf32>
    %20 = vector.shape_cast %19 : vector<1x4xf32> to vector<4xf32>
    %21 = vector.shape_cast %20 : vector<4xf32> to vector<1x4xf32>
    %22 = vector.broadcast %21 : vector<1x4xf32> to vector<128x4xf32>
    %23 = arith.addf %18, %22 : vector<128x4xf32>
    %c0_13 = arith.constant 0 : index
    %c0_14 = arith.constant 0 : index
    %24 = vector.load %arg4[%c0_13, %c0_14] : memref<128x1xf32, #tpu.memory_space<vmem>>, vector<128x1xf32>
    %25 = vector.broadcast %24 : vector<128x1xf32> to vector<128x4xf32>
    %26 = arith.mulf %23, %25 : vector<128x4xf32>
    %27 = arith.truncf %26 : vector<128x4xf32> to vector<128x4xbf16>
    %c0_15 = arith.constant 0 : index
    %c0_16 = arith.constant 0 : index
    %c0_17 = arith.constant 0 : index
    %28 = vector.load %arg7[%c0_15, %c0_16, %c0_17] : memref<1x128x4xbf16, #tpu.memory_space<vmem>>, vector<1x128x4xbf16>
    %29 = vector.shape_cast %28 : vector<1x128x4xbf16> to vector<128x4xbf16>
    %30 = vector.shape_cast %27 : vector<128x4xbf16> to vector<1x128x4xbf16>
    tpu.vector_store %arg7[%c0_15, %c0_16, %c0_17], %30 {strides = array<i32>} : memref<1x128x4xbf16, #tpu.memory_space<vmem>>, vector<1x128x4xbf16>,
    return
  }
  func.func @transform_0(%arg0: i32, %arg1: i32) -> (i32, i32, i32) {
    %c0_i32 = arith.constant 0 : i32
    %c0_i32_0 = arith.constant 0 : i32
    return %arg0, %arg1, %c0_i32 : i32, i32, i32
  }
  func.func @transform_1(%arg0: i32, %arg1: i32) -> (i32, i32, i32, i32) {
    %c0_i32 = arith.constant 0 : i32
    %c0_i32_0 = arith.constant 0 : i32
    %c0_i32_1 = arith.constant 0 : i32
    return %arg0, %arg1, %c0_i32, %c0_i32_0 : i32, i32, i32, i32
  }
  func.func @transform_2(%arg0: i32, %arg1: i32) -> (i32, i32) {
    %c0_i32 = arith.constant 0 : i32
    %c0_i32_0 = arith.constant 0 : i32
    return %arg1, %c0_i32 : i32, i32
  }
  func.func @transform_3(%arg0: i32, %arg1: i32) -> (i32, i32) {
    %c0_i32 = arith.constant 0 : i32
    %c0_i32_0 = arith.constant 0 : i32
    %c0_i32_1 = arith.constant 0 : i32
    return %c0_i32, %c0_i32_0 : i32, i32
  }
  func.func @transform_4(%arg0: i32, %arg1: i32) -> (i32, i32) {
    %c0_i32 = arith.constant 0 : i32
    %c0_i32_0 = arith.constant 0 : i32
    %c0_i32_1 = arith.constant 0 : i32
    return %c0_i32, %c0_i32_0 : i32, i32
  }
  func.func @transform_5(%arg0: i32, %arg1: i32) -> (i32, i32, i32) {
    %c0_i32 = arith.constant 0 : i32
    %c0_i32_0 = arith.constant 0 : i32
    return %arg0, %arg1, %c0_i32 : i32, i32, i32
  }
}

</mosaic_0001>

<llo_original>
// kernel: edsr_forward.6
$region0: #{edsr_forward.6}
  #allocation0 [shape = 'u32[]', space=smem, size = 0x4, offset = 0x4, fixed_abs, tag = 'smem constant byte address 0x4 - core index']
  #allocation1 [shape = 'u32[144,128]{1,0:T(1,128)}', space=vmem, size = 0x12000, scoped, tag = 'internal scratch']
  %s0 = inlined_call_operand.vmem [shape: bf16[4,512,4], index: 0, kind: input, shape index: {}]
  %s1 = inlined_call_operand.vmem [shape: bf16[4,4,42,4], index: 1, kind: input, shape index: {}]
  %s2 = inlined_call_operand.vmem [shape: f32[512,1], index: 2, kind: input, shape index: {}]
  %s3 = inlined_call_operand.vmem [shape: bf16[36,16], index: 3, kind: input, shape index: {}]
  %s4 = inlined_call_operand.vmem [shape: f32[1,16], index: 4, kind: input, shape index: {}]
  %s5 = inlined_call_operand.vmem [shape: bf16[4,512,16], index: 5, kind: output, shape index: {}]
  %s6 = sld [smem:[#allocation0]]
  $region53: #{edsr_forward.6} parent=0
    _
  %s8 = ssub.s32 1, %s6
  %s9 = scalar_select 0, %s8, %s6
  loop: start=0, step=1, limit=18
  $region2: #{edsr_forward.6} parent=0 // loop_pre_header
    _
  $region3: #{edsr_forward.6} parent=0 // loop_header
    %s11 = sphi 0, %s15
    %p12 = scmp.ge.s32.totalorder %s11, 18
    %s18 = sphi 0, %s30
    %s19 = sphi 0, %s26
    %s20 = sphi 0, %s18
    %s21 = sphi 0, %s19
    %s22 = sphi 0, %s20
    %s23 = sphi 0, %s21
    %s35 = sphi 0, %s37
    %s38 = sphi 0, %s35
    %s39 = sphi 0, %s38
    %s55 = sphi 0, %s39
    %s63 = sphi 0, %s65
    %s66 = sphi 0, %s63
    %s67 = sphi 0, %s66
    %s83 = sphi 0, %s67
    %s89 = sphi 0, %s91
    %s92 = sphi 0, %s89
    %s93 = sphi 0, %s92
    %s109 = sphi 0, %s93
    %s113 = sphi 0, %s113
    %s115 = sphi 0, %s113
    %s116 = sphi 0, %s115
    %s130 = sphi 0, %s116
    %s134 = sphi 0, %s134
    %s136 = sphi 0, %s134
    %s137 = sphi 0, %s136
    %s151 = sphi 0, %s137
    %s159 = sphi 0, %s161
    %s162 = sphi 0, %s159
    %s163 = sphi 0, %s162
    %s179 = sphi 0, %s163
  $region4: #{edsr_forward.6} parent=0 // loop_header_branch
    %14 = sbr.rel (%p12) target = $region8
  $region5: #{edsr_forward.6} parent=0 // loop_body
    %s16 = ssub.s32 %s11, 1
    %s17 = ssub.s32 %s11, 2
    %s24 = sadd.s32 1, %s19
    %p25 = scmp.ge.s32.totalorder %s24, 4
    %s26 = scalar_select %p25, 0, %s24
    %s27 = sadd.s32 1, %s18
    %s28 = scalar_select %p25, %s27, %s18
    %p29 = scmp.ge.s32.totalorder %s28, 4
    %s30 = scalar_select %p29, 0, %s28
    %s31 = ssub.s32 %s18, %s30
    %s32 = ssub.s32 %s19, %s26
    %s33 = sor.u32 %s31, %s32
    %p34 = scmp.eq.s32.totalorder %s33, 0
    %s36 = sadd.s32 %s35, 1
    %s37 = scalar_select %p34, %s35, %s36
    %p40 = pneg %p34
    %p41 = scmp.eq.s32.totalorder %s11, 15
    %p42 = por %p40, %p41
    %p43 = scmp.ne.s32.totalorder %s35, %s38
    %p44 = scmp.eq.s32.totalorder %s11, 0
    %p45 = por %p43, %p44
    %p46 = scmp.ne.s32.totalorder %s35, %s38
    %p47 = scmp.eq.s32.totalorder %s16, 15
    %p48 = por %p46, %p47
    %p49 = scmp.ne.s32.totalorder %s38, %s39
    %p50 = scmp.eq.s32.totalorder %s16, 0
    %p51 = por %p49, %p50
    %p52 = scmp.ne.s32.totalorder %s38, %s39
    %p53 = scmp.eq.s32.totalorder %s17, 15
    %p54 = por %p52, %p53
    %p56 = scmp.ne.s32.totalorder %s39, %s55
    %p57 = scmp.eq.s32.totalorder %s17, 0
    %p58 = por %p56, %p57
    %s59 = ssub.s32 %s18, %s30
    %s60 = ssub.s32 %s19, %s26
    %s61 = sor.u32 %s59, %s60
    %p62 = scmp.eq.s32.totalorder %s61, 0
    %s64 = sadd.s32 %s63, 1
    %s65 = scalar_select %p62, %s63, %s64
    %p68 = pneg %p62
    %p69 = scmp.eq.s32.totalorder %s11, 15
    %p70 = por %p68, %p69
    %p71 = scmp.ne.s32.totalorder %s63, %s66
    %p72 = scmp.eq.s32.totalorder %s11, 0
    %p73 = por %p71, %p72
    %p74 = scmp.ne.s32.totalorder %s63, %s66
    %p75 = scmp.eq.s32.totalorder %s16, 15
    %p76 = por %p74, %p75
    %p77 = scmp.ne.s32.totalorder %s66, %s67
    %p78 = scmp.eq.s32.totalorder %s16, 0
    %p79 = por %p77, %p78
    %p80 = scmp.ne.s32.totalorder %s66, %s67
    %p81 = scmp.eq.s32.totalorder %s17, 15
    %p82 = por %p80, %p81
    %p84 = scmp.ne.s32.totalorder %s67, %s83
    %p85 = scmp.eq.s32.totalorder %s17, 0
    %p86 = por %p84, %p85
    %s87 = ssub.s32 %s19, %s26
    %p88 = scmp.eq.s32.totalorder %s87, 0
    %s90 = sadd.s32 %s89, 1
    %s91 = scalar_select %p88, %s89, %s90
    %p94 = pneg %p88
    %p95 = scmp.eq.s32.totalorder %s11, 15
    %p96 = por %p94, %p95
    %p97 = scmp.ne.s32.totalorder %s89, %s92
    %p98 = scmp.eq.s32.totalorder %s11, 0
    %p99 = por %p97, %p98
    %p100 = scmp.ne.s32.totalorder %s89, %s92
    %p101 = scmp.eq.s32.totalorder %s16, 15
    %p102 = por %p100, %p101
    %p103 = scmp.ne.s32.totalorder %s92, %s93
    %p104 = scmp.eq.s32.totalorder %s16, 0
    %p105 = por %p103, %p104
    %p106 = scmp.ne.s32.totalorder %s92, %s93
    %p107 = scmp.eq.s32.totalorder %s17, 15
    %p108 = por %p106, %p107
    %p110 = scmp.ne.s32.totalorder %s93, %s109
    %p111 = scmp.eq.s32.totalorder %s17, 0
    %p112 = por %p110, %p111
    %s114 = sadd.s32 %s113, 1
    %p117 = scmp.eq.s32.totalorder %s11, 15
    %p118 = scmp.ne.s32.totalorder %s113, %s115
    %p119 = scmp.eq.s32.totalorder %s11, 0
    %p120 = por %p118, %p119
    %p121 = scmp.ne.s32.totalorder %s113, %s115
    %p122 = scmp.eq.s32.totalorder %s16, 15
    %p123 = por %p121, %p122
    %p124 = scmp.ne.s32.totalorder %s115, %s116
    %p125 = scmp.eq.s32.totalorder %s16, 0
    %p126 = por %p124, %p125
    %p127 = scmp.ne.s32.totalorder %s115, %s116
    %p128 = scmp.eq.s32.totalorder %s17, 15
    %p129 = por %p127, %p128
    %p131 = scmp.ne.s32.totalorder %s116, %s130
    %p132 = scmp.eq.s32.totalorder %s17, 0
    %p133 = por %p131, %p132
    %s135 = sadd.s32 %s134, 1
    %p138 = scmp.eq.s32.totalorder %s11, 15
    %p139 = scmp.ne.s32.totalorder %s134, %s136
    %p140 = scmp.eq.s32.totalorder %s11, 0
    %p141 = por %p139, %p140
    %p142 = scmp.ne.s32.totalorder %s134, %s136
    %p143 = scmp.eq.s32.totalorder %s16, 15
    %p144 = por %p142, %p143
    %p145 = scmp.ne.s32.totalorder %s136, %s137
    %p146 = scmp.eq.s32.totalorder %s16, 0
    %p147 = por %p145, %p146
    %p148 = scmp.ne.s32.totalorder %s136, %s137
    %p149 = scmp.eq.s32.totalorder %s17, 15
    %p150 = por %p148, %p149
    %p152 = scmp.ne.s32.totalorder %s137, %s151
    %p153 = scmp.eq.s32.totalorder %s17, 0
    %p154 = por %p152, %p153
    %s155 = ssub.s32 %s18, %s30
    %s156 = ssub.s32 %s19, %s26
    %s157 = sor.u32 %s155, %s156
    %p158 = scmp.eq.s32.totalorder %s157, 0
    %s160 = sadd.s32 %s159, 1
    %s161 = scalar_select %p158, %s159, %s160
    %p164 = pneg %p158
    %p165 = scmp.eq.s32.totalorder %s11, 15
    %p166 = por %p164, %p165
    %p167 = scmp.ne.s32.totalorder %s159, %s162
    %p168 = scmp.eq.s32.totalorder %s11, 0
    %p169 = por %p167, %p168
    %p170 = scmp.ne.s32.totalorder %s159, %s162
    %p171 = scmp.eq.s32.totalorder %s16, 15
    %p172 = por %p170, %p171
    %p173 = scmp.ne.s32.totalorder %s162, %s163
    %p174 = scmp.eq.s32.totalorder %s16, 0
    %p175 = por %p173, %p174
    %p176 = scmp.ne.s32.totalorder %s162, %s163
    %p177 = scmp.eq.s32.totalorder %s17, 15
    %p178 = por %p176, %p177
    %p180 = scmp.ne.s32.totalorder %s163, %s179
    %p181 = scmp.eq.s32.totalorder %s17, 0
    %p182 = por %p180, %p181
    %p183 = scmp.le.s32.totalorder 1, %s11
    %p184 = scmp.lt.s32.totalorder %s11, 17
    %p185 = pnand %p183, %p184
    %p186 = pneg %p185
    // Predicated region
    $region9: #{edsr_forward.6} parent=5 // pred_check
      _
    $region10: #{edsr_forward.6} parent=5 // pred_check_branch
      %188 = sbr.rel (%p185) target = $region12
    $region11: #{edsr_forward.6} parent=5 // pred_region
      %s189 = ssub.s32 %s11, 1
      // Predicated region
      $region13: #{edsr_forward.6} parent=11 // pred_check
        %p190 = pneg %p126
      $region14: #{edsr_forward.6} parent=11 // pred_check_branch
        %192 = sbr.rel (%p190) target = $region16
      $region15: #{edsr_forward.6} parent=11 // pred_region
        _
      $region16: #{edsr_forward.6} parent=11 // pred_fallthru
        _
      // Predicated region
      $region17: #{edsr_forward.6} parent=11 // pred_check
        %p193 = pneg %p147
      $region18: #{edsr_forward.6} parent=11 // pred_check_branch
        %195 = sbr.rel (%p193) target = $region20
      $region19: #{edsr_forward.6} parent=11 // pred_region
        _
      $region20: #{edsr_forward.6} parent=11 // pred_fallthru
        _
    $region12: #{edsr_forward.6} parent=5 // pred_fallthru
      _
    %p196 = scmp.lt.s32.totalorder %s11, 16
    // Predicated region
    $region21: #{edsr_forward.6} parent=5 // pred_check
      %p197 = pneg %p196
    $region22: #{edsr_forward.6} parent=5 // pred_check_branch
      %199 = sbr.rel (%p197) target = $region24
    $region23: #{edsr_forward.6} parent=5 // pred_region
      // Predicated region
      $region25: #{edsr_forward.6} parent=23 // pred_check
        %p200 = pneg %p45
      $region26: #{edsr_forward.6} parent=23 // pred_check_branch
        %202 = sbr.rel (%p200) target = $region28
      $region27: #{edsr_forward.6} parent=23 // pred_region
        %s203 = smul.u32 16, %s19
        %p204 = scmp.lt.s32.totalorder %s18, 3
        %s205 = scalar_select %p204, %s18, 3
        %p206 = scmp.lt.s32.totalorder %s203, 63
        %s207 = scalar_select %p206, %s203, 63
        %s208 = smul.addr %s205, 64
        %s209 = sadd.s32 %s207, %s208
        %s210 = smul.addr %s209, 4
        %s211 = scalar_lea.vmem %s0, %s210
        %s212 = smul.u32 16, %s19
      $region28: #{edsr_forward.6} parent=23 // pred_fallthru
        _
      // Predicated region
      $region29: #{edsr_forward.6} parent=23 // pred_check
        %p213 = pneg %p73
      $region30: #{edsr_forward.6} parent=23 // pred_check_branch
        %215 = sbr.rel (%p213) target = $region32
      $region31: #{edsr_forward.6} parent=23 // pred_region
        %p216 = scmp.lt.s32.totalorder %s18, 3
        %s217 = scalar_select %p216, %s18, 3
        %p218 = scmp.lt.s32.totalorder %s19, 3
        %s219 = scalar_select %p218, %s19, 3
        %s220 = smul.addr %s219, 6
        %s221 = smul.addr %s217, 24
        %s222 = sadd.s32 %s220, %s221
        %s223 = smul.addr %s222, 4
        %s224 = scalar_lea.vmem %s1, %s223
      $region32: #{edsr_forward.6} parent=23 // pred_fallthru
        _
      // Predicated region
      $region33: #{edsr_forward.6} parent=23 // pred_check
        %p225 = pneg %p99
      $region34: #{edsr_forward.6} parent=23 // pred_check_branch
        %227 = sbr.rel (%p225) target = $region36
      $region35: #{edsr_forward.6} parent=23 // pred_region
        %s228 = smul.u32 16, %s19
        %p229 = scmp.lt.s32.totalorder %s228, 63
        %s230 = scalar_select %p229, %s228, 63
        %s231 = smul.addr %s230, 8
        %s232 = scalar_lea.vmem %s2, %s231
        %s233 = smul.u32 16, %s19
      $region36: #{edsr_forward.6} parent=23 // pred_fallthru
        _
    $region24: #{edsr_forward.6} parent=5 // pred_fallthru
      _
    %p234 = scmp.le.s32.totalorder 1, %s11
    %p235 = scmp.lt.s32.totalorder %s11, 17
    %p236 = pnand %p234, %p235
    %p237 = pneg %p236
    // Predicated region
    $region37: #{edsr_forward.6} parent=5 // pred_check
      _
    $region38: #{edsr_forward.6} parent=5 // pred_check_branch
      %239 = sbr.rel (%p236) target = $region40
    $region39: #{edsr_forward.6} parent=5 // pred_region
      %s240 = ssub.s32 %s11, 1
      %s241 = smul.u32 16, %s21
      %p242 = scmp.lt.s32.totalorder %s20, 3
      %s243 = scalar_select %p242, %s20, 3
      %p244 = scmp.lt.s32.totalorder %s241, 63
      %s245 = scalar_select %p244, %s241, 63
      %s246 = smul.addr %s243, 64
      %s247 = sadd.s32 %s245, %s246
      %s248 = smul.addr %s247, 4
      %s249 = scalar_lea.vmem %s0, %s248
      %p250 = pneg %p51
      %p251 = pneg %p48
      %p252 = scmp.lt.s32.totalorder %s20, 3
      %s253 = scalar_select %p252, %s20, 3
      %p254 = scmp.lt.s32.totalorder %s21, 3
      %s255 = scalar_select %p254, %s21, 3
      %s256 = smul.addr %s255, 6
      %s257 = smul.addr %s253, 24
      %s258 = sadd.s32 %s256, %s257
      %s259 = smul.addr %s258, 4
      %s260 = scalar_lea.vmem %s1, %s259
      %p261 = pneg %p79
      %p262 = pneg %p76
      %s263 = smul.u32 16, %s21
      %p264 = scmp.lt.s32.totalorder %s263, 63
      %s265 = scalar_select %p264, %s263, 63
      %s266 = smul.addr %s265, 8
      %s267 = scalar_lea.vmem %s2, %s266
      %p268 = pneg %p105
      %p269 = pneg %p102
      %p270 = pneg %p126
      %p271 = pneg %p123
      %p272 = pneg %p147
      %p273 = pneg %p144
      %p274 = pneg %p175
      %p275 = pneg %p172
      %s276 = smul.u32 16, %s21
      %p277 = scmp.lt.s32.totalorder %s20, 3
      %s278 = scalar_select %p277, %s20, 3
      %p279 = scmp.lt.s32.totalorder %s276, 63
      %s280 = scalar_select %p279, %s276, 63
      %s281 = smul.addr %s278, 64
      %s282 = sadd.s32 %s280, %s281
      %s283 = smul.addr %s282, 4
      %s284 = scalar_lea.vmem %s5, %s283
      %s285 = smul.u32 16, %s21
      %p286 = scmp.lt.s32.totalorder %s20, 3
      %s287 = scalar_select %p286, %s20, 3
      %p288 = scmp.lt.s32.totalorder %s285, 63
      %s289 = scalar_select %p288, %s285, 63
      %s290 = smul.addr %s287, 64
      %s291 = sadd.s32 %s289, %s290
      %s292 = smul.addr %s291, 4
      %s293 = scalar_lea.vmem %s0, %s292
      %s294 = smul.u32 16, %s21
      %p295 = scmp.lt.s32.totalorder %s20, 3
      %s296 = scalar_select %p295, %s20, 3
      %p297 = scmp.lt.s32.totalorder %s21, 3
      %s298 = scalar_select %p297, %s21, 3
      %s299 = smul.addr %s298, 6
      %s300 = smul.addr %s296, 24
      %s301 = sadd.s32 %s299, %s300
      %s302 = smul.addr %s301, 4
      %s303 = scalar_lea.vmem %s1, %s302
      %s304 = smul.u32 16, %s21
      %p305 = scmp.lt.s32.totalorder %s304, 63
      %s306 = scalar_select %p305, %s304, 63
      %s307 = smul.addr %s306, 8
      %s308 = scalar_lea.vmem %s2, %s307
      %s309 = smul.u32 16, %s21
      %s310 = smul.u32 16, %s21
      %p311 = scmp.lt.s32.totalorder %s20, 3
      %s312 = scalar_select %p311, %s20, 3
      %p313 = scmp.lt.s32.totalorder %s310, 63
      %s314 = scalar_select %p313, %s310, 63
      %s315 = smul.addr %s312, 64
      %s316 = sadd.s32 %s314, %s315
      %s317 = smul.addr %s316, 4
      %s318 = scalar_lea.vmem %s5, %s317
      %s319 = smul.u32 16, %s21
      %v321 = vld [vmem:[%s303] sm:$0xf]
      %v322 = vld [vmem:[%s303 + $0x4] sm:$0xf]
      %v323 = vld [vmem:[%s303 + $0x8] sm:$0x7]
      %v324 = vld [vmem:[%s293] sm:$0xf]
      %v325 = vld [vmem:[%s293 + $0x4] sm:$0xf]
      %v326 = vld [vmem:[%s293 + $0x8] sm:$0xf]
      %v327 = vld [vmem:[%s293 + $0xc] sm:$0xf]
      %v328 = vld [vmem:[%s293 + $0x10] sm:$0xf]
      %v329 = vld [vmem:[%s293 + $0x14] sm:$0xf]
      %v330 = vld [vmem:[%s293 + $0x18] sm:$0xf]
      %v331 = vld [vmem:[%s293 + $0x1c] sm:$0xf]
      %v332 = vld [vmem:[%s293 + $0x20] sm:$0xf]
      %v333 = vld [vmem:[%s293 + $0x24] sm:$0xf]
      %v334 = vld [vmem:[%s293 + $0x28] sm:$0xf]
      %v335 = vld [vmem:[%s293 + $0x2c] sm:$0xf]
      %v336 = vld [vmem:[%s293 + $0x30] sm:$0xf]
      %v337 = vld [vmem:[%s293 + $0x34] sm:$0xf]
      %v338 = vld [vmem:[%s293 + $0x38] sm:$0xf]
      %v339 = vld [vmem:[%s293 + $0x3c] sm:$0xf]
      %v340 = vld [vmem:[%s303 + $0x8] sm:$0xc]
      %v341 = vld [vmem:[%s303 + $0xc] sm:$0xf]
      %v342 = vld [vmem:[%s303 + $0x10] sm:$0xf]
      %v343 = vld [vmem:[%s303 + $0x14] sm:$0x1]
      %v347 = vunpack.c.l.b16 %v321
      %v348 = vunpack.c.l.b16 %v322
      %v349 = vunpack.c.l.b16 %v323
      %v350 = vpack.c.b16 %v348, %v347
      %v351 = vpack.c.b16 %v349, %v349
      %v369 = vunpack.c.l.b16 %v324
      %v370 = vunpack.c.l.b16 %v325
      %v371 = vunpack.c.l.b16 %v326
      %v372 = vunpack.c.l.b16 %v327
      %v373 = vunpack.c.l.b16 %v328
      %v374 = vunpack.c.l.b16 %v329
      %v375 = vunpack.c.l.b16 %v330
      %v376 = vunpack.c.l.b16 %v331
      %v377 = vunpack.c.l.b16 %v332
      %v378 = vunpack.c.l.b16 %v333
      %v379 = vunpack.c.l.b16 %v334
      %v380 = vunpack.c.l.b16 %v335
      %v381 = vunpack.c.l.b16 %v336
      %v382 = vunpack.c.l.b16 %v337
      %v383 = vunpack.c.l.b16 %v338
      %v384 = vunpack.c.l.b16 %v339
      %v385 = vpack.c.b16 %v370, %v369
      %v386 = vpack.c.b16 %v372, %v371
      %v387 = vpack.c.b16 %v374, %v373
      %v388 = vpack.c.b16 %v376, %v375
      %v389 = vpack.c.b16 %v378, %v377
      %v390 = vpack.c.b16 %v380, %v379
      %v391 = vpack.c.b16 %v382, %v381
      %v392 = vpack.c.b16 %v384, %v383
      %vm393 = vsmask.f32 2304
      %v395 = vshrl.u32 %v385, 16
      %v397 = vrot.slane %v395, 5
      %v398 = vshll.u32 %v385, 16
      %v400 = vrot.slane %v398, 6
      %v401 = vor.u32 %v397, %v400
      %v403 = vshrl.u32 %v386, 16
      %v405 = vrot.slane %v403, 5
      %v406 = vshll.u32 %v386, 16
      %v408 = vrot.slane %v406, 6
      %v409 = vor.u32 %v405, %v408
      %v410 = vsel %vm393, %v401, %v409
      %v412 = vshrl.u32 %v387, 16
      %v414 = vrot.slane %v412, 5
      %v415 = vshll.u32 %v387, 16
      %v417 = vrot.slane %v415, 6
      %v418 = vor.u32 %v414, %v417
      %v419 = vsel %vm393, %v409, %v418
      %v421 = vshrl.u32 %v388, 16
      %v423 = vrot.slane %v421, 5
      %v424 = vshll.u32 %v388, 16
      %v426 = vrot.slane %v424, 6
      %v427 = vor.u32 %v423, %v426
      %v428 = vsel %vm393, %v418, %v427
      %v430 = vshrl.u32 %v389, 16
      %v432 = vrot.slane %v430, 5
      %v433 = vshll.u32 %v389, 16
      %v435 = vrot.slane %v433, 6
      %v436 = vor.u32 %v432, %v435
      %v437 = vsel %vm393, %v427, %v436
      %v439 = vshrl.u32 %v390, 16
      %v441 = vrot.slane %v439, 5
      %v442 = vshll.u32 %v390, 16
      %v444 = vrot.slane %v442, 6
      %v445 = vor.u32 %v441, %v444
      %v446 = vsel %vm393, %v436, %v445
      %v448 = vshrl.u32 %v391, 16
      %v450 = vrot.slane %v448, 5
      %v451 = vshll.u32 %v391, 16
      %v453 = vrot.slane %v451, 6
      %v454 = vor.u32 %v450, %v453
      %v455 = vsel %vm393, %v445, %v454
      %v457 = vshrl.u32 %v392, 16
      %v459 = vrot.slane %v457, 5
      %v460 = vshll.u32 %v392, 16
      %v462 = vrot.slane %v460, 6
      %v463 = vor.u32 %v459, %v462
      %v464 = vsel %vm393, %v454, %v463
      %v471 = vunpack.c.l.b16 %v340
      %v472 = vunpack.c.l.b16 %v341
      %v473 = vunpack.c.l.b16 %v342
      %v474 = vunpack.c.l.b16 %v343
      %v475 = vpack.c.b16 %v472, %v471
      %v476 = vpack.c.b16 %v474, %v473
      %vm478 = vcmask 1042432
      %vm479 = vmand %vm478, %vm393
      %v480 = vsel %vm479, %v351, %v401
      %v481 = vsel %vm479, %v463, %v475
      %vm482 = vsmask.f32 7424
      %v484 = vshrl.u32 %v350, 16
      %v486 = vshll.u32 %v350, 16
      %v488 = vrot.slane %v486, 1
      %v489 = vor.u32 %v484, %v488
      %v491 = vshll.u32 %v480, 16
      %v493 = vrot.slane %v491, 1
      %v494 = vsel %vm482, %v489, %v493
      %v495 = vshrl.u32 %v480, 16
      %v497 = vor.u32 %v495, %v493
      %v499 = vshll.u32 %v410, 16
      %v501 = vrot.slane %v499, 1
      %v502 = vsel %vm482, %v497, %v501
      %v503 = vshrl.u32 %v410, 16
      %v505 = vor.u32 %v503, %v501
      %v507 = vshll.u32 %v419, 16
      %v509 = vrot.slane %v507, 1
      %v510 = vsel %vm482, %v505, %v509
      %v511 = vshrl.u32 %v419, 16
      %v513 = vor.u32 %v511, %v509
      %v515 = vshll.u32 %v428, 16
      %v517 = vrot.slane %v515, 1
      %v518 = vsel %vm482, %v513, %v517
      %v519 = vshrl.u32 %v428, 16
      %v521 = vor.u32 %v519, %v517
      %v523 = vshll.u32 %v437, 16
      %v525 = vrot.slane %v523, 1
      %v526 = vsel %vm482, %v521, %v525
      %v527 = vshrl.u32 %v437, 16
      %v529 = vor.u32 %v527, %v525
      %v531 = vshll.u32 %v446, 16
      %v533 = vrot.slane %v531, 1
      %v534 = vsel %vm482, %v529, %v533
      %v535 = vshrl.u32 %v446, 16
      %v537 = vor.u32 %v535, %v533
      %v539 = vshll.u32 %v455, 16
      %v541 = vrot.slane %v539, 1
      %v542 = vsel %vm482, %v537, %v541
      %v543 = vshrl.u32 %v455, 16
      %v545 = vor.u32 %v543, %v541
      %v547 = vshll.u32 %v464, 16
      %v549 = vrot.slane %v547, 1
      %v550 = vsel %vm482, %v545, %v549
      %551 = vrot.lane.b32.xlu0 %v494, 4
      %v552 = vpop.permute.xlu0 %551
      %553 = vrot.lane.b32.xlu0 %v502, 4
      %v554 = vpop.permute.xlu0 %553
      %555 = vrot.lane.b32.xlu0 %v510, 4
      %v556 = vpop.permute.xlu0 %555
      %557 = vrot.lane.b32.xlu0 %v518, 4
      %v558 = vpop.permute.xlu0 %557
      %559 = vrot.lane.b32.xlu0 %v526, 4
      %v560 = vpop.permute.xlu0 %559
      %561 = vrot.lane.b32.xlu0 %v534, 4
      %v562 = vpop.permute.xlu0 %561
      %563 = vrot.lane.b32.xlu0 %v542, 4
      %v564 = vpop.permute.xlu0 %563
      %565 = vrot.lane.b32.xlu0 %v550, 4
      %v566 = vpop.permute.xlu0 %565
      %vm568 = vcmask 1046528
      %v569 = vrot.slane %v350, 1
      %v570 = vrot.slane %v480, 1
      %v571 = vsel %vm568, %v569, %v570
      %v572 = vrot.slane %v410, 1
      %v573 = vsel %vm568, %v570, %v572
      %v574 = vrot.slane %v419, 1
      %v575 = vsel %vm568, %v572, %v574
      %v576 = vrot.slane %v428, 1
      %v577 = vsel %vm568, %v574, %v576
      %v578 = vrot.slane %v437, 1
      %v579 = vsel %vm568, %v576, %v578
      %v580 = vrot.slane %v446, 1
      %v581 = vsel %vm568, %v578, %v580
      %v582 = vrot.slane %v455, 1
      %v583 = vsel %vm568, %v580, %v582
      %v584 = vrot.slane %v464, 1
      %v585 = vsel %vm568, %v582, %v584
      %586 = vrot.lane.b32.xlu0 %v571, 8
      %v587 = vpop.permute.xlu0 %586
      %588 = vrot.lane.b32.xlu0 %v573, 8
      %v589 = vpop.permute.xlu0 %588
      %590 = vrot.lane.b32.xlu0 %v575, 8
      %v591 = vpop.permute.xlu0 %590
      %592 = vrot.lane.b32.xlu0 %v577, 8
      %v593 = vpop.permute.xlu0 %592
      %594 = vrot.lane.b32.xlu0 %v579, 8
      %v595 = vpop.permute.xlu0 %594
      %596 = vrot.lane.b32.xlu0 %v581, 8
      %v597 = vpop.permute.xlu0 %596
      %598 = vrot.lane.b32.xlu0 %v583, 8
      %v599 = vpop.permute.xlu0 %598
      %600 = vrot.lane.b32.xlu0 %v585, 8
      %v601 = vpop.permute.xlu0 %600
      %vm603 = vcmask 1045504
      %v604 = vrot.slane %v480, 2
      %v605 = vrot.slane %v410, 2
      %v606 = vsel %vm603, %v604, %v605
      %v607 = vrot.slane %v419, 2
      %v608 = vsel %vm603, %v605, %v607
      %v609 = vrot.slane %v428, 2
      %v610 = vsel %vm603, %v607, %v609
      %v611 = vrot.slane %v437, 2
      %v612 = vsel %vm603, %v609, %v611
      %v613 = vrot.slane %v446, 2
      %v614 = vsel %vm603, %v611, %v613
      %v615 = vrot.slane %v455, 2
      %v616 = vsel %vm603, %v613, %v615
      %v617 = vrot.slane %v464, 2
      %v618 = vsel %vm603, %v615, %v617
      %v619 = vrot.slane %v481, 2
      %v620 = vsel %vm603, %v617, %v619
      %621 = vrot.lane.b32.xlu0 %v606, 12
      %v622 = vpop.permute.xlu0 %621
      %623 = vrot.lane.b32.xlu0 %v608, 12
      %v624 = vpop.permute.xlu0 %623
      %625 = vrot.lane.b32.xlu0 %v610, 12
      %v626 = vpop.permute.xlu0 %625
      %627 = vrot.lane.b32.xlu0 %v612, 12
      %v628 = vpop.permute.xlu0 %627
      %629 = vrot.lane.b32.xlu0 %v614, 12
      %v630 = vpop.permute.xlu0 %629
      %631 = vrot.lane.b32.xlu0 %v616, 12
      %v632 = vpop.permute.xlu0 %631
      %633 = vrot.lane.b32.xlu0 %v618, 12
      %v634 = vpop.permute.xlu0 %633
      %635 = vrot.lane.b32.xlu0 %v620, 12
      %v636 = vpop.permute.xlu0 %635
      %vm637 = vsmask.f32 5376
      %v638 = vrot.slane %v495, 2
      %v639 = vrot.slane %v491, 3
      %v640 = vor.u32 %v638, %v639
      %v641 = vrot.slane %v503, 2
      %v642 = vrot.slane %v499, 3
      %v643 = vor.u32 %v641, %v642
      %v644 = vsel %vm637, %v640, %v643
      %v645 = vrot.slane %v511, 2
      %v646 = vrot.slane %v507, 3
      %v647 = vor.u32 %v645, %v646
      %v648 = vsel %vm637, %v643, %v647
      %v649 = vrot.slane %v519, 2
      %v650 = vrot.slane %v515, 3
      %v651 = vor.u32 %v649, %v650
      %v652 = vsel %vm637, %v647, %v651
      %v653 = vrot.slane %v527, 2
      %v654 = vrot.slane %v523, 3
      %v655 = vor.u32 %v653, %v654
      %v656 = vsel %vm637, %v651, %v655
      %v657 = vrot.slane %v535, 2
      %v658 = vrot.slane %v531, 3
      %v659 = vor.u32 %v657, %v658
      %v660 = vsel %vm637, %v655, %v659
      %v661 = vrot.slane %v543, 2
      %v662 = vrot.slane %v539, 3
      %v663 = vor.u32 %v661, %v662
      %v664 = vsel %vm637, %v659, %v663
      %v665 = vshrl.u32 %v464, 16
      %v667 = vrot.slane %v665, 2
      %v668 = vrot.slane %v547, 3
      %v669 = vor.u32 %v667, %v668
      %v670 = vsel %vm637, %v663, %v669
      %v672 = vshrl.u32 %v481, 16
      %v674 = vrot.slane %v672, 2
      %v675 = vshll.u32 %v481, 16
      %v677 = vrot.slane %v675, 3
      %v678 = vor.u32 %v674, %v677
      %v679 = vsel %vm637, %v669, %v678
      %680 = vrot.lane.b32.xlu0 %v644, 16
      %v681 = vpop.permute.xlu0 %680
      %682 = vrot.lane.b32.xlu0 %v648, 16
      %v683 = vpop.permute.xlu0 %682
      %684 = vrot.lane.b32.xlu0 %v652, 16
      %v685 = vpop.permute.xlu0 %684
      %686 = vrot.lane.b32.xlu0 %v656, 16
      %v687 = vpop.permute.xlu0 %686
      %688 = vrot.lane.b32.xlu0 %v660, 16
      %v689 = vpop.permute.xlu0 %688
      %690 = vrot.lane.b32.xlu0 %v664, 16
      %v691 = vpop.permute.xlu0 %690
      %692 = vrot.lane.b32.xlu0 %v670, 16
      %v693 = vpop.permute.xlu0 %692
      %694 = vrot.lane.b32.xlu0 %v679, 16
      %v695 = vpop.permute.xlu0 %694
      %vm696 = vcmask 1044480
      %v697 = vrot.slane %v480, 3
      %v698 = vrot.slane %v410, 3
      %v699 = vsel %vm696, %v697, %v698
      %v700 = vrot.slane %v419, 3
      %v701 = vsel %vm696, %v698, %v700
      %v702 = vrot.slane %v428, 3
      %v703 = vsel %vm696, %v700, %v702
      %v704 = vrot.slane %v437, 3
      %v705 = vsel %vm696, %v702, %v704
      %v706 = vrot.slane %v446, 3
      %v707 = vsel %vm696, %v704, %v706
      %v708 = vrot.slane %v455, 3
      %v709 = vsel %vm696, %v706, %v708
      %v710 = vrot.slane %v464, 3
      %v711 = vsel %vm696, %v708, %v710
      %v712 = vrot.slane %v481, 3
      %v713 = vsel %vm696, %v710, %v712
      %714 = vrot.lane.b32.xlu0 %v699, 20
      %v715 = vpop.permute.xlu0 %714
      %716 = vrot.lane.b32.xlu0 %v701, 20
      %v717 = vpop.permute.xlu0 %716
      %718 = vrot.lane.b32.xlu0 %v703, 20
      %v719 = vpop.permute.xlu0 %718
      %720 = vrot.lane.b32.xlu0 %v705, 20
      %v721 = vpop.permute.xlu0 %720
      %722 = vrot.lane.b32.xlu0 %v707, 20
      %v723 = vpop.permute.xlu0 %722
      %724 = vrot.lane.b32.xlu0 %v709, 20
      %v725 = vpop.permute.xlu0 %724
      %726 = vrot.lane.b32.xlu0 %v711, 20
      %v727 = vpop.permute.xlu0 %726
      %728 = vrot.lane.b32.xlu0 %v713, 20
      %v729 = vpop.permute.xlu0 %728
      %vm730 = vcmask 1043456
      %v731 = vrot.slane %v410, 4
      %v732 = vrot.slane %v419, 4
      %v733 = vsel %vm730, %v731, %v732
      %v734 = vrot.slane %v428, 4
      %v735 = vsel %vm730, %v732, %v734
      %v736 = vrot.slane %v437, 4
      %v737 = vsel %vm730, %v734, %v736
      %v738 = vrot.slane %v446, 4
      %v739 = vsel %vm730, %v736, %v738
      %v740 = vrot.slane %v455, 4
      %v741 = vsel %vm730, %v738, %v740
      %v742 = vrot.slane %v464, 4
      %v743 = vsel %vm730, %v740, %v742
      %v744 = vrot.slane %v481, 4
      %v745 = vsel %vm730, %v742, %v744
      %v746 = vrot.slane %v476, 4
      %v747 = vsel %vm730, %v744, %v746
      %748 = vrot.lane.b32.xlu0 %v733, 24
      %v749 = vpop.permute.xlu0 %748
      %750 = vrot.lane.b32.xlu0 %v735, 24
      %v751 = vpop.permute.xlu0 %750
      %752 = vrot.lane.b32.xlu0 %v737, 24
      %v753 = vpop.permute.xlu0 %752
      %754 = vrot.lane.b32.xlu0 %v739, 24
      %v755 = vpop.permute.xlu0 %754
      %756 = vrot.lane.b32.xlu0 %v741, 24
      %v757 = vpop.permute.xlu0 %756
      %758 = vrot.lane.b32.xlu0 %v743, 24
      %v759 = vpop.permute.xlu0 %758
      %760 = vrot.lane.b32.xlu0 %v745, 24
      %v761 = vpop.permute.xlu0 %760
      %762 = vrot.lane.b32.xlu0 %v747, 24
      %v763 = vpop.permute.xlu0 %762
      %vm764 = vsmask.f32 3328
      %v765 = vrot.slane %v503, 4
      %v766 = vrot.slane %v499, 5
      %v767 = vor.u32 %v765, %v766
      %v768 = vrot.slane %v511, 4
      %v769 = vrot.slane %v507, 5
      %v770 = vor.u32 %v768, %v769
      %v771 = vsel %vm764, %v767, %v770
      %v772 = vrot.slane %v519, 4
      %v773 = vrot.slane %v515, 5
      %v774 = vor.u32 %v772, %v773
      %v775 = vsel %vm764, %v770, %v774
      %v776 = vrot.slane %v527, 4
      %v777 = vrot.slane %v523, 5
      %v778 = vor.u32 %v776, %v777
      %v779 = vsel %vm764, %v774, %v778
      %v780 = vrot.slane %v535, 4
      %v781 = vrot.slane %v531, 5
      %v782 = vor.u32 %v780, %v781
      %v783 = vsel %vm764, %v778, %v782
      %v784 = vrot.slane %v543, 4
      %v785 = vrot.slane %v539, 5
      %v786 = vor.u32 %v784, %v785
      %v787 = vsel %vm764, %v782, %v786
      %v788 = vrot.slane %v665, 4
      %v789 = vrot.slane %v547, 5
      %v790 = vor.u32 %v788, %v789
      %v791 = vsel %vm764, %v786, %v790
      %v792 = vrot.slane %v672, 4
      %v793 = vrot.slane %v675, 5
      %v794 = vor.u32 %v792, %v793
      %v795 = vsel %vm764, %v790, %v794
      %v797 = vshrl.u32 %v476, 16
      %v799 = vrot.slane %v797, 4
      %v800 = vshll.u32 %v476, 16
      %v802 = vrot.slane %v800, 5
      %v803 = vor.u32 %v799, %v802
      %v804 = vsel %vm764, %v794, %v803
      %805 = vrot.lane.b32.xlu0 %v771, 28
      %v806 = vpop.permute.xlu0 %805
      %807 = vrot.lane.b32.xlu0 %v775, 28
      %v808 = vpop.permute.xlu0 %807
      %809 = vrot.lane.b32.xlu0 %v779, 28
      %v810 = vpop.permute.xlu0 %809
      %811 = vrot.lane.b32.xlu0 %v783, 28
      %v812 = vpop.permute.xlu0 %811
      %813 = vrot.lane.b32.xlu0 %v787, 28
      %v814 = vpop.permute.xlu0 %813
      %815 = vrot.lane.b32.xlu0 %v791, 28
      %v816 = vpop.permute.xlu0 %815
      %817 = vrot.lane.b32.xlu0 %v795, 28
      %v818 = vpop.permute.xlu0 %817
      %819 = vrot.lane.b32.xlu0 %v804, 28
      %v820 = vpop.permute.xlu0 %819
      %v821 = vrot.slane %v410, 5
      %v822 = vrot.slane %v419, 5
      %v823 = vsel %vm478, %v821, %v822
      %v824 = vrot.slane %v428, 5
      %v825 = vsel %vm478, %v822, %v824
      %v826 = vrot.slane %v437, 5
      %v827 = vsel %vm478, %v824, %v826
      %v828 = vrot.slane %v446, 5
      %v829 = vsel %vm478, %v826, %v828
      %v830 = vrot.slane %v455, 5
      %v831 = vsel %vm478, %v828, %v830
      %v832 = vrot.slane %v464, 5
      %v833 = vsel %vm478, %v830, %v832
      %v834 = vrot.slane %v481, 5
      %v835 = vsel %vm478, %v832, %v834
      %v836 = vrot.slane %v476, 5
      %v837 = vsel %vm478, %v834, %v836
      %838 = vrot.lane.b32.xlu0 %v823, 32
      %v839 = vpop.permute.xlu0 %838
      %840 = vrot.lane.b32.xlu0 %v825, 32
      %v841 = vpop.permute.xlu0 %840
      %842 = vrot.lane.b32.xlu0 %v827, 32
      %v843 = vpop.permute.xlu0 %842
      %844 = vrot.lane.b32.xlu0 %v829, 32
      %v845 = vpop.permute.xlu0 %844
      %846 = vrot.lane.b32.xlu0 %v831, 32
      %v847 = vpop.permute.xlu0 %846
      %848 = vrot.lane.b32.xlu0 %v833, 32
      %v849 = vpop.permute.xlu0 %848
      %850 = vrot.lane.b32.xlu0 %v835, 32
      %v851 = vpop.permute.xlu0 %850
      %852 = vrot.lane.b32.xlu0 %v837, 32
      %v853 = vpop.permute.xlu0 %852
      %vm854 = vcmask 31744
      %v856 = vsel %vm854, %v350, %v552
      %v858 = vsel %vm854, %v480, %v554
      %v860 = vsel %vm854, %v410, %v556
      %v862 = vsel %vm854, %v419, %v558
      %v864 = vsel %vm854, %v428, %v560
      %v866 = vsel %vm854, %v437, %v562
      %v868 = vsel %vm854, %v446, %v564
      %v870 = vsel %vm854, %v455, %v566
      %vm871 = vcmask 64512
      %v873 = vsel %vm871, %v856, %v587
      %v875 = vsel %vm871, %v858, %v589
      %v877 = vsel %vm871, %v860, %v591
      %v879 = vsel %vm871, %v862, %v593
      %v881 = vsel %vm871, %v864, %v595
      %v883 = vsel %vm871, %v866, %v597
      %v885 = vsel %vm871, %v868, %v599
      %v887 = vsel %vm871, %v870, %v601
      %vm888 = vcmask 97280
      %v890 = vsel %vm888, %v873, %v622
      %v892 = vsel %vm888, %v875, %v624
      %v894 = vsel %vm888, %v877, %v626
      %v896 = vsel %vm888, %v879, %v628
      %v898 = vsel %vm888, %v881, %v630
      %v900 = vsel %vm888, %v883, %v632
      %v902 = vsel %vm888, %v885, %v634
      %v904 = vsel %vm888, %v887, %v636
      %vm905 = vcmask 130048
      %v907 = vsel %vm905, %v890, %v681
      %v909 = vsel %vm905, %v892, %v683
      %v911 = vsel %vm905, %v894, %v685
      %v913 = vsel %vm905, %v896, %v687
      %v915 = vsel %vm905, %v898, %v689
      %v917 = vsel %vm905, %v900, %v691
      %v919 = vsel %vm905, %v902, %v693
      %v921 = vsel %vm905, %v904, %v695
      %vm922 = vcmask 162816
      %v924 = vsel %vm922, %v907, %v715
      %v926 = vsel %vm922, %v909, %v717
      %v928 = vsel %vm922, %v911, %v719
      %v930 = vsel %vm922, %v913, %v721
      %v932 = vsel %vm922, %v915, %v723
      %v934 = vsel %vm922, %v917, %v725
      %v936 = vsel %vm922, %v919, %v727
      %v938 = vsel %vm922, %v921, %v729
      %vm939 = vcmask 195584
      %v941 = vsel %vm939, %v924, %v749
      %v943 = vsel %vm939, %v926, %v751
      %v945 = vsel %vm939, %v928, %v753
      %v947 = vsel %vm939, %v930, %v755
      %v949 = vsel %vm939, %v932, %v757
      %v951 = vsel %vm939, %v934, %v759
      %v953 = vsel %vm939, %v936, %v761
      %v955 = vsel %vm939, %v938, %v763
      %vm956 = vcmask 228352
      %v958 = vsel %vm956, %v941, %v806
      %v960 = vsel %vm956, %v943, %v808
      %v962 = vsel %vm956, %v945, %v810
      %v964 = vsel %vm956, %v947, %v812
      %v966 = vsel %vm956, %v949, %v814
      %v968 = vsel %vm956, %v951, %v816
      %v970 = vsel %vm956, %v953, %v818
      %v972 = vsel %vm956, %v955, %v820
      %vm973 = vcmask 261120
      %v975 = vsel %vm973, %v958, %v839
      %v977 = vsel %vm973, %v960, %v841
      %v979 = vsel %vm973, %v962, %v843
      %v981 = vsel %vm973, %v964, %v845
      %v983 = vsel %vm973, %v966, %v847
      %v985 = vsel %vm973, %v968, %v849
      %v987 = vsel %vm973, %v970, %v851
      %v989 = vsel %vm973, %v972, %v853
      %v990 = vld [vmem:[%s3] sm:$0xf]
      %v991 = vld [vmem:[%s3 + $0x4] sm:$0xf]
      %v992 = vld [vmem:[%s3 + $0x8] sm:$0xf]
      %v993 = vld [vmem:[%s3 + $0xc] sm:$0xf]
      %v994 = vld [vmem:[%s3 + $0x10] sm:$0x3]
      %v995 = vld [vmem:[%s4] sm:$0x1]
      %v997 = vlaneseq
      %v998 = vshrl.u32 %v997, 7
      %v999 = vsub.s32 0, %v998
      %v1000 = vrot.slane %v995, %v999
      %v1007 = vunpack.c.l.b16 %v990
      %v1008 = vunpack.c.l.b16 %v991
      %v1009 = vunpack.c.l.b16 %v992
      %v1010 = vunpack.c.l.b16 %v993
      %v1011 = vunpack.c.l.b16 %v994
      %v1012 = vpack.c.b16 %v1008, %v1007
      %v1013 = vpack.c.b16 %v1010, %v1009
      %v1014 = vpack.c.b16 %v1011, %v1011
      %vm1017 = vcmask 293888
      %v1018 = vsel %vm1017, %v975, 0
      %v1020 = vsel %vm1017, %v977, 0
      %v1022 = vsel %vm1017, %v979, 0
      %v1024 = vsel %vm1017, %v981, 0
      %v1026 = vsel %vm1017, %v983, 0
      %v1028 = vsel %vm1017, %v985, 0
      %v1030 = vsel %vm1017, %v987, 0
      %v1032 = vsel %vm1017, %v989, 0
      %vm1034 = vcmask 1041408
      %v1036 = vsel %vm1034, %v1014, 0
      %1038 = vmatprep.subr.bf16.mxu0 0
      %1039 = vmatpush1.bf16.msra.mxu0 %v1012
      %1040 = vmatprep.subr.bf16.mxu0 0
      %1041 = vmatpush1.bf16.msra.mxu0 %v1013
      %1042 = vmatprep.subr.bf16.mxu0 0
      %1043 = vmatpush1.bf16.msra.mxu0 %v1036
      %1044 = vmatprep.subr.bf16.mxu0 0
      %1045 = vmatpush1.bf16.msra.mxu0 0
      %1046 = vmatprep.subr.bf16.mxu0 0
      %1047 = vmatpush1.bf16.msra.mxu0 0
      %1048 = vmatprep.subr.bf16.mxu0 0
      %1049 = vmatpush1.bf16.msra.mxu0 0
      %1050 = vmatprep.subr.bf16.mxu0 0
      %1051 = vmatpush1.bf16.msra.mxu0 0
      %1052 = vmatprep.subr.bf16.mxu0 0
      %1053 = vmatpush1.bf16.msra.mxu0 0
      %1054 = vmatprep.subr.bf16.mxu0 0
      %1055 = vmatpush1.bf16.msra.mxu0 0
      %1056 = vmatprep.subr.bf16.mxu0 0
      %1057 = vmatpush1.bf16.msra.mxu0 0
      %1058 = vmatprep.subr.bf16.mxu0 0
      %1059 = vmatpush1.bf16.msra.mxu0 0
      %1060 = vmatprep.subr.bf16.mxu0 0
      %1061 = vmatpush1.bf16.msra.mxu0 0
      %1062 = vmatprep.subr.bf16.mxu0 0
      %1063 = vmatpush1.bf16.msra.mxu0 0
      %1064 = vmatprep.subr.bf16.mxu0 0
      %1065 = vmatpush1.bf16.msra.mxu0 0
      %1066 = vmatprep.subr.bf16.mxu0 0
      %1067 = vmatpush1.bf16.msra.mxu0 0
      %1068 = vmatprep.subr.bf16.mxu0 0
      %1069 = vmatpush1.bf16.msra.mxu0 0
      %1070 = vmatprep.mubr.bf16.mxu0 0
      %1071 = vmatmul.mubr.bf16.gmra.mrb[0].mxu0 %v1018
      %v1072 = vpop.f32.mrb[0].mxu0
      %v1073 = vadd.f32 %v1000, %v1072
      %v1074 = vpop.f32.mrb[0].mxu0
      %v1075 = vpop.f32.mrb[0].mxu0
      %v1076 = vadd.f32 %v1000, %v1075
      %v1077 = vpop.f32.mrb[0].mxu0
      %1078 = vmatprep.mubr.bf16.mxu0 0
      %1079 = vmatmul.mubr.bf16.gmra.mrb[0].mxu0 %v1020
      %v1080 = vpop.f32.mrb[0].mxu0
      %v1081 = vadd.f32 %v1000, %v1080
      %v1082 = vpop.f32.mrb[0].mxu0
      %v1083 = vpop.f32.mrb[0].mxu0
      %v1084 = vadd.f32 %v1000, %v1083
      %v1085 = vpop.f32.mrb[0].mxu0
      %1086 = vmatprep.mubr.bf16.mxu0 0
      %1087 = vmatmul.mubr.bf16.gmra.mrb[0].mxu0 %v1022
      %v1088 = vpop.f32.mrb[0].mxu0
      %v1089 = vadd.f32 %v1000, %v1088
      %v1090 = vpop.f32.mrb[0].mxu0
      %v1091 = vpop.f32.mrb[0].mxu0
      %v1092 = vadd.f32 %v1000, %v1091
      %v1093 = vpop.f32.mrb[0].mxu0
      %1094 = vmatprep.mubr.bf16.mxu0 0
      %1095 = vmatmul.mubr.bf16.gmra.mrb[0].mxu0 %v1024
      %v1096 = vpop.f32.mrb[0].mxu0
      %v1097 = vadd.f32 %v1000, %v1096
      %v1098 = vpop.f32.mrb[0].mxu0
      %v1099 = vpop.f32.mrb[0].mxu0
      %v1100 = vadd.f32 %v1000, %v1099
      %v1101 = vpop.f32.mrb[0].mxu0
      %1102 = vmatprep.mubr.bf16.mxu0 0
      %1103 = vmatmul.mubr.bf16.gmra.mrb[0].mxu0 %v1026
      %v1104 = vpop.f32.mrb[0].mxu0
      %v1105 = vadd.f32 %v1000, %v1104
      %v1106 = vpop.f32.mrb[0].mxu0
      %v1107 = vpop.f32.mrb[0].mxu0
      %v1108 = vadd.f32 %v1000, %v1107
      %v1109 = vpop.f32.mrb[0].mxu0
      %1110 = vmatprep.mubr.bf16.mxu0 0
      %1111 = vmatmul.mubr.bf16.gmra.mrb[0].mxu0 %v1028
      %v1112 = vpop.f32.mrb[0].mxu0
      %v1113 = vadd.f32 %v1000, %v1112
      %v1114 = vpop.f32.mrb[0].mxu0
      %v1115 = vpop.f32.mrb[0].mxu0
      %v1116 = vadd.f32 %v1000, %v1115
      %v1117 = vpop.f32.mrb[0].mxu0
      %1118 = vmatprep.mubr.bf16.mxu0 0
      %1119 = vmatmul.mubr.bf16.gmra.mrb[0].mxu0 %v1030
      %v1120 = vpop.f32.mrb[0].mxu0
      %v1121 = vadd.f32 %v1000, %v1120
      %v1122 = vpop.f32.mrb[0].mxu0
      %v1123 = vpop.f32.mrb[0].mxu0
      %v1124 = vadd.f32 %v1000, %v1123
      %v1125 = vpop.f32.mrb[0].mxu0
      %1126 = vmatprep.mubr.bf16.mxu0 0
      %1127 = vmatmul.mubr.bf16.gmra.mrb[0].mxu0 %v1032
      %v1128 = vpop.f32.mrb[0].mxu0
      %v1129 = vadd.f32 %v1000, %v1128
      %v1130 = vpop.f32.mrb[0].mxu0
      %v1131 = vpop.f32.mrb[0].mxu0
      %v1132 = vadd.f32 %v1000, %v1131
      %v1133 = vpop.f32.mrb[0].mxu0
      %1134 = vdwg.mxu0
      %v1135 = vld [vmem:[%s308] sm:$0xff]
      %v1136 = vld [vmem:[%s308 + $0x8] sm:$0xff]
      %v1137 = vld [vmem:[%s308 + $0x10] sm:$0xff]
      %v1138 = vld [vmem:[%s308 + $0x18] sm:$0xff]
      %v1139 = vld [vmem:[%s308 + $0x20] sm:$0xff]
      %v1140 = vld [vmem:[%s308 + $0x28] sm:$0xff]
      %v1141 = vld [vmem:[%s308 + $0x30] sm:$0xff]
      %v1142 = vld [vmem:[%s308 + $0x38] sm:$0xff]
      %v1143 = vld [vmem:[%s308 + $0x40] sm:$0xff]
      %v1144 = vld [vmem:[%s308 + $0x48] sm:$0xff]
      %v1145 = vld [vmem:[%s308 + $0x50] sm:$0xff]
      %v1146 = vld [vmem:[%s308 + $0x58] sm:$0xff]
      %v1147 = vld [vmem:[%s308 + $0x60] sm:$0xff]
      %v1148 = vld [vmem:[%s308 + $0x68] sm:$0xff]
      %v1149 = vld [vmem:[%s308 + $0x70] sm:$0xff]
      %v1150 = vld [vmem:[%s308 + $0x78] sm:$0xff]
      %1152 = vset.pattern.permute.xlu0 0
      %1153 = vperm.xlu0 %1152, %v1135
      %v1154 = vpop.permute.xlu0 %1153
      %1157 = vset.pattern.permute.xlu0 0
      %1158 = vperm.xlu0 %1157, %v1136
      %v1159 = vpop.permute.xlu0 %1158
      %1162 = vset.pattern.permute.xlu0 0
      %1163 = vperm.xlu0 %1162, %v1137
      %v1164 = vpop.permute.xlu0 %1163
      %1167 = vset.pattern.permute.xlu0 0
      %1168 = vperm.xlu0 %1167, %v1138
      %v1169 = vpop.permute.xlu0 %1168
      %1172 = vset.pattern.permute.xlu0 0
      %1173 = vperm.xlu0 %1172, %v1139
      %v1174 = vpop.permute.xlu0 %1173
      %1177 = vset.pattern.permute.xlu0 0
      %1178 = vperm.xlu0 %1177, %v1140
      %v1179 = vpop.permute.xlu0 %1178
      %1182 = vset.pattern.permute.xlu0 0
      %1183 = vperm.xlu0 %1182, %v1141
      %v1184 = vpop.permute.xlu0 %1183
      %1187 = vset.pattern.permute.xlu0 0
      %1188 = vperm.xlu0 %1187, %v1142
      %v1189 = vpop.permute.xlu0 %1188
      %1192 = vset.pattern.permute.xlu0 0
      %1193 = vperm.xlu0 %1192, %v1143
      %v1194 = vpop.permute.xlu0 %1193
      %1197 = vset.pattern.permute.xlu0 0
      %1198 = vperm.xlu0 %1197, %v1144
      %v1199 = vpop.permute.xlu0 %1198
      %1202 = vset.pattern.permute.xlu0 0
      %1203 = vperm.xlu0 %1202, %v1145
      %v1204 = vpop.permute.xlu0 %1203
      %1207 = vset.pattern.permute.xlu0 0
      %1208 = vperm.xlu0 %1207, %v1146
      %v1209 = vpop.permute.xlu0 %1208
      %1212 = vset.pattern.permute.xlu0 0
      %1213 = vperm.xlu0 %1212, %v1147
      %v1214 = vpop.permute.xlu0 %1213
      %1217 = vset.pattern.permute.xlu0 0
      %1218 = vperm.xlu0 %1217, %v1148
      %v1219 = vpop.permute.xlu0 %1218
      %1222 = vset.pattern.permute.xlu0 0
      %1223 = vperm.xlu0 %1222, %v1149
      %v1224 = vpop.permute.xlu0 %1223
      %1227 = vset.pattern.permute.xlu0 0
      %1228 = vperm.xlu0 %1227, %v1150
      %v1229 = vpop.permute.xlu0 %1228
      %v1231 = vmul.f32 %v1073, %v1154
      %v1232 = vmul.f32 %v1076, %v1159
      %v1233 = vmul.f32 %v1081, %v1164
      %v1234 = vmul.f32 %v1084, %v1169
      %v1235 = vmul.f32 %v1089, %v1174
      %v1236 = vmul.f32 %v1092, %v1179
      %v1237 = vmul.f32 %v1097, %v1184
      %v1238 = vmul.f32 %v1100, %v1189
      %v1239 = vmul.f32 %v1105, %v1194
      %v1240 = vmul.f32 %v1108, %v1199
      %v1241 = vmul.f32 %v1113, %v1204
      %v1242 = vmul.f32 %v1116, %v1209
      %v1243 = vmul.f32 %v1121, %v1214
      %v1244 = vmul.f32 %v1124, %v1219
      %v1245 = vmul.f32 %v1129, %v1224
      %v1246 = vmul.f32 %v1132, %v1229
      %v1247 = vpack.c.bf16 %v1232, %v1231
      %v1248 = vpack.c.bf16 %v1234, %v1233
      %v1249 = vpack.c.bf16 %v1236, %v1235
      %v1250 = vpack.c.bf16 %v1238, %v1237
      %v1251 = vpack.c.bf16 %v1240, %v1239
      %v1252 = vpack.c.bf16 %v1242, %v1241
      %v1253 = vpack.c.bf16 %v1244, %v1243
      %v1254 = vpack.c.bf16 %v1246, %v1245
      %v1263 = vunpack.c.l.b16 %v1247
      %v1264 = vunpack.c.h.b16 %v1247
      %v1265 = vunpack.c.l.b16 %v1248
      %v1266 = vunpack.c.h.b16 %v1248
      %v1267 = vunpack.c.l.b16 %v1249
      %v1268 = vunpack.c.h.b16 %v1249
      %v1269 = vunpack.c.l.b16 %v1250
      %v1270 = vunpack.c.h.b16 %v1250
      %v1271 = vunpack.c.l.b16 %v1251
      %v1272 = vunpack.c.h.b16 %v1251
      %v1273 = vunpack.c.l.b16 %v1252
      %v1274 = vunpack.c.h.b16 %v1252
      %v1275 = vunpack.c.l.b16 %v1253
      %v1276 = vunpack.c.h.b16 %v1253
      %v1277 = vunpack.c.l.b16 %v1254
      %v1278 = vunpack.c.h.b16 %v1254
      %v1279 = vpack.c.b16 %v1263, %v1263
      %v1280 = vpack.c.b16 %v1264, %v1264
      %v1281 = vpack.c.b16 %v1265, %v1265
      %v1282 = vpack.c.b16 %v1266, %v1266
      %v1283 = vpack.c.b16 %v1267, %v1267
      %v1284 = vpack.c.b16 %v1268, %v1268
      %v1285 = vpack.c.b16 %v1269, %v1269
      %v1286 = vpack.c.b16 %v1270, %v1270
      %v1287 = vpack.c.b16 %v1271, %v1271
      %v1288 = vpack.c.b16 %v1272, %v1272
      %v1289 = vpack.c.b16 %v1273, %v1273
      %v1290 = vpack.c.b16 %v1274, %v1274
      %v1291 = vpack.c.b16 %v1275, %v1275
      %v1292 = vpack.c.b16 %v1276, %v1276
      %v1293 = vpack.c.b16 %v1277, %v1277
      %v1294 = vpack.c.b16 %v1278, %v1278
      %vm1311 = vcmask 125952
      %1312 = vst.msk [vmem:[%s318] sm:$0xf] %vm1311, %v1279
      %1313 = vst.msk [vmem:[%s318 + $0x4] sm:$0xf] %vm1311, %v1280
      %1314 = vst.msk [vmem:[%s318 + $0x8] sm:$0xf] %vm1311, %v1281
      %1315 = vst.msk [vmem:[%s318 + $0xc] sm:$0xf] %vm1311, %v1282
      %1316 = vst.msk [vmem:[%s318 + $0x10] sm:$0xf] %vm1311, %v1283
      %1317 = vst.msk [vmem:[%s318 + $0x14] sm:$0xf] %vm1311, %v1284
      %1318 = vst.msk [vmem:[%s318 + $0x18] sm:$0xf] %vm1311, %v1285
      %1319 = vst.msk [vmem:[%s318 + $0x1c] sm:$0xf] %vm1311, %v1286
      %1320 = vst.msk [vmem:[%s318 + $0x20] sm:$0xf] %vm1311, %v1287
      %1321 = vst.msk [vmem:[%s318 + $0x24] sm:$0xf] %vm1311, %v1288
      %1322 = vst.msk [vmem:[%s318 + $0x28] sm:$0xf] %vm1311, %v1289
      %1323 = vst.msk [vmem:[%s318 + $0x2c] sm:$0xf] %vm1311, %v1290
      %1324 = vst.msk [vmem:[%s318 + $0x30] sm:$0xf] %vm1311, %v1291
      %1325 = vst.msk [vmem:[%s318 + $0x34] sm:$0xf] %vm1311, %v1292
      %1326 = vst.msk [vmem:[%s318 + $0x38] sm:$0xf] %vm1311, %v1293
      %1327 = vst.msk [vmem:[%s318 + $0x3c] sm:$0xf] %vm1311, %v1294
      %s1328 = smul.u32 16, %s21
      %p1329 = scmp.lt.s32.totalorder %s20, 3
      %s1330 = scalar_select %p1329, %s20, 3
      %p1331 = scmp.lt.s32.totalorder %s1328, 63
      %s1332 = scalar_select %p1331, %s1328, 63
      %s1333 = smul.addr %s1330, 64
      %s1334 = sadd.s32 %s1332, %s1333
      %s1335 = smul.addr %s1334, 4
      %s1336 = scalar_lea.vmem %s5, %s1335
      // Predicated region
      $region41: #{edsr_forward.6} parent=39 // pred_check
        %p1337 = pneg %p172
      $region42: #{edsr_forward.6} parent=39 // pred_check_branch
        %1339 = sbr.rel (%p1337) target = $region44
      $region43: #{edsr_forward.6} parent=39 // pred_region
        %s1340 = smul.u32 16, %s21
      $region44: #{edsr_forward.6} parent=39 // pred_fallthru
        _
    $region40: #{edsr_forward.6} parent=5 // pred_fallthru
      _
    %p1341 = scmp.le.s32.totalorder 2, %s11
    // Predicated region
    $region45: #{edsr_forward.6} parent=5 // pred_check
      %p1342 = pneg %p1341
    $region46: #{edsr_forward.6} parent=5 // pred_check_branch
      %1344 = sbr.rel (%p1342) target = $region48
    $region47: #{edsr_forward.6} parent=5 // pred_region
      %s1345 = ssub.s32 %s11, 2
      // Predicated region
      $region49: #{edsr_forward.6} parent=47 // pred_check
        %p1346 = pneg %p178
      $region50: #{edsr_forward.6} parent=47 // pred_check_branch
        %1348 = sbr.rel (%p1346) target = $region52
      $region51: #{edsr_forward.6} parent=47 // pred_region
        %s1349 = smul.u32 16, %s23
        %p1350 = scmp.lt.s32.totalorder %s22, 3
        %s1351 = scalar_select %p1350, %s22, 3
        %p1352 = scmp.lt.s32.totalorder %s1349, 63
        %s1353 = scalar_select %p1352, %s1349, 63
        %s1354 = smul.addr %s1351, 64
        %s1355 = sadd.s32 %s1353, %s1354
        %s1356 = smul.addr %s1355, 4
        %s1357 = scalar_lea.vmem %s5, %s1356
      $region52: #{edsr_forward.6} parent=47 // pred_fallthru
        _
    $region48: #{edsr_forward.6} parent=5 // pred_fallthru
      _
  $region6: #{edsr_forward.6} parent=0 // loop_footer
    %s15 = sadd.s32 1, %s11
  $region7: #{edsr_forward.6} parent=0 // loop_footer_branch
    %10 = sbr.rel target = $region3
  $region8: #{edsr_forward.6} parent=0 // loop_exit
    _

// kernel: edsr_forward.9
$region0: #{edsr_forward.9}
  #allocation0 [shape = 'u32[]', space=smem, size = 0x4, offset = 0x4, fixed_abs, tag = 'smem constant byte address 0x4 - core index']
  #allocation1 [shape = 'u32[144,128]{1,0:T(1,128)}', space=vmem, size = 0x12000, scoped, tag = 'internal scratch']
  %s0 = inlined_call_operand.vmem [shape: bf16[4,512,16], index: 0, kind: input, shape index: {}]
  %s1 = inlined_call_operand.vmem [shape: bf16[4,4,42,16], index: 1, kind: input, shape index: {}]
  %s2 = inlined_call_operand.vmem [shape: f32[512,1], index: 2, kind: input, shape index: {}]
  %s3 = inlined_call_operand.vmem [shape: bf16[4,512,16], index: 3, kind: input, shape index: {}]
  %s4 = inlined_call_operand.vmem [shape: bf16[144,16], index: 4, kind: input, shape index: {}]
  %s5 = inlined_call_operand.vmem [shape: f32[1,16], index: 5, kind: input, shape index: {}]
  %s6 = inlined_call_operand.vmem [shape: bf16[4,512,16], index: 6, kind: output, shape index: {}]
  %s7 = sld [smem:[#allocation0]]
  $region57: #{edsr_forward.9} parent=0
    _
  %s9 = ssub.s32 1, %s7
  %s10 = scalar_select 0, %s9, %s7
  loop: start=0, step=1, limit=18
  $region2: #{edsr_forward.9} parent=0 // loop_pre_header
    _
  $region3: #{edsr_forward.9} parent=0 // loop_header
    %s12 = sphi 0, %s16
    %p13 = scmp.ge.s32.totalorder %s12, 18
    %s19 = sphi 0, %s31
    %s20 = sphi 0, %s27
    %s21 = sphi 0, %s19
    %s22 = sphi 0, %s20
    %s23 = sphi 0, %s21
    %s24 = sphi 0, %s22
    %s36 = sphi 0, %s38
    %s39 = sphi 0, %s36
    %s40 = sphi 0, %s39
    %s56 = sphi 0, %s40
    %s64 = sphi 0, %s66
    %s67 = sphi 0, %s64
    %s68 = sphi 0, %s67
    %s84 = sphi 0, %s68
    %s90 = sphi 0, %s92
    %s93 = sphi 0, %s90
    %s94 = sphi 0, %s93
    %s110 = sphi 0, %s94
    %s118 = sphi 0, %s120
    %s121 = sphi 0, %s118
    %s122 = sphi 0, %s121
    %s138 = sphi 0, %s122
    %s142 = sphi 0, %s142
    %s144 = sphi 0, %s142
    %s145 = sphi 0, %s144
    %s159 = sphi 0, %s145
    %s163 = sphi 0, %s163
    %s165 = sphi 0, %s163
    %s166 = sphi 0, %s165
    %s180 = sphi 0, %s166
    %s188 = sphi 0, %s190
    %s191 = sphi 0, %s188
    %s192 = sphi 0, %s191
    %s208 = sphi 0, %s192
  $region4: #{edsr_forward.9} parent=0 // loop_header_branch
    %15 = sbr.rel (%p13) target = $region8
  $region5: #{edsr_forward.9} parent=0 // loop_body
    %s17 = ssub.s32 %s12, 1
    %s18 = ssub.s32 %s12, 2
    %s25 = sadd.s32 1, %s20
    %p26 = scmp.ge.s32.totalorder %s25, 4
    %s27 = scalar_select %p26, 0, %s25
    %s28 = sadd.s32 1, %s19
    %s29 = scalar_select %p26, %s28, %s19
    %p30 = scmp.ge.s32.totalorder %s29, 4
    %s31 = scalar_select %p30, 0, %s29
    %s32 = ssub.s32 %s19, %s31
    %s33 = ssub.s32 %s20, %s27
    %s34 = sor.u32 %s32, %s33
    %p35 = scmp.eq.s32.totalorder %s34, 0
    %s37 = sadd.s32 %s36, 1
    %s38 = scalar_select %p35, %s36, %s37
    %p41 = pneg %p35
    %p42 = scmp.eq.s32.totalorder %s12, 15
    %p43 = por %p41, %p42
    %p44 = scmp.ne.s32.totalorder %s36, %s39
    %p45 = scmp.eq.s32.totalorder %s12, 0
    %p46 = por %p44, %p45
    %p47 = scmp.ne.s32.totalorder %s36, %s39
    %p48 = scmp.eq.s32.totalorder %s17, 15
    %p49 = por %p47, %p48
    %p50 = scmp.ne.s32.totalorder %s39, %s40
    %p51 = scmp.eq.s32.totalorder %s17, 0
    %p52 = por %p50, %p51
    %p53 = scmp.ne.s32.totalorder %s39, %s40
    %p54 = scmp.eq.s32.totalorder %s18, 15
    %p55 = por %p53, %p54
    %p57 = scmp.ne.s32.totalorder %s40, %s56
    %p58 = scmp.eq.s32.totalorder %s18, 0
    %p59 = por %p57, %p58
    %s60 = ssub.s32 %s19, %s31
    %s61 = ssub.s32 %s20, %s27
    %s62 = sor.u32 %s60, %s61
    %p63 = scmp.eq.s32.totalorder %s62, 0
    %s65 = sadd.s32 %s64, 1
    %s66 = scalar_select %p63, %s64, %s65
    %p69 = pneg %p63
    %p70 = scmp.eq.s32.totalorder %s12, 15
    %p71 = por %p69, %p70
    %p72 = scmp.ne.s32.totalorder %s64, %s67
    %p73 = scmp.eq.s32.totalorder %s12, 0
    %p74 = por %p72, %p73
    %p75 = scmp.ne.s32.totalorder %s64, %s67
    %p76 = scmp.eq.s32.totalorder %s17, 15
    %p77 = por %p75, %p76
    %p78 = scmp.ne.s32.totalorder %s67, %s68
    %p79 = scmp.eq.s32.totalorder %s17, 0
    %p80 = por %p78, %p79
    %p81 = scmp.ne.s32.totalorder %s67, %s68
    %p82 = scmp.eq.s32.totalorder %s18, 15
    %p83 = por %p81, %p82
    %p85 = scmp.ne.s32.totalorder %s68, %s84
    %p86 = scmp.eq.s32.totalorder %s18, 0
    %p87 = por %p85, %p86
    %s88 = ssub.s32 %s20, %s27
    %p89 = scmp.eq.s32.totalorder %s88, 0
    %s91 = sadd.s32 %s90, 1
    %s92 = scalar_select %p89, %s90, %s91
    %p95 = pneg %p89
    %p96 = scmp.eq.s32.totalorder %s12, 15
    %p97 = por %p95, %p96
    %p98 = scmp.ne.s32.totalorder %s90, %s93
    %p99 = scmp.eq.s32.totalorder %s12, 0
    %p100 = por %p98, %p99
    %p101 = scmp.ne.s32.totalorder %s90, %s93
    %p102 = scmp.eq.s32.totalorder %s17, 15
    %p103 = por %p101, %p102
    %p104 = scmp.ne.s32.totalorder %s93, %s94
    %p105 = scmp.eq.s32.totalorder %s17, 0
    %p106 = por %p104, %p105
    %p107 = scmp.ne.s32.totalorder %s93, %s94
    %p108 = scmp.eq.s32.totalorder %s18, 15
    %p109 = por %p107, %p108
    %p111 = scmp.ne.s32.totalorder %s94, %s110
    %p112 = scmp.eq.s32.totalorder %s18, 0
    %p113 = por %p111, %p112
    %s114 = ssub.s32 %s19, %s31
    %s115 = ssub.s32 %s20, %s27
    %s116 = sor.u32 %s114, %s115
    %p117 = scmp.eq.s32.totalorder %s116, 0
    %s119 = sadd.s32 %s118, 1
    %s120 = scalar_select %p117, %s118, %s119
    %p123 = pneg %p117
    %p124 = scmp.eq.s32.totalorder %s12, 15
    %p125 = por %p123, %p124
    %p126 = scmp.ne.s32.totalorder %s118, %s121
    %p127 = scmp.eq.s32.totalorder %s12, 0
    %p128 = por %p126, %p127
    %p129 = scmp.ne.s32.totalorder %s118, %s121
    %p130 = scmp.eq.s32.totalorder %s17, 15
    %p131 = por %p129, %p130
    %p132 = scmp.ne.s32.totalorder %s121, %s122
    %p133 = scmp.eq.s32.totalorder %s17, 0
    %p134 = por %p132, %p133
    %p135 = scmp.ne.s32.totalorder %s121, %s122
    %p136 = scmp.eq.s32.totalorder %s18, 15
    %p137 = por %p135, %p136
    %p139 = scmp.ne.s32.totalorder %s122, %s138
    %p140 = scmp.eq.s32.totalorder %s18, 0
    %p141 = por %p139, %p140
    %s143 = sadd.s32 %s142, 1
    %p146 = scmp.eq.s32.totalorder %s12, 15
    %p147 = scmp.ne.s32.totalorder %s142, %s144
    %p148 = scmp.eq.s32.totalorder %s12, 0
    %p149 = por %p147, %p148
    %p150 = scmp.ne.s32.totalorder %s142, %s144
    %p151 = scmp.eq.s32.totalorder %s17, 15
    %p152 = por %p150, %p151
    %p153 = scmp.ne.s32.totalorder %s144, %s145
    %p154 = scmp.eq.s32.totalorder %s17, 0
    %p155 = por %p153, %p154
    %p156 = scmp.ne.s32.totalorder %s144, %s145
    %p157 = scmp.eq.s32.totalorder %s18, 15
    %p158 = por %p156, %p157
    %p160 = scmp.ne.s32.totalorder %s145, %s159
    %p161 = scmp.eq.s32.totalorder %s18, 0
    %p162 = por %p160, %p161
    %s164 = sadd.s32 %s163, 1
    %p167 = scmp.eq.s32.totalorder %s12, 15
    %p168 = scmp.ne.s32.totalorder %s163, %s165
    %p169 = scmp.eq.s32.totalorder %s12, 0
    %p170 = por %p168, %p169
    %p171 = scmp.ne.s32.totalorder %s163, %s165
    %p172 = scmp.eq.s32.totalorder %s17, 15
    %p173 = por %p171, %p172
    %p174 = scmp.ne.s32.totalorder %s165, %s166
    %p175 = scmp.eq.s32.totalorder %s17, 0
    %p176 = por %p174, %p175
    %p177 = scmp.ne.s32.totalorder %s165, %s166
    %p178 = scmp.eq.s32.totalorder %s18, 15
    %p179 = por %p177, %p178
    %p181 = scmp.ne.s32.totalorder %s166, %s180
    %p182 = scmp.eq.s32.totalorder %s18, 0
    %p183 = por %p181, %p182
    %s184 = ssub.s32 %s19, %s31
    %s185 = ssub.s32 %s20, %s27
    %s186 = sor.u32 %s184, %s185
    %p187 = scmp.eq.s32.totalorder %s186, 0
    %s189 = sadd.s32 %s188, 1
    %s190 = scalar_select %p187, %s188, %s189
    %p193 = pneg %p187
    %p194 = scmp.eq.s32.totalorder %s12, 15
    %p195 = por %p193, %p194
    %p196 = scmp.ne.s32.totalorder %s188, %s191
    %p197 = scmp.eq.s32.totalorder %s12, 0
    %p198 = por %p196, %p197
    %p199 = scmp.ne.s32.totalorder %s188, %s191
    %p200 = scmp.eq.s32.totalorder %s17, 15
    %p201 = por %p199, %p200
    %p202 = scmp.ne.s32.totalorder %s191, %s192
    %p203 = scmp.eq.s32.totalorder %s17, 0
    %p204 = por %p202, %p203
    %p205 = scmp.ne.s32.totalorder %s191, %s192
    %p206 = scmp.eq.s32.totalorder %s18, 15
    %p207 = por %p205, %p206
    %p209 = scmp.ne.s32.totalorder %s192, %s208
    %p210 = scmp.eq.s32.totalorder %s18, 0
    %p211 = por %p209, %p210
    %p212 = scmp.le.s32.totalorder 1, %s12
    %p213 = scmp.lt.s32.totalorder %s12, 17
    %p214 = pnand %p212, %p213
    %p215 = pneg %p214
    // Predicated region
    $region9: #{edsr_forward.9} parent=5 // pred_check
      _
    $region10: #{edsr_forward.9} parent=5 // pred_check_branch
      %217 = sbr.rel (%p214) target = $region12
    $region11: #{edsr_forward.9} parent=5 // pred_region
      %s218 = ssub.s32 %s12, 1
      // Predicated region
      $region13: #{edsr_forward.9} parent=11 // pred_check
        %p219 = pneg %p155
      $region14: #{edsr_forward.9} parent=11 // pred_check_branch
        %221 = sbr.rel (%p219) target = $region16
      $region15: #{edsr_forward.9} parent=11 // pred_region
        _
      $region16: #{edsr_forward.9} parent=11 // pred_fallthru
        _
      // Predicated region
      $region17: #{edsr_forward.9} parent=11 // pred_check
        %p222 = pneg %p176
      $region18: #{edsr_forward.9} parent=11 // pred_check_branch
        %224 = sbr.rel (%p222) target = $region20
      $region19: #{edsr_forward.9} parent=11 // pred_region
        _
      $region20: #{edsr_forward.9} parent=11 // pred_fallthru
        _
    $region12: #{edsr_forward.9} parent=5 // pred_fallthru
      _
    %p225 = scmp.lt.s32.totalorder %s12, 16
    // Predicated region
    $region21: #{edsr_forward.9} parent=5 // pred_check
      %p226 = pneg %p225
    $region22: #{edsr_forward.9} parent=5 // pred_check_branch
      %228 = sbr.rel (%p226) target = $region24
    $region23: #{edsr_forward.9} parent=5 // pred_region
      // Predicated region
      $region25: #{edsr_forward.9} parent=23 // pred_check
        %p229 = pneg %p46
      $region26: #{edsr_forward.9} parent=23 // pred_check_branch
        %231 = sbr.rel (%p229) target = $region28
      $region27: #{edsr_forward.9} parent=23 // pred_region
        %s232 = smul.u32 16, %s20
        %p233 = scmp.lt.s32.totalorder %s19, 3
        %s234 = scalar_select %p233, %s19, 3
        %p235 = scmp.lt.s32.totalorder %s232, 63
        %s236 = scalar_select %p235, %s232, 63
        %s237 = smul.addr %s234, 64
        %s238 = sadd.s32 %s236, %s237
        %s239 = smul.addr %s238, 4
        %s240 = scalar_lea.vmem %s0, %s239
        %s241 = smul.u32 16, %s20
      $region28: #{edsr_forward.9} parent=23 // pred_fallthru
        _
      // Predicated region
      $region29: #{edsr_forward.9} parent=23 // pred_check
        %p242 = pneg %p74
      $region30: #{edsr_forward.9} parent=23 // pred_check_branch
        %244 = sbr.rel (%p242) target = $region32
      $region31: #{edsr_forward.9} parent=23 // pred_region
        %p245 = scmp.lt.s32.totalorder %s19, 3
        %s246 = scalar_select %p245, %s19, 3
        %p247 = scmp.lt.s32.totalorder %s20, 3
        %s248 = scalar_select %p247, %s20, 3
        %s249 = smul.addr %s248, 6
        %s250 = smul.addr %s246, 24
        %s251 = sadd.s32 %s249, %s250
        %s252 = smul.addr %s251, 4
        %s253 = scalar_lea.vmem %s1, %s252
      $region32: #{edsr_forward.9} parent=23 // pred_fallthru
        _
      // Predicated region
      $region33: #{edsr_forward.9} parent=23 // pred_check
        %p254 = pneg %p100
      $region34: #{edsr_forward.9} parent=23 // pred_check_branch
        %256 = sbr.rel (%p254) target = $region36
      $region35: #{edsr_forward.9} parent=23 // pred_region
        %s257 = smul.u32 16, %s20
        %p258 = scmp.lt.s32.totalorder %s257, 63
        %s259 = scalar_select %p258, %s257, 63
        %s260 = smul.addr %s259, 8
        %s261 = scalar_lea.vmem %s2, %s260
        %s262 = smul.u32 16, %s20
      $region36: #{edsr_forward.9} parent=23 // pred_fallthru
        _
      // Predicated region
      $region37: #{edsr_forward.9} parent=23 // pred_check
        %p263 = pneg %p128
      $region38: #{edsr_forward.9} parent=23 // pred_check_branch
        %265 = sbr.rel (%p263) target = $region40
      $region39: #{edsr_forward.9} parent=23 // pred_region
        %s266 = smul.u32 16, %s20
        %p267 = scmp.lt.s32.totalorder %s19, 3
        %s268 = scalar_select %p267, %s19, 3
        %p269 = scmp.lt.s32.totalorder %s266, 63
        %s270 = scalar_select %p269, %s266, 63
        %s271 = smul.addr %s268, 64
        %s272 = sadd.s32 %s270, %s271
        %s273 = smul.addr %s272, 4
        %s274 = scalar_lea.vmem %s3, %s273
        %s275 = smul.u32 16, %s20
      $region40: #{edsr_forward.9} parent=23 // pred_fallthru
        _
    $region24: #{edsr_forward.9} parent=5 // pred_fallthru
      _
    %p276 = scmp.le.s32.totalorder 1, %s12
    %p277 = scmp.lt.s32.totalorder %s12, 17
    %p278 = pnand %p276, %p277
    %p279 = pneg %p278
    // Predicated region
    $region41: #{edsr_forward.9} parent=5 // pred_check
      _
    $region42: #{edsr_forward.9} parent=5 // pred_check_branch
      %281 = sbr.rel (%p278) target = $region44
    $region43: #{edsr_forward.9} parent=5 // pred_region
      %s282 = ssub.s32 %s12, 1
      %s283 = smul.u32 16, %s22
      %p284 = scmp.lt.s32.totalorder %s21, 3
      %s285 = scalar_select %p284, %s21, 3
      %p286 = scmp.lt.s32.totalorder %s283, 63
      %s287 = scalar_select %p286, %s283, 63
      %s288 = smul.addr %s285, 64
      %s289 = sadd.s32 %s287, %s288
      %s290 = smul.addr %s289, 4
      %s291 = scalar_lea.vmem %s0, %s290
      %p292 = pneg %p52
      %p293 = pneg %p49
      %p294 = scmp.lt.s32.totalorder %s21, 3
      %s295 = scalar_select %p294, %s21, 3
      %p296 = scmp.lt.s32.totalorder %s22, 3
      %s297 = scalar_select %p296, %s22, 3
      %s298 = smul.addr %s297, 6
      %s299 = smul.addr %s295, 24
      %s300 = sadd.s32 %s298, %s299
      %s301 = smul.addr %s300, 4
      %s302 = scalar_lea.vmem %s1, %s301
      %p303 = pneg %p80
      %p304 = pneg %p77
      %s305 = smul.u32 16, %s22
      %p306 = scmp.lt.s32.totalorder %s305, 63
      %s307 = scalar_select %p306, %s305, 63
      %s308 = smul.addr %s307, 8
      %s309 = scalar_lea.vmem %s2, %s308
      %p310 = pneg %p106
      %p311 = pneg %p103
      %s312 = smul.u32 16, %s22
      %p313 = scmp.lt.s32.totalorder %s21, 3
      %s314 = scalar_select %p313, %s21, 3
      %p315 = scmp.lt.s32.totalorder %s312, 63
      %s316 = scalar_select %p315, %s312, 63
      %s317 = smul.addr %s314, 64
      %s318 = sadd.s32 %s316, %s317
      %s319 = smul.addr %s318, 4
      %s320 = scalar_lea.vmem %s3, %s319
      %p321 = pneg %p134
      %p322 = pneg %p131
      %p323 = pneg %p155
      %p324 = pneg %p152
      %p325 = pneg %p176
      %p326 = pneg %p173
      %p327 = pneg %p204
      %p328 = pneg %p201
      %s329 = smul.u32 16, %s22
      %p330 = scmp.lt.s32.totalorder %s21, 3
      %s331 = scalar_select %p330, %s21, 3
      %p332 = scmp.lt.s32.totalorder %s329, 63
      %s333 = scalar_select %p332, %s329, 63
      %s334 = smul.addr %s331, 64
      %s335 = sadd.s32 %s333, %s334
      %s336 = smul.addr %s335, 4
      %s337 = scalar_lea.vmem %s6, %s336
      %s338 = smul.u32 16, %s22
      %p339 = scmp.lt.s32.totalorder %s21, 3
      %s340 = scalar_select %p339, %s21, 3
      %p341 = scmp.lt.s32.totalorder %s338, 63
      %s342 = scalar_select %p341, %s338, 63
      %s343 = smul.addr %s340, 64
      %s344 = sadd.s32 %s342, %s343
      %s345 = smul.addr %s344, 4
      %s346 = scalar_lea.vmem %s0, %s345
      %s347 = smul.u32 16, %s22
      %p348 = scmp.lt.s32.totalorder %s21, 3
      %s349 = scalar_select %p348, %s21, 3
      %p350 = scmp.lt.s32.totalorder %s22, 3
      %s351 = scalar_select %p350, %s22, 3
      %s352 = smul.addr %s351, 6
      %s353 = smul.addr %s349, 24
      %s354 = sadd.s32 %s352, %s353
      %s355 = smul.addr %s354, 4
      %s356 = scalar_lea.vmem %s1, %s355
      %s357 = smul.u32 16, %s22
      %p358 = scmp.lt.s32.totalorder %s357, 63
      %s359 = scalar_select %p358, %s357, 63
      %s360 = smul.addr %s359, 8
      %s361 = scalar_lea.vmem %s2, %s360
      %s362 = smul.u32 16, %s22
      %s363 = smul.u32 16, %s22
      %p364 = scmp.lt.s32.totalorder %s21, 3
      %s365 = scalar_select %p364, %s21, 3
      %p366 = scmp.lt.s32.totalorder %s363, 63
      %s367 = scalar_select %p366, %s363, 63
      %s368 = smul.addr %s365, 64
      %s369 = sadd.s32 %s367, %s368
      %s370 = smul.addr %s369, 4
      %s371 = scalar_lea.vmem %s3, %s370
      %s372 = smul.u32 16, %s22
      %s373 = smul.u32 16, %s22
      %p374 = scmp.lt.s32.totalorder %s21, 3
      %s375 = scalar_select %p374, %s21, 3
      %p376 = scmp.lt.s32.totalorder %s373, 63
      %s377 = scalar_select %p376, %s373, 63
      %s378 = smul.addr %s375, 64
      %s379 = sadd.s32 %s377, %s378
      %s380 = smul.addr %s379, 4
      %s381 = scalar_lea.vmem %s6, %s380
      %s382 = smul.u32 16, %s22
      %v384 = vld [vmem:[%s356] sm:$0xf]
      %v385 = vld [vmem:[%s356 + $0x4] sm:$0xf]
      %v386 = vld [vmem:[%s356 + $0x8] sm:$0x7]
      %v387 = vld [vmem:[%s346] sm:$0xf]
      %v388 = vld [vmem:[%s346 + $0x4] sm:$0xf]
      %v389 = vld [vmem:[%s346 + $0x8] sm:$0xf]
      %v390 = vld [vmem:[%s346 + $0xc] sm:$0xf]
      %v391 = vld [vmem:[%s346 + $0x10] sm:$0xf]
      %v392 = vld [vmem:[%s346 + $0x14] sm:$0xf]
      %v393 = vld [vmem:[%s346 + $0x18] sm:$0xf]
      %v394 = vld [vmem:[%s346 + $0x1c] sm:$0xf]
      %v395 = vld [vmem:[%s346 + $0x20] sm:$0xf]
      %v396 = vld [vmem:[%s346 + $0x24] sm:$0xf]
      %v397 = vld [vmem:[%s346 + $0x28] sm:$0xf]
      %v398 = vld [vmem:[%s346 + $0x2c] sm:$0xf]
      %v399 = vld [vmem:[%s346 + $0x30] sm:$0xf]
      %v400 = vld [vmem:[%s346 + $0x34] sm:$0xf]
      %v401 = vld [vmem:[%s346 + $0x38] sm:$0xf]
      %v402 = vld [vmem:[%s346 + $0x3c] sm:$0xf]
      %v403 = vld [vmem:[%s356 + $0x8] sm:$0xc]
      %v404 = vld [vmem:[%s356 + $0xc] sm:$0xf]
      %v405 = vld [vmem:[%s356 + $0x10] sm:$0xf]
      %v406 = vld [vmem:[%s356 + $0x14] sm:$0x1]
      %v410 = vunpack.c.l.b16 %v384
      %v411 = vunpack.c.l.b16 %v385
      %v412 = vunpack.c.l.b16 %v386
      %v413 = vpack.c.b16 %v411, %v410
      %v414 = vpack.c.b16 %v412, %v412
      %v432 = vunpack.c.l.b16 %v387
      %v433 = vunpack.c.l.b16 %v388
      %v434 = vunpack.c.l.b16 %v389
      %v435 = vunpack.c.l.b16 %v390
      %v436 = vunpack.c.l.b16 %v391
      %v437 = vunpack.c.l.b16 %v392
      %v438 = vunpack.c.l.b16 %v393
      %v439 = vunpack.c.l.b16 %v394
      %v440 = vunpack.c.l.b16 %v395
      %v441 = vunpack.c.l.b16 %v396
      %v442 = vunpack.c.l.b16 %v397
      %v443 = vunpack.c.l.b16 %v398
      %v444 = vunpack.c.l.b16 %v399
      %v445 = vunpack.c.l.b16 %v400
      %v446 = vunpack.c.l.b16 %v401
      %v447 = vunpack.c.l.b16 %v402
      %v448 = vpack.c.b16 %v433, %v432
      %v449 = vpack.c.b16 %v435, %v434
      %v450 = vpack.c.b16 %v437, %v436
      %v451 = vpack.c.b16 %v439, %v438
      %v452 = vpack.c.b16 %v441, %v440
      %v453 = vpack.c.b16 %v443, %v442
      %v454 = vpack.c.b16 %v445, %v444
      %v455 = vpack.c.b16 %v447, %v446
      %vm456 = vsmask.f32 2304
      %v458 = vshrl.u32 %v448, 16
      %v460 = vrot.slane %v458, 5
      %v461 = vshll.u32 %v448, 16
      %v463 = vrot.slane %v461, 6
      %v464 = vor.u32 %v460, %v463
      %v466 = vshrl.u32 %v449, 16
      %v468 = vrot.slane %v466, 5
      %v469 = vshll.u32 %v449, 16
      %v471 = vrot.slane %v469, 6
      %v472 = vor.u32 %v468, %v471
      %v473 = vsel %vm456, %v464, %v472
      %v475 = vshrl.u32 %v450, 16
      %v477 = vrot.slane %v475, 5
      %v478 = vshll.u32 %v450, 16
      %v480 = vrot.slane %v478, 6
      %v481 = vor.u32 %v477, %v480
      %v482 = vsel %vm456, %v472, %v481
      %v484 = vshrl.u32 %v451, 16
      %v486 = vrot.slane %v484, 5
      %v487 = vshll.u32 %v451, 16
      %v489 = vrot.slane %v487, 6
      %v490 = vor.u32 %v486, %v489
      %v491 = vsel %vm456, %v481, %v490
      %v493 = vshrl.u32 %v452, 16
      %v495 = vrot.slane %v493, 5
      %v496 = vshll.u32 %v452, 16
      %v498 = vrot.slane %v496, 6
      %v499 = vor.u32 %v495, %v498
      %v500 = vsel %vm456, %v490, %v499
      %v502 = vshrl.u32 %v453, 16
      %v504 = vrot.slane %v502, 5
      %v505 = vshll.u32 %v453, 16
      %v507 = vrot.slane %v505, 6
      %v508 = vor.u32 %v504, %v507
      %v509 = vsel %vm456, %v499, %v508
      %v511 = vshrl.u32 %v454, 16
      %v513 = vrot.slane %v511, 5
      %v514 = vshll.u32 %v454, 16
      %v516 = vrot.slane %v514, 6
      %v517 = vor.u32 %v513, %v516
      %v518 = vsel %vm456, %v508, %v517
      %v520 = vshrl.u32 %v455, 16
      %v522 = vrot.slane %v520, 5
      %v523 = vshll.u32 %v455, 16
      %v525 = vrot.slane %v523, 6
      %v526 = vor.u32 %v522, %v525
      %v527 = vsel %vm456, %v517, %v526
      %v534 = vunpack.c.l.b16 %v403
      %v535 = vunpack.c.l.b16 %v404
      %v536 = vunpack.c.l.b16 %v405
      %v537 = vunpack.c.l.b16 %v406
      %v538 = vpack.c.b16 %v535, %v534
      %v539 = vpack.c.b16 %v537, %v536
      %vm541 = vcmask 1042432
      %vm542 = vmand %vm541, %vm456
      %v543 = vsel %vm542, %v414, %v464
      %v544 = vsel %vm542, %v526, %v538
      %vm545 = vsmask.f32 7424
      %v547 = vshrl.u32 %v413, 16
      %v549 = vshll.u32 %v413, 16
      %v551 = vrot.slane %v549, 1
      %v552 = vor.u32 %v547, %v551
      %v554 = vshll.u32 %v543, 16
      %v556 = vrot.slane %v554, 1
      %v557 = vsel %vm545, %v552, %v556
      %v558 = vshrl.u32 %v543, 16
      %v560 = vor.u32 %v558, %v556
      %v562 = vshll.u32 %v473, 16
      %v564 = vrot.slane %v562, 1
      %v565 = vsel %vm545, %v560, %v564
      %v566 = vshrl.u32 %v473, 16
      %v568 = vor.u32 %v566, %v564
      %v570 = vshll.u32 %v482, 16
      %v572 = vrot.slane %v570, 1
      %v573 = vsel %vm545, %v568, %v572
      %v574 = vshrl.u32 %v482, 16
      %v576 = vor.u32 %v574, %v572
      %v578 = vshll.u32 %v491, 16
      %v580 = vrot.slane %v578, 1
      %v581 = vsel %vm545, %v576, %v580
      %v582 = vshrl.u32 %v491, 16
      %v584 = vor.u32 %v582, %v580
      %v586 = vshll.u32 %v500, 16
      %v588 = vrot.slane %v586, 1
      %v589 = vsel %vm545, %v584, %v588
      %v590 = vshrl.u32 %v500, 16
      %v592 = vor.u32 %v590, %v588
      %v594 = vshll.u32 %v509, 16
      %v596 = vrot.slane %v594, 1
      %v597 = vsel %vm545, %v592, %v596
      %v598 = vshrl.u32 %v509, 16
      %v600 = vor.u32 %v598, %v596
      %v602 = vshll.u32 %v518, 16
      %v604 = vrot.slane %v602, 1
      %v605 = vsel %vm545, %v600, %v604
      %v606 = vshrl.u32 %v518, 16
      %v608 = vor.u32 %v606, %v604
      %v610 = vshll.u32 %v527, 16
      %v612 = vrot.slane %v610, 1
      %v613 = vsel %vm545, %v608, %v612
      %614 = vrot.lane.b32.xlu0 %v557, 16
      %v615 = vpop.permute.xlu0 %614
      %616 = vrot.lane.b32.xlu0 %v565, 16
      %v617 = vpop.permute.xlu0 %616
      %618 = vrot.lane.b32.xlu0 %v573, 16
      %v619 = vpop.permute.xlu0 %618
      %620 = vrot.lane.b32.xlu0 %v581, 16
      %v621 = vpop.permute.xlu0 %620
      %622 = vrot.lane.b32.xlu0 %v589, 16
      %v623 = vpop.permute.xlu0 %622
      %624 = vrot.lane.b32.xlu0 %v597, 16
      %v625 = vpop.permute.xlu0 %624
      %626 = vrot.lane.b32.xlu0 %v605, 16
      %v627 = vpop.permute.xlu0 %626
      %628 = vrot.lane.b32.xlu0 %v613, 16
      %v629 = vpop.permute.xlu0 %628
      %vm631 = vcmask 1046528
      %v632 = vrot.slane %v413, 1
      %v633 = vrot.slane %v543, 1
      %v634 = vsel %vm631, %v632, %v633
      %v635 = vrot.slane %v473, 1
      %v636 = vsel %vm631, %v633, %v635
      %v637 = vrot.slane %v482, 1
      %v638 = vsel %vm631, %v635, %v637
      %v639 = vrot.slane %v491, 1
      %v640 = vsel %vm631, %v637, %v639
      %v641 = vrot.slane %v500, 1
      %v642 = vsel %vm631, %v639, %v641
      %v643 = vrot.slane %v509, 1
      %v644 = vsel %vm631, %v641, %v643
      %v645 = vrot.slane %v518, 1
      %v646 = vsel %vm631, %v643, %v645
      %v647 = vrot.slane %v527, 1
      %v648 = vsel %vm631, %v645, %v647
      %649 = vrot.lane.b32.xlu0 %v634, 32
      %v650 = vpop.permute.xlu0 %649
      %651 = vrot.lane.b32.xlu0 %v636, 32
      %v652 = vpop.permute.xlu0 %651
      %653 = vrot.lane.b32.xlu0 %v638, 32
      %v654 = vpop.permute.xlu0 %653
      %655 = vrot.lane.b32.xlu0 %v640, 32
      %v656 = vpop.permute.xlu0 %655
      %657 = vrot.lane.b32.xlu0 %v642, 32
      %v658 = vpop.permute.xlu0 %657
      %659 = vrot.lane.b32.xlu0 %v644, 32
      %v660 = vpop.permute.xlu0 %659
      %661 = vrot.lane.b32.xlu0 %v646, 32
      %v662 = vpop.permute.xlu0 %661
      %663 = vrot.lane.b32.xlu0 %v648, 32
      %v664 = vpop.permute.xlu0 %663
      %vm666 = vcmask 1045504
      %v667 = vrot.slane %v543, 2
      %v668 = vrot.slane %v473, 2
      %v669 = vsel %vm666, %v667, %v668
      %v670 = vrot.slane %v482, 2
      %v671 = vsel %vm666, %v668, %v670
      %v672 = vrot.slane %v491, 2
      %v673 = vsel %vm666, %v670, %v672
      %v674 = vrot.slane %v500, 2
      %v675 = vsel %vm666, %v672, %v674
      %v676 = vrot.slane %v509, 2
      %v677 = vsel %vm666, %v674, %v676
      %v678 = vrot.slane %v518, 2
      %v679 = vsel %vm666, %v676, %v678
      %v680 = vrot.slane %v527, 2
      %v681 = vsel %vm666, %v678, %v680
      %v682 = vrot.slane %v544, 2
      %v683 = vsel %vm666, %v680, %v682
      %684 = vrot.lane.b32.xlu0 %v669, 48
      %v685 = vpop.permute.xlu0 %684
      %686 = vrot.lane.b32.xlu0 %v671, 48
      %v687 = vpop.permute.xlu0 %686
      %688 = vrot.lane.b32.xlu0 %v673, 48
      %v689 = vpop.permute.xlu0 %688
      %690 = vrot.lane.b32.xlu0 %v675, 48
      %v691 = vpop.permute.xlu0 %690
      %692 = vrot.lane.b32.xlu0 %v677, 48
      %v693 = vpop.permute.xlu0 %692
      %694 = vrot.lane.b32.xlu0 %v679, 48
      %v695 = vpop.permute.xlu0 %694
      %696 = vrot.lane.b32.xlu0 %v681, 48
      %v697 = vpop.permute.xlu0 %696
      %698 = vrot.lane.b32.xlu0 %v683, 48
      %v699 = vpop.permute.xlu0 %698
      %vm700 = vsmask.f32 5376
      %v701 = vrot.slane %v558, 2
      %v702 = vrot.slane %v554, 3
      %v703 = vor.u32 %v701, %v702
      %v704 = vrot.slane %v566, 2
      %v705 = vrot.slane %v562, 3
      %v706 = vor.u32 %v704, %v705
      %v707 = vsel %vm700, %v703, %v706
      %v708 = vrot.slane %v574, 2
      %v709 = vrot.slane %v570, 3
      %v710 = vor.u32 %v708, %v709
      %v711 = vsel %vm700, %v706, %v710
      %v712 = vrot.slane %v582, 2
      %v713 = vrot.slane %v578, 3
      %v714 = vor.u32 %v712, %v713
      %v715 = vsel %vm700, %v710, %v714
      %v716 = vrot.slane %v590, 2
      %v717 = vrot.slane %v586, 3
      %v718 = vor.u32 %v716, %v717
      %v719 = vsel %vm700, %v714, %v718
      %v720 = vrot.slane %v598, 2
      %v721 = vrot.slane %v594, 3
      %v722 = vor.u32 %v720, %v721
      %v723 = vsel %vm700, %v718, %v722
      %v724 = vrot.slane %v606, 2
      %v725 = vrot.slane %v602, 3
      %v726 = vor.u32 %v724, %v725
      %v727 = vsel %vm700, %v722, %v726
      %v728 = vshrl.u32 %v527, 16
      %v730 = vrot.slane %v728, 2
      %v731 = vrot.slane %v610, 3
      %v732 = vor.u32 %v730, %v731
      %v733 = vsel %vm700, %v726, %v732
      %v735 = vshrl.u32 %v544, 16
      %v737 = vrot.slane %v735, 2
      %v738 = vshll.u32 %v544, 16
      %v740 = vrot.slane %v738, 3
      %v741 = vor.u32 %v737, %v740
      %v742 = vsel %vm700, %v732, %v741
      %743 = vrot.lane.b32.xlu0 %v707, 64
      %v744 = vpop.permute.xlu0 %743
      %745 = vrot.lane.b32.xlu0 %v711, 64
      %v746 = vpop.permute.xlu0 %745
      %747 = vrot.lane.b32.xlu0 %v715, 64
      %v748 = vpop.permute.xlu0 %747
      %749 = vrot.lane.b32.xlu0 %v719, 64
      %v750 = vpop.permute.xlu0 %749
      %751 = vrot.lane.b32.xlu0 %v723, 64
      %v752 = vpop.permute.xlu0 %751
      %753 = vrot.lane.b32.xlu0 %v727, 64
      %v754 = vpop.permute.xlu0 %753
      %755 = vrot.lane.b32.xlu0 %v733, 64
      %v756 = vpop.permute.xlu0 %755
      %757 = vrot.lane.b32.xlu0 %v742, 64
      %v758 = vpop.permute.xlu0 %757
      %vm759 = vcmask 1044480
      %v760 = vrot.slane %v543, 3
      %v761 = vrot.slane %v473, 3
      %v762 = vsel %vm759, %v760, %v761
      %v763 = vrot.slane %v482, 3
      %v764 = vsel %vm759, %v761, %v763
      %v765 = vrot.slane %v491, 3
      %v766 = vsel %vm759, %v763, %v765
      %v767 = vrot.slane %v500, 3
      %v768 = vsel %vm759, %v765, %v767
      %v769 = vrot.slane %v509, 3
      %v770 = vsel %vm759, %v767, %v769
      %v771 = vrot.slane %v518, 3
      %v772 = vsel %vm759, %v769, %v771
      %v773 = vrot.slane %v527, 3
      %v774 = vsel %vm759, %v771, %v773
      %v775 = vrot.slane %v544, 3
      %v776 = vsel %vm759, %v773, %v775
      %777 = vrot.lane.b32.xlu0 %v762, 80
      %v778 = vpop.permute.xlu0 %777
      %779 = vrot.lane.b32.xlu0 %v764, 80
      %v780 = vpop.permute.xlu0 %779
      %781 = vrot.lane.b32.xlu0 %v766, 80
      %v782 = vpop.permute.xlu0 %781
      %783 = vrot.lane.b32.xlu0 %v768, 80
      %v784 = vpop.permute.xlu0 %783
      %785 = vrot.lane.b32.xlu0 %v770, 80
      %v786 = vpop.permute.xlu0 %785
      %787 = vrot.lane.b32.xlu0 %v772, 80
      %v788 = vpop.permute.xlu0 %787
      %789 = vrot.lane.b32.xlu0 %v774, 80
      %v790 = vpop.permute.xlu0 %789
      %791 = vrot.lane.b32.xlu0 %v776, 80
      %v792 = vpop.permute.xlu0 %791
      %vm793 = vcmask 1043456
      %v794 = vrot.slane %v473, 4
      %v795 = vrot.slane %v482, 4
      %v796 = vsel %vm793, %v794, %v795
      %v797 = vrot.slane %v491, 4
      %v798 = vsel %vm793, %v795, %v797
      %v799 = vrot.slane %v500, 4
      %v800 = vsel %vm793, %v797, %v799
      %v801 = vrot.slane %v509, 4
      %v802 = vsel %vm793, %v799, %v801
      %v803 = vrot.slane %v518, 4
      %v804 = vsel %vm793, %v801, %v803
      %v805 = vrot.slane %v527, 4
      %v806 = vsel %vm793, %v803, %v805
      %v807 = vrot.slane %v544, 4
      %v808 = vsel %vm793, %v805, %v807
      %v809 = vrot.slane %v539, 4
      %v810 = vsel %vm793, %v807, %v809
      %811 = vrot.lane.b32.xlu0 %v796, 96
      %v812 = vpop.permute.xlu0 %811
      %813 = vrot.lane.b32.xlu0 %v798, 96
      %v814 = vpop.permute.xlu0 %813
      %815 = vrot.lane.b32.xlu0 %v800, 96
      %v816 = vpop.permute.xlu0 %815
      %817 = vrot.lane.b32.xlu0 %v802, 96
      %v818 = vpop.permute.xlu0 %817
      %819 = vrot.lane.b32.xlu0 %v804, 96
      %v820 = vpop.permute.xlu0 %819
      %821 = vrot.lane.b32.xlu0 %v806, 96
      %v822 = vpop.permute.xlu0 %821
      %823 = vrot.lane.b32.xlu0 %v808, 96
      %v824 = vpop.permute.xlu0 %823
      %825 = vrot.lane.b32.xlu0 %v810, 96
      %v826 = vpop.permute.xlu0 %825
      %vm827 = vsmask.f32 3328
      %v828 = vrot.slane %v566, 4
      %v829 = vrot.slane %v562, 5
      %v830 = vor.u32 %v828, %v829
      %v831 = vrot.slane %v574, 4
      %v832 = vrot.slane %v570, 5
      %v833 = vor.u32 %v831, %v832
      %v834 = vsel %vm827, %v830, %v833
      %v835 = vrot.slane %v582, 4
      %v836 = vrot.slane %v578, 5
      %v837 = vor.u32 %v835, %v836
      %v838 = vsel %vm827, %v833, %v837
      %v839 = vrot.slane %v590, 4
      %v840 = vrot.slane %v586, 5
      %v841 = vor.u32 %v839, %v840
      %v842 = vsel %vm827, %v837, %v841
      %v843 = vrot.slane %v598, 4
      %v844 = vrot.slane %v594, 5
      %v845 = vor.u32 %v843, %v844
      %v846 = vsel %vm827, %v841, %v845
      %v847 = vrot.slane %v606, 4
      %v848 = vrot.slane %v602, 5
      %v849 = vor.u32 %v847, %v848
      %v850 = vsel %vm827, %v845, %v849
      %v851 = vrot.slane %v728, 4
      %v852 = vrot.slane %v610, 5
      %v853 = vor.u32 %v851, %v852
      %v854 = vsel %vm827, %v849, %v853
      %v855 = vrot.slane %v735, 4
      %v856 = vrot.slane %v738, 5
      %v857 = vor.u32 %v855, %v856
      %v858 = vsel %vm827, %v853, %v857
      %v860 = vshrl.u32 %v539, 16
      %v862 = vrot.slane %v860, 4
      %v863 = vshll.u32 %v539, 16
      %v865 = vrot.slane %v863, 5
      %v866 = vor.u32 %v862, %v865
      %v867 = vsel %vm827, %v857, %v866
      %868 = vrot.lane.b32.xlu0 %v834, 112
      %v869 = vpop.permute.xlu0 %868
      %870 = vrot.lane.b32.xlu0 %v838, 112
      %v871 = vpop.permute.xlu0 %870
      %872 = vrot.lane.b32.xlu0 %v842, 112
      %v873 = vpop.permute.xlu0 %872
      %874 = vrot.lane.b32.xlu0 %v846, 112
      %v875 = vpop.permute.xlu0 %874
      %876 = vrot.lane.b32.xlu0 %v850, 112
      %v877 = vpop.permute.xlu0 %876
      %878 = vrot.lane.b32.xlu0 %v854, 112
      %v879 = vpop.permute.xlu0 %878
      %880 = vrot.lane.b32.xlu0 %v858, 112
      %v881 = vpop.permute.xlu0 %880
      %882 = vrot.lane.b32.xlu0 %v867, 112
      %v883 = vpop.permute.xlu0 %882
      %v884 = vrot.slane %v473, 5
      %v885 = vrot.slane %v482, 5
      %v886 = vsel %vm541, %v884, %v885
      %v887 = vrot.slane %v491, 5
      %v888 = vsel %vm541, %v885, %v887
      %v889 = vrot.slane %v500, 5
      %v890 = vsel %vm541, %v887, %v889
      %v891 = vrot.slane %v509, 5
      %v892 = vsel %vm541, %v889, %v891
      %v893 = vrot.slane %v518, 5
      %v894 = vsel %vm541, %v891, %v893
      %v895 = vrot.slane %v527, 5
      %v896 = vsel %vm541, %v893, %v895
      %v897 = vrot.slane %v544, 5
      %v898 = vsel %vm541, %v895, %v897
      %v899 = vrot.slane %v539, 5
      %v900 = vsel %vm541, %v897, %v899
      %vm901 = vcmask 130048
      %v903 = vsel %vm901, %v413, %v615
      %v905 = vsel %vm901, %v543, %v617
      %v907 = vsel %vm901, %v473, %v619
      %v909 = vsel %vm901, %v482, %v621
      %v911 = vsel %vm901, %v491, %v623
      %v913 = vsel %vm901, %v500, %v625
      %v915 = vsel %vm901, %v509, %v627
      %v917 = vsel %vm901, %v518, %v629
      %vm918 = vcmask 261120
      %v920 = vsel %vm918, %v903, %v650
      %v922 = vsel %vm918, %v905, %v652
      %v924 = vsel %vm918, %v907, %v654
      %v926 = vsel %vm918, %v909, %v656
      %v928 = vsel %vm918, %v911, %v658
      %v930 = vsel %vm918, %v913, %v660
      %v932 = vsel %vm918, %v915, %v662
      %v934 = vsel %vm918, %v917, %v664
      %vm935 = vcmask 392192
      %v937 = vsel %vm935, %v920, %v685
      %v939 = vsel %vm935, %v922, %v687
      %v941 = vsel %vm935, %v924, %v689
      %v943 = vsel %vm935, %v926, %v691
      %v945 = vsel %vm935, %v928, %v693
      %v947 = vsel %vm935, %v930, %v695
      %v949 = vsel %vm935, %v932, %v697
      %v951 = vsel %vm935, %v934, %v699
      %vm952 = vcmask 523264
      %v954 = vsel %vm952, %v937, %v744
      %v956 = vsel %vm952, %v939, %v746
      %v958 = vsel %vm952, %v941, %v748
      %v960 = vsel %vm952, %v943, %v750
      %v962 = vsel %vm952, %v945, %v752
      %v964 = vsel %vm952, %v947, %v754
      %v966 = vsel %vm952, %v949, %v756
      %v968 = vsel %vm952, %v951, %v758
      %vm969 = vcmask 654336
      %v971 = vsel %vm969, %v954, %v778
      %v973 = vsel %vm969, %v956, %v780
      %v975 = vsel %vm969, %v958, %v782
      %v977 = vsel %vm969, %v960, %v784
      %v979 = vsel %vm969, %v962, %v786
      %v981 = vsel %vm969, %v964, %v788
      %v983 = vsel %vm969, %v966, %v790
      %v985 = vsel %vm969, %v968, %v792
      %vm986 = vcmask 785408
      %v988 = vsel %vm986, %v971, %v812
      %v990 = vsel %vm986, %v973, %v814
      %v992 = vsel %vm986, %v975, %v816
      %v994 = vsel %vm986, %v977, %v818
      %v996 = vsel %vm986, %v979, %v820
      %v998 = vsel %vm986, %v981, %v822
      %v1000 = vsel %vm986, %v983, %v824
      %v1002 = vsel %vm986, %v985, %v826
      %vm1003 = vcmask 916480
      %v1005 = vsel %vm1003, %v988, %v869
      %v1008 = vsel %vm1003, %v990, %v871
      %v1011 = vsel %vm1003, %v992, %v873
      %v1014 = vsel %vm1003, %v994, %v875
      %v1017 = vsel %vm1003, %v996, %v877
      %v1020 = vsel %vm1003, %v998, %v879
      %v1023 = vsel %vm1003, %v1000, %v881
      %v1026 = vsel %vm1003, %v1002, %v883
      %v1028 = vld [vmem:[%s4] sm:$0xf]
      %v1029 = vld [vmem:[%s4 + $0x4] sm:$0xf]
      %v1030 = vld [vmem:[%s4 + $0x8] sm:$0xf]
      %v1031 = vld [vmem:[%s4 + $0xc] sm:$0xf]
      %v1032 = vld [vmem:[%s4 + $0x10] sm:$0xf]
      %v1033 = vld [vmem:[%s4 + $0x14] sm:$0xf]
      %v1034 = vld [vmem:[%s4 + $0x18] sm:$0xf]
      %v1035 = vld [vmem:[%s4 + $0x1c] sm:$0xf]
      %v1036 = vld [vmem:[%s4 + $0x20] sm:$0xf]
      %v1037 = vld [vmem:[%s4 + $0x24] sm:$0xf]
      %v1038 = vld [vmem:[%s4 + $0x28] sm:$0xf]
      %v1039 = vld [vmem:[%s4 + $0x2c] sm:$0xf]
      %v1040 = vld [vmem:[%s4 + $0x30] sm:$0xf]
      %v1041 = vld [vmem:[%s4 + $0x34] sm:$0xf]
      %v1042 = vld [vmem:[%s4 + $0x38] sm:$0xf]
      %v1043 = vld [vmem:[%s4 + $0x3c] sm:$0xf]
      %v1044 = vld [vmem:[%s4 + $0x40] sm:$0xf]
      %v1045 = vld [vmem:[%s4 + $0x44] sm:$0xf]
      %v1046 = vld [vmem:[%s5] sm:$0x1]
      %v1048 = vlaneseq
      %v1049 = vshrl.u32 %v1048, 7
      %v1050 = vsub.s32 0, %v1049
      %v1051 = vrot.slane %v1046, %v1050
      %v1071 = vunpack.c.l.b16 %v1028
      %v1072 = vunpack.c.l.b16 %v1029
      %v1073 = vunpack.c.l.b16 %v1030
      %v1074 = vunpack.c.l.b16 %v1031
      %v1075 = vunpack.c.l.b16 %v1032
      %v1076 = vunpack.c.l.b16 %v1033
      %v1077 = vunpack.c.l.b16 %v1034
      %v1078 = vunpack.c.l.b16 %v1035
      %v1079 = vunpack.c.l.b16 %v1036
      %v1080 = vunpack.c.l.b16 %v1037
      %v1081 = vunpack.c.l.b16 %v1038
      %v1082 = vunpack.c.l.b16 %v1039
      %v1083 = vunpack.c.l.b16 %v1040
      %v1084 = vunpack.c.l.b16 %v1041
      %v1085 = vunpack.c.l.b16 %v1042
      %v1086 = vunpack.c.l.b16 %v1043
      %v1087 = vunpack.c.l.b16 %v1044
      %v1088 = vunpack.c.l.b16 %v1045
      %v1089 = vpack.c.b16 %v1072, %v1071
      %v1090 = vpack.c.b16 %v1074, %v1073
      %v1091 = vpack.c.b16 %v1076, %v1075
      %v1092 = vpack.c.b16 %v1078, %v1077
      %v1093 = vpack.c.b16 %v1080, %v1079
      %v1094 = vpack.c.b16 %v1082, %v1081
      %v1095 = vpack.c.b16 %v1084, %v1083
      %v1096 = vpack.c.b16 %v1086, %v1085
      %v1097 = vpack.c.b16 %v1088, %v1087
      %v1108 = vsel %vm901, %v886, 0
      %v1111 = vsel %vm901, %v888, 0
      %v1114 = vsel %vm901, %v890, 0
      %v1117 = vsel %vm901, %v892, 0
      %v1120 = vsel %vm901, %v894, 0
      %v1123 = vsel %vm901, %v896, 0
      %v1126 = vsel %vm901, %v898, 0
      %v1129 = vsel %vm901, %v900, 0
      %1131 = vmatprep.subr.bf16.mxu0 0
      %1132 = vmatpush1.bf16.msra.mxu0 %v1089
      %1133 = vmatprep.subr.bf16.mxu0 0
      %1134 = vmatpush1.bf16.msra.mxu0 %v1090
      %1135 = vmatprep.subr.bf16.mxu0 0
      %1136 = vmatpush1.bf16.msra.mxu0 %v1091
      %1137 = vmatprep.subr.bf16.mxu0 0
      %1138 = vmatpush1.bf16.msra.mxu0 %v1092
      %1139 = vmatprep.subr.bf16.mxu0 0
      %1140 = vmatpush1.bf16.msra.mxu0 %v1093
      %1141 = vmatprep.subr.bf16.mxu0 0
      %1142 = vmatpush1.bf16.msra.mxu0 %v1094
      %1143 = vmatprep.subr.bf16.mxu0 0
      %1144 = vmatpush1.bf16.msra.mxu0 %v1095
      %1145 = vmatprep.subr.bf16.mxu0 0
      %1146 = vmatpush1.bf16.msra.mxu0 %v1096
      %1147 = vmatprep.subr.bf16.mxu0 0
      %1148 = vmatpush1.bf16.msra.mxu0 %v1097
      %1149 = vmatprep.subr.bf16.mxu0 0
      %1150 = vmatpush1.bf16.msra.mxu0 0
      %1151 = vmatprep.subr.bf16.mxu0 0
      %1152 = vmatpush1.bf16.msra.mxu0 0
      %1153 = vmatprep.subr.bf16.mxu0 0
      %1154 = vmatpush1.bf16.msra.mxu0 0
      %1155 = vmatprep.subr.bf16.mxu0 0
      %1156 = vmatpush1.bf16.msra.mxu0 0
      %1157 = vmatprep.subr.bf16.mxu0 0
      %1158 = vmatpush1.bf16.msra.mxu0 0
      %1159 = vmatprep.subr.bf16.mxu0 0
      %1160 = vmatpush1.bf16.msra.mxu0 0
      %1161 = vmatprep.subr.bf16.mxu0 0
      %1162 = vmatpush1.bf16.msra.mxu0 0
      %1163 = vmatprep.mubr.bf16.mxu0 %v1108
      %1164 = vmatmul.mubr.bf16.gmra.mrb[0].mxu0 %v1005
      %v1165 = vpop.f32.mrb[0].mxu0
      %v1166 = vadd.f32 %v1051, %v1165
      %v1167 = vpop.f32.mrb[0].mxu0
      %v1168 = vpop.f32.mrb[0].mxu0
      %v1169 = vadd.f32 %v1051, %v1168
      %v1170 = vpop.f32.mrb[0].mxu0
      %1171 = vmatprep.mubr.bf16.mxu0 %v1111
      %1172 = vmatmul.mubr.bf16.gmra.mrb[0].mxu0 %v1008
      %v1173 = vpop.f32.mrb[0].mxu0
      %v1174 = vadd.f32 %v1051, %v1173
      %v1175 = vpop.f32.mrb[0].mxu0
      %v1176 = vpop.f32.mrb[0].mxu0
      %v1177 = vadd.f32 %v1051, %v1176
      %v1178 = vpop.f32.mrb[0].mxu0
      %1179 = vmatprep.mubr.bf16.mxu0 %v1114
      %1180 = vmatmul.mubr.bf16.gmra.mrb[0].mxu0 %v1011
      %v1181 = vpop.f32.mrb[0].mxu0
      %v1182 = vadd.f32 %v1051, %v1181
      %v1183 = vpop.f32.mrb[0].mxu0
      %v1184 = vpop.f32.mrb[0].mxu0
      %v1185 = vadd.f32 %v1051, %v1184
      %v1186 = vpop.f32.mrb[0].mxu0
      %1187 = vmatprep.mubr.bf16.mxu0 %v1117
      %1188 = vmatmul.mubr.bf16.gmra.mrb[0].mxu0 %v1014
      %v1189 = vpop.f32.mrb[0].mxu0
      %v1190 = vadd.f32 %v1051, %v1189
      %v1191 = vpop.f32.mrb[0].mxu0
      %v1192 = vpop.f32.mrb[0].mxu0
      %v1193 = vadd.f32 %v1051, %v1192
      %v1194 = vpop.f32.mrb[0].mxu0
      %1195 = vmatprep.mubr.bf16.mxu0 %v1120
      %1196 = vmatmul.mubr.bf16.gmra.mrb[0].mxu0 %v1017
      %v1197 = vpop.f32.mrb[0].mxu0
      %v1198 = vadd.f32 %v1051, %v1197
      %v1199 = vpop.f32.mrb[0].mxu0
      %v1200 = vpop.f32.mrb[0].mxu0
      %v1201 = vadd.f32 %v1051, %v1200
      %v1202 = vpop.f32.mrb[0].mxu0
      %1203 = vmatprep.mubr.bf16.mxu0 %v1123
      %1204 = vmatmul.mubr.bf16.gmra.mrb[0].mxu0 %v1020
      %v1205 = vpop.f32.mrb[0].mxu0
      %v1206 = vadd.f32 %v1051, %v1205
      %v1207 = vpop.f32.mrb[0].mxu0
      %v1208 = vpop.f32.mrb[0].mxu0
      %v1209 = vadd.f32 %v1051, %v1208
      %v1210 = vpop.f32.mrb[0].mxu0
      %1211 = vmatprep.mubr.bf16.mxu0 %v1126
      %1212 = vmatmul.mubr.bf16.gmra.mrb[0].mxu0 %v1023
      %v1213 = vpop.f32.mrb[0].mxu0
      %v1214 = vadd.f32 %v1051, %v1213
      %v1215 = vpop.f32.mrb[0].mxu0
      %v1216 = vpop.f32.mrb[0].mxu0
      %v1217 = vadd.f32 %v1051, %v1216
      %v1218 = vpop.f32.mrb[0].mxu0
      %1219 = vmatprep.mubr.bf16.mxu0 %v1129
      %1220 = vmatmul.mubr.bf16.gmra.mrb[0].mxu0 %v1026
      %v1221 = vpop.f32.mrb[0].mxu0
      %v1222 = vadd.f32 %v1051, %v1221
      %v1223 = vpop.f32.mrb[0].mxu0
      %v1224 = vpop.f32.mrb[0].mxu0
      %v1225 = vadd.f32 %v1051, %v1224
      %v1226 = vpop.f32.mrb[0].mxu0
      %1227 = vdwg.mxu0
      %v1228 = vld [vmem:[%s371] sm:$0xf]
      %v1229 = vld [vmem:[%s371 + $0x4] sm:$0xf]
      %v1230 = vld [vmem:[%s371 + $0x8] sm:$0xf]
      %v1231 = vld [vmem:[%s371 + $0xc] sm:$0xf]
      %v1232 = vld [vmem:[%s371 + $0x10] sm:$0xf]
      %v1233 = vld [vmem:[%s371 + $0x14] sm:$0xf]
      %v1234 = vld [vmem:[%s371 + $0x18] sm:$0xf]
      %v1235 = vld [vmem:[%s371 + $0x1c] sm:$0xf]
      %v1236 = vld [vmem:[%s371 + $0x20] sm:$0xf]
      %v1237 = vld [vmem:[%s371 + $0x24] sm:$0xf]
      %v1238 = vld [vmem:[%s371 + $0x28] sm:$0xf]
      %v1239 = vld [vmem:[%s371 + $0x2c] sm:$0xf]
      %v1240 = vld [vmem:[%s371 + $0x30] sm:$0xf]
      %v1241 = vld [vmem:[%s371 + $0x34] sm:$0xf]
      %v1242 = vld [vmem:[%s371 + $0x38] sm:$0xf]
      %v1243 = vld [vmem:[%s371 + $0x3c] sm:$0xf]
      %v1244 = vunpack.c.l.bf16 %v1228
      %v1245 = vunpack.c.l.bf16 %v1229
      %v1246 = vunpack.c.l.bf16 %v1230
      %v1247 = vunpack.c.l.bf16 %v1231
      %v1248 = vunpack.c.l.bf16 %v1232
      %v1249 = vunpack.c.l.bf16 %v1233
      %v1250 = vunpack.c.l.bf16 %v1234
      %v1251 = vunpack.c.l.bf16 %v1235
      %v1252 = vunpack.c.l.bf16 %v1236
      %v1253 = vunpack.c.l.bf16 %v1237
      %v1254 = vunpack.c.l.bf16 %v1238
      %v1255 = vunpack.c.l.bf16 %v1239
      %v1256 = vunpack.c.l.bf16 %v1240
      %v1257 = vunpack.c.l.bf16 %v1241
      %v1258 = vunpack.c.l.bf16 %v1242
      %v1259 = vunpack.c.l.bf16 %v1243
      %v1260 = vadd.f32 %v1166, %v1244
      %v1261 = vadd.f32 %v1169, %v1245
      %v1262 = vadd.f32 %v1174, %v1246
      %v1263 = vadd.f32 %v1177, %v1247
      %v1264 = vadd.f32 %v1182, %v1248
      %v1265 = vadd.f32 %v1185, %v1249
      %v1266 = vadd.f32 %v1190, %v1250
      %v1267 = vadd.f32 %v1193, %v1251
      %v1268 = vadd.f32 %v1198, %v1252
      %v1269 = vadd.f32 %v1201, %v1253
      %v1270 = vadd.f32 %v1206, %v1254
      %v1271 = vadd.f32 %v1209, %v1255
      %v1272 = vadd.f32 %v1214, %v1256
      %v1273 = vadd.f32 %v1217, %v1257
      %v1274 = vadd.f32 %v1222, %v1258
      %v1275 = vadd.f32 %v1225, %v1259
      %v1276 = vld [vmem:[%s361] sm:$0xff]
      %v1277 = vld [vmem:[%s361 + $0x8] sm:$0xff]
      %v1278 = vld [vmem:[%s361 + $0x10] sm:$0xff]
      %v1279 = vld [vmem:[%s361 + $0x18] sm:$0xff]
      %v1280 = vld [vmem:[%s361 + $0x20] sm:$0xff]
      %v1281 = vld [vmem:[%s361 + $0x28] sm:$0xff]
      %v1282 = vld [vmem:[%s361 + $0x30] sm:$0xff]
      %v1283 = vld [vmem:[%s361 + $0x38] sm:$0xff]
      %v1284 = vld [vmem:[%s361 + $0x40] sm:$0xff]
      %v1285 = vld [vmem:[%s361 + $0x48] sm:$0xff]
      %v1286 = vld [vmem:[%s361 + $0x50] sm:$0xff]
      %v1287 = vld [vmem:[%s361 + $0x58] sm:$0xff]
      %v1288 = vld [vmem:[%s361 + $0x60] sm:$0xff]
      %v1289 = vld [vmem:[%s361 + $0x68] sm:$0xff]
      %v1290 = vld [vmem:[%s361 + $0x70] sm:$0xff]
      %v1291 = vld [vmem:[%s361 + $0x78] sm:$0xff]
      %1293 = vset.pattern.permute.xlu0 0
      %1294 = vperm.xlu0 %1293, %v1276
      %v1295 = vpop.permute.xlu0 %1294
      %1298 = vset.pattern.permute.xlu0 0
      %1299 = vperm.xlu0 %1298, %v1277
      %v1300 = vpop.permute.xlu0 %1299
      %1303 = vset.pattern.permute.xlu0 0
      %1304 = vperm.xlu0 %1303, %v1278
      %v1305 = vpop.permute.xlu0 %1304
      %1308 = vset.pattern.permute.xlu0 0
      %1309 = vperm.xlu0 %1308, %v1279
      %v1310 = vpop.permute.xlu0 %1309
      %1313 = vset.pattern.permute.xlu0 0
      %1314 = vperm.xlu0 %1313, %v1280
      %v1315 = vpop.permute.xlu0 %1314
      %1318 = vset.pattern.permute.xlu0 0
      %1319 = vperm.xlu0 %1318, %v1281
      %v1320 = vpop.permute.xlu0 %1319
      %1323 = vset.pattern.permute.xlu0 0
      %1324 = vperm.xlu0 %1323, %v1282
      %v1325 = vpop.permute.xlu0 %1324
      %1328 = vset.pattern.permute.xlu0 0
      %1329 = vperm.xlu0 %1328, %v1283
      %v1330 = vpop.permute.xlu0 %1329
      %1333 = vset.pattern.permute.xlu0 0
      %1334 = vperm.xlu0 %1333, %v1284
      %v1335 = vpop.permute.xlu0 %1334
      %1338 = vset.pattern.permute.xlu0 0
      %1339 = vperm.xlu0 %1338, %v1285
      %v1340 = vpop.permute.xlu0 %1339
      %1343 = vset.pattern.permute.xlu0 0
      %1344 = vperm.xlu0 %1343, %v1286
      %v1345 = vpop.permute.xlu0 %1344
      %1348 = vset.pattern.permute.xlu0 0
      %1349 = vperm.xlu0 %1348, %v1287
      %v1350 = vpop.permute.xlu0 %1349
      %1353 = vset.pattern.permute.xlu0 0
      %1354 = vperm.xlu0 %1353, %v1288
      %v1355 = vpop.permute.xlu0 %1354
      %1358 = vset.pattern.permute.xlu0 0
      %1359 = vperm.xlu0 %1358, %v1289
      %v1360 = vpop.permute.xlu0 %1359
      %1363 = vset.pattern.permute.xlu0 0
      %1364 = vperm.xlu0 %1363, %v1290
      %v1365 = vpop.permute.xlu0 %1364
      %1368 = vset.pattern.permute.xlu0 0
      %1369 = vperm.xlu0 %1368, %v1291
      %v1370 = vpop.permute.xlu0 %1369
      %v1372 = vmul.f32 %v1260, %v1295
      %v1373 = vmul.f32 %v1261, %v1300
      %v1374 = vmul.f32 %v1262, %v1305
      %v1375 = vmul.f32 %v1263, %v1310
      %v1376 = vmul.f32 %v1264, %v1315
      %v1377 = vmul.f32 %v1265, %v1320
      %v1378 = vmul.f32 %v1266, %v1325
      %v1379 = vmul.f32 %v1267, %v1330
      %v1380 = vmul.f32 %v1268, %v1335
      %v1381 = vmul.f32 %v1269, %v1340
      %v1382 = vmul.f32 %v1270, %v1345
      %v1383 = vmul.f32 %v1271, %v1350
      %v1384 = vmul.f32 %v1272, %v1355
      %v1385 = vmul.f32 %v1273, %v1360
      %v1386 = vmul.f32 %v1274, %v1365
      %v1387 = vmul.f32 %v1275, %v1370
      %v1388 = vpack.c.bf16 %v1373, %v1372
      %v1389 = vpack.c.bf16 %v1375, %v1374
      %v1390 = vpack.c.bf16 %v1377, %v1376
      %v1391 = vpack.c.bf16 %v1379, %v1378
      %v1392 = vpack.c.bf16 %v1381, %v1380
      %v1393 = vpack.c.bf16 %v1383, %v1382
      %v1394 = vpack.c.bf16 %v1385, %v1384
      %v1395 = vpack.c.bf16 %v1387, %v1386
      %v1404 = vunpack.c.l.b16 %v1388
      %v1405 = vunpack.c.h.b16 %v1388
      %v1406 = vunpack.c.l.b16 %v1389
      %v1407 = vunpack.c.h.b16 %v1389
      %v1408 = vunpack.c.l.b16 %v1390
      %v1409 = vunpack.c.h.b16 %v1390
      %v1410 = vunpack.c.l.b16 %v1391
      %v1411 = vunpack.c.h.b16 %v1391
      %v1412 = vunpack.c.l.b16 %v1392
      %v1413 = vunpack.c.h.b16 %v1392
      %v1414 = vunpack.c.l.b16 %v1393
      %v1415 = vunpack.c.h.b16 %v1393
      %v1416 = vunpack.c.l.b16 %v1394
      %v1417 = vunpack.c.h.b16 %v1394
      %v1418 = vunpack.c.l.b16 %v1395
      %v1419 = vunpack.c.h.b16 %v1395
      %v1420 = vpack.c.b16 %v1404, %v1404
      %v1421 = vpack.c.b16 %v1405, %v1405
      %v1422 = vpack.c.b16 %v1406, %v1406
      %v1423 = vpack.c.b16 %v1407, %v1407
      %v1424 = vpack.c.b16 %v1408, %v1408
      %v1425 = vpack.c.b16 %v1409, %v1409
      %v1426 = vpack.c.b16 %v1410, %v1410
      %v1427 = vpack.c.b16 %v1411, %v1411
      %v1428 = vpack.c.b16 %v1412, %v1412
      %v1429 = vpack.c.b16 %v1413, %v1413
      %v1430 = vpack.c.b16 %v1414, %v1414
      %v1431 = vpack.c.b16 %v1415, %v1415
      %v1432 = vpack.c.b16 %v1416, %v1416
      %v1433 = vpack.c.b16 %v1417, %v1417
      %v1434 = vpack.c.b16 %v1418, %v1418
      %v1435 = vpack.c.b16 %v1419, %v1419
      %vm1452 = vcmask 125952
      %1453 = vst.msk [vmem:[%s381] sm:$0xf] %vm1452, %v1420
      %1454 = vst.msk [vmem:[%s381 + $0x4] sm:$0xf] %vm1452, %v1421
      %1455 = vst.msk [vmem:[%s381 + $0x8] sm:$0xf] %vm1452, %v1422
      %1456 = vst.msk [vmem:[%s381 + $0xc] sm:$0xf] %vm1452, %v1423
      %1457 = vst.msk [vmem:[%s381 + $0x10] sm:$0xf] %vm1452, %v1424
      %1458 = vst.msk [vmem:[%s381 + $0x14] sm:$0xf] %vm1452, %v1425
      %1459 = vst.msk [vmem:[%s381 + $0x18] sm:$0xf] %vm1452, %v1426
      %1460 = vst.msk [vmem:[%s381 + $0x1c] sm:$0xf] %vm1452, %v1427
      %1461 = vst.msk [vmem:[%s381 + $0x20] sm:$0xf] %vm1452, %v1428
      %1462 = vst.msk [vmem:[%s381 + $0x24] sm:$0xf] %vm1452, %v1429
      %1463 = vst.msk [vmem:[%s381 + $0x28] sm:$0xf] %vm1452, %v1430
      %1464 = vst.msk [vmem:[%s381 + $0x2c] sm:$0xf] %vm1452, %v1431
      %1465 = vst.msk [vmem:[%s381 + $0x30] sm:$0xf] %vm1452, %v1432
      %1466 = vst.msk [vmem:[%s381 + $0x34] sm:$0xf] %vm1452, %v1433
      %1467 = vst.msk [vmem:[%s381 + $0x38] sm:$0xf] %vm1452, %v1434
      %1468 = vst.msk [vmem:[%s381 + $0x3c] sm:$0xf] %vm1452, %v1435
      %s1469 = smul.u32 16, %s22
      %p1470 = scmp.lt.s32.totalorder %s21, 3
      %s1471 = scalar_select %p1470, %s21, 3
      %p1472 = scmp.lt.s32.totalorder %s1469, 63
      %s1473 = scalar_select %p1472, %s1469, 63
      %s1474 = smul.addr %s1471, 64
      %s1475 = sadd.s32 %s1473, %s1474
      %s1476 = smul.addr %s1475, 4
      %s1477 = scalar_lea.vmem %s6, %s1476
      // Predicated region
      $region45: #{edsr_forward.9} parent=43 // pred_check
        %p1478 = pneg %p201
      $region46: #{edsr_forward.9} parent=43 // pred_check_branch
        %1480 = sbr.rel (%p1478) target = $region48
      $region47: #{edsr_forward.9} parent=43 // pred_region
        %s1481 = smul.u32 16, %s22
      $region48: #{edsr_forward.9} parent=43 // pred_fallthru
        _
    $region44: #{edsr_forward.9} parent=5 // pred_fallthru
      _
    %p1482 = scmp.le.s32.totalorder 2, %s12
    // Predicated region
    $region49: #{edsr_forward.9} parent=5 // pred_check
      %p1483 = pneg %p1482
    $region50: #{edsr_forward.9} parent=5 // pred_check_branch
      %1485 = sbr.rel (%p1483) target = $region52
    $region51: #{edsr_forward.9} parent=5 // pred_region
      %s1486 = ssub.s32 %s12, 2
      // Predicated region
      $region53: #{edsr_forward.9} parent=51 // pred_check
        %p1487 = pneg %p207
      $region54: #{edsr_forward.9} parent=51 // pred_check_branch
        %1489 = sbr.rel (%p1487) target = $region56
      $region55: #{edsr_forward.9} parent=51 // pred_region
        %s1490 = smul.u32 16, %s24
        %p1491 = scmp.lt.s32.totalorder %s23, 3
        %s1492 = scalar_select %p1491, %s23, 3
        %p1493 = scmp.lt.s32.totalorder %s1490, 63
        %s1494 = scalar_select %p1493, %s1490, 63
        %s1495 = smul.addr %s1492, 64
        %s1496 = sadd.s32 %s1494, %s1495
        %s1497 = smul.addr %s1496, 4
        %s1498 = scalar_lea.vmem %s6, %s1497
      $region56: #{edsr_forward.9} parent=51 // pred_fallthru
        _
    $region52: #{edsr_forward.9} parent=5 // pred_fallthru
      _
  $region6: #{edsr_forward.9} parent=0 // loop_footer
    %s16 = sadd.s32 1, %s12
  $region7: #{edsr_forward.9} parent=0 // loop_footer_branch
    %11 = sbr.rel target = $region3
  $region8: #{edsr_forward.9} parent=0 // loop_exit
    _

// kernel: edsr_forward.7
$region0: #{edsr_forward.7}
  #allocation0 [shape = 'u32[]', space=smem, size = 0x4, offset = 0x4, fixed_abs, tag = 'smem constant byte address 0x4 - core index']
  #allocation1 [shape = 'u32[144,128]{1,0:T(1,128)}', space=vmem, size = 0x12000, scoped, tag = 'internal scratch']
  %s0 = inlined_call_operand.vmem [shape: bf16[4,512,16], index: 0, kind: input, shape index: {}]
  %s1 = inlined_call_operand.vmem [shape: bf16[4,4,84,16], index: 1, kind: input, shape index: {}]
  %s2 = inlined_call_operand.vmem [shape: f32[512,1], index: 2, kind: input, shape index: {}]
  %s3 = inlined_call_operand.vmem [shape: bf16[144,16], index: 3, kind: input, shape index: {}]
  %s4 = inlined_call_operand.vmem [shape: f32[1,16], index: 4, kind: input, shape index: {}]
  %s5 = inlined_call_operand.vmem [shape: bf16[144,16], index: 5, kind: input, shape index: {}]
  %s6 = inlined_call_operand.vmem [shape: f32[1,16], index: 6, kind: input, shape index: {}]
  %s7 = inlined_call_operand.vmem [shape: bf16[4,512,16], index: 7, kind: output, shape index: {}]
  %s8 = sld [smem:[#allocation0]]
  $region61: #{edsr_forward.7} parent=0
    _
  %s10 = ssub.s32 1, %s8
  %s11 = scalar_select 0, %s10, %s8
  loop: start=0, step=1, limit=18
  $region2: #{edsr_forward.7} parent=0 // loop_pre_header
    _
  $region3: #{edsr_forward.7} parent=0 // loop_header
    %s13 = sphi 0, %s17
    %p14 = scmp.ge.s32.totalorder %s13, 18
    %s20 = sphi 0, %s32
    %s21 = sphi 0, %s28
    %s22 = sphi 0, %s20
    %s23 = sphi 0, %s21
    %s24 = sphi 0, %s22
    %s25 = sphi 0, %s23
    %s37 = sphi 0, %s39
    %s40 = sphi 0, %s37
    %s41 = sphi 0, %s40
    %s57 = sphi 0, %s41
    %s65 = sphi 0, %s67
    %s68 = sphi 0, %s65
    %s69 = sphi 0, %s68
    %s85 = sphi 0, %s69
    %s91 = sphi 0, %s93
    %s94 = sphi 0, %s91
    %s95 = sphi 0, %s94
    %s111 = sphi 0, %s95
    %s115 = sphi 0, %s115
    %s117 = sphi 0, %s115
    %s118 = sphi 0, %s117
    %s132 = sphi 0, %s118
    %s136 = sphi 0, %s136
    %s138 = sphi 0, %s136
    %s139 = sphi 0, %s138
    %s153 = sphi 0, %s139
    %s157 = sphi 0, %s157
    %s159 = sphi 0, %s157
    %s160 = sphi 0, %s159
    %s174 = sphi 0, %s160
    %s178 = sphi 0, %s178
    %s180 = sphi 0, %s178
    %s181 = sphi 0, %s180
    %s195 = sphi 0, %s181
    %s203 = sphi 0, %s205
    %s206 = sphi 0, %s203
    %s207 = sphi 0, %s206
    %s223 = sphi 0, %s207
  $region4: #{edsr_forward.7} parent=0 // loop_header_branch
    %16 = sbr.rel (%p14) target = $region8
  $region5: #{edsr_forward.7} parent=0 // loop_body
    %s18 = ssub.s32 %s13, 1
    %s19 = ssub.s32 %s13, 2
    %s26 = sadd.s32 1, %s21
    %p27 = scmp.ge.s32.totalorder %s26, 4
    %s28 = scalar_select %p27, 0, %s26
    %s29 = sadd.s32 1, %s20
    %s30 = scalar_select %p27, %s29, %s20
    %p31 = scmp.ge.s32.totalorder %s30, 4
    %s32 = scalar_select %p31, 0, %s30
    %s33 = ssub.s32 %s20, %s32
    %s34 = ssub.s32 %s21, %s28
    %s35 = sor.u32 %s33, %s34
    %p36 = scmp.eq.s32.totalorder %s35, 0
    %s38 = sadd.s32 %s37, 1
    %s39 = scalar_select %p36, %s37, %s38
    %p42 = pneg %p36
    %p43 = scmp.eq.s32.totalorder %s13, 15
    %p44 = por %p42, %p43
    %p45 = scmp.ne.s32.totalorder %s37, %s40
    %p46 = scmp.eq.s32.totalorder %s13, 0
    %p47 = por %p45, %p46
    %p48 = scmp.ne.s32.totalorder %s37, %s40
    %p49 = scmp.eq.s32.totalorder %s18, 15
    %p50 = por %p48, %p49
    %p51 = scmp.ne.s32.totalorder %s40, %s41
    %p52 = scmp.eq.s32.totalorder %s18, 0
    %p53 = por %p51, %p52
    %p54 = scmp.ne.s32.totalorder %s40, %s41
    %p55 = scmp.eq.s32.totalorder %s19, 15
    %p56 = por %p54, %p55
    %p58 = scmp.ne.s32.totalorder %s41, %s57
    %p59 = scmp.eq.s32.totalorder %s19, 0
    %p60 = por %p58, %p59
    %s61 = ssub.s32 %s20, %s32
    %s62 = ssub.s32 %s21, %s28
    %s63 = sor.u32 %s61, %s62
    %p64 = scmp.eq.s32.totalorder %s63, 0
    %s66 = sadd.s32 %s65, 1
    %s67 = scalar_select %p64, %s65, %s66
    %p70 = pneg %p64
    %p71 = scmp.eq.s32.totalorder %s13, 15
    %p72 = por %p70, %p71
    %p73 = scmp.ne.s32.totalorder %s65, %s68
    %p74 = scmp.eq.s32.totalorder %s13, 0
    %p75 = por %p73, %p74
    %p76 = scmp.ne.s32.totalorder %s65, %s68
    %p77 = scmp.eq.s32.totalorder %s18, 15
    %p78 = por %p76, %p77
    %p79 = scmp.ne.s32.totalorder %s68, %s69
    %p80 = scmp.eq.s32.totalorder %s18, 0
    %p81 = por %p79, %p80
    %p82 = scmp.ne.s32.totalorder %s68, %s69
    %p83 = scmp.eq.s32.totalorder %s19, 15
    %p84 = por %p82, %p83
    %p86 = scmp.ne.s32.totalorder %s69, %s85
    %p87 = scmp.eq.s32.totalorder %s19, 0
    %p88 = por %p86, %p87
    %s89 = ssub.s32 %s21, %s28
    %p90 = scmp.eq.s32.totalorder %s89, 0
    %s92 = sadd.s32 %s91, 1
    %s93 = scalar_select %p90, %s91, %s92
    %p96 = pneg %p90
    %p97 = scmp.eq.s32.totalorder %s13, 15
    %p98 = por %p96, %p97
    %p99 = scmp.ne.s32.totalorder %s91, %s94
    %p100 = scmp.eq.s32.totalorder %s13, 0
    %p101 = por %p99, %p100
    %p102 = scmp.ne.s32.totalorder %s91, %s94
    %p103 = scmp.eq.s32.totalorder %s18, 15
    %p104 = por %p102, %p103
    %p105 = scmp.ne.s32.totalorder %s94, %s95
    %p106 = scmp.eq.s32.totalorder %s18, 0
    %p107 = por %p105, %p106
    %p108 = scmp.ne.s32.totalorder %s94, %s95
    %p109 = scmp.eq.s32.totalorder %s19, 15
    %p110 = por %p108, %p109
    %p112 = scmp.ne.s32.totalorder %s95, %s111
    %p113 = scmp.eq.s32.totalorder %s19, 0
    %p114 = por %p112, %p113
    %s116 = sadd.s32 %s115, 1
    %p119 = scmp.eq.s32.totalorder %s13, 15
    %p120 = scmp.ne.s32.totalorder %s115, %s117
    %p121 = scmp.eq.s32.totalorder %s13, 0
    %p122 = por %p120, %p121
    %p123 = scmp.ne.s32.totalorder %s115, %s117
    %p124 = scmp.eq.s32.totalorder %s18, 15
    %p125 = por %p123, %p124
    %p126 = scmp.ne.s32.totalorder %s117, %s118
    %p127 = scmp.eq.s32.totalorder %s18, 0
    %p128 = por %p126, %p127
    %p129 = scmp.ne.s32.totalorder %s117, %s118
    %p130 = scmp.eq.s32.totalorder %s19, 15
    %p131 = por %p129, %p130
    %p133 = scmp.ne.s32.totalorder %s118, %s132
    %p134 = scmp.eq.s32.totalorder %s19, 0
    %p135 = por %p133, %p134
    %s137 = sadd.s32 %s136, 1
    %p140 = scmp.eq.s32.totalorder %s13, 15
    %p141 = scmp.ne.s32.totalorder %s136, %s138
    %p142 = scmp.eq.s32.totalorder %s13, 0
    %p143 = por %p141, %p142
    %p144 = scmp.ne.s32.totalorder %s136, %s138
    %p145 = scmp.eq.s32.totalorder %s18, 15
    %p146 = por %p144, %p145
    %p147 = scmp.ne.s32.totalorder %s138, %s139
    %p148 = scmp.eq.s32.totalorder %s18, 0
    %p149 = por %p147, %p148
    %p150 = scmp.ne.s32.totalorder %s138, %s139
    %p151 = scmp.eq.s32.totalorder %s19, 15
    %p152 = por %p150, %p151
    %p154 = scmp.ne.s32.totalorder %s139, %s153
    %p155 = scmp.eq.s32.totalorder %s19, 0
    %p156 = por %p154, %p155
    %s158 = sadd.s32 %s157, 1
    %p161 = scmp.eq.s32.totalorder %s13, 15
    %p162 = scmp.ne.s32.totalorder %s157, %s159
    %p163 = scmp.eq.s32.totalorder %s13, 0
    %p164 = por %p162, %p163
    %p165 = scmp.ne.s32.totalorder %s157, %s159
    %p166 = scmp.eq.s32.totalorder %s18, 15
    %p167 = por %p165, %p166
    %p168 = scmp.ne.s32.totalorder %s159, %s160
    %p169 = scmp.eq.s32.totalorder %s18, 0
    %p170 = por %p168, %p169
    %p171 = scmp.ne.s32.totalorder %s159, %s160
    %p172 = scmp.eq.s32.totalorder %s19, 15
    %p173 = por %p171, %p172
    %p175 = scmp.ne.s32.totalorder %s160, %s174
    %p176 = scmp.eq.s32.totalorder %s19, 0
    %p177 = por %p175, %p176
    %s179 = sadd.s32 %s178, 1
    %p182 = scmp.eq.s32.totalorder %s13, 15
    %p183 = scmp.ne.s32.totalorder %s178, %s180
    %p184 = scmp.eq.s32.totalorder %s13, 0
    %p185 = por %p183, %p184
    %p186 = scmp.ne.s32.totalorder %s178, %s180
    %p187 = scmp.eq.s32.totalorder %s18, 15
    %p188 = por %p186, %p187
    %p189 = scmp.ne.s32.totalorder %s180, %s181
    %p190 = scmp.eq.s32.totalorder %s18, 0
    %p191 = por %p189, %p190
    %p192 = scmp.ne.s32.totalorder %s180, %s181
    %p193 = scmp.eq.s32.totalorder %s19, 15
    %p194 = por %p192, %p193
    %p196 = scmp.ne.s32.totalorder %s181, %s195
    %p197 = scmp.eq.s32.totalorder %s19, 0
    %p198 = por %p196, %p197
    %s199 = ssub.s32 %s20, %s32
    %s200 = ssub.s32 %s21, %s28
    %s201 = sor.u32 %s199, %s200
    %p202 = scmp.eq.s32.totalorder %s201, 0
    %s204 = sadd.s32 %s203, 1
    %s205 = scalar_select %p202, %s203, %s204
    %p208 = pneg %p202
    %p209 = scmp.eq.s32.totalorder %s13, 15
    %p210 = por %p208, %p209
    %p211 = scmp.ne.s32.totalorder %s203, %s206
    %p212 = scmp.eq.s32.totalorder %s13, 0
    %p213 = por %p211, %p212
    %p214 = scmp.ne.s32.totalorder %s203, %s206
    %p215 = scmp.eq.s32.totalorder %s18, 15
    %p216 = por %p214, %p215
    %p217 = scmp.ne.s32.totalorder %s206, %s207
    %p218 = scmp.eq.s32.totalorder %s18, 0
    %p219 = por %p217, %p218
    %p220 = scmp.ne.s32.totalorder %s206, %s207
    %p221 = scmp.eq.s32.totalorder %s19, 15
    %p222 = por %p220, %p221
    %p224 = scmp.ne.s32.totalorder %s207, %s223
    %p225 = scmp.eq.s32.totalorder %s19, 0
    %p226 = por %p224, %p225
    %p227 = scmp.le.s32.totalorder 1, %s13
    %p228 = scmp.lt.s32.totalorder %s13, 17
    %p229 = pnand %p227, %p228
    %p230 = pneg %p229
    // Predicated region
    $region9: #{edsr_forward.7} parent=5 // pred_check
      _
    $region10: #{edsr_forward.7} parent=5 // pred_check_branch
      %232 = sbr.rel (%p229) target = $region12
    $region11: #{edsr_forward.7} parent=5 // pred_region
      %s233 = ssub.s32 %s13, 1
      // Predicated region
      $region13: #{edsr_forward.7} parent=11 // pred_check
        %p234 = pneg %p128
      $region14: #{edsr_forward.7} parent=11 // pred_check_branch
        %236 = sbr.rel (%p234) target = $region16
      $region15: #{edsr_forward.7} parent=11 // pred_region
        _
      $region16: #{edsr_forward.7} parent=11 // pred_fallthru
        _
      // Predicated region
      $region17: #{edsr_forward.7} parent=11 // pred_check
        %p237 = pneg %p149
      $region18: #{edsr_forward.7} parent=11 // pred_check_branch
        %239 = sbr.rel (%p237) target = $region20
      $region19: #{edsr_forward.7} parent=11 // pred_region
        _
      $region20: #{edsr_forward.7} parent=11 // pred_fallthru
        _
      // Predicated region
      $region21: #{edsr_forward.7} parent=11 // pred_check
        %p240 = pneg %p170
      $region22: #{edsr_forward.7} parent=11 // pred_check_branch
        %242 = sbr.rel (%p240) target = $region24
      $region23: #{edsr_forward.7} parent=11 // pred_region
        _
      $region24: #{edsr_forward.7} parent=11 // pred_fallthru
        _
      // Predicated region
      $region25: #{edsr_forward.7} parent=11 // pred_check
        %p243 = pneg %p191
      $region26: #{edsr_forward.7} parent=11 // pred_check_branch
        %245 = sbr.rel (%p243) target = $region28
      $region27: #{edsr_forward.7} parent=11 // pred_region
        _
      $region28: #{edsr_forward.7} parent=11 // pred_fallthru
        _
    $region12: #{edsr_forward.7} parent=5 // pred_fallthru
      _
    %p246 = scmp.lt.s32.totalorder %s13, 16
    // Predicated region
    $region29: #{edsr_forward.7} parent=5 // pred_check
      %p247 = pneg %p246
    $region30: #{edsr_forward.7} parent=5 // pred_check_branch
      %249 = sbr.rel (%p247) target = $region32
    $region31: #{edsr_forward.7} parent=5 // pred_region
      // Predicated region
      $region33: #{edsr_forward.7} parent=31 // pred_check
        %p250 = pneg %p47
      $region34: #{edsr_forward.7} parent=31 // pred_check_branch
        %252 = sbr.rel (%p250) target = $region36
      $region35: #{edsr_forward.7} parent=31 // pred_region
        %s253 = smul.u32 16, %s21
        %p254 = scmp.lt.s32.totalorder %s20, 3
        %s255 = scalar_select %p254, %s20, 3
        %p256 = scmp.lt.s32.totalorder %s253, 63
        %s257 = scalar_select %p256, %s253, 63
        %s258 = smul.addr %s255, 64
        %s259 = sadd.s32 %s257, %s258
        %s260 = smul.addr %s259, 4
        %s261 = scalar_lea.vmem %s0, %s260
        %s262 = smul.u32 16, %s21
      $region36: #{edsr_forward.7} parent=31 // pred_fallthru
        _
      // Predicated region
      $region37: #{edsr_forward.7} parent=31 // pred_check
        %p263 = pneg %p75
      $region38: #{edsr_forward.7} parent=31 // pred_check_branch
        %265 = sbr.rel (%p263) target = $region40
      $region39: #{edsr_forward.7} parent=31 // pred_region
        %p266 = scmp.lt.s32.totalorder %s20, 3
        %s267 = scalar_select %p266, %s20, 3
        %p268 = scmp.lt.s32.totalorder %s21, 3
        %s269 = scalar_select %p268, %s21, 3
        %s270 = smul.addr %s269, 11
        %s271 = smul.addr %s267, 44
        %s272 = sadd.s32 %s270, %s271
        %s273 = smul.addr %s272, 4
        %s274 = scalar_lea.vmem %s1, %s273
      $region40: #{edsr_forward.7} parent=31 // pred_fallthru
        _
      // Predicated region
      $region41: #{edsr_forward.7} parent=31 // pred_check
        %p275 = pneg %p101
      $region42: #{edsr_forward.7} parent=31 // pred_check_branch
        %277 = sbr.rel (%p275) target = $region44
      $region43: #{edsr_forward.7} parent=31 // pred_region
        %s278 = smul.u32 16, %s21
        %p279 = scmp.lt.s32.totalorder %s278, 63
        %s280 = scalar_select %p279, %s278, 63
        %s281 = smul.addr %s280, 8
        %s282 = scalar_lea.vmem %s2, %s281
        %s283 = smul.u32 16, %s21
      $region44: #{edsr_forward.7} parent=31 // pred_fallthru
        _
    $region32: #{edsr_forward.7} parent=5 // pred_fallthru
      _
    %p284 = scmp.le.s32.totalorder 1, %s13
    %p285 = scmp.lt.s32.totalorder %s13, 17
    %p286 = pnand %p284, %p285
    %p287 = pneg %p286
    // Predicated region
    $region45: #{edsr_forward.7} parent=5 // pred_check
      _
    $region46: #{edsr_forward.7} parent=5 // pred_check_branch
      %289 = sbr.rel (%p286) target = $region48
    $region47: #{edsr_forward.7} parent=5 // pred_region
      %s290 = ssub.s32 %s13, 1
      %s291 = smul.u32 16, %s23
      %p292 = scmp.lt.s32.totalorder %s22, 3
      %s293 = scalar_select %p292, %s22, 3
      %p294 = scmp.lt.s32.totalorder %s291, 63
      %s295 = scalar_select %p294, %s291, 63
      %s296 = smul.addr %s293, 64
      %s297 = sadd.s32 %s295, %s296
      %s298 = smul.addr %s297, 4
      %s299 = scalar_lea.vmem %s0, %s298
      %p300 = pneg %p53
      %p301 = pneg %p50
      %p302 = scmp.lt.s32.totalorder %s22, 3
      %s303 = scalar_select %p302, %s22, 3
      %p304 = scmp.lt.s32.totalorder %s23, 3
      %s305 = scalar_select %p304, %s23, 3
      %s306 = smul.addr %s305, 11
      %s307 = smul.addr %s303, 44
      %s308 = sadd.s32 %s306, %s307
      %s309 = smul.addr %s308, 4
      %s310 = scalar_lea.vmem %s1, %s309
      %p311 = pneg %p81
      %p312 = pneg %p78
      %s313 = smul.u32 16, %s23
      %p314 = scmp.lt.s32.totalorder %s313, 63
      %s315 = scalar_select %p314, %s313, 63
      %s316 = smul.addr %s315, 8
      %s317 = scalar_lea.vmem %s2, %s316
      %p318 = pneg %p107
      %p319 = pneg %p104
      %p320 = pneg %p128
      %p321 = pneg %p125
      %p322 = pneg %p149
      %p323 = pneg %p146
      %p324 = pneg %p170
      %p325 = pneg %p167
      %p326 = pneg %p191
      %p327 = pneg %p188
      %p328 = pneg %p219
      %p329 = pneg %p216
      %s330 = smul.u32 16, %s23
      %p331 = scmp.lt.s32.totalorder %s22, 3
      %s332 = scalar_select %p331, %s22, 3
      %p333 = scmp.lt.s32.totalorder %s330, 63
      %s334 = scalar_select %p333, %s330, 63
      %s335 = smul.addr %s332, 64
      %s336 = sadd.s32 %s334, %s335
      %s337 = smul.addr %s336, 4
      %s338 = scalar_lea.vmem %s7, %s337
      %s339 = smul.u32 16, %s23
      %p340 = scmp.lt.s32.totalorder %s22, 3
      %s341 = scalar_select %p340, %s22, 3
      %p342 = scmp.lt.s32.totalorder %s339, 63
      %s343 = scalar_select %p342, %s339, 63
      %s344 = smul.addr %s341, 64
      %s345 = sadd.s32 %s343, %s344
      %s346 = smul.addr %s345, 4
      %s347 = scalar_lea.vmem %s0, %s346
      %s348 = smul.u32 16, %s23
      %p349 = scmp.lt.s32.totalorder %s22, 3
      %s350 = scalar_select %p349, %s22, 3
      %p351 = scmp.lt.s32.totalorder %s23, 3
      %s352 = scalar_select %p351, %s23, 3
      %s353 = smul.addr %s352, 11
      %s354 = smul.addr %s350, 44
      %s355 = sadd.s32 %s353, %s354
      %s356 = smul.addr %s355, 4
      %s357 = scalar_lea.vmem %s1, %s356
      %s358 = smul.u32 16, %s23
      %p359 = scmp.lt.s32.totalorder %s358, 63
      %s360 = scalar_select %p359, %s358, 63
      %s361 = smul.addr %s360, 8
      %s362 = scalar_lea.vmem %s2, %s361
      %s363 = smul.u32 16, %s23
      %s364 = smul.u32 16, %s23
      %p365 = scmp.lt.s32.totalorder %s22, 3
      %s366 = scalar_select %p365, %s22, 3
      %p367 = scmp.lt.s32.totalorder %s364, 63
      %s368 = scalar_select %p367, %s364, 63
      %s369 = smul.addr %s366, 64
      %s370 = sadd.s32 %s368, %s369
      %s371 = smul.addr %s370, 4
      %s372 = scalar_lea.vmem %s7, %s371
      %s373 = smul.u32 16, %s23
      %v375 = vld [vmem:[%s357] sm:$0xf]
      %v376 = vld [vmem:[%s357 + $0x4] sm:$0xf]
      %v377 = vld [vmem:[%s357 + $0x8] sm:$0xf]
      %v378 = vld [vmem:[%s357 + $0xc] sm:$0xf]
      %v379 = vld [vmem:[%s357 + $0x10] sm:$0xf]
      %v380 = vld [vmem:[%s357 + $0x14] sm:$0x1]
      %v381 = vld [vmem:[%s347] sm:$0xf]
      %v382 = vld [vmem:[%s347 + $0x4] sm:$0xf]
      %v383 = vld [vmem:[%s347 + $0x8] sm:$0xf]
      %v384 = vld [vmem:[%s347 + $0xc] sm:$0xf]
      %v385 = vld [vmem:[%s347 + $0x10] sm:$0xf]
      %v386 = vld [vmem:[%s347 + $0x14] sm:$0xf]
      %v387 = vld [vmem:[%s347 + $0x18] sm:$0xf]
      %v388 = vld [vmem:[%s347 + $0x1c] sm:$0xf]
      %v389 = vld [vmem:[%s347 + $0x20] sm:$0xf]
      %v390 = vld [vmem:[%s347 + $0x24] sm:$0xf]
      %v391 = vld [vmem:[%s347 + $0x28] sm:$0xf]
      %v392 = vld [vmem:[%s347 + $0x2c] sm:$0xf]
      %v393 = vld [vmem:[%s347 + $0x30] sm:$0xf]
      %v394 = vld [vmem:[%s347 + $0x34] sm:$0xf]
      %v395 = vld [vmem:[%s347 + $0x38] sm:$0xf]
      %v396 = vld [vmem:[%s347 + $0x3c] sm:$0xf]
      %v397 = vld [vmem:[%s357 + $0x14] sm:$0xe]
      %v398 = vld [vmem:[%s357 + $0x18] sm:$0xf]
      %v399 = vld [vmem:[%s357 + $0x1c] sm:$0xf]
      %v400 = vld [vmem:[%s357 + $0x20] sm:$0xf]
      %v401 = vld [vmem:[%s357 + $0x24] sm:$0xf]
      %v402 = vld [vmem:[%s357 + $0x28] sm:$0x3]
      %v409 = vunpack.c.l.b16 %v375
      %v410 = vunpack.c.l.b16 %v376
      %v411 = vunpack.c.l.b16 %v377
      %v412 = vunpack.c.l.b16 %v378
      %v413 = vunpack.c.l.b16 %v379
      %v414 = vunpack.c.l.b16 %v380
      %v415 = vpack.c.b16 %v410, %v409
      %v416 = vpack.c.b16 %v412, %v411
      %v417 = vpack.c.b16 %v414, %v413
      %v434 = vunpack.c.l.b16 %v381
      %v435 = vunpack.c.l.b16 %v382
      %v436 = vunpack.c.l.b16 %v383
      %v437 = vunpack.c.l.b16 %v384
      %v438 = vunpack.c.l.b16 %v385
      %v439 = vunpack.c.l.b16 %v386
      %v440 = vunpack.c.l.b16 %v387
      %v441 = vunpack.c.l.b16 %v388
      %v442 = vunpack.c.l.b16 %v389
      %v443 = vunpack.c.l.b16 %v390
      %v444 = vunpack.c.l.b16 %v391
      %v445 = vunpack.c.l.b16 %v392
      %v446 = vunpack.c.l.b16 %v393
      %v447 = vunpack.c.l.b16 %v394
      %v448 = vunpack.c.l.b16 %v395
      %v449 = vunpack.c.l.b16 %v396
      %v450 = vpack.c.b16 %v435, %v434
      %v451 = vpack.c.b16 %v437, %v436
      %v452 = vpack.c.b16 %v439, %v438
      %v453 = vpack.c.b16 %v441, %v440
      %v454 = vpack.c.b16 %v443, %v442
      %v455 = vpack.c.b16 %v445, %v444
      %v456 = vpack.c.b16 %v447, %v446
      %v457 = vpack.c.b16 %v449, %v448
      %vm458 = vcmask 1044480
      %v459 = vrot.slane %v450, 3
      %v460 = vrot.slane %v451, 3
      %v461 = vsel %vm458, %v459, %v460
      %v462 = vrot.slane %v452, 3
      %v463 = vsel %vm458, %v460, %v462
      %v464 = vrot.slane %v453, 3
      %v465 = vsel %vm458, %v462, %v464
      %v466 = vrot.slane %v454, 3
      %v467 = vsel %vm458, %v464, %v466
      %v468 = vrot.slane %v455, 3
      %v469 = vsel %vm458, %v466, %v468
      %v470 = vrot.slane %v456, 3
      %v471 = vsel %vm458, %v468, %v470
      %v472 = vrot.slane %v457, 3
      %v473 = vsel %vm458, %v470, %v472
      %v480 = vunpack.c.l.b16 %v397
      %v481 = vunpack.c.l.b16 %v398
      %v482 = vunpack.c.l.b16 %v399
      %v483 = vunpack.c.l.b16 %v400
      %v484 = vunpack.c.l.b16 %v401
      %v485 = vunpack.c.l.b16 %v402
      %v486 = vpack.c.b16 %v480, %v480
      %v487 = vpack.c.b16 %v482, %v481
      %v488 = vpack.c.b16 %v484, %v483
      %v489 = vpack.c.b16 %v485, %v485
      %vm490 = vcmask 1044480
      %v493 = vsel %vm490, %v417, %v459
      %v496 = vsel %vm490, %v472, %v486
      %vm497 = vsmask.f32 7424
      %v499 = vshrl.u32 %v415, 16
      %v501 = vshll.u32 %v415, 16
      %v503 = vrot.slane %v501, 1
      %v504 = vor.u32 %v499, %v503
      %v506 = vshll.u32 %v416, 16
      %v508 = vrot.slane %v506, 1
      %v509 = vsel %vm497, %v504, %v508
      %v510 = vshrl.u32 %v416, 16
      %v512 = vor.u32 %v510, %v508
      %v513 = vshll.u32 %v493, 16
      %v515 = vrot.slane %v513, 1
      %v516 = vsel %vm497, %v512, %v515
      %v517 = vshrl.u32 %v493, 16
      %v519 = vor.u32 %v517, %v515
      %v521 = vshll.u32 %v461, 16
      %v523 = vrot.slane %v521, 1
      %v524 = vsel %vm497, %v519, %v523
      %v525 = vshrl.u32 %v461, 16
      %v527 = vor.u32 %v525, %v523
      %v529 = vshll.u32 %v463, 16
      %v531 = vrot.slane %v529, 1
      %v532 = vsel %vm497, %v527, %v531
      %v533 = vshrl.u32 %v463, 16
      %v535 = vor.u32 %v533, %v531
      %v537 = vshll.u32 %v465, 16
      %v539 = vrot.slane %v537, 1
      %v540 = vsel %vm497, %v535, %v539
      %v541 = vshrl.u32 %v465, 16
      %v543 = vor.u32 %v541, %v539
      %v545 = vshll.u32 %v467, 16
      %v547 = vrot.slane %v545, 1
      %v548 = vsel %vm497, %v543, %v547
      %v549 = vshrl.u32 %v467, 16
      %v551 = vor.u32 %v549, %v547
      %v553 = vshll.u32 %v469, 16
      %v555 = vrot.slane %v553, 1
      %v556 = vsel %vm497, %v551, %v555
      %v557 = vshrl.u32 %v469, 16
      %v559 = vor.u32 %v557, %v555
      %v561 = vshll.u32 %v471, 16
      %v563 = vrot.slane %v561, 1
      %v564 = vsel %vm497, %v559, %v563
      %v565 = vshrl.u32 %v471, 16
      %v567 = vor.u32 %v565, %v563
      %v569 = vshll.u32 %v473, 16
      %v571 = vrot.slane %v569, 1
      %v572 = vsel %vm497, %v567, %v571
      %v573 = vshrl.u32 %v473, 16
      %v575 = vor.u32 %v573, %v571
      %v576 = vshll.u32 %v496, 16
      %v578 = vrot.slane %v576, 1
      %v579 = vsel %vm497, %v575, %v578
      %v580 = vshrl.u32 %v496, 16
      %v582 = vor.u32 %v580, %v578
      %583 = vrot.lane.b32.xlu0 %v509, 16
      %v584 = vpop.permute.xlu0 %583
      %585 = vrot.lane.b32.xlu0 %v516, 16
      %v586 = vpop.permute.xlu0 %585
      %587 = vrot.lane.b32.xlu0 %v524, 16
      %v588 = vpop.permute.xlu0 %587
      %589 = vrot.lane.b32.xlu0 %v532, 16
      %v590 = vpop.permute.xlu0 %589
      %591 = vrot.lane.b32.xlu0 %v540, 16
      %v592 = vpop.permute.xlu0 %591
      %593 = vrot.lane.b32.xlu0 %v548, 16
      %v594 = vpop.permute.xlu0 %593
      %595 = vrot.lane.b32.xlu0 %v556, 16
      %v596 = vpop.permute.xlu0 %595
      %597 = vrot.lane.b32.xlu0 %v564, 16
      %v598 = vpop.permute.xlu0 %597
      %599 = vrot.lane.b32.xlu0 %v572, 16
      %v600 = vpop.permute.xlu0 %599
      %601 = vrot.lane.b32.xlu0 %v579, 16
      %v602 = vpop.permute.xlu0 %601
      %603 = vrot.lane.b32.xlu0 %v582, 16
      %v604 = vpop.permute.xlu0 %603
      %vm607 = vcmask 1046528
      %v608 = vrot.slane %v415, 1
      %v609 = vrot.slane %v416, 1
      %v610 = vsel %vm607, %v608, %v609
      %v611 = vrot.slane %v493, 1
      %v612 = vsel %vm607, %v609, %v611
      %v613 = vrot.slane %v461, 1
      %v614 = vsel %vm607, %v611, %v613
      %v615 = vrot.slane %v463, 1
      %v616 = vsel %vm607, %v613, %v615
      %v617 = vrot.slane %v465, 1
      %v618 = vsel %vm607, %v615, %v617
      %v619 = vrot.slane %v467, 1
      %v620 = vsel %vm607, %v617, %v619
      %v621 = vrot.slane %v469, 1
      %v622 = vsel %vm607, %v619, %v621
      %v623 = vrot.slane %v471, 1
      %v624 = vsel %vm607, %v621, %v623
      %v625 = vrot.slane %v473, 1
      %v626 = vsel %vm607, %v623, %v625
      %v627 = vrot.slane %v496, 1
      %v628 = vsel %vm607, %v625, %v627
      %629 = vrot.lane.b32.xlu0 %v610, 32
      %v630 = vpop.permute.xlu0 %629
      %631 = vrot.lane.b32.xlu0 %v612, 32
      %v632 = vpop.permute.xlu0 %631
      %633 = vrot.lane.b32.xlu0 %v614, 32
      %v634 = vpop.permute.xlu0 %633
      %635 = vrot.lane.b32.xlu0 %v616, 32
      %v636 = vpop.permute.xlu0 %635
      %637 = vrot.lane.b32.xlu0 %v618, 32
      %v638 = vpop.permute.xlu0 %637
      %639 = vrot.lane.b32.xlu0 %v620, 32
      %v640 = vpop.permute.xlu0 %639
      %641 = vrot.lane.b32.xlu0 %v622, 32
      %v642 = vpop.permute.xlu0 %641
      %643 = vrot.lane.b32.xlu0 %v624, 32
      %v644 = vpop.permute.xlu0 %643
      %645 = vrot.lane.b32.xlu0 %v626, 32
      %v646 = vpop.permute.xlu0 %645
      %647 = vrot.lane.b32.xlu0 %v628, 32
      %v648 = vpop.permute.xlu0 %647
      %649 = vrot.lane.b32.xlu0 %v627, 32
      %v650 = vpop.permute.xlu0 %649
      %vm651 = vcmask 1045504
      %v652 = vrot.slane %v416, 2
      %v653 = vrot.slane %v493, 2
      %v654 = vsel %vm651, %v652, %v653
      %v655 = vrot.slane %v461, 2
      %v656 = vsel %vm651, %v653, %v655
      %v657 = vrot.slane %v463, 2
      %v658 = vsel %vm651, %v655, %v657
      %v659 = vrot.slane %v465, 2
      %v660 = vsel %vm651, %v657, %v659
      %v661 = vrot.slane %v467, 2
      %v662 = vsel %vm651, %v659, %v661
      %v663 = vrot.slane %v469, 2
      %v664 = vsel %vm651, %v661, %v663
      %v665 = vrot.slane %v471, 2
      %v666 = vsel %vm651, %v663, %v665
      %v667 = vrot.slane %v473, 2
      %v668 = vsel %vm651, %v665, %v667
      %v669 = vrot.slane %v496, 2
      %v670 = vsel %vm651, %v667, %v669
      %v671 = vrot.slane %v487, 2
      %v672 = vsel %vm651, %v669, %v671
      %673 = vrot.lane.b32.xlu0 %v654, 48
      %v674 = vpop.permute.xlu0 %673
      %675 = vrot.lane.b32.xlu0 %v656, 48
      %v676 = vpop.permute.xlu0 %675
      %677 = vrot.lane.b32.xlu0 %v658, 48
      %v678 = vpop.permute.xlu0 %677
      %679 = vrot.lane.b32.xlu0 %v660, 48
      %v680 = vpop.permute.xlu0 %679
      %681 = vrot.lane.b32.xlu0 %v662, 48
      %v682 = vpop.permute.xlu0 %681
      %683 = vrot.lane.b32.xlu0 %v664, 48
      %v684 = vpop.permute.xlu0 %683
      %685 = vrot.lane.b32.xlu0 %v666, 48
      %v686 = vpop.permute.xlu0 %685
      %687 = vrot.lane.b32.xlu0 %v668, 48
      %v688 = vpop.permute.xlu0 %687
      %689 = vrot.lane.b32.xlu0 %v670, 48
      %v690 = vpop.permute.xlu0 %689
      %691 = vrot.lane.b32.xlu0 %v672, 48
      %v692 = vpop.permute.xlu0 %691
      %693 = vrot.lane.b32.xlu0 %v671, 48
      %v694 = vpop.permute.xlu0 %693
      %vm695 = vsmask.f32 5376
      %v696 = vrot.slane %v510, 2
      %v697 = vrot.slane %v506, 3
      %v698 = vor.u32 %v696, %v697
      %v699 = vrot.slane %v517, 2
      %v700 = vrot.slane %v513, 3
      %v701 = vor.u32 %v699, %v700
      %v702 = vsel %vm695, %v698, %v701
      %v703 = vrot.slane %v525, 2
      %v704 = vrot.slane %v521, 3
      %v705 = vor.u32 %v703, %v704
      %v706 = vsel %vm695, %v701, %v705
      %v707 = vrot.slane %v533, 2
      %v708 = vrot.slane %v529, 3
      %v709 = vor.u32 %v707, %v708
      %v710 = vsel %vm695, %v705, %v709
      %v711 = vrot.slane %v541, 2
      %v712 = vrot.slane %v537, 3
      %v713 = vor.u32 %v711, %v712
      %v714 = vsel %vm695, %v709, %v713
      %v715 = vrot.slane %v549, 2
      %v716 = vrot.slane %v545, 3
      %v717 = vor.u32 %v715, %v716
      %v718 = vsel %vm695, %v713, %v717
      %v719 = vrot.slane %v557, 2
      %v720 = vrot.slane %v553, 3
      %v721 = vor.u32 %v719, %v720
      %v722 = vsel %vm695, %v717, %v721
      %v723 = vrot.slane %v565, 2
      %v724 = vrot.slane %v561, 3
      %v725 = vor.u32 %v723, %v724
      %v726 = vsel %vm695, %v721, %v725
      %v727 = vrot.slane %v573, 2
      %v728 = vrot.slane %v569, 3
      %v729 = vor.u32 %v727, %v728
      %v730 = vsel %vm695, %v725, %v729
      %v731 = vrot.slane %v580, 2
      %v732 = vrot.slane %v576, 3
      %v733 = vor.u32 %v731, %v732
      %v734 = vsel %vm695, %v729, %v733
      %v736 = vshrl.u32 %v487, 16
      %v738 = vrot.slane %v736, 2
      %v739 = vshll.u32 %v487, 16
      %v741 = vrot.slane %v739, 3
      %v742 = vor.u32 %v738, %v741
      %v743 = vsel %vm695, %v733, %v742
      %744 = vrot.lane.b32.xlu0 %v702, 64
      %v745 = vpop.permute.xlu0 %744
      %746 = vrot.lane.b32.xlu0 %v706, 64
      %v747 = vpop.permute.xlu0 %746
      %748 = vrot.lane.b32.xlu0 %v710, 64
      %v749 = vpop.permute.xlu0 %748
      %750 = vrot.lane.b32.xlu0 %v714, 64
      %v751 = vpop.permute.xlu0 %750
      %752 = vrot.lane.b32.xlu0 %v718, 64
      %v753 = vpop.permute.xlu0 %752
      %754 = vrot.lane.b32.xlu0 %v722, 64
      %v755 = vpop.permute.xlu0 %754
      %756 = vrot.lane.b32.xlu0 %v726, 64
      %v757 = vpop.permute.xlu0 %756
      %758 = vrot.lane.b32.xlu0 %v730, 64
      %v759 = vpop.permute.xlu0 %758
      %760 = vrot.lane.b32.xlu0 %v734, 64
      %v761 = vpop.permute.xlu0 %760
      %762 = vrot.lane.b32.xlu0 %v743, 64
      %v763 = vpop.permute.xlu0 %762
      %764 = vrot.lane.b32.xlu0 %v742, 64
      %v765 = vpop.permute.xlu0 %764
      %v766 = vrot.slane %v416, 3
      %v767 = vrot.slane %v493, 3
      %v768 = vsel %vm458, %v766, %v767
      %v769 = vrot.slane %v461, 3
      %v770 = vsel %vm458, %v767, %v769
      %v771 = vrot.slane %v463, 3
      %v772 = vsel %vm458, %v769, %v771
      %v773 = vrot.slane %v465, 3
      %v774 = vsel %vm458, %v771, %v773
      %v775 = vrot.slane %v467, 3
      %v776 = vsel %vm458, %v773, %v775
      %v777 = vrot.slane %v469, 3
      %v778 = vsel %vm458, %v775, %v777
      %v779 = vrot.slane %v471, 3
      %v780 = vsel %vm458, %v777, %v779
      %v781 = vrot.slane %v473, 3
      %v782 = vsel %vm458, %v779, %v781
      %v783 = vrot.slane %v496, 3
      %v784 = vsel %vm458, %v781, %v783
      %v785 = vrot.slane %v487, 3
      %v786 = vsel %vm458, %v783, %v785
      %787 = vrot.lane.b32.xlu0 %v768, 80
      %v788 = vpop.permute.xlu0 %787
      %789 = vrot.lane.b32.xlu0 %v770, 80
      %v790 = vpop.permute.xlu0 %789
      %791 = vrot.lane.b32.xlu0 %v772, 80
      %v792 = vpop.permute.xlu0 %791
      %793 = vrot.lane.b32.xlu0 %v774, 80
      %v794 = vpop.permute.xlu0 %793
      %795 = vrot.lane.b32.xlu0 %v776, 80
      %v796 = vpop.permute.xlu0 %795
      %797 = vrot.lane.b32.xlu0 %v778, 80
      %v798 = vpop.permute.xlu0 %797
      %799 = vrot.lane.b32.xlu0 %v780, 80
      %v800 = vpop.permute.xlu0 %799
      %801 = vrot.lane.b32.xlu0 %v782, 80
      %v802 = vpop.permute.xlu0 %801
      %803 = vrot.lane.b32.xlu0 %v784, 80
      %v804 = vpop.permute.xlu0 %803
      %805 = vrot.lane.b32.xlu0 %v786, 80
      %v806 = vpop.permute.xlu0 %805
      %807 = vrot.lane.b32.xlu0 %v785, 80
      %v808 = vpop.permute.xlu0 %807
      %vm809 = vcmask 1043456
      %v810 = vrot.slane %v493, 4
      %v811 = vrot.slane %v461, 4
      %v812 = vsel %vm809, %v810, %v811
      %v813 = vrot.slane %v463, 4
      %v814 = vsel %vm809, %v811, %v813
      %v815 = vrot.slane %v465, 4
      %v816 = vsel %vm809, %v813, %v815
      %v817 = vrot.slane %v467, 4
      %v818 = vsel %vm809, %v815, %v817
      %v819 = vrot.slane %v469, 4
      %v820 = vsel %vm809, %v817, %v819
      %v821 = vrot.slane %v471, 4
      %v822 = vsel %vm809, %v819, %v821
      %v823 = vrot.slane %v473, 4
      %v824 = vsel %vm809, %v821, %v823
      %v825 = vrot.slane %v496, 4
      %v826 = vsel %vm809, %v823, %v825
      %v827 = vrot.slane %v487, 4
      %v828 = vsel %vm809, %v825, %v827
      %v829 = vrot.slane %v488, 4
      %v830 = vsel %vm809, %v827, %v829
      %v831 = vrot.slane %v489, 4
      %v832 = vsel %vm809, %v829, %v831
      %833 = vrot.lane.b32.xlu0 %v812, 96
      %v834 = vpop.permute.xlu0 %833
      %835 = vrot.lane.b32.xlu0 %v814, 96
      %v836 = vpop.permute.xlu0 %835
      %837 = vrot.lane.b32.xlu0 %v816, 96
      %v838 = vpop.permute.xlu0 %837
      %839 = vrot.lane.b32.xlu0 %v818, 96
      %v840 = vpop.permute.xlu0 %839
      %841 = vrot.lane.b32.xlu0 %v820, 96
      %v842 = vpop.permute.xlu0 %841
      %843 = vrot.lane.b32.xlu0 %v822, 96
      %v844 = vpop.permute.xlu0 %843
      %845 = vrot.lane.b32.xlu0 %v824, 96
      %v846 = vpop.permute.xlu0 %845
      %847 = vrot.lane.b32.xlu0 %v826, 96
      %v848 = vpop.permute.xlu0 %847
      %849 = vrot.lane.b32.xlu0 %v828, 96
      %v850 = vpop.permute.xlu0 %849
      %851 = vrot.lane.b32.xlu0 %v830, 96
      %v852 = vpop.permute.xlu0 %851
      %853 = vrot.lane.b32.xlu0 %v832, 96
      %v854 = vpop.permute.xlu0 %853
      %vm855 = vsmask.f32 3328
      %v856 = vrot.slane %v517, 4
      %v857 = vrot.slane %v513, 5
      %v858 = vor.u32 %v856, %v857
      %v859 = vrot.slane %v525, 4
      %v860 = vrot.slane %v521, 5
      %v861 = vor.u32 %v859, %v860
      %v862 = vsel %vm855, %v858, %v861
      %v863 = vrot.slane %v533, 4
      %v864 = vrot.slane %v529, 5
      %v865 = vor.u32 %v863, %v864
      %v866 = vsel %vm855, %v861, %v865
      %v867 = vrot.slane %v541, 4
      %v868 = vrot.slane %v537, 5
      %v869 = vor.u32 %v867, %v868
      %v870 = vsel %vm855, %v865, %v869
      %v871 = vrot.slane %v549, 4
      %v872 = vrot.slane %v545, 5
      %v873 = vor.u32 %v871, %v872
      %v874 = vsel %vm855, %v869, %v873
      %v875 = vrot.slane %v557, 4
      %v876 = vrot.slane %v553, 5
      %v877 = vor.u32 %v875, %v876
      %v878 = vsel %vm855, %v873, %v877
      %v879 = vrot.slane %v565, 4
      %v880 = vrot.slane %v561, 5
      %v881 = vor.u32 %v879, %v880
      %v882 = vsel %vm855, %v877, %v881
      %v883 = vrot.slane %v573, 4
      %v884 = vrot.slane %v569, 5
      %v885 = vor.u32 %v883, %v884
      %v886 = vsel %vm855, %v881, %v885
      %v887 = vrot.slane %v580, 4
      %v888 = vrot.slane %v576, 5
      %v889 = vor.u32 %v887, %v888
      %v890 = vsel %vm855, %v885, %v889
      %v891 = vrot.slane %v736, 4
      %v892 = vrot.slane %v739, 5
      %v893 = vor.u32 %v891, %v892
      %v894 = vsel %vm855, %v889, %v893
      %v896 = vshrl.u32 %v488, 16
      %v898 = vrot.slane %v896, 4
      %v899 = vshll.u32 %v488, 16
      %v901 = vrot.slane %v899, 5
      %v902 = vor.u32 %v898, %v901
      %v903 = vsel %vm855, %v893, %v902
      %v905 = vshrl.u32 %v489, 16
      %v907 = vrot.slane %v905, 4
      %v908 = vshll.u32 %v489, 16
      %v910 = vrot.slane %v908, 5
      %v911 = vor.u32 %v907, %v910
      %v912 = vsel %vm855, %v902, %v911
      %913 = vrot.lane.b32.xlu0 %v862, 112
      %v914 = vpop.permute.xlu0 %913
      %915 = vrot.lane.b32.xlu0 %v866, 112
      %v916 = vpop.permute.xlu0 %915
      %917 = vrot.lane.b32.xlu0 %v870, 112
      %v918 = vpop.permute.xlu0 %917
      %919 = vrot.lane.b32.xlu0 %v874, 112
      %v920 = vpop.permute.xlu0 %919
      %921 = vrot.lane.b32.xlu0 %v878, 112
      %v922 = vpop.permute.xlu0 %921
      %923 = vrot.lane.b32.xlu0 %v882, 112
      %v924 = vpop.permute.xlu0 %923
      %925 = vrot.lane.b32.xlu0 %v886, 112
      %v926 = vpop.permute.xlu0 %925
      %927 = vrot.lane.b32.xlu0 %v890, 112
      %v928 = vpop.permute.xlu0 %927
      %929 = vrot.lane.b32.xlu0 %v894, 112
      %v930 = vpop.permute.xlu0 %929
      %931 = vrot.lane.b32.xlu0 %v903, 112
      %v932 = vpop.permute.xlu0 %931
      %933 = vrot.lane.b32.xlu0 %v912, 112
      %v934 = vpop.permute.xlu0 %933
      %vm935 = vcmask 1042432
      %v936 = vrot.slane %v493, 5
      %v937 = vrot.slane %v461, 5
      %v938 = vsel %vm935, %v936, %v937
      %v939 = vrot.slane %v463, 5
      %v940 = vsel %vm935, %v937, %v939
      %v941 = vrot.slane %v465, 5
      %v942 = vsel %vm935, %v939, %v941
      %v943 = vrot.slane %v467, 5
      %v944 = vsel %vm935, %v941, %v943
      %v945 = vrot.slane %v469, 5
      %v946 = vsel %vm935, %v943, %v945
      %v947 = vrot.slane %v471, 5
      %v948 = vsel %vm935, %v945, %v947
      %v949 = vrot.slane %v473, 5
      %v950 = vsel %vm935, %v947, %v949
      %v951 = vrot.slane %v496, 5
      %v952 = vsel %vm935, %v949, %v951
      %v953 = vrot.slane %v487, 5
      %v954 = vsel %vm935, %v951, %v953
      %v955 = vrot.slane %v488, 5
      %v956 = vsel %vm935, %v953, %v955
      %v957 = vrot.slane %v489, 5
      %v958 = vsel %vm935, %v955, %v957
      %vm959 = vcmask 130048
      %v961 = vsel %vm959, %v415, %v584
      %v963 = vsel %vm959, %v416, %v586
      %v965 = vsel %vm959, %v493, %v588
      %v967 = vsel %vm959, %v461, %v590
      %v969 = vsel %vm959, %v463, %v592
      %v971 = vsel %vm959, %v465, %v594
      %v973 = vsel %vm959, %v467, %v596
      %v975 = vsel %vm959, %v469, %v598
      %v977 = vsel %vm959, %v471, %v600
      %v979 = vsel %vm959, %v473, %v602
      %v981 = vsel %vm959, %v496, %v604
      %vm982 = vcmask 261120
      %v984 = vsel %vm982, %v961, %v630
      %v986 = vsel %vm982, %v963, %v632
      %v988 = vsel %vm982, %v965, %v634
      %v990 = vsel %vm982, %v967, %v636
      %v992 = vsel %vm982, %v969, %v638
      %v994 = vsel %vm982, %v971, %v640
      %v996 = vsel %vm982, %v973, %v642
      %v998 = vsel %vm982, %v975, %v644
      %v1000 = vsel %vm982, %v977, %v646
      %v1002 = vsel %vm982, %v979, %v648
      %v1004 = vsel %vm982, %v981, %v650
      %vm1005 = vcmask 392192
      %v1007 = vsel %vm1005, %v984, %v674
      %v1009 = vsel %vm1005, %v986, %v676
      %v1011 = vsel %vm1005, %v988, %v678
      %v1013 = vsel %vm1005, %v990, %v680
      %v1015 = vsel %vm1005, %v992, %v682
      %v1017 = vsel %vm1005, %v994, %v684
      %v1019 = vsel %vm1005, %v996, %v686
      %v1021 = vsel %vm1005, %v998, %v688
      %v1023 = vsel %vm1005, %v1000, %v690
      %v1025 = vsel %vm1005, %v1002, %v692
      %v1027 = vsel %vm1005, %v1004, %v694
      %vm1028 = vcmask 523264
      %v1030 = vsel %vm1028, %v1007, %v745
      %v1032 = vsel %vm1028, %v1009, %v747
      %v1034 = vsel %vm1028, %v1011, %v749
      %v1036 = vsel %vm1028, %v1013, %v751
      %v1038 = vsel %vm1028, %v1015, %v753
      %v1040 = vsel %vm1028, %v1017, %v755
      %v1042 = vsel %vm1028, %v1019, %v757
      %v1044 = vsel %vm1028, %v1021, %v759
      %v1046 = vsel %vm1028, %v1023, %v761
      %v1048 = vsel %vm1028, %v1025, %v763
      %v1050 = vsel %vm1028, %v1027, %v765
      %vm1051 = vcmask 654336
      %v1053 = vsel %vm1051, %v1030, %v788
      %v1055 = vsel %vm1051, %v1032, %v790
      %v1057 = vsel %vm1051, %v1034, %v792
      %v1059 = vsel %vm1051, %v1036, %v794
      %v1061 = vsel %vm1051, %v1038, %v796
      %v1063 = vsel %vm1051, %v1040, %v798
      %v1065 = vsel %vm1051, %v1042, %v800
      %v1067 = vsel %vm1051, %v1044, %v802
      %v1069 = vsel %vm1051, %v1046, %v804
      %v1071 = vsel %vm1051, %v1048, %v806
      %v1073 = vsel %vm1051, %v1050, %v808
      %vm1074 = vcmask 785408
      %v1076 = vsel %vm1074, %v1053, %v834
      %v1078 = vsel %vm1074, %v1055, %v836
      %v1080 = vsel %vm1074, %v1057, %v838
      %v1082 = vsel %vm1074, %v1059, %v840
      %v1084 = vsel %vm1074, %v1061, %v842
      %v1086 = vsel %vm1074, %v1063, %v844
      %v1088 = vsel %vm1074, %v1065, %v846
      %v1090 = vsel %vm1074, %v1067, %v848
      %v1092 = vsel %vm1074, %v1069, %v850
      %v1094 = vsel %vm1074, %v1071, %v852
      %v1096 = vsel %vm1074, %v1073, %v854
      %vm1097 = vcmask 916480
      %v1099 = vsel %vm1097, %v1076, %v914
      %v1102 = vsel %vm1097, %v1078, %v916
      %v1105 = vsel %vm1097, %v1080, %v918
      %v1108 = vsel %vm1097, %v1082, %v920
      %v1111 = vsel %vm1097, %v1084, %v922
      %v1114 = vsel %vm1097, %v1086, %v924
      %v1117 = vsel %vm1097, %v1088, %v926
      %v1120 = vsel %vm1097, %v1090, %v928
      %v1123 = vsel %vm1097, %v1092, %v930
      %v1126 = vsel %vm1097, %v1094, %v932
      %v1129 = vsel %vm1097, %v1096, %v934
      %v1131 = vld [vmem:[%s3] sm:$0xf]
      %v1132 = vld [vmem:[%s3 + $0x4] sm:$0xf]
      %v1133 = vld [vmem:[%s3 + $0x8] sm:$0xf]
      %v1134 = vld [vmem:[%s3 + $0xc] sm:$0xf]
      %v1135 = vld [vmem:[%s3 + $0x10] sm:$0xf]
      %v1136 = vld [vmem:[%s3 + $0x14] sm:$0xf]
      %v1137 = vld [vmem:[%s3 + $0x18] sm:$0xf]
      %v1138 = vld [vmem:[%s3 + $0x1c] sm:$0xf]
      %v1139 = vld [vmem:[%s3 + $0x20] sm:$0xf]
      %v1140 = vld [vmem:[%s3 + $0x24] sm:$0xf]
      %v1141 = vld [vmem:[%s3 + $0x28] sm:$0xf]
      %v1142 = vld [vmem:[%s3 + $0x2c] sm:$0xf]
      %v1143 = vld [vmem:[%s3 + $0x30] sm:$0xf]
      %v1144 = vld [vmem:[%s3 + $0x34] sm:$0xf]
      %v1145 = vld [vmem:[%s3 + $0x38] sm:$0xf]
      %v1146 = vld [vmem:[%s3 + $0x3c] sm:$0xf]
      %v1147 = vld [vmem:[%s3 + $0x40] sm:$0xf]
      %v1148 = vld [vmem:[%s3 + $0x44] sm:$0xf]
      %v1149 = vld [vmem:[%s4] sm:$0x1]
      %v1151 = vlaneseq
      %v1152 = vshrl.u32 %v1151, 7
      %v1153 = vsub.s32 0, %v1152
      %v1154 = vrot.slane %v1149, %v1153
      %v1174 = vunpack.c.l.b16 %v1131
      %v1175 = vunpack.c.l.b16 %v1132
      %v1176 = vunpack.c.l.b16 %v1133
      %v1177 = vunpack.c.l.b16 %v1134
      %v1178 = vunpack.c.l.b16 %v1135
      %v1179 = vunpack.c.l.b16 %v1136
      %v1180 = vunpack.c.l.b16 %v1137
      %v1181 = vunpack.c.l.b16 %v1138
      %v1182 = vunpack.c.l.b16 %v1139
      %v1183 = vunpack.c.l.b16 %v1140
      %v1184 = vunpack.c.l.b16 %v1141
      %v1185 = vunpack.c.l.b16 %v1142
      %v1186 = vunpack.c.l.b16 %v1143
      %v1187 = vunpack.c.l.b16 %v1144
      %v1188 = vunpack.c.l.b16 %v1145
      %v1189 = vunpack.c.l.b16 %v1146
      %v1190 = vunpack.c.l.b16 %v1147
      %v1191 = vunpack.c.l.b16 %v1148
      %v1192 = vpack.c.b16 %v1175, %v1174
      %v1193 = vpack.c.b16 %v1177, %v1176
      %v1194 = vpack.c.b16 %v1179, %v1178
      %v1195 = vpack.c.b16 %v1181, %v1180
      %v1196 = vpack.c.b16 %v1183, %v1182
      %v1197 = vpack.c.b16 %v1185, %v1184
      %v1198 = vpack.c.b16 %v1187, %v1186
      %v1199 = vpack.c.b16 %v1189, %v1188
      %v1200 = vpack.c.b16 %v1191, %v1190
      %v1211 = vsel %vm959, %v938, 0
      %v1214 = vsel %vm959, %v940, 0
      %v1217 = vsel %vm959, %v942, 0
      %v1220 = vsel %vm959, %v944, 0
      %v1223 = vsel %vm959, %v946, 0
      %v1226 = vsel %vm959, %v948, 0
      %v1229 = vsel %vm959, %v950, 0
      %v1232 = vsel %vm959, %v952, 0
      %v1235 = vsel %vm959, %v954, 0
      %v1238 = vsel %vm959, %v956, 0
      %v1241 = vsel %vm959, %v958, 0
      %1243 = vmatprep.subr.bf16.mxu0 0
      %1244 = vmatpush1.bf16.msra.mxu0 %v1192
      %1245 = vmatprep.subr.bf16.mxu0 0
      %1246 = vmatpush1.bf16.msra.mxu0 %v1193
      %1247 = vmatprep.subr.bf16.mxu0 0
      %1248 = vmatpush1.bf16.msra.mxu0 %v1194
      %1249 = vmatprep.subr.bf16.mxu0 0
      %1250 = vmatpush1.bf16.msra.mxu0 %v1195
      %1251 = vmatprep.subr.bf16.mxu0 0
      %1252 = vmatpush1.bf16.msra.mxu0 %v1196
      %1253 = vmatprep.subr.bf16.mxu0 0
      %1254 = vmatpush1.bf16.msra.mxu0 %v1197
      %1255 = vmatprep.subr.bf16.mxu0 0
      %1256 = vmatpush1.bf16.msra.mxu0 %v1198
      %1257 = vmatprep.subr.bf16.mxu0 0
      %1258 = vmatpush1.bf16.msra.mxu0 %v1199
      %1259 = vmatprep.subr.bf16.mxu0 0
      %1260 = vmatpush1.bf16.msra.mxu0 %v1200
      %1261 = vmatprep.subr.bf16.mxu0 0
      %1262 = vmatpush1.bf16.msra.mxu0 0
      %1263 = vmatprep.subr.bf16.mxu0 0
      %1264 = vmatpush1.bf16.msra.mxu0 0
      %1265 = vmatprep.subr.bf16.mxu0 0
      %1266 = vmatpush1.bf16.msra.mxu0 0
      %1267 = vmatprep.subr.bf16.mxu0 0
      %1268 = vmatpush1.bf16.msra.mxu0 0
      %1269 = vmatprep.subr.bf16.mxu0 0
      %1270 = vmatpush1.bf16.msra.mxu0 0
      %1271 = vmatprep.subr.bf16.mxu0 0
      %1272 = vmatpush1.bf16.msra.mxu0 0
      %1273 = vmatprep.subr.bf16.mxu0 0
      %1274 = vmatpush1.bf16.msra.mxu0 0
      %1275 = vmatprep.mubr.bf16.mxu0 %v1211
      %1276 = vmatmul.mubr.bf16.gmra.mrb[0].mxu0 %v1099
      %v1277 = vpop.f32.mrb[0].mxu0
      %v1278 = vadd.f32 %v1154, %v1277
      %v1279 = vpop.f32.mrb[0].mxu0
      %v1280 = vpop.f32.mrb[0].mxu0
      %v1281 = vadd.f32 %v1154, %v1280
      %v1282 = vpop.f32.mrb[0].mxu0
      %1283 = vmatprep.mubr.bf16.mxu0 %v1214
      %1284 = vmatmul.mubr.bf16.gmra.mrb[0].mxu0 %v1102
      %v1285 = vpop.f32.mrb[0].mxu0
      %v1286 = vadd.f32 %v1154, %v1285
      %v1287 = vpop.f32.mrb[0].mxu0
      %v1288 = vpop.f32.mrb[0].mxu0
      %v1289 = vadd.f32 %v1154, %v1288
      %v1290 = vpop.f32.mrb[0].mxu0
      %1291 = vmatprep.mubr.bf16.mxu0 %v1217
      %1292 = vmatmul.mubr.bf16.gmra.mrb[0].mxu0 %v1105
      %v1293 = vpop.f32.mrb[0].mxu0
      %v1294 = vadd.f32 %v1154, %v1293
      %v1295 = vpop.f32.mrb[0].mxu0
      %v1296 = vpop.f32.mrb[0].mxu0
      %v1297 = vadd.f32 %v1154, %v1296
      %v1298 = vpop.f32.mrb[0].mxu0
      %1299 = vmatprep.mubr.bf16.mxu0 %v1220
      %1300 = vmatmul.mubr.bf16.gmra.mrb[0].mxu0 %v1108
      %v1301 = vpop.f32.mrb[0].mxu0
      %v1302 = vadd.f32 %v1154, %v1301
      %v1303 = vpop.f32.mrb[0].mxu0
      %v1304 = vpop.f32.mrb[0].mxu0
      %v1305 = vadd.f32 %v1154, %v1304
      %v1306 = vpop.f32.mrb[0].mxu0
      %1307 = vmatprep.mubr.bf16.mxu0 %v1223
      %1308 = vmatmul.mubr.bf16.gmra.mrb[0].mxu0 %v1111
      %v1309 = vpop.f32.mrb[0].mxu0
      %v1310 = vadd.f32 %v1154, %v1309
      %v1311 = vpop.f32.mrb[0].mxu0
      %v1312 = vpop.f32.mrb[0].mxu0
      %v1313 = vadd.f32 %v1154, %v1312
      %v1314 = vpop.f32.mrb[0].mxu0
      %1315 = vmatprep.mubr.bf16.mxu0 %v1226
      %1316 = vmatmul.mubr.bf16.gmra.mrb[0].mxu0 %v1114
      %v1317 = vpop.f32.mrb[0].mxu0
      %v1318 = vadd.f32 %v1154, %v1317
      %v1319 = vpop.f32.mrb[0].mxu0
      %v1320 = vpop.f32.mrb[0].mxu0
      %v1321 = vadd.f32 %v1154, %v1320
      %v1322 = vpop.f32.mrb[0].mxu0
      %1323 = vmatprep.mubr.bf16.mxu0 %v1229
      %1324 = vmatmul.mubr.bf16.gmra.mrb[0].mxu0 %v1117
      %v1325 = vpop.f32.mrb[0].mxu0
      %v1326 = vadd.f32 %v1154, %v1325
      %v1327 = vpop.f32.mrb[0].mxu0
      %v1328 = vpop.f32.mrb[0].mxu0
      %v1329 = vadd.f32 %v1154, %v1328
      %v1330 = vpop.f32.mrb[0].mxu0
      %1331 = vmatprep.mubr.bf16.mxu0 %v1232
      %1332 = vmatmul.mubr.bf16.gmra.mrb[0].mxu0 %v1120
      %v1333 = vpop.f32.mrb[0].mxu0
      %v1334 = vadd.f32 %v1154, %v1333
      %v1335 = vpop.f32.mrb[0].mxu0
      %v1336 = vpop.f32.mrb[0].mxu0
      %v1337 = vadd.f32 %v1154, %v1336
      %v1338 = vpop.f32.mrb[0].mxu0
      %1339 = vmatprep.mubr.bf16.mxu0 %v1235
      %1340 = vmatmul.mubr.bf16.gmra.mrb[0].mxu0 %v1123
      %v1341 = vpop.f32.mrb[0].mxu0
      %v1342 = vadd.f32 %v1154, %v1341
      %v1343 = vpop.f32.mrb[0].mxu0
      %v1344 = vpop.f32.mrb[0].mxu0
      %v1345 = vadd.f32 %v1154, %v1344
      %v1346 = vpop.f32.mrb[0].mxu0
      %1347 = vmatprep.mubr.bf16.mxu0 %v1238
      %1348 = vmatmul.mubr.bf16.gmra.mrb[0].mxu0 %v1126
      %v1349 = vpop.f32.mrb[0].mxu0
      %v1350 = vadd.f32 %v1154, %v1349
      %v1351 = vpop.f32.mrb[0].mxu0
      %v1352 = vpop.f32.mrb[0].mxu0
      %v1353 = vadd.f32 %v1154, %v1352
      %v1354 = vpop.f32.mrb[0].mxu0
      %1355 = vmatprep.mubr.bf16.mxu0 %v1241
      %1356 = vmatmul.mubr.bf16.gmra.mrb[0].mxu0 %v1129
      %v1357 = vpop.f32.mrb[0].mxu0
      %v1358 = vadd.f32 %v1154, %v1357
      %v1359 = vpop.f32.mrb[0].mxu0
      %v1360 = vpop.f32.mrb[0].mxu0
      %v1361 = vadd.f32 %v1154, %v1360
      %v1362 = vpop.f32.mrb[0].mxu0
      %1363 = vdwg.mxu0
      %v1364 = vmax.f32 %v1278, 0.0
      %v1365 = vmax.f32 %v1281, 0.0
      %v1366 = vmax.f32 %v1286, 0.0
      %v1367 = vmax.f32 %v1289, 0.0
      %v1368 = vmax.f32 %v1294, 0.0
      %v1369 = vmax.f32 %v1297, 0.0
      %v1370 = vmax.f32 %v1302, 0.0
      %v1371 = vmax.f32 %v1305, 0.0
      %v1372 = vmax.f32 %v1310, 0.0
      %v1373 = vmax.f32 %v1313, 0.0
      %v1374 = vmax.f32 %v1318, 0.0
      %v1375 = vmax.f32 %v1321, 0.0
      %v1376 = vmax.f32 %v1326, 0.0
      %v1377 = vmax.f32 %v1329, 0.0
      %v1378 = vmax.f32 %v1334, 0.0
      %v1379 = vmax.f32 %v1337, 0.0
      %v1380 = vmax.f32 %v1342, 0.0
      %v1381 = vmax.f32 %v1345, 0.0
      %v1382 = vmax.f32 %v1350, 0.0
      %v1383 = vmax.f32 %v1353, 0.0
      %v1384 = vmax.f32 %v1358, 0.0
      %v1385 = vmax.f32 %v1361, 0.0
      %v1386 = vpack.c.bf16 %v1365, %v1364
      %v1387 = vpack.c.bf16 %v1367, %v1366
      %v1388 = vpack.c.bf16 %v1369, %v1368
      %v1389 = vpack.c.bf16 %v1371, %v1370
      %v1390 = vpack.c.bf16 %v1373, %v1372
      %v1391 = vpack.c.bf16 %v1375, %v1374
      %v1392 = vpack.c.bf16 %v1377, %v1376
      %v1393 = vpack.c.bf16 %v1379, %v1378
      %v1394 = vpack.c.bf16 %v1381, %v1380
      %v1395 = vpack.c.bf16 %v1383, %v1382
      %v1396 = vpack.c.bf16 %v1385, %v1384
      %v1398 = vshrl.u32 %v1386, 16
      %v1400 = vshll.u32 %v1386, 16
      %v1402 = vrot.slane %v1400, 1
      %v1403 = vor.u32 %v1398, %v1402
      %v1405 = vshll.u32 %v1387, 16
      %v1407 = vrot.slane %v1405, 1
      %v1408 = vsel %vm497, %v1403, %v1407
      %v1409 = vshrl.u32 %v1387, 16
      %v1411 = vor.u32 %v1409, %v1407
      %v1413 = vshll.u32 %v1388, 16
      %v1415 = vrot.slane %v1413, 1
      %v1416 = vsel %vm497, %v1411, %v1415
      %v1417 = vshrl.u32 %v1388, 16
      %v1419 = vor.u32 %v1417, %v1415
      %v1421 = vshll.u32 %v1389, 16
      %v1423 = vrot.slane %v1421, 1
      %v1424 = vsel %vm497, %v1419, %v1423
      %v1425 = vshrl.u32 %v1389, 16
      %v1427 = vor.u32 %v1425, %v1423
      %v1429 = vshll.u32 %v1390, 16
      %v1431 = vrot.slane %v1429, 1
      %v1432 = vsel %vm497, %v1427, %v1431
      %v1433 = vshrl.u32 %v1390, 16
      %v1435 = vor.u32 %v1433, %v1431
      %v1437 = vshll.u32 %v1391, 16
      %v1439 = vrot.slane %v1437, 1
      %v1440 = vsel %vm497, %v1435, %v1439
      %v1441 = vshrl.u32 %v1391, 16
      %v1443 = vor.u32 %v1441, %v1439
      %v1445 = vshll.u32 %v1392, 16
      %v1447 = vrot.slane %v1445, 1
      %v1448 = vsel %vm497, %v1443, %v1447
      %v1449 = vshrl.u32 %v1392, 16
      %v1451 = vor.u32 %v1449, %v1447
      %v1453 = vshll.u32 %v1393, 16
      %v1455 = vrot.slane %v1453, 1
      %v1456 = vsel %vm497, %v1451, %v1455
      %v1457 = vshrl.u32 %v1393, 16
      %v1459 = vor.u32 %v1457, %v1455
      %v1461 = vshll.u32 %v1394, 16
      %v1463 = vrot.slane %v1461, 1
      %v1464 = vsel %vm497, %v1459, %v1463
      %1465 = vrot.lane.b32.xlu0 %v1408, 16
      %v1466 = vpop.permute.xlu0 %1465
      %1467 = vrot.lane.b32.xlu0 %v1416, 16
      %v1468 = vpop.permute.xlu0 %1467
      %1469 = vrot.lane.b32.xlu0 %v1424, 16
      %v1470 = vpop.permute.xlu0 %1469
      %1471 = vrot.lane.b32.xlu0 %v1432, 16
      %v1472 = vpop.permute.xlu0 %1471
      %1473 = vrot.lane.b32.xlu0 %v1440, 16
      %v1474 = vpop.permute.xlu0 %1473
      %1475 = vrot.lane.b32.xlu0 %v1448, 16
      %v1476 = vpop.permute.xlu0 %1475
      %1477 = vrot.lane.b32.xlu0 %v1456, 16
      %v1478 = vpop.permute.xlu0 %1477
      %1479 = vrot.lane.b32.xlu0 %v1464, 16
      %v1480 = vpop.permute.xlu0 %1479
      %v1490 = vrot.slane %v1386, 1
      %v1491 = vrot.slane %v1387, 1
      %v1492 = vsel %vm607, %v1490, %v1491
      %v1493 = vrot.slane %v1388, 1
      %v1494 = vsel %vm607, %v1491, %v1493
      %v1495 = vrot.slane %v1389, 1
      %v1496 = vsel %vm607, %v1493, %v1495
      %v1497 = vrot.slane %v1390, 1
      %v1498 = vsel %vm607, %v1495, %v1497
      %v1499 = vrot.slane %v1391, 1
      %v1500 = vsel %vm607, %v1497, %v1499
      %v1501 = vrot.slane %v1392, 1
      %v1502 = vsel %vm607, %v1499, %v1501
      %v1503 = vrot.slane %v1393, 1
      %v1504 = vsel %vm607, %v1501, %v1503
      %v1505 = vrot.slane %v1394, 1
      %v1506 = vsel %vm607, %v1503, %v1505
      %1507 = vrot.lane.b32.xlu0 %v1492, 32
      %v1508 = vpop.permute.xlu0 %1507
      %1509 = vrot.lane.b32.xlu0 %v1494, 32
      %v1510 = vpop.permute.xlu0 %1509
      %1511 = vrot.lane.b32.xlu0 %v1496, 32
      %v1512 = vpop.permute.xlu0 %1511
      %1513 = vrot.lane.b32.xlu0 %v1498, 32
      %v1514 = vpop.permute.xlu0 %1513
      %1515 = vrot.lane.b32.xlu0 %v1500, 32
      %v1516 = vpop.permute.xlu0 %1515
      %1517 = vrot.lane.b32.xlu0 %v1502, 32
      %v1518 = vpop.permute.xlu0 %1517
      %1519 = vrot.lane.b32.xlu0 %v1504, 32
      %v1520 = vpop.permute.xlu0 %1519
      %1521 = vrot.lane.b32.xlu0 %v1506, 32
      %v1522 = vpop.permute.xlu0 %1521
      %v1524 = vrot.slane %v1387, 2
      %v1525 = vrot.slane %v1388, 2
      %v1526 = vsel %vm651, %v1524, %v1525
      %v1527 = vrot.slane %v1389, 2
      %v1528 = vsel %vm651, %v1525, %v1527
      %v1529 = vrot.slane %v1390, 2
      %v1530 = vsel %vm651, %v1527, %v1529
      %v1531 = vrot.slane %v1391, 2
      %v1532 = vsel %vm651, %v1529, %v1531
      %v1533 = vrot.slane %v1392, 2
      %v1534 = vsel %vm651, %v1531, %v1533
      %v1535 = vrot.slane %v1393, 2
      %v1536 = vsel %vm651, %v1533, %v1535
      %v1537 = vrot.slane %v1394, 2
      %v1538 = vsel %vm651, %v1535, %v1537
      %v1539 = vrot.slane %v1395, 2
      %v1540 = vsel %vm651, %v1537, %v1539
      %1541 = vrot.lane.b32.xlu0 %v1526, 48
      %v1542 = vpop.permute.xlu0 %1541
      %1543 = vrot.lane.b32.xlu0 %v1528, 48
      %v1544 = vpop.permute.xlu0 %1543
      %1545 = vrot.lane.b32.xlu0 %v1530, 48
      %v1546 = vpop.permute.xlu0 %1545
      %1547 = vrot.lane.b32.xlu0 %v1532, 48
      %v1548 = vpop.permute.xlu0 %1547
      %1549 = vrot.lane.b32.xlu0 %v1534, 48
      %v1550 = vpop.permute.xlu0 %1549
      %1551 = vrot.lane.b32.xlu0 %v1536, 48
      %v1552 = vpop.permute.xlu0 %1551
      %1553 = vrot.lane.b32.xlu0 %v1538, 48
      %v1554 = vpop.permute.xlu0 %1553
      %1555 = vrot.lane.b32.xlu0 %v1540, 48
      %v1556 = vpop.permute.xlu0 %1555
      %v1557 = vrot.slane %v1409, 2
      %v1558 = vrot.slane %v1405, 3
      %v1559 = vor.u32 %v1557, %v1558
      %v1560 = vrot.slane %v1417, 2
      %v1561 = vrot.slane %v1413, 3
      %v1562 = vor.u32 %v1560, %v1561
      %v1563 = vsel %vm695, %v1559, %v1562
      %v1564 = vrot.slane %v1425, 2
      %v1565 = vrot.slane %v1421, 3
      %v1566 = vor.u32 %v1564, %v1565
      %v1567 = vsel %vm695, %v1562, %v1566
      %v1568 = vrot.slane %v1433, 2
      %v1569 = vrot.slane %v1429, 3
      %v1570 = vor.u32 %v1568, %v1569
      %v1571 = vsel %vm695, %v1566, %v1570
      %v1572 = vrot.slane %v1441, 2
      %v1573 = vrot.slane %v1437, 3
      %v1574 = vor.u32 %v1572, %v1573
      %v1575 = vsel %vm695, %v1570, %v1574
      %v1576 = vrot.slane %v1449, 2
      %v1577 = vrot.slane %v1445, 3
      %v1578 = vor.u32 %v1576, %v1577
      %v1579 = vsel %vm695, %v1574, %v1578
      %v1580 = vrot.slane %v1457, 2
      %v1581 = vrot.slane %v1453, 3
      %v1582 = vor.u32 %v1580, %v1581
      %v1583 = vsel %vm695, %v1578, %v1582
      %v1584 = vshrl.u32 %v1394, 16
      %v1586 = vrot.slane %v1584, 2
      %v1587 = vrot.slane %v1461, 3
      %v1588 = vor.u32 %v1586, %v1587
      %v1589 = vsel %vm695, %v1582, %v1588
      %v1591 = vshrl.u32 %v1395, 16
      %v1593 = vrot.slane %v1591, 2
      %v1594 = vshll.u32 %v1395, 16
      %v1596 = vrot.slane %v1594, 3
      %v1597 = vor.u32 %v1593, %v1596
      %v1598 = vsel %vm695, %v1588, %v1597
      %1599 = vrot.lane.b32.xlu0 %v1563, 64
      %v1600 = vpop.permute.xlu0 %1599
      %1601 = vrot.lane.b32.xlu0 %v1567, 64
      %v1602 = vpop.permute.xlu0 %1601
      %1603 = vrot.lane.b32.xlu0 %v1571, 64
      %v1604 = vpop.permute.xlu0 %1603
      %1605 = vrot.lane.b32.xlu0 %v1575, 64
      %v1606 = vpop.permute.xlu0 %1605
      %1607 = vrot.lane.b32.xlu0 %v1579, 64
      %v1608 = vpop.permute.xlu0 %1607
      %1609 = vrot.lane.b32.xlu0 %v1583, 64
      %v1610 = vpop.permute.xlu0 %1609
      %1611 = vrot.lane.b32.xlu0 %v1589, 64
      %v1612 = vpop.permute.xlu0 %1611
      %1613 = vrot.lane.b32.xlu0 %v1598, 64
      %v1614 = vpop.permute.xlu0 %1613
      %v1615 = vrot.slane %v1387, 3
      %v1616 = vrot.slane %v1388, 3
      %v1617 = vsel %vm458, %v1615, %v1616
      %v1618 = vrot.slane %v1389, 3
      %v1619 = vsel %vm458, %v1616, %v1618
      %v1620 = vrot.slane %v1390, 3
      %v1621 = vsel %vm458, %v1618, %v1620
      %v1622 = vrot.slane %v1391, 3
      %v1623 = vsel %vm458, %v1620, %v1622
      %v1624 = vrot.slane %v1392, 3
      %v1625 = vsel %vm458, %v1622, %v1624
      %v1626 = vrot.slane %v1393, 3
      %v1627 = vsel %vm458, %v1624, %v1626
      %v1628 = vrot.slane %v1394, 3
      %v1629 = vsel %vm458, %v1626, %v1628
      %v1630 = vrot.slane %v1395, 3
      %v1631 = vsel %vm458, %v1628, %v1630
      %1632 = vrot.lane.b32.xlu0 %v1617, 80
      %v1633 = vpop.permute.xlu0 %1632
      %1634 = vrot.lane.b32.xlu0 %v1619, 80
      %v1635 = vpop.permute.xlu0 %1634
      %1636 = vrot.lane.b32.xlu0 %v1621, 80
      %v1637 = vpop.permute.xlu0 %1636
      %1638 = vrot.lane.b32.xlu0 %v1623, 80
      %v1639 = vpop.permute.xlu0 %1638
      %1640 = vrot.lane.b32.xlu0 %v1625, 80
      %v1641 = vpop.permute.xlu0 %1640
      %1642 = vrot.lane.b32.xlu0 %v1627, 80
      %v1643 = vpop.permute.xlu0 %1642
      %1644 = vrot.lane.b32.xlu0 %v1629, 80
      %v1645 = vpop.permute.xlu0 %1644
      %1646 = vrot.lane.b32.xlu0 %v1631, 80
      %v1647 = vpop.permute.xlu0 %1646
      %v1649 = vrot.slane %v1388, 4
      %v1650 = vrot.slane %v1389, 4
      %v1651 = vsel %vm809, %v1649, %v1650
      %v1652 = vrot.slane %v1390, 4
      %v1653 = vsel %vm809, %v1650, %v1652
      %v1654 = vrot.slane %v1391, 4
      %v1655 = vsel %vm809, %v1652, %v1654
      %v1656 = vrot.slane %v1392, 4
      %v1657 = vsel %vm809, %v1654, %v1656
      %v1658 = vrot.slane %v1393, 4
      %v1659 = vsel %vm809, %v1656, %v1658
      %v1660 = vrot.slane %v1394, 4
      %v1661 = vsel %vm809, %v1658, %v1660
      %v1662 = vrot.slane %v1395, 4
      %v1663 = vsel %vm809, %v1660, %v1662
      %v1664 = vrot.slane %v1396, 4
      %v1665 = vsel %vm809, %v1662, %v1664
      %1666 = vrot.lane.b32.xlu0 %v1651, 96
      %v1667 = vpop.permute.xlu0 %1666
      %1668 = vrot.lane.b32.xlu0 %v1653, 96
      %v1669 = vpop.permute.xlu0 %1668
      %1670 = vrot.lane.b32.xlu0 %v1655, 96
      %v1671 = vpop.permute.xlu0 %1670
      %1672 = vrot.lane.b32.xlu0 %v1657, 96
      %v1673 = vpop.permute.xlu0 %1672
      %1674 = vrot.lane.b32.xlu0 %v1659, 96
      %v1675 = vpop.permute.xlu0 %1674
      %1676 = vrot.lane.b32.xlu0 %v1661, 96
      %v1677 = vpop.permute.xlu0 %1676
      %1678 = vrot.lane.b32.xlu0 %v1663, 96
      %v1679 = vpop.permute.xlu0 %1678
      %1680 = vrot.lane.b32.xlu0 %v1665, 96
      %v1681 = vpop.permute.xlu0 %1680
      %v1682 = vrot.slane %v1417, 4
      %v1683 = vrot.slane %v1413, 5
      %v1684 = vor.u32 %v1682, %v1683
      %v1685 = vrot.slane %v1425, 4
      %v1686 = vrot.slane %v1421, 5
      %v1687 = vor.u32 %v1685, %v1686
      %v1688 = vsel %vm855, %v1684, %v1687
      %v1689 = vrot.slane %v1433, 4
      %v1690 = vrot.slane %v1429, 5
      %v1691 = vor.u32 %v1689, %v1690
      %v1692 = vsel %vm855, %v1687, %v1691
      %v1693 = vrot.slane %v1441, 4
      %v1694 = vrot.slane %v1437, 5
      %v1695 = vor.u32 %v1693, %v1694
      %v1696 = vsel %vm855, %v1691, %v1695
      %v1697 = vrot.slane %v1449, 4
      %v1698 = vrot.slane %v1445, 5
      %v1699 = vor.u32 %v1697, %v1698
      %v1700 = vsel %vm855, %v1695, %v1699
      %v1701 = vrot.slane %v1457, 4
      %v1702 = vrot.slane %v1453, 5
      %v1703 = vor.u32 %v1701, %v1702
      %v1704 = vsel %vm855, %v1699, %v1703
      %v1705 = vrot.slane %v1584, 4
      %v1706 = vrot.slane %v1461, 5
      %v1707 = vor.u32 %v1705, %v1706
      %v1708 = vsel %vm855, %v1703, %v1707
      %v1709 = vrot.slane %v1591, 4
      %v1710 = vrot.slane %v1594, 5
      %v1711 = vor.u32 %v1709, %v1710
      %v1712 = vsel %vm855, %v1707, %v1711
      %v1714 = vshrl.u32 %v1396, 16
      %v1716 = vrot.slane %v1714, 4
      %v1717 = vshll.u32 %v1396, 16
      %v1719 = vrot.slane %v1717, 5
      %v1720 = vor.u32 %v1716, %v1719
      %v1721 = vsel %vm855, %v1711, %v1720
      %1722 = vrot.lane.b32.xlu0 %v1688, 112
      %v1723 = vpop.permute.xlu0 %1722
      %1724 = vrot.lane.b32.xlu0 %v1692, 112
      %v1725 = vpop.permute.xlu0 %1724
      %1726 = vrot.lane.b32.xlu0 %v1696, 112
      %v1727 = vpop.permute.xlu0 %1726
      %1728 = vrot.lane.b32.xlu0 %v1700, 112
      %v1729 = vpop.permute.xlu0 %1728
      %1730 = vrot.lane.b32.xlu0 %v1704, 112
      %v1731 = vpop.permute.xlu0 %1730
      %1732 = vrot.lane.b32.xlu0 %v1708, 112
      %v1733 = vpop.permute.xlu0 %1732
      %1734 = vrot.lane.b32.xlu0 %v1712, 112
      %v1735 = vpop.permute.xlu0 %1734
      %1736 = vrot.lane.b32.xlu0 %v1721, 112
      %v1737 = vpop.permute.xlu0 %1736
      %v1738 = vrot.slane %v1388, 5
      %v1739 = vrot.slane %v1389, 5
      %v1740 = vsel %vm935, %v1738, %v1739
      %v1741 = vrot.slane %v1390, 5
      %v1742 = vsel %vm935, %v1739, %v1741
      %v1743 = vrot.slane %v1391, 5
      %v1744 = vsel %vm935, %v1741, %v1743
      %v1745 = vrot.slane %v1392, 5
      %v1746 = vsel %vm935, %v1743, %v1745
      %v1747 = vrot.slane %v1393, 5
      %v1748 = vsel %vm935, %v1745, %v1747
      %v1749 = vrot.slane %v1394, 5
      %v1750 = vsel %vm935, %v1747, %v1749
      %v1751 = vrot.slane %v1395, 5
      %v1752 = vsel %vm935, %v1749, %v1751
      %v1753 = vrot.slane %v1396, 5
      %v1754 = vsel %vm935, %v1751, %v1753
      %v1756 = vsel %vm959, %v1386, %v1466
      %v1758 = vsel %vm959, %v1387, %v1468
      %v1760 = vsel %vm959, %v1388, %v1470
      %v1762 = vsel %vm959, %v1389, %v1472
      %v1764 = vsel %vm959, %v1390, %v1474
      %v1766 = vsel %vm959, %v1391, %v1476
      %v1768 = vsel %vm959, %v1392, %v1478
      %v1770 = vsel %vm959, %v1393, %v1480
      %v1772 = vsel %vm982, %v1756, %v1508
      %v1774 = vsel %vm982, %v1758, %v1510
      %v1776 = vsel %vm982, %v1760, %v1512
      %v1778 = vsel %vm982, %v1762, %v1514
      %v1780 = vsel %vm982, %v1764, %v1516
      %v1782 = vsel %vm982, %v1766, %v1518
      %v1784 = vsel %vm982, %v1768, %v1520
      %v1786 = vsel %vm982, %v1770, %v1522
      %v1788 = vsel %vm1005, %v1772, %v1542
      %v1790 = vsel %vm1005, %v1774, %v1544
      %v1792 = vsel %vm1005, %v1776, %v1546
      %v1794 = vsel %vm1005, %v1778, %v1548
      %v1796 = vsel %vm1005, %v1780, %v1550
      %v1798 = vsel %vm1005, %v1782, %v1552
      %v1800 = vsel %vm1005, %v1784, %v1554
      %v1802 = vsel %vm1005, %v1786, %v1556
      %v1804 = vsel %vm1028, %v1788, %v1600
      %v1806 = vsel %vm1028, %v1790, %v1602
      %v1808 = vsel %vm1028, %v1792, %v1604
      %v1810 = vsel %vm1028, %v1794, %v1606
      %v1812 = vsel %vm1028, %v1796, %v1608
      %v1814 = vsel %vm1028, %v1798, %v1610
      %v1816 = vsel %vm1028, %v1800, %v1612
      %v1818 = vsel %vm1028, %v1802, %v1614
      %v1820 = vsel %vm1051, %v1804, %v1633
      %v1822 = vsel %vm1051, %v1806, %v1635
      %v1824 = vsel %vm1051, %v1808, %v1637
      %v1826 = vsel %vm1051, %v1810, %v1639
      %v1828 = vsel %vm1051, %v1812, %v1641
      %v1830 = vsel %vm1051, %v1814, %v1643
      %v1832 = vsel %vm1051, %v1816, %v1645
      %v1834 = vsel %vm1051, %v1818, %v1647
      %v1836 = vsel %vm1074, %v1820, %v1667
      %v1838 = vsel %vm1074, %v1822, %v1669
      %v1840 = vsel %vm1074, %v1824, %v1671
      %v1842 = vsel %vm1074, %v1826, %v1673
      %v1844 = vsel %vm1074, %v1828, %v1675
      %v1846 = vsel %vm1074, %v1830, %v1677
      %v1848 = vsel %vm1074, %v1832, %v1679
      %v1850 = vsel %vm1074, %v1834, %v1681
      %v1852 = vsel %vm1097, %v1836, %v1723
      %v1855 = vsel %vm1097, %v1838, %v1725
      %v1858 = vsel %vm1097, %v1840, %v1727
      %v1861 = vsel %vm1097, %v1842, %v1729
      %v1864 = vsel %vm1097, %v1844, %v1731
      %v1867 = vsel %vm1097, %v1846, %v1733
      %v1870 = vsel %vm1097, %v1848, %v1735
      %v1873 = vsel %vm1097, %v1850, %v1737
      %v1875 = vld [vmem:[%s5] sm:$0xf]
      %v1876 = vld [vmem:[%s5 + $0x4] sm:$0xf]
      %v1877 = vld [vmem:[%s5 + $0x8] sm:$0xf]
      %v1878 = vld [vmem:[%s5 + $0xc] sm:$0xf]
      %v1879 = vld [vmem:[%s5 + $0x10] sm:$0xf]
      %v1880 = vld [vmem:[%s5 + $0x14] sm:$0xf]
      %v1881 = vld [vmem:[%s5 + $0x18] sm:$0xf]
      %v1882 = vld [vmem:[%s5 + $0x1c] sm:$0xf]
      %v1883 = vld [vmem:[%s5 + $0x20] sm:$0xf]
      %v1884 = vld [vmem:[%s5 + $0x24] sm:$0xf]
      %v1885 = vld [vmem:[%s5 + $0x28] sm:$0xf]
      %v1886 = vld [vmem:[%s5 + $0x2c] sm:$0xf]
      %v1887 = vld [vmem:[%s5 + $0x30] sm:$0xf]
      %v1888 = vld [vmem:[%s5 + $0x34] sm:$0xf]
      %v1889 = vld [vmem:[%s5 + $0x38] sm:$0xf]
      %v1890 = vld [vmem:[%s5 + $0x3c] sm:$0xf]
      %v1891 = vld [vmem:[%s5 + $0x40] sm:$0xf]
      %v1892 = vld [vmem:[%s5 + $0x44] sm:$0xf]
      %v1893 = vld [vmem:[%s6] sm:$0x1]
      %v1895 = vlaneseq
      %v1896 = vshrl.u32 %v1895, 7
      %v1897 = vsub.s32 0, %v1896
      %v1898 = vrot.slane %v1893, %v1897
      %v1918 = vunpack.c.l.b16 %v1875
      %v1919 = vunpack.c.l.b16 %v1876
      %v1920 = vunpack.c.l.b16 %v1877
      %v1921 = vunpack.c.l.b16 %v1878
      %v1922 = vunpack.c.l.b16 %v1879
      %v1923 = vunpack.c.l.b16 %v1880
      %v1924 = vunpack.c.l.b16 %v1881
      %v1925 = vunpack.c.l.b16 %v1882
      %v1926 = vunpack.c.l.b16 %v1883
      %v1927 = vunpack.c.l.b16 %v1884
      %v1928 = vunpack.c.l.b16 %v1885
      %v1929 = vunpack.c.l.b16 %v1886
      %v1930 = vunpack.c.l.b16 %v1887
      %v1931 = vunpack.c.l.b16 %v1888
      %v1932 = vunpack.c.l.b16 %v1889
      %v1933 = vunpack.c.l.b16 %v1890
      %v1934 = vunpack.c.l.b16 %v1891
      %v1935 = vunpack.c.l.b16 %v1892
      %v1936 = vpack.c.b16 %v1919, %v1918
      %v1937 = vpack.c.b16 %v1921, %v1920
      %v1938 = vpack.c.b16 %v1923, %v1922
      %v1939 = vpack.c.b16 %v1925, %v1924
      %v1940 = vpack.c.b16 %v1927, %v1926
      %v1941 = vpack.c.b16 %v1929, %v1928
      %v1942 = vpack.c.b16 %v1931, %v1930
      %v1943 = vpack.c.b16 %v1933, %v1932
      %v1944 = vpack.c.b16 %v1935, %v1934
      %v1955 = vsel %vm959, %v1740, 0
      %v1958 = vsel %vm959, %v1742, 0
      %v1961 = vsel %vm959, %v1744, 0
      %v1964 = vsel %vm959, %v1746, 0
      %v1967 = vsel %vm959, %v1748, 0
      %v1970 = vsel %vm959, %v1750, 0
      %v1973 = vsel %vm959, %v1752, 0
      %v1976 = vsel %vm959, %v1754, 0
      %1978 = vmatprep.subr.bf16.mxu0 0
      %1979 = vmatpush1.bf16.msra.mxu0 %v1936
      %1980 = vmatprep.subr.bf16.mxu0 0
      %1981 = vmatpush1.bf16.msra.mxu0 %v1937
      %1982 = vmatprep.subr.bf16.mxu0 0
      %1983 = vmatpush1.bf16.msra.mxu0 %v1938
      %1984 = vmatprep.subr.bf16.mxu0 0
      %1985 = vmatpush1.bf16.msra.mxu0 %v1939
      %1986 = vmatprep.subr.bf16.mxu0 0
      %1987 = vmatpush1.bf16.msra.mxu0 %v1940
      %1988 = vmatprep.subr.bf16.mxu0 0
      %1989 = vmatpush1.bf16.msra.mxu0 %v1941
      %1990 = vmatprep.subr.bf16.mxu0 0
      %1991 = vmatpush1.bf16.msra.mxu0 %v1942
      %1992 = vmatprep.subr.bf16.mxu0 0
      %1993 = vmatpush1.bf16.msra.mxu0 %v1943
      %1994 = vmatprep.subr.bf16.mxu0 0
      %1995 = vmatpush1.bf16.msra.mxu0 %v1944
      %1996 = vmatprep.subr.bf16.mxu0 0
      %1997 = vmatpush1.bf16.msra.mxu0 0
      %1998 = vmatprep.subr.bf16.mxu0 0
      %1999 = vmatpush1.bf16.msra.mxu0 0
      %2000 = vmatprep.subr.bf16.mxu0 0
      %2001 = vmatpush1.bf16.msra.mxu0 0
      %2002 = vmatprep.subr.bf16.mxu0 0
      %2003 = vmatpush1.bf16.msra.mxu0 0
      %2004 = vmatprep.subr.bf16.mxu0 0
      %2005 = vmatpush1.bf16.msra.mxu0 0
      %2006 = vmatprep.subr.bf16.mxu0 0
      %2007 = vmatpush1.bf16.msra.mxu0 0
      %2008 = vmatprep.subr.bf16.mxu0 0
      %2009 = vmatpush1.bf16.msra.mxu0 0
      %2010 = vmatprep.mubr.bf16.mxu0 %v1955
      %2011 = vmatmul.mubr.bf16.gmra.mrb[0].mxu0 %v1852
      %v2012 = vpop.f32.mrb[0].mxu0
      %v2013 = vadd.f32 %v1898, %v2012
      %v2014 = vpop.f32.mrb[0].mxu0
      %v2015 = vpop.f32.mrb[0].mxu0
      %v2016 = vadd.f32 %v1898, %v2015
      %v2017 = vpop.f32.mrb[0].mxu0
      %2018 = vmatprep.mubr.bf16.mxu0 %v1958
      %2019 = vmatmul.mubr.bf16.gmra.mrb[0].mxu0 %v1855
      %v2020 = vpop.f32.mrb[0].mxu0
      %v2021 = vadd.f32 %v1898, %v2020
      %v2022 = vpop.f32.mrb[0].mxu0
      %v2023 = vpop.f32.mrb[0].mxu0
      %v2024 = vadd.f32 %v1898, %v2023
      %v2025 = vpop.f32.mrb[0].mxu0
      %2026 = vmatprep.mubr.bf16.mxu0 %v1961
      %2027 = vmatmul.mubr.bf16.gmra.mrb[0].mxu0 %v1858
      %v2028 = vpop.f32.mrb[0].mxu0
      %v2029 = vadd.f32 %v1898, %v2028
      %v2030 = vpop.f32.mrb[0].mxu0
      %v2031 = vpop.f32.mrb[0].mxu0
      %v2032 = vadd.f32 %v1898, %v2031
      %v2033 = vpop.f32.mrb[0].mxu0
      %2034 = vmatprep.mubr.bf16.mxu0 %v1964
      %2035 = vmatmul.mubr.bf16.gmra.mrb[0].mxu0 %v1861
      %v2036 = vpop.f32.mrb[0].mxu0
      %v2037 = vadd.f32 %v1898, %v2036
      %v2038 = vpop.f32.mrb[0].mxu0
      %v2039 = vpop.f32.mrb[0].mxu0
      %v2040 = vadd.f32 %v1898, %v2039
      %v2041 = vpop.f32.mrb[0].mxu0
      %2042 = vmatprep.mubr.bf16.mxu0 %v1967
      %2043 = vmatmul.mubr.bf16.gmra.mrb[0].mxu0 %v1864
      %v2044 = vpop.f32.mrb[0].mxu0
      %v2045 = vadd.f32 %v1898, %v2044
      %v2046 = vpop.f32.mrb[0].mxu0
      %v2047 = vpop.f32.mrb[0].mxu0
      %v2048 = vadd.f32 %v1898, %v2047
      %v2049 = vpop.f32.mrb[0].mxu0
      %2050 = vmatprep.mubr.bf16.mxu0 %v1970
      %2051 = vmatmul.mubr.bf16.gmra.mrb[0].mxu0 %v1867
      %v2052 = vpop.f32.mrb[0].mxu0
      %v2053 = vadd.f32 %v1898, %v2052
      %v2054 = vpop.f32.mrb[0].mxu0
      %v2055 = vpop.f32.mrb[0].mxu0
      %v2056 = vadd.f32 %v1898, %v2055
      %v2057 = vpop.f32.mrb[0].mxu0
      %2058 = vmatprep.mubr.bf16.mxu0 %v1973
      %2059 = vmatmul.mubr.bf16.gmra.mrb[0].mxu0 %v1870
      %v2060 = vpop.f32.mrb[0].mxu0
      %v2061 = vadd.f32 %v1898, %v2060
      %v2062 = vpop.f32.mrb[0].mxu0
      %v2063 = vpop.f32.mrb[0].mxu0
      %v2064 = vadd.f32 %v1898, %v2063
      %v2065 = vpop.f32.mrb[0].mxu0
      %2066 = vmatprep.mubr.bf16.mxu0 %v1976
      %2067 = vmatmul.mubr.bf16.gmra.mrb[0].mxu0 %v1873
      %v2068 = vpop.f32.mrb[0].mxu0
      %v2069 = vadd.f32 %v1898, %v2068
      %v2070 = vpop.f32.mrb[0].mxu0
      %v2071 = vpop.f32.mrb[0].mxu0
      %v2072 = vadd.f32 %v1898, %v2071
      %v2073 = vpop.f32.mrb[0].mxu0
      %2074 = vdwg.mxu0
      %v2075 = vmul.f32 %v2013, 0.1
      %v2076 = vmul.f32 %v2016, 0.1
      %v2077 = vmul.f32 %v2021, 0.1
      %v2078 = vmul.f32 %v2024, 0.1
      %v2079 = vmul.f32 %v2029, 0.1
      %v2080 = vmul.f32 %v2032, 0.1
      %v2081 = vmul.f32 %v2037, 0.1
      %v2082 = vmul.f32 %v2040, 0.1
      %v2083 = vmul.f32 %v2045, 0.1
      %v2084 = vmul.f32 %v2048, 0.1
      %v2085 = vmul.f32 %v2053, 0.1
      %v2086 = vmul.f32 %v2056, 0.1
      %v2087 = vmul.f32 %v2061, 0.1
      %v2088 = vmul.f32 %v2064, 0.1
      %v2089 = vmul.f32 %v2069, 0.1
      %v2090 = vmul.f32 %v2072, 0.1
      %v2091 = vunpack.c.l.bf16 %v381
      %v2092 = vunpack.c.l.bf16 %v382
      %v2093 = vunpack.c.l.bf16 %v383
      %v2094 = vunpack.c.l.bf16 %v384
      %v2095 = vunpack.c.l.bf16 %v385
      %v2096 = vunpack.c.l.bf16 %v386
      %v2097 = vunpack.c.l.bf16 %v387
      %v2098 = vunpack.c.l.bf16 %v388
      %v2099 = vunpack.c.l.bf16 %v389
      %v2100 = vunpack.c.l.bf16 %v390
      %v2101 = vunpack.c.l.bf16 %v391
      %v2102 = vunpack.c.l.bf16 %v392
      %v2103 = vunpack.c.l.bf16 %v393
      %v2104 = vunpack.c.l.bf16 %v394
      %v2105 = vunpack.c.l.bf16 %v395
      %v2106 = vunpack.c.l.bf16 %v396
      %v2107 = vadd.f32 %v2075, %v2091
      %v2108 = vadd.f32 %v2076, %v2092
      %v2109 = vadd.f32 %v2077, %v2093
      %v2110 = vadd.f32 %v2078, %v2094
      %v2111 = vadd.f32 %v2079, %v2095
      %v2112 = vadd.f32 %v2080, %v2096
      %v2113 = vadd.f32 %v2081, %v2097
      %v2114 = vadd.f32 %v2082, %v2098
      %v2115 = vadd.f32 %v2083, %v2099
      %v2116 = vadd.f32 %v2084, %v2100
      %v2117 = vadd.f32 %v2085, %v2101
      %v2118 = vadd.f32 %v2086, %v2102
      %v2119 = vadd.f32 %v2087, %v2103
      %v2120 = vadd.f32 %v2088, %v2104
      %v2121 = vadd.f32 %v2089, %v2105
      %v2122 = vadd.f32 %v2090, %v2106
      %v2123 = vld [vmem:[%s362] sm:$0xff]
      %v2124 = vld [vmem:[%s362 + $0x8] sm:$0xff]
      %v2125 = vld [vmem:[%s362 + $0x10] sm:$0xff]
      %v2126 = vld [vmem:[%s362 + $0x18] sm:$0xff]
      %v2127 = vld [vmem:[%s362 + $0x20] sm:$0xff]
      %v2128 = vld [vmem:[%s362 + $0x28] sm:$0xff]
      %v2129 = vld [vmem:[%s362 + $0x30] sm:$0xff]
      %v2130 = vld [vmem:[%s362 + $0x38] sm:$0xff]
      %v2131 = vld [vmem:[%s362 + $0x40] sm:$0xff]
      %v2132 = vld [vmem:[%s362 + $0x48] sm:$0xff]
      %v2133 = vld [vmem:[%s362 + $0x50] sm:$0xff]
      %v2134 = vld [vmem:[%s362 + $0x58] sm:$0xff]
      %v2135 = vld [vmem:[%s362 + $0x60] sm:$0xff]
      %v2136 = vld [vmem:[%s362 + $0x68] sm:$0xff]
      %v2137 = vld [vmem:[%s362 + $0x70] sm:$0xff]
      %v2138 = vld [vmem:[%s362 + $0x78] sm:$0xff]
      %2140 = vset.pattern.permute.xlu0 0
      %2141 = vperm.xlu0 %2140, %v2123
      %v2142 = vpop.permute.xlu0 %2141
      %2145 = vset.pattern.permute.xlu0 0
      %2146 = vperm.xlu0 %2145, %v2124
      %v2147 = vpop.permute.xlu0 %2146
      %2150 = vset.pattern.permute.xlu0 0
      %2151 = vperm.xlu0 %2150, %v2125
      %v2152 = vpop.permute.xlu0 %2151
      %2155 = vset.pattern.permute.xlu0 0
      %2156 = vperm.xlu0 %2155, %v2126
      %v2157 = vpop.permute.xlu0 %2156
      %2160 = vset.pattern.permute.xlu0 0
      %2161 = vperm.xlu0 %2160, %v2127
      %v2162 = vpop.permute.xlu0 %2161
      %2165 = vset.pattern.permute.xlu0 0
      %2166 = vperm.xlu0 %2165, %v2128
      %v2167 = vpop.permute.xlu0 %2166
      %2170 = vset.pattern.permute.xlu0 0
      %2171 = vperm.xlu0 %2170, %v2129
      %v2172 = vpop.permute.xlu0 %2171
      %2175 = vset.pattern.permute.xlu0 0
      %2176 = vperm.xlu0 %2175, %v2130
      %v2177 = vpop.permute.xlu0 %2176
      %2180 = vset.pattern.permute.xlu0 0
      %2181 = vperm.xlu0 %2180, %v2131
      %v2182 = vpop.permute.xlu0 %2181
      %2185 = vset.pattern.permute.xlu0 0
      %2186 = vperm.xlu0 %2185, %v2132
      %v2187 = vpop.permute.xlu0 %2186
      %2190 = vset.pattern.permute.xlu0 0
      %2191 = vperm.xlu0 %2190, %v2133
      %v2192 = vpop.permute.xlu0 %2191
      %2195 = vset.pattern.permute.xlu0 0
      %2196 = vperm.xlu0 %2195, %v2134
      %v2197 = vpop.permute.xlu0 %2196
      %2200 = vset.pattern.permute.xlu0 0
      %2201 = vperm.xlu0 %2200, %v2135
      %v2202 = vpop.permute.xlu0 %2201
      %2205 = vset.pattern.permute.xlu0 0
      %2206 = vperm.xlu0 %2205, %v2136
      %v2207 = vpop.permute.xlu0 %2206
      %2210 = vset.pattern.permute.xlu0 0
      %2211 = vperm.xlu0 %2210, %v2137
      %v2212 = vpop.permute.xlu0 %2211
      %2215 = vset.pattern.permute.xlu0 0
      %2216 = vperm.xlu0 %2215, %v2138
      %v2217 = vpop.permute.xlu0 %2216
      %v2219 = vmul.f32 %v2107, %v2142
      %v2220 = vmul.f32 %v2108, %v2147
      %v2221 = vmul.f32 %v2109, %v2152
      %v2222 = vmul.f32 %v2110, %v2157
      %v2223 = vmul.f32 %v2111, %v2162
      %v2224 = vmul.f32 %v2112, %v2167
      %v2225 = vmul.f32 %v2113, %v2172
      %v2226 = vmul.f32 %v2114, %v2177
      %v2227 = vmul.f32 %v2115, %v2182
      %v2228 = vmul.f32 %v2116, %v2187
      %v2229 = vmul.f32 %v2117, %v2192
      %v2230 = vmul.f32 %v2118, %v2197
      %v2231 = vmul.f32 %v2119, %v2202
      %v2232 = vmul.f32 %v2120, %v2207
      %v2233 = vmul.f32 %v2121, %v2212
      %v2234 = vmul.f32 %v2122, %v2217
      %v2235 = vpack.c.bf16 %v2220, %v2219
      %v2236 = vpack.c.bf16 %v2222, %v2221
      %v2237 = vpack.c.bf16 %v2224, %v2223
      %v2238 = vpack.c.bf16 %v2226, %v2225
      %v2239 = vpack.c.bf16 %v2228, %v2227
      %v2240 = vpack.c.bf16 %v2230, %v2229
      %v2241 = vpack.c.bf16 %v2232, %v2231
      %v2242 = vpack.c.bf16 %v2234, %v2233
      %v2251 = vunpack.c.l.b16 %v2235
      %v2252 = vunpack.c.h.b16 %v2235
      %v2253 = vunpack.c.l.b16 %v2236
      %v2254 = vunpack.c.h.b16 %v2236
      %v2255 = vunpack.c.l.b16 %v2237
      %v2256 = vunpack.c.h.b16 %v2237
      %v2257 = vunpack.c.l.b16 %v2238
      %v2258 = vunpack.c.h.b16 %v2238
      %v2259 = vunpack.c.l.b16 %v2239
      %v2260 = vunpack.c.h.b16 %v2239
      %v2261 = vunpack.c.l.b16 %v2240
      %v2262 = vunpack.c.h.b16 %v2240
      %v2263 = vunpack.c.l.b16 %v2241
      %v2264 = vunpack.c.h.b16 %v2241
      %v2265 = vunpack.c.l.b16 %v2242
      %v2266 = vunpack.c.h.b16 %v2242
      %v2267 = vpack.c.b16 %v2251, %v2251
      %v2268 = vpack.c.b16 %v2252, %v2252
      %v2269 = vpack.c.b16 %v2253, %v2253
      %v2270 = vpack.c.b16 %v2254, %v2254
      %v2271 = vpack.c.b16 %v2255, %v2255
      %v2272 = vpack.c.b16 %v2256, %v2256
      %v2273 = vpack.c.b16 %v2257, %v2257
      %v2274 = vpack.c.b16 %v2258, %v2258
      %v2275 = vpack.c.b16 %v2259, %v2259
      %v2276 = vpack.c.b16 %v2260, %v2260
      %v2277 = vpack.c.b16 %v2261, %v2261
      %v2278 = vpack.c.b16 %v2262, %v2262
      %v2279 = vpack.c.b16 %v2263, %v2263
      %v2280 = vpack.c.b16 %v2264, %v2264
      %v2281 = vpack.c.b16 %v2265, %v2265
      %v2282 = vpack.c.b16 %v2266, %v2266
      %vm2299 = vcmask 125952
      %2300 = vst.msk [vmem:[%s372] sm:$0xf] %vm2299, %v2267
      %2301 = vst.msk [vmem:[%s372 + $0x4] sm:$0xf] %vm2299, %v2268
      %2302 = vst.msk [vmem:[%s372 + $0x8] sm:$0xf] %vm2299, %v2269
      %2303 = vst.msk [vmem:[%s372 + $0xc] sm:$0xf] %vm2299, %v2270
      %2304 = vst.msk [vmem:[%s372 + $0x10] sm:$0xf] %vm2299, %v2271
      %2305 = vst.msk [vmem:[%s372 + $0x14] sm:$0xf] %vm2299, %v2272
      %2306 = vst.msk [vmem:[%s372 + $0x18] sm:$0xf] %vm2299, %v2273
      %2307 = vst.msk [vmem:[%s372 + $0x1c] sm:$0xf] %vm2299, %v2274
      %2308 = vst.msk [vmem:[%s372 + $0x20] sm:$0xf] %vm2299, %v2275
      %2309 = vst.msk [vmem:[%s372 + $0x24] sm:$0xf] %vm2299, %v2276
      %2310 = vst.msk [vmem:[%s372 + $0x28] sm:$0xf] %vm2299, %v2277
      %2311 = vst.msk [vmem:[%s372 + $0x2c] sm:$0xf] %vm2299, %v2278
      %2312 = vst.msk [vmem:[%s372 + $0x30] sm:$0xf] %vm2299, %v2279
      %2313 = vst.msk [vmem:[%s372 + $0x34] sm:$0xf] %vm2299, %v2280
      %2314 = vst.msk [vmem:[%s372 + $0x38] sm:$0xf] %vm2299, %v2281
      %2315 = vst.msk [vmem:[%s372 + $0x3c] sm:$0xf] %vm2299, %v2282
      %s2316 = smul.u32 16, %s23
      %p2317 = scmp.lt.s32.totalorder %s22, 3
      %s2318 = scalar_select %p2317, %s22, 3
      %p2319 = scmp.lt.s32.totalorder %s2316, 63
      %s2320 = scalar_select %p2319, %s2316, 63
      %s2321 = smul.addr %s2318, 64
      %s2322 = sadd.s32 %s2320, %s2321
      %s2323 = smul.addr %s2322, 4
      %s2324 = scalar_lea.vmem %s7, %s2323
      // Predicated region
      $region49: #{edsr_forward.7} parent=47 // pred_check
        %p2325 = pneg %p216
      $region50: #{edsr_forward.7} parent=47 // pred_check_branch
        %2327 = sbr.rel (%p2325) target = $region52
      $region51: #{edsr_forward.7} parent=47 // pred_region
        %s2328 = smul.u32 16, %s23
      $region52: #{edsr_forward.7} parent=47 // pred_fallthru
        _
    $region48: #{edsr_forward.7} parent=5 // pred_fallthru
      _
    %p2329 = scmp.le.s32.totalorder 2, %s13
    // Predicated region
    $region53: #{edsr_forward.7} parent=5 // pred_check
      %p2330 = pneg %p2329
    $region54: #{edsr_forward.7} parent=5 // pred_check_branch
      %2332 = sbr.rel (%p2330) target = $region56
    $region55: #{edsr_forward.7} parent=5 // pred_region
      %s2333 = ssub.s32 %s13, 2
      // Predicated region
      $region57: #{edsr_forward.7} parent=55 // pred_check
        %p2334 = pneg %p222
      $region58: #{edsr_forward.7} parent=55 // pred_check_branch
        %2336 = sbr.rel (%p2334) target = $region60
      $region59: #{edsr_forward.7} parent=55 // pred_region
        %s2337 = smul.u32 16, %s25
        %p2338 = scmp.lt.s32.totalorder %s24, 3
        %s2339 = scalar_select %p2338, %s24, 3
        %p2340 = scmp.lt.s32.totalorder %s2337, 63
        %s2341 = scalar_select %p2340, %s2337, 63
        %s2342 = smul.addr %s2339, 64
        %s2343 = sadd.s32 %s2341, %s2342
        %s2344 = smul.addr %s2343, 4
        %s2345 = scalar_lea.vmem %s7, %s2344
      $region60: #{edsr_forward.7} parent=55 // pred_fallthru
        _
    $region56: #{edsr_forward.7} parent=5 // pred_fallthru
      _
  $region6: #{edsr_forward.7} parent=0 // loop_footer
    %s17 = sadd.s32 1, %s13
  $region7: #{edsr_forward.7} parent=0 // loop_footer_branch
    %12 = sbr.rel target = $region3
  $region8: #{edsr_forward.7} parent=0 // loop_exit
    _

// kernel: edsr_forward.10
$region0: #{edsr_forward.10}
  #allocation0 [shape = 'u32[]', space=smem, size = 0x4, offset = 0x4, fixed_abs, tag = 'smem constant byte address 0x4 - core index']
  #allocation1 [shape = 'u32[144,128]{1,0:T(1,128)}', space=vmem, size = 0x12000, scoped, tag = 'internal scratch']
  %s0 = inlined_call_operand.vmem [shape: bf16[4,512,16], index: 0, kind: input, shape index: {}]
  %s1 = inlined_call_operand.vmem [shape: bf16[4,4,42,16], index: 1, kind: input, shape index: {}]
  %s2 = inlined_call_operand.vmem [shape: f32[512,1], index: 2, kind: input, shape index: {}]
  %s3 = inlined_call_operand.vmem [shape: bf16[144,64], index: 3, kind: input, shape index: {}]
  %s4 = inlined_call_operand.vmem [shape: f32[1,64], index: 4, kind: input, shape index: {}]
  %s5 = inlined_call_operand.vmem [shape: bf16[4,512,64], index: 5, kind: output, shape index: {}]
  %s6 = sld [smem:[#allocation0]]
  $region53: #{edsr_forward.10} parent=0
    _
  %s8 = ssub.s32 1, %s6
  %s9 = scalar_select 0, %s8, %s6
  loop: start=0, step=1, limit=18
  $region2: #{edsr_forward.10} parent=0 // loop_pre_header
    _
  $region3: #{edsr_forward.10} parent=0 // loop_header
    %s11 = sphi 0, %s15
    %p12 = scmp.ge.s32.totalorder %s11, 18
    %s18 = sphi 0, %s30
    %s19 = sphi 0, %s26
    %s20 = sphi 0, %s18
    %s21 = sphi 0, %s19
    %s22 = sphi 0, %s20
    %s23 = sphi 0, %s21
    %s35 = sphi 0, %s37
    %s38 = sphi 0, %s35
    %s39 = sphi 0, %s38
    %s55 = sphi 0, %s39
    %s63 = sphi 0, %s65
    %s66 = sphi 0, %s63
    %s67 = sphi 0, %s66
    %s83 = sphi 0, %s67
    %s89 = sphi 0, %s91
    %s92 = sphi 0, %s89
    %s93 = sphi 0, %s92
    %s109 = sphi 0, %s93
    %s113 = sphi 0, %s113
    %s115 = sphi 0, %s113
    %s116 = sphi 0, %s115
    %s130 = sphi 0, %s116
    %s134 = sphi 0, %s134
    %s136 = sphi 0, %s134
    %s137 = sphi 0, %s136
    %s151 = sphi 0, %s137
    %s159 = sphi 0, %s161
    %s162 = sphi 0, %s159
    %s163 = sphi 0, %s162
    %s179 = sphi 0, %s163
  $region4: #{edsr_forward.10} parent=0 // loop_header_branch
    %14 = sbr.rel (%p12) target = $region8
  $region5: #{edsr_forward.10} parent=0 // loop_body
    %s16 = ssub.s32 %s11, 1
    %s17 = ssub.s32 %s11, 2
    %s24 = sadd.s32 1, %s19
    %p25 = scmp.ge.s32.totalorder %s24, 4
    %s26 = scalar_select %p25, 0, %s24
    %s27 = sadd.s32 1, %s18
    %s28 = scalar_select %p25, %s27, %s18
    %p29 = scmp.ge.s32.totalorder %s28, 4
    %s30 = scalar_select %p29, 0, %s28
    %s31 = ssub.s32 %s18, %s30
    %s32 = ssub.s32 %s19, %s26
    %s33 = sor.u32 %s31, %s32
    %p34 = scmp.eq.s32.totalorder %s33, 0
    %s36 = sadd.s32 %s35, 1
    %s37 = scalar_select %p34, %s35, %s36
    %p40 = pneg %p34
    %p41 = scmp.eq.s32.totalorder %s11, 15
    %p42 = por %p40, %p41
    %p43 = scmp.ne.s32.totalorder %s35, %s38
    %p44 = scmp.eq.s32.totalorder %s11, 0
    %p45 = por %p43, %p44
    %p46 = scmp.ne.s32.totalorder %s35, %s38
    %p47 = scmp.eq.s32.totalorder %s16, 15
    %p48 = por %p46, %p47
    %p49 = scmp.ne.s32.totalorder %s38, %s39
    %p50 = scmp.eq.s32.totalorder %s16, 0
    %p51 = por %p49, %p50
    %p52 = scmp.ne.s32.totalorder %s38, %s39
    %p53 = scmp.eq.s32.totalorder %s17, 15
    %p54 = por %p52, %p53
    %p56 = scmp.ne.s32.totalorder %s39, %s55
    %p57 = scmp.eq.s32.totalorder %s17, 0
    %p58 = por %p56, %p57
    %s59 = ssub.s32 %s18, %s30
    %s60 = ssub.s32 %s19, %s26
    %s61 = sor.u32 %s59, %s60
    %p62 = scmp.eq.s32.totalorder %s61, 0
    %s64 = sadd.s32 %s63, 1
    %s65 = scalar_select %p62, %s63, %s64
    %p68 = pneg %p62
    %p69 = scmp.eq.s32.totalorder %s11, 15
    %p70 = por %p68, %p69
    %p71 = scmp.ne.s32.totalorder %s63, %s66
    %p72 = scmp.eq.s32.totalorder %s11, 0
    %p73 = por %p71, %p72
    %p74 = scmp.ne.s32.totalorder %s63, %s66
    %p75 = scmp.eq.s32.totalorder %s16, 15
    %p76 = por %p74, %p75
    %p77 = scmp.ne.s32.totalorder %s66, %s67
    %p78 = scmp.eq.s32.totalorder %s16, 0
    %p79 = por %p77, %p78
    %p80 = scmp.ne.s32.totalorder %s66, %s67
    %p81 = scmp.eq.s32.totalorder %s17, 15
    %p82 = por %p80, %p81
    %p84 = scmp.ne.s32.totalorder %s67, %s83
    %p85 = scmp.eq.s32.totalorder %s17, 0
    %p86 = por %p84, %p85
    %s87 = ssub.s32 %s19, %s26
    %p88 = scmp.eq.s32.totalorder %s87, 0
    %s90 = sadd.s32 %s89, 1
    %s91 = scalar_select %p88, %s89, %s90
    %p94 = pneg %p88
    %p95 = scmp.eq.s32.totalorder %s11, 15
    %p96 = por %p94, %p95
    %p97 = scmp.ne.s32.totalorder %s89, %s92
    %p98 = scmp.eq.s32.totalorder %s11, 0
    %p99 = por %p97, %p98
    %p100 = scmp.ne.s32.totalorder %s89, %s92
    %p101 = scmp.eq.s32.totalorder %s16, 15
    %p102 = por %p100, %p101
    %p103 = scmp.ne.s32.totalorder %s92, %s93
    %p104 = scmp.eq.s32.totalorder %s16, 0
    %p105 = por %p103, %p104
    %p106 = scmp.ne.s32.totalorder %s92, %s93
    %p107 = scmp.eq.s32.totalorder %s17, 15
    %p108 = por %p106, %p107
    %p110 = scmp.ne.s32.totalorder %s93, %s109
    %p111 = scmp.eq.s32.totalorder %s17, 0
    %p112 = por %p110, %p111
    %s114 = sadd.s32 %s113, 1
    %p117 = scmp.eq.s32.totalorder %s11, 15
    %p118 = scmp.ne.s32.totalorder %s113, %s115
    %p119 = scmp.eq.s32.totalorder %s11, 0
    %p120 = por %p118, %p119
    %p121 = scmp.ne.s32.totalorder %s113, %s115
    %p122 = scmp.eq.s32.totalorder %s16, 15
    %p123 = por %p121, %p122
    %p124 = scmp.ne.s32.totalorder %s115, %s116
    %p125 = scmp.eq.s32.totalorder %s16, 0
    %p126 = por %p124, %p125
    %p127 = scmp.ne.s32.totalorder %s115, %s116
    %p128 = scmp.eq.s32.totalorder %s17, 15
    %p129 = por %p127, %p128
    %p131 = scmp.ne.s32.totalorder %s116, %s130
    %p132 = scmp.eq.s32.totalorder %s17, 0
    %p133 = por %p131, %p132
    %s135 = sadd.s32 %s134, 1
    %p138 = scmp.eq.s32.totalorder %s11, 15
    %p139 = scmp.ne.s32.totalorder %s134, %s136
    %p140 = scmp.eq.s32.totalorder %s11, 0
    %p141 = por %p139, %p140
    %p142 = scmp.ne.s32.totalorder %s134, %s136
    %p143 = scmp.eq.s32.totalorder %s16, 15
    %p144 = por %p142, %p143
    %p145 = scmp.ne.s32.totalorder %s136, %s137
    %p146 = scmp.eq.s32.totalorder %s16, 0
    %p147 = por %p145, %p146
    %p148 = scmp.ne.s32.totalorder %s136, %s137
    %p149 = scmp.eq.s32.totalorder %s17, 15
    %p150 = por %p148, %p149
    %p152 = scmp.ne.s32.totalorder %s137, %s151
    %p153 = scmp.eq.s32.totalorder %s17, 0
    %p154 = por %p152, %p153
    %s155 = ssub.s32 %s18, %s30
    %s156 = ssub.s32 %s19, %s26
    %s157 = sor.u32 %s155, %s156
    %p158 = scmp.eq.s32.totalorder %s157, 0
    %s160 = sadd.s32 %s159, 1
    %s161 = scalar_select %p158, %s159, %s160
    %p164 = pneg %p158
    %p165 = scmp.eq.s32.totalorder %s11, 15
    %p166 = por %p164, %p165
    %p167 = scmp.ne.s32.totalorder %s159, %s162
    %p168 = scmp.eq.s32.totalorder %s11, 0
    %p169 = por %p167, %p168
    %p170 = scmp.ne.s32.totalorder %s159, %s162
    %p171 = scmp.eq.s32.totalorder %s16, 15
    %p172 = por %p170, %p171
    %p173 = scmp.ne.s32.totalorder %s162, %s163
    %p174 = scmp.eq.s32.totalorder %s16, 0
    %p175 = por %p173, %p174
    %p176 = scmp.ne.s32.totalorder %s162, %s163
    %p177 = scmp.eq.s32.totalorder %s17, 15
    %p178 = por %p176, %p177
    %p180 = scmp.ne.s32.totalorder %s163, %s179
    %p181 = scmp.eq.s32.totalorder %s17, 0
    %p182 = por %p180, %p181
    %p183 = scmp.le.s32.totalorder 1, %s11
    %p184 = scmp.lt.s32.totalorder %s11, 17
    %p185 = pnand %p183, %p184
    %p186 = pneg %p185
    // Predicated region
    $region9: #{edsr_forward.10} parent=5 // pred_check
      _
    $region10: #{edsr_forward.10} parent=5 // pred_check_branch
      %188 = sbr.rel (%p185) target = $region12
    $region11: #{edsr_forward.10} parent=5 // pred_region
      %s189 = ssub.s32 %s11, 1
      // Predicated region
      $region13: #{edsr_forward.10} parent=11 // pred_check
        %p190 = pneg %p126
      $region14: #{edsr_forward.10} parent=11 // pred_check_branch
        %192 = sbr.rel (%p190) target = $region16
      $region15: #{edsr_forward.10} parent=11 // pred_region
        _
      $region16: #{edsr_forward.10} parent=11 // pred_fallthru
        _
      // Predicated region
      $region17: #{edsr_forward.10} parent=11 // pred_check
        %p193 = pneg %p147
      $region18: #{edsr_forward.10} parent=11 // pred_check_branch
        %195 = sbr.rel (%p193) target = $region20
      $region19: #{edsr_forward.10} parent=11 // pred_region
        _
      $region20: #{edsr_forward.10} parent=11 // pred_fallthru
        _
    $region12: #{edsr_forward.10} parent=5 // pred_fallthru
      _
    %p196 = scmp.lt.s32.totalorder %s11, 16
    // Predicated region
    $region21: #{edsr_forward.10} parent=5 // pred_check
      %p197 = pneg %p196
    $region22: #{edsr_forward.10} parent=5 // pred_check_branch
      %199 = sbr.rel (%p197) target = $region24
    $region23: #{edsr_forward.10} parent=5 // pred_region
      // Predicated region
      $region25: #{edsr_forward.10} parent=23 // pred_check
        %p200 = pneg %p45
      $region26: #{edsr_forward.10} parent=23 // pred_check_branch
        %202 = sbr.rel (%p200) target = $region28
      $region27: #{edsr_forward.10} parent=23 // pred_region
        %s203 = smul.u32 16, %s19
        %p204 = scmp.lt.s32.totalorder %s18, 3
        %s205 = scalar_select %p204, %s18, 3
        %p206 = scmp.lt.s32.totalorder %s203, 63
        %s207 = scalar_select %p206, %s203, 63
        %s208 = smul.addr %s205, 64
        %s209 = sadd.s32 %s207, %s208
        %s210 = smul.addr %s209, 4
        %s211 = scalar_lea.vmem %s0, %s210
        %s212 = smul.u32 16, %s19
      $region28: #{edsr_forward.10} parent=23 // pred_fallthru
        _
      // Predicated region
      $region29: #{edsr_forward.10} parent=23 // pred_check
        %p213 = pneg %p73
      $region30: #{edsr_forward.10} parent=23 // pred_check_branch
        %215 = sbr.rel (%p213) target = $region32
      $region31: #{edsr_forward.10} parent=23 // pred_region
        %p216 = scmp.lt.s32.totalorder %s18, 3
        %s217 = scalar_select %p216, %s18, 3
        %p218 = scmp.lt.s32.totalorder %s19, 3
        %s219 = scalar_select %p218, %s19, 3
        %s220 = smul.addr %s219, 6
        %s221 = smul.addr %s217, 24
        %s222 = sadd.s32 %s220, %s221
        %s223 = smul.addr %s222, 4
        %s224 = scalar_lea.vmem %s1, %s223
      $region32: #{edsr_forward.10} parent=23 // pred_fallthru
        _
      // Predicated region
      $region33: #{edsr_forward.10} parent=23 // pred_check
        %p225 = pneg %p99
      $region34: #{edsr_forward.10} parent=23 // pred_check_branch
        %227 = sbr.rel (%p225) target = $region36
      $region35: #{edsr_forward.10} parent=23 // pred_region
        %s228 = smul.u32 16, %s19
        %p229 = scmp.lt.s32.totalorder %s228, 63
        %s230 = scalar_select %p229, %s228, 63
        %s231 = smul.addr %s230, 8
        %s232 = scalar_lea.vmem %s2, %s231
        %s233 = smul.u32 16, %s19
      $region36: #{edsr_forward.10} parent=23 // pred_fallthru
        _
    $region24: #{edsr_forward.10} parent=5 // pred_fallthru
      _
    %p234 = scmp.le.s32.totalorder 1, %s11
    %p235 = scmp.lt.s32.totalorder %s11, 17
    %p236 = pnand %p234, %p235
    %p237 = pneg %p236
    // Predicated region
    $region37: #{edsr_forward.10} parent=5 // pred_check
      _
    $region38: #{edsr_forward.10} parent=5 // pred_check_branch
      %239 = sbr.rel (%p236) target = $region40
    $region39: #{edsr_forward.10} parent=5 // pred_region
      %s240 = ssub.s32 %s11, 1
      %s241 = smul.u32 16, %s21
      %p242 = scmp.lt.s32.totalorder %s20, 3
      %s243 = scalar_select %p242, %s20, 3
      %p244 = scmp.lt.s32.totalorder %s241, 63
      %s245 = scalar_select %p244, %s241, 63
      %s246 = smul.addr %s243, 64
      %s247 = sadd.s32 %s245, %s246
      %s248 = smul.addr %s247, 4
      %s249 = scalar_lea.vmem %s0, %s248
      %p250 = pneg %p51
      %p251 = pneg %p48
      %p252 = scmp.lt.s32.totalorder %s20, 3
      %s253 = scalar_select %p252, %s20, 3
      %p254 = scmp.lt.s32.totalorder %s21, 3
      %s255 = scalar_select %p254, %s21, 3
      %s256 = smul.addr %s255, 6
      %s257 = smul.addr %s253, 24
      %s258 = sadd.s32 %s256, %s257
      %s259 = smul.addr %s258, 4
      %s260 = scalar_lea.vmem %s1, %s259
      %p261 = pneg %p79
      %p262 = pneg %p76
      %s263 = smul.u32 16, %s21
      %p264 = scmp.lt.s32.totalorder %s263, 63
      %s265 = scalar_select %p264, %s263, 63
      %s266 = smul.addr %s265, 8
      %s267 = scalar_lea.vmem %s2, %s266
      %p268 = pneg %p105
      %p269 = pneg %p102
      %p270 = pneg %p126
      %p271 = pneg %p123
      %p272 = pneg %p147
      %p273 = pneg %p144
      %p274 = pneg %p175
      %p275 = pneg %p172
      %s276 = smul.u32 16, %s21
      %p277 = scmp.lt.s32.totalorder %s20, 3
      %s278 = scalar_select %p277, %s20, 3
      %p279 = scmp.lt.s32.totalorder %s276, 63
      %s280 = scalar_select %p279, %s276, 63
      %s281 = smul.addr %s278, 64
      %s282 = sadd.s32 %s280, %s281
      %s283 = smul.addr %s282, 4
      %s284 = scalar_lea.vmem %s5, %s283
      %s285 = smul.u32 16, %s21
      %p286 = scmp.lt.s32.totalorder %s20, 3
      %s287 = scalar_select %p286, %s20, 3
      %p288 = scmp.lt.s32.totalorder %s285, 63
      %s289 = scalar_select %p288, %s285, 63
      %s290 = smul.addr %s287, 64
      %s291 = sadd.s32 %s289, %s290
      %s292 = smul.addr %s291, 4
      %s293 = scalar_lea.vmem %s0, %s292
      %s294 = smul.u32 16, %s21
      %p295 = scmp.lt.s32.totalorder %s20, 3
      %s296 = scalar_select %p295, %s20, 3
      %p297 = scmp.lt.s32.totalorder %s21, 3
      %s298 = scalar_select %p297, %s21, 3
      %s299 = smul.addr %s298, 6
      %s300 = smul.addr %s296, 24
      %s301 = sadd.s32 %s299, %s300
      %s302 = smul.addr %s301, 4
      %s303 = scalar_lea.vmem %s1, %s302
      %s304 = smul.u32 16, %s21
      %p305 = scmp.lt.s32.totalorder %s304, 63
      %s306 = scalar_select %p305, %s304, 63
      %s307 = smul.addr %s306, 8
      %s308 = scalar_lea.vmem %s2, %s307
      %s309 = smul.u32 16, %s21
      %s310 = smul.u32 16, %s21
      %p311 = scmp.lt.s32.totalorder %s20, 3
      %s312 = scalar_select %p311, %s20, 3
      %p313 = scmp.lt.s32.totalorder %s310, 63
      %s314 = scalar_select %p313, %s310, 63
      %s315 = smul.addr %s312, 64
      %s316 = sadd.s32 %s314, %s315
      %s317 = smul.addr %s316, 4
      %s318 = scalar_lea.vmem %s5, %s317
      %s319 = smul.u32 16, %s21
      %v321 = vld [vmem:[%s303] sm:$0xf]
      %v322 = vld [vmem:[%s303 + $0x4] sm:$0xf]
      %v323 = vld [vmem:[%s303 + $0x8] sm:$0x7]
      %v324 = vld [vmem:[%s293] sm:$0xf]
      %v325 = vld [vmem:[%s293 + $0x4] sm:$0xf]
      %v326 = vld [vmem:[%s293 + $0x8] sm:$0xf]
      %v327 = vld [vmem:[%s293 + $0xc] sm:$0xf]
      %v328 = vld [vmem:[%s293 + $0x10] sm:$0xf]
      %v329 = vld [vmem:[%s293 + $0x14] sm:$0xf]
      %v330 = vld [vmem:[%s293 + $0x18] sm:$0xf]
      %v331 = vld [vmem:[%s293 + $0x1c] sm:$0xf]
      %v332 = vld [vmem:[%s293 + $0x20] sm:$0xf]
      %v333 = vld [vmem:[%s293 + $0x24] sm:$0xf]
      %v334 = vld [vmem:[%s293 + $0x28] sm:$0xf]
      %v335 = vld [vmem:[%s293 + $0x2c] sm:$0xf]
      %v336 = vld [vmem:[%s293 + $0x30] sm:$0xf]
      %v337 = vld [vmem:[%s293 + $0x34] sm:$0xf]
      %v338 = vld [vmem:[%s293 + $0x38] sm:$0xf]
      %v339 = vld [vmem:[%s293 + $0x3c] sm:$0xf]
      %v340 = vld [vmem:[%s303 + $0x8] sm:$0xc]
      %v341 = vld [vmem:[%s303 + $0xc] sm:$0xf]
      %v342 = vld [vmem:[%s303 + $0x10] sm:$0xf]
      %v343 = vld [vmem:[%s303 + $0x14] sm:$0x1]
      %v347 = vunpack.c.l.b16 %v321
      %v348 = vunpack.c.l.b16 %v322
      %v349 = vunpack.c.l.b16 %v323
      %v350 = vpack.c.b16 %v348, %v347
      %v351 = vpack.c.b16 %v349, %v349
      %v369 = vunpack.c.l.b16 %v324
      %v370 = vunpack.c.l.b16 %v325
      %v371 = vunpack.c.l.b16 %v326
      %v372 = vunpack.c.l.b16 %v327
      %v373 = vunpack.c.l.b16 %v328
      %v374 = vunpack.c.l.b16 %v329
      %v375 = vunpack.c.l.b16 %v330
      %v376 = vunpack.c.l.b16 %v331
      %v377 = vunpack.c.l.b16 %v332
      %v378 = vunpack.c.l.b16 %v333
      %v379 = vunpack.c.l.b16 %v334
      %v380 = vunpack.c.l.b16 %v335
      %v381 = vunpack.c.l.b16 %v336
      %v382 = vunpack.c.l.b16 %v337
      %v383 = vunpack.c.l.b16 %v338
      %v384 = vunpack.c.l.b16 %v339
      %v385 = vpack.c.b16 %v370, %v369
      %v386 = vpack.c.b16 %v372, %v371
      %v387 = vpack.c.b16 %v374, %v373
      %v388 = vpack.c.b16 %v376, %v375
      %v389 = vpack.c.b16 %v378, %v377
      %v390 = vpack.c.b16 %v380, %v379
      %v391 = vpack.c.b16 %v382, %v381
      %v392 = vpack.c.b16 %v384, %v383
      %vm393 = vsmask.f32 2304
      %v395 = vshrl.u32 %v385, 16
      %v397 = vrot.slane %v395, 5
      %v398 = vshll.u32 %v385, 16
      %v400 = vrot.slane %v398, 6
      %v401 = vor.u32 %v397, %v400
      %v403 = vshrl.u32 %v386, 16
      %v405 = vrot.slane %v403, 5
      %v406 = vshll.u32 %v386, 16
      %v408 = vrot.slane %v406, 6
      %v409 = vor.u32 %v405, %v408
      %v410 = vsel %vm393, %v401, %v409
      %v412 = vshrl.u32 %v387, 16
      %v414 = vrot.slane %v412, 5
      %v415 = vshll.u32 %v387, 16
      %v417 = vrot.slane %v415, 6
      %v418 = vor.u32 %v414, %v417
      %v419 = vsel %vm393, %v409, %v418
      %v421 = vshrl.u32 %v388, 16
      %v423 = vrot.slane %v421, 5
      %v424 = vshll.u32 %v388, 16
      %v426 = vrot.slane %v424, 6
      %v427 = vor.u32 %v423, %v426
      %v428 = vsel %vm393, %v418, %v427
      %v430 = vshrl.u32 %v389, 16
      %v432 = vrot.slane %v430, 5
      %v433 = vshll.u32 %v389, 16
      %v435 = vrot.slane %v433, 6
      %v436 = vor.u32 %v432, %v435
      %v437 = vsel %vm393, %v427, %v436
      %v439 = vshrl.u32 %v390, 16
      %v441 = vrot.slane %v439, 5
      %v442 = vshll.u32 %v390, 16
      %v444 = vrot.slane %v442, 6
      %v445 = vor.u32 %v441, %v444
      %v446 = vsel %vm393, %v436, %v445
      %v448 = vshrl.u32 %v391, 16
      %v450 = vrot.slane %v448, 5
      %v451 = vshll.u32 %v391, 16
      %v453 = vrot.slane %v451, 6
      %v454 = vor.u32 %v450, %v453
      %v455 = vsel %vm393, %v445, %v454
      %v457 = vshrl.u32 %v392, 16
      %v459 = vrot.slane %v457, 5
      %v460 = vshll.u32 %v392, 16
      %v462 = vrot.slane %v460, 6
      %v463 = vor.u32 %v459, %v462
      %v464 = vsel %vm393, %v454, %v463
      %v471 = vunpack.c.l.b16 %v340
      %v472 = vunpack.c.l.b16 %v341
      %v473 = vunpack.c.l.b16 %v342
      %v474 = vunpack.c.l.b16 %v343
      %v475 = vpack.c.b16 %v472, %v471
      %v476 = vpack.c.b16 %v474, %v473
      %vm478 = vcmask 1042432
      %vm479 = vmand %vm478, %vm393
      %v480 = vsel %vm479, %v351, %v401
      %v481 = vsel %vm479, %v463, %v475
      %vm482 = vsmask.f32 7424
      %v484 = vshrl.u32 %v350, 16
      %v486 = vshll.u32 %v350, 16
      %v488 = vrot.slane %v486, 1
      %v489 = vor.u32 %v484, %v488
      %v491 = vshll.u32 %v480, 16
      %v493 = vrot.slane %v491, 1
      %v494 = vsel %vm482, %v489, %v493
      %v495 = vshrl.u32 %v480, 16
      %v497 = vor.u32 %v495, %v493
      %v499 = vshll.u32 %v410, 16
      %v501 = vrot.slane %v499, 1
      %v502 = vsel %vm482, %v497, %v501
      %v503 = vshrl.u32 %v410, 16
      %v505 = vor.u32 %v503, %v501
      %v507 = vshll.u32 %v419, 16
      %v509 = vrot.slane %v507, 1
      %v510 = vsel %vm482, %v505, %v509
      %v511 = vshrl.u32 %v419, 16
      %v513 = vor.u32 %v511, %v509
      %v515 = vshll.u32 %v428, 16
      %v517 = vrot.slane %v515, 1
      %v518 = vsel %vm482, %v513, %v517
      %v519 = vshrl.u32 %v428, 16
      %v521 = vor.u32 %v519, %v517
      %v523 = vshll.u32 %v437, 16
      %v525 = vrot.slane %v523, 1
      %v526 = vsel %vm482, %v521, %v525
      %v527 = vshrl.u32 %v437, 16
      %v529 = vor.u32 %v527, %v525
      %v531 = vshll.u32 %v446, 16
      %v533 = vrot.slane %v531, 1
      %v534 = vsel %vm482, %v529, %v533
      %v535 = vshrl.u32 %v446, 16
      %v537 = vor.u32 %v535, %v533
      %v539 = vshll.u32 %v455, 16
      %v541 = vrot.slane %v539, 1
      %v542 = vsel %vm482, %v537, %v541
      %v543 = vshrl.u32 %v455, 16
      %v545 = vor.u32 %v543, %v541
      %v547 = vshll.u32 %v464, 16
      %v549 = vrot.slane %v547, 1
      %v550 = vsel %vm482, %v545, %v549
      %551 = vrot.lane.b32.xlu0 %v494, 16
      %v552 = vpop.permute.xlu0 %551
      %553 = vrot.lane.b32.xlu0 %v502, 16
      %v554 = vpop.permute.xlu0 %553
      %555 = vrot.lane.b32.xlu0 %v510, 16
      %v556 = vpop.permute.xlu0 %555
      %557 = vrot.lane.b32.xlu0 %v518, 16
      %v558 = vpop.permute.xlu0 %557
      %559 = vrot.lane.b32.xlu0 %v526, 16
      %v560 = vpop.permute.xlu0 %559
      %561 = vrot.lane.b32.xlu0 %v534, 16
      %v562 = vpop.permute.xlu0 %561
      %563 = vrot.lane.b32.xlu0 %v542, 16
      %v564 = vpop.permute.xlu0 %563
      %565 = vrot.lane.b32.xlu0 %v550, 16
      %v566 = vpop.permute.xlu0 %565
      %vm568 = vcmask 1046528
      %v569 = vrot.slane %v350, 1
      %v570 = vrot.slane %v480, 1
      %v571 = vsel %vm568, %v569, %v570
      %v572 = vrot.slane %v410, 1
      %v573 = vsel %vm568, %v570, %v572
      %v574 = vrot.slane %v419, 1
      %v575 = vsel %vm568, %v572, %v574
      %v576 = vrot.slane %v428, 1
      %v577 = vsel %vm568, %v574, %v576
      %v578 = vrot.slane %v437, 1
      %v579 = vsel %vm568, %v576, %v578
      %v580 = vrot.slane %v446, 1
      %v581 = vsel %vm568, %v578, %v580
      %v582 = vrot.slane %v455, 1
      %v583 = vsel %vm568, %v580, %v582
      %v584 = vrot.slane %v464, 1
      %v585 = vsel %vm568, %v582, %v584
      %586 = vrot.lane.b32.xlu0 %v571, 32
      %v587 = vpop.permute.xlu0 %586
      %588 = vrot.lane.b32.xlu0 %v573, 32
      %v589 = vpop.permute.xlu0 %588
      %590 = vrot.lane.b32.xlu0 %v575, 32
      %v591 = vpop.permute.xlu0 %590
      %592 = vrot.lane.b32.xlu0 %v577, 32
      %v593 = vpop.permute.xlu0 %592
      %594 = vrot.lane.b32.xlu0 %v579, 32
      %v595 = vpop.permute.xlu0 %594
      %596 = vrot.lane.b32.xlu0 %v581, 32
      %v597 = vpop.permute.xlu0 %596
      %598 = vrot.lane.b32.xlu0 %v583, 32
      %v599 = vpop.permute.xlu0 %598
      %600 = vrot.lane.b32.xlu0 %v585, 32
      %v601 = vpop.permute.xlu0 %600
      %vm603 = vcmask 1045504
      %v604 = vrot.slane %v480, 2
      %v605 = vrot.slane %v410, 2
      %v606 = vsel %vm603, %v604, %v605
      %v607 = vrot.slane %v419, 2
      %v608 = vsel %vm603, %v605, %v607
      %v609 = vrot.slane %v428, 2
      %v610 = vsel %vm603, %v607, %v609
      %v611 = vrot.slane %v437, 2
      %v612 = vsel %vm603, %v609, %v611
      %v613 = vrot.slane %v446, 2
      %v614 = vsel %vm603, %v611, %v613
      %v615 = vrot.slane %v455, 2
      %v616 = vsel %vm603, %v613, %v615
      %v617 = vrot.slane %v464, 2
      %v618 = vsel %vm603, %v615, %v617
      %v619 = vrot.slane %v481, 2
      %v620 = vsel %vm603, %v617, %v619
      %621 = vrot.lane.b32.xlu0 %v606, 48
      %v622 = vpop.permute.xlu0 %621
      %623 = vrot.lane.b32.xlu0 %v608, 48
      %v624 = vpop.permute.xlu0 %623
      %625 = vrot.lane.b32.xlu0 %v610, 48
      %v626 = vpop.permute.xlu0 %625
      %627 = vrot.lane.b32.xlu0 %v612, 48
      %v628 = vpop.permute.xlu0 %627
      %629 = vrot.lane.b32.xlu0 %v614, 48
      %v630 = vpop.permute.xlu0 %629
      %631 = vrot.lane.b32.xlu0 %v616, 48
      %v632 = vpop.permute.xlu0 %631
      %633 = vrot.lane.b32.xlu0 %v618, 48
      %v634 = vpop.permute.xlu0 %633
      %635 = vrot.lane.b32.xlu0 %v620, 48
      %v636 = vpop.permute.xlu0 %635
      %vm637 = vsmask.f32 5376
      %v638 = vrot.slane %v495, 2
      %v639 = vrot.slane %v491, 3
      %v640 = vor.u32 %v638, %v639
      %v641 = vrot.slane %v503, 2
      %v642 = vrot.slane %v499, 3
      %v643 = vor.u32 %v641, %v642
      %v644 = vsel %vm637, %v640, %v643
      %v645 = vrot.slane %v511, 2
      %v646 = vrot.slane %v507, 3
      %v647 = vor.u32 %v645, %v646
      %v648 = vsel %vm637, %v643, %v647
      %v649 = vrot.slane %v519, 2
      %v650 = vrot.slane %v515, 3
      %v651 = vor.u32 %v649, %v650
      %v652 = vsel %vm637, %v647, %v651
      %v653 = vrot.slane %v527, 2
      %v654 = vrot.slane %v523, 3
      %v655 = vor.u32 %v653, %v654
      %v656 = vsel %vm637, %v651, %v655
      %v657 = vrot.slane %v535, 2
      %v658 = vrot.slane %v531, 3
      %v659 = vor.u32 %v657, %v658
      %v660 = vsel %vm637, %v655, %v659
      %v661 = vrot.slane %v543, 2
      %v662 = vrot.slane %v539, 3
      %v663 = vor.u32 %v661, %v662
      %v664 = vsel %vm637, %v659, %v663
      %v665 = vshrl.u32 %v464, 16
      %v667 = vrot.slane %v665, 2
      %v668 = vrot.slane %v547, 3
      %v669 = vor.u32 %v667, %v668
      %v670 = vsel %vm637, %v663, %v669
      %v672 = vshrl.u32 %v481, 16
      %v674 = vrot.slane %v672, 2
      %v675 = vshll.u32 %v481, 16
      %v677 = vrot.slane %v675, 3
      %v678 = vor.u32 %v674, %v677
      %v679 = vsel %vm637, %v669, %v678
      %680 = vrot.lane.b32.xlu0 %v644, 64
      %v681 = vpop.permute.xlu0 %680
      %682 = vrot.lane.b32.xlu0 %v648, 64
      %v683 = vpop.permute.xlu0 %682
      %684 = vrot.lane.b32.xlu0 %v652, 64
      %v685 = vpop.permute.xlu0 %684
      %686 = vrot.lane.b32.xlu0 %v656, 64
      %v687 = vpop.permute.xlu0 %686
      %688 = vrot.lane.b32.xlu0 %v660, 64
      %v689 = vpop.permute.xlu0 %688
      %690 = vrot.lane.b32.xlu0 %v664, 64
      %v691 = vpop.permute.xlu0 %690
      %692 = vrot.lane.b32.xlu0 %v670, 64
      %v693 = vpop.permute.xlu0 %692
      %694 = vrot.lane.b32.xlu0 %v679, 64
      %v695 = vpop.permute.xlu0 %694
      %vm696 = vcmask 1044480
      %v697 = vrot.slane %v480, 3
      %v698 = vrot.slane %v410, 3
      %v699 = vsel %vm696, %v697, %v698
      %v700 = vrot.slane %v419, 3
      %v701 = vsel %vm696, %v698, %v700
      %v702 = vrot.slane %v428, 3
      %v703 = vsel %vm696, %v700, %v702
      %v704 = vrot.slane %v437, 3
      %v705 = vsel %vm696, %v702, %v704
      %v706 = vrot.slane %v446, 3
      %v707 = vsel %vm696, %v704, %v706
      %v708 = vrot.slane %v455, 3
      %v709 = vsel %vm696, %v706, %v708
      %v710 = vrot.slane %v464, 3
      %v711 = vsel %vm696, %v708, %v710
      %v712 = vrot.slane %v481, 3
      %v713 = vsel %vm696, %v710, %v712
      %714 = vrot.lane.b32.xlu0 %v699, 80
      %v715 = vpop.permute.xlu0 %714
      %716 = vrot.lane.b32.xlu0 %v701, 80
      %v717 = vpop.permute.xlu0 %716
      %718 = vrot.lane.b32.xlu0 %v703, 80
      %v719 = vpop.permute.xlu0 %718
      %720 = vrot.lane.b32.xlu0 %v705, 80
      %v721 = vpop.permute.xlu0 %720
      %722 = vrot.lane.b32.xlu0 %v707, 80
      %v723 = vpop.permute.xlu0 %722
      %724 = vrot.lane.b32.xlu0 %v709, 80
      %v725 = vpop.permute.xlu0 %724
      %726 = vrot.lane.b32.xlu0 %v711, 80
      %v727 = vpop.permute.xlu0 %726
      %728 = vrot.lane.b32.xlu0 %v713, 80
      %v729 = vpop.permute.xlu0 %728
      %vm730 = vcmask 1043456
      %v731 = vrot.slane %v410, 4
      %v732 = vrot.slane %v419, 4
      %v733 = vsel %vm730, %v731, %v732
      %v734 = vrot.slane %v428, 4
      %v735 = vsel %vm730, %v732, %v734
      %v736 = vrot.slane %v437, 4
      %v737 = vsel %vm730, %v734, %v736
      %v738 = vrot.slane %v446, 4
      %v739 = vsel %vm730, %v736, %v738
      %v740 = vrot.slane %v455, 4
      %v741 = vsel %vm730, %v738, %v740
      %v742 = vrot.slane %v464, 4
      %v743 = vsel %vm730, %v740, %v742
      %v744 = vrot.slane %v481, 4
      %v745 = vsel %vm730, %v742, %v744
      %v746 = vrot.slane %v476, 4
      %v747 = vsel %vm730, %v744, %v746
      %748 = vrot.lane.b32.xlu0 %v733, 96
      %v749 = vpop.permute.xlu0 %748
      %750 = vrot.lane.b32.xlu0 %v735, 96
      %v751 = vpop.permute.xlu0 %750
      %752 = vrot.lane.b32.xlu0 %v737, 96
      %v753 = vpop.permute.xlu0 %752
      %754 = vrot.lane.b32.xlu0 %v739, 96
      %v755 = vpop.permute.xlu0 %754
      %756 = vrot.lane.b32.xlu0 %v741, 96
      %v757 = vpop.permute.xlu0 %756
      %758 = vrot.lane.b32.xlu0 %v743, 96
      %v759 = vpop.permute.xlu0 %758
      %760 = vrot.lane.b32.xlu0 %v745, 96
      %v761 = vpop.permute.xlu0 %760
      %762 = vrot.lane.b32.xlu0 %v747, 96
      %v763 = vpop.permute.xlu0 %762
      %vm764 = vsmask.f32 3328
      %v765 = vrot.slane %v503, 4
      %v766 = vrot.slane %v499, 5
      %v767 = vor.u32 %v765, %v766
      %v768 = vrot.slane %v511, 4
      %v769 = vrot.slane %v507, 5
      %v770 = vor.u32 %v768, %v769
      %v771 = vsel %vm764, %v767, %v770
      %v772 = vrot.slane %v519, 4
      %v773 = vrot.slane %v515, 5
      %v774 = vor.u32 %v772, %v773
      %v775 = vsel %vm764, %v770, %v774
      %v776 = vrot.slane %v527, 4
      %v777 = vrot.slane %v523, 5
      %v778 = vor.u32 %v776, %v777
      %v779 = vsel %vm764, %v774, %v778
      %v780 = vrot.slane %v535, 4
      %v781 = vrot.slane %v531, 5
      %v782 = vor.u32 %v780, %v781
      %v783 = vsel %vm764, %v778, %v782
      %v784 = vrot.slane %v543, 4
      %v785 = vrot.slane %v539, 5
      %v786 = vor.u32 %v784, %v785
      %v787 = vsel %vm764, %v782, %v786
      %v788 = vrot.slane %v665, 4
      %v789 = vrot.slane %v547, 5
      %v790 = vor.u32 %v788, %v789
      %v791 = vsel %vm764, %v786, %v790
      %v792 = vrot.slane %v672, 4
      %v793 = vrot.slane %v675, 5
      %v794 = vor.u32 %v792, %v793
      %v795 = vsel %vm764, %v790, %v794
      %v797 = vshrl.u32 %v476, 16
      %v799 = vrot.slane %v797, 4
      %v800 = vshll.u32 %v476, 16
      %v802 = vrot.slane %v800, 5
      %v803 = vor.u32 %v799, %v802
      %v804 = vsel %vm764, %v794, %v803
      %805 = vrot.lane.b32.xlu0 %v771, 112
      %v806 = vpop.permute.xlu0 %805
      %807 = vrot.lane.b32.xlu0 %v775, 112
      %v808 = vpop.permute.xlu0 %807
      %809 = vrot.lane.b32.xlu0 %v779, 112
      %v810 = vpop.permute.xlu0 %809
      %811 = vrot.lane.b32.xlu0 %v783, 112
      %v812 = vpop.permute.xlu0 %811
      %813 = vrot.lane.b32.xlu0 %v787, 112
      %v814 = vpop.permute.xlu0 %813
      %815 = vrot.lane.b32.xlu0 %v791, 112
      %v816 = vpop.permute.xlu0 %815
      %817 = vrot.lane.b32.xlu0 %v795, 112
      %v818 = vpop.permute.xlu0 %817
      %819 = vrot.lane.b32.xlu0 %v804, 112
      %v820 = vpop.permute.xlu0 %819
      %v821 = vrot.slane %v410, 5
      %v822 = vrot.slane %v419, 5
      %v823 = vsel %vm478, %v821, %v822
      %v824 = vrot.slane %v428, 5
      %v825 = vsel %vm478, %v822, %v824
      %v826 = vrot.slane %v437, 5
      %v827 = vsel %vm478, %v824, %v826
      %v828 = vrot.slane %v446, 5
      %v829 = vsel %vm478, %v826, %v828
      %v830 = vrot.slane %v455, 5
      %v831 = vsel %vm478, %v828, %v830
      %v832 = vrot.slane %v464, 5
      %v833 = vsel %vm478, %v830, %v832
      %v834 = vrot.slane %v481, 5
      %v835 = vsel %vm478, %v832, %v834
      %v836 = vrot.slane %v476, 5
      %v837 = vsel %vm478, %v834, %v836
      %vm838 = vcmask 130048
      %v840 = vsel %vm838, %v350, %v552
      %v842 = vsel %vm838, %v480, %v554
      %v844 = vsel %vm838, %v410, %v556
      %v846 = vsel %vm838, %v419, %v558
      %v848 = vsel %vm838, %v428, %v560
      %v850 = vsel %vm838, %v437, %v562
      %v852 = vsel %vm838, %v446, %v564
      %v854 = vsel %vm838, %v455, %v566
      %vm855 = vcmask 261120
      %v857 = vsel %vm855, %v840, %v587
      %v859 = vsel %vm855, %v842, %v589
      %v861 = vsel %vm855, %v844, %v591
      %v863 = vsel %vm855, %v846, %v593
      %v865 = vsel %vm855, %v848, %v595
      %v867 = vsel %vm855, %v850, %v597
      %v869 = vsel %vm855, %v852, %v599
      %v871 = vsel %vm855, %v854, %v601
      %vm872 = vcmask 392192
      %v874 = vsel %vm872, %v857, %v622
      %v876 = vsel %vm872, %v859, %v624
      %v878 = vsel %vm872, %v861, %v626
      %v880 = vsel %vm872, %v863, %v628
      %v882 = vsel %vm872, %v865, %v630
      %v884 = vsel %vm872, %v867, %v632
      %v886 = vsel %vm872, %v869, %v634
      %v888 = vsel %vm872, %v871, %v636
      %vm889 = vcmask 523264
      %v891 = vsel %vm889, %v874, %v681
      %v893 = vsel %vm889, %v876, %v683
      %v895 = vsel %vm889, %v878, %v685
      %v897 = vsel %vm889, %v880, %v687
      %v899 = vsel %vm889, %v882, %v689
      %v901 = vsel %vm889, %v884, %v691
      %v903 = vsel %vm889, %v886, %v693
      %v905 = vsel %vm889, %v888, %v695
      %vm906 = vcmask 654336
      %v908 = vsel %vm906, %v891, %v715
      %v910 = vsel %vm906, %v893, %v717
      %v912 = vsel %vm906, %v895, %v719
      %v914 = vsel %vm906, %v897, %v721
      %v916 = vsel %vm906, %v899, %v723
      %v918 = vsel %vm906, %v901, %v725
      %v920 = vsel %vm906, %v903, %v727
      %v922 = vsel %vm906, %v905, %v729
      %vm923 = vcmask 785408
      %v925 = vsel %vm923, %v908, %v749
      %v927 = vsel %vm923, %v910, %v751
      %v929 = vsel %vm923, %v912, %v753
      %v931 = vsel %vm923, %v914, %v755
      %v933 = vsel %vm923, %v916, %v757
      %v935 = vsel %vm923, %v918, %v759
      %v937 = vsel %vm923, %v920, %v761
      %v939 = vsel %vm923, %v922, %v763
      %vm940 = vcmask 916480
      %v942 = vsel %vm940, %v925, %v806
      %v945 = vsel %vm940, %v927, %v808
      %v948 = vsel %vm940, %v929, %v810
      %v951 = vsel %vm940, %v931, %v812
      %v954 = vsel %vm940, %v933, %v814
      %v957 = vsel %vm940, %v935, %v816
      %v960 = vsel %vm940, %v937, %v818
      %v963 = vsel %vm940, %v939, %v820
      %v965 = vld [vmem:[%s3] sm:$0xf]
      %v966 = vld [vmem:[%s3 + $0x4] sm:$0xf]
      %v967 = vld [vmem:[%s3 + $0x8] sm:$0xf]
      %v968 = vld [vmem:[%s3 + $0xc] sm:$0xf]
      %v969 = vld [vmem:[%s3 + $0x10] sm:$0xf]
      %v970 = vld [vmem:[%s3 + $0x14] sm:$0xf]
      %v971 = vld [vmem:[%s3 + $0x18] sm:$0xf]
      %v972 = vld [vmem:[%s3 + $0x1c] sm:$0xf]
      %v973 = vld [vmem:[%s3 + $0x20] sm:$0xf]
      %v974 = vld [vmem:[%s3 + $0x24] sm:$0xf]
      %v975 = vld [vmem:[%s3 + $0x28] sm:$0xf]
      %v976 = vld [vmem:[%s3 + $0x2c] sm:$0xf]
      %v977 = vld [vmem:[%s3 + $0x30] sm:$0xf]
      %v978 = vld [vmem:[%s3 + $0x34] sm:$0xf]
      %v979 = vld [vmem:[%s3 + $0x38] sm:$0xf]
      %v980 = vld [vmem:[%s3 + $0x3c] sm:$0xf]
      %v981 = vld [vmem:[%s3 + $0x40] sm:$0xf]
      %v982 = vld [vmem:[%s3 + $0x44] sm:$0xf]
      %v983 = vld [vmem:[%s4] sm:$0x1]
      %v985 = vlaneseq
      %v986 = vshrl.u32 %v985, 7
      %v987 = vsub.s32 0, %v986
      %v988 = vrot.slane %v983, %v987
      %v1008 = vunpack.c.l.b16 %v965
      %v1009 = vunpack.c.l.b16 %v966
      %v1010 = vunpack.c.l.b16 %v967
      %v1011 = vunpack.c.l.b16 %v968
      %v1012 = vunpack.c.l.b16 %v969
      %v1013 = vunpack.c.l.b16 %v970
      %v1014 = vunpack.c.l.b16 %v971
      %v1015 = vunpack.c.l.b16 %v972
      %v1016 = vunpack.c.l.b16 %v973
      %v1017 = vunpack.c.l.b16 %v974
      %v1018 = vunpack.c.l.b16 %v975
      %v1019 = vunpack.c.l.b16 %v976
      %v1020 = vunpack.c.l.b16 %v977
      %v1021 = vunpack.c.l.b16 %v978
      %v1022 = vunpack.c.l.b16 %v979
      %v1023 = vunpack.c.l.b16 %v980
      %v1024 = vunpack.c.l.b16 %v981
      %v1025 = vunpack.c.l.b16 %v982
      %v1026 = vpack.c.b16 %v1009, %v1008
      %v1027 = vpack.c.b16 %v1011, %v1010
      %v1028 = vpack.c.b16 %v1013, %v1012
      %v1029 = vpack.c.b16 %v1015, %v1014
      %v1030 = vpack.c.b16 %v1017, %v1016
      %v1031 = vpack.c.b16 %v1019, %v1018
      %v1032 = vpack.c.b16 %v1021, %v1020
      %v1033 = vpack.c.b16 %v1023, %v1022
      %v1034 = vpack.c.b16 %v1025, %v1024
      %v1045 = vsel %vm838, %v823, 0
      %v1048 = vsel %vm838, %v825, 0
      %v1051 = vsel %vm838, %v827, 0
      %v1054 = vsel %vm838, %v829, 0
      %v1057 = vsel %vm838, %v831, 0
      %v1060 = vsel %vm838, %v833, 0
      %v1063 = vsel %vm838, %v835, 0
      %v1066 = vsel %vm838, %v837, 0
      %1068 = vmatprep.subr.bf16.mxu0 0
      %1069 = vmatpush1.bf16.msra.mxu0 %v1026
      %1070 = vmatprep.subr.bf16.mxu0 0
      %1071 = vmatpush1.bf16.msra.mxu0 %v1027
      %1072 = vmatprep.subr.bf16.mxu0 0
      %1073 = vmatpush1.bf16.msra.mxu0 %v1028
      %1074 = vmatprep.subr.bf16.mxu0 0
      %1075 = vmatpush1.bf16.msra.mxu0 %v1029
      %1076 = vmatprep.subr.bf16.mxu0 0
      %1077 = vmatpush1.bf16.msra.mxu0 %v1030
      %1078 = vmatprep.subr.bf16.mxu0 0
      %1079 = vmatpush1.bf16.msra.mxu0 %v1031
      %1080 = vmatprep.subr.bf16.mxu0 0
      %1081 = vmatpush1.bf16.msra.mxu0 %v1032
      %1082 = vmatprep.subr.bf16.mxu0 0
      %1083 = vmatpush1.bf16.msra.mxu0 %v1033
      %1084 = vmatprep.subr.bf16.mxu0 0
      %1085 = vmatpush1.bf16.msra.mxu0 %v1034
      %1086 = vmatprep.subr.bf16.mxu0 0
      %1087 = vmatpush1.bf16.msra.mxu0 0
      %1088 = vmatprep.subr.bf16.mxu0 0
      %1089 = vmatpush1.bf16.msra.mxu0 0
      %1090 = vmatprep.subr.bf16.mxu0 0
      %1091 = vmatpush1.bf16.msra.mxu0 0
      %1092 = vmatprep.subr.bf16.mxu0 0
      %1093 = vmatpush1.bf16.msra.mxu0 0
      %1094 = vmatprep.subr.bf16.mxu0 0
      %1095 = vmatpush1.bf16.msra.mxu0 0
      %1096 = vmatprep.subr.bf16.mxu0 0
      %1097 = vmatpush1.bf16.msra.mxu0 0
      %1098 = vmatprep.subr.bf16.mxu0 0
      %1099 = vmatpush1.bf16.msra.mxu0 0
      %1100 = vmatprep.mubr.bf16.mxu0 %v1045
      %1101 = vmatmul.mubr.bf16.gmra.mrb[0].mxu0 %v942
      %v1102 = vpop.f32.mrb[0].mxu0
      %v1103 = vadd.f32 %v988, %v1102
      %v1104 = vpop.f32.mrb[0].mxu0
      %v1105 = vpop.f32.mrb[0].mxu0
      %v1106 = vadd.f32 %v988, %v1105
      %v1107 = vpop.f32.mrb[0].mxu0
      %1108 = vmatprep.mubr.bf16.mxu0 %v1048
      %1109 = vmatmul.mubr.bf16.gmra.mrb[0].mxu0 %v945
      %v1110 = vpop.f32.mrb[0].mxu0
      %v1111 = vadd.f32 %v988, %v1110
      %v1112 = vpop.f32.mrb[0].mxu0
      %v1113 = vpop.f32.mrb[0].mxu0
      %v1114 = vadd.f32 %v988, %v1113
      %v1115 = vpop.f32.mrb[0].mxu0
      %1116 = vmatprep.mubr.bf16.mxu0 %v1051
      %1117 = vmatmul.mubr.bf16.gmra.mrb[0].mxu0 %v948
      %v1118 = vpop.f32.mrb[0].mxu0
      %v1119 = vadd.f32 %v988, %v1118
      %v1120 = vpop.f32.mrb[0].mxu0
      %v1121 = vpop.f32.mrb[0].mxu0
      %v1122 = vadd.f32 %v988, %v1121
      %v1123 = vpop.f32.mrb[0].mxu0
      %1124 = vmatprep.mubr.bf16.mxu0 %v1054
      %1125 = vmatmul.mubr.bf16.gmra.mrb[0].mxu0 %v951
      %v1126 = vpop.f32.mrb[0].mxu0
      %v1127 = vadd.f32 %v988, %v1126
      %v1128 = vpop.f32.mrb[0].mxu0
      %v1129 = vpop.f32.mrb[0].mxu0
      %v1130 = vadd.f32 %v988, %v1129
      %v1131 = vpop.f32.mrb[0].mxu0
      %1132 = vmatprep.mubr.bf16.mxu0 %v1057
      %1133 = vmatmul.mubr.bf16.gmra.mrb[0].mxu0 %v954
      %v1134 = vpop.f32.mrb[0].mxu0
      %v1135 = vadd.f32 %v988, %v1134
      %v1136 = vpop.f32.mrb[0].mxu0
      %v1137 = vpop.f32.mrb[0].mxu0
      %v1138 = vadd.f32 %v988, %v1137
      %v1139 = vpop.f32.mrb[0].mxu0
      %1140 = vmatprep.mubr.bf16.mxu0 %v1060
      %1141 = vmatmul.mubr.bf16.gmra.mrb[0].mxu0 %v957
      %v1142 = vpop.f32.mrb[0].mxu0
      %v1143 = vadd.f32 %v988, %v1142
      %v1144 = vpop.f32.mrb[0].mxu0
      %v1145 = vpop.f32.mrb[0].mxu0
      %v1146 = vadd.f32 %v988, %v1145
      %v1147 = vpop.f32.mrb[0].mxu0
      %1148 = vmatprep.mubr.bf16.mxu0 %v1063
      %1149 = vmatmul.mubr.bf16.gmra.mrb[0].mxu0 %v960
      %v1150 = vpop.f32.mrb[0].mxu0
      %v1151 = vadd.f32 %v988, %v1150
      %v1152 = vpop.f32.mrb[0].mxu0
      %v1153 = vpop.f32.mrb[0].mxu0
      %v1154 = vadd.f32 %v988, %v1153
      %v1155 = vpop.f32.mrb[0].mxu0
      %1156 = vmatprep.mubr.bf16.mxu0 %v1066
      %1157 = vmatmul.mubr.bf16.gmra.mrb[0].mxu0 %v963
      %v1158 = vpop.f32.mrb[0].mxu0
      %v1159 = vadd.f32 %v988, %v1158
      %v1160 = vpop.f32.mrb[0].mxu0
      %v1161 = vpop.f32.mrb[0].mxu0
      %v1162 = vadd.f32 %v988, %v1161
      %v1163 = vpop.f32.mrb[0].mxu0
      %1164 = vdwg.mxu0
      %v1165 = vld [vmem:[%s308] sm:$0xff]
      %v1166 = vld [vmem:[%s308 + $0x8] sm:$0xff]
      %v1167 = vld [vmem:[%s308 + $0x10] sm:$0xff]
      %v1168 = vld [vmem:[%s308 + $0x18] sm:$0xff]
      %v1169 = vld [vmem:[%s308 + $0x20] sm:$0xff]
      %v1170 = vld [vmem:[%s308 + $0x28] sm:$0xff]
      %v1171 = vld [vmem:[%s308 + $0x30] sm:$0xff]
      %v1172 = vld [vmem:[%s308 + $0x38] sm:$0xff]
      %v1173 = vld [vmem:[%s308 + $0x40] sm:$0xff]
      %v1174 = vld [vmem:[%s308 + $0x48] sm:$0xff]
      %v1175 = vld [vmem:[%s308 + $0x50] sm:$0xff]
      %v1176 = vld [vmem:[%s308 + $0x58] sm:$0xff]
      %v1177 = vld [vmem:[%s308 + $0x60] sm:$0xff]
      %v1178 = vld [vmem:[%s308 + $0x68] sm:$0xff]
      %v1179 = vld [vmem:[%s308 + $0x70] sm:$0xff]
      %v1180 = vld [vmem:[%s308 + $0x78] sm:$0xff]
      %1182 = vset.pattern.permute.xlu0 0
      %1183 = vperm.xlu0 %1182, %v1165
      %v1184 = vpop.permute.xlu0 %1183
      %1187 = vset.pattern.permute.xlu0 0
      %1188 = vperm.xlu0 %1187, %v1166
      %v1189 = vpop.permute.xlu0 %1188
      %1192 = vset.pattern.permute.xlu0 0
      %1193 = vperm.xlu0 %1192, %v1167
      %v1194 = vpop.permute.xlu0 %1193
      %1197 = vset.pattern.permute.xlu0 0
      %1198 = vperm.xlu0 %1197, %v1168
      %v1199 = vpop.permute.xlu0 %1198
      %1202 = vset.pattern.permute.xlu0 0
      %1203 = vperm.xlu0 %1202, %v1169
      %v1204 = vpop.permute.xlu0 %1203
      %1207 = vset.pattern.permute.xlu0 0
      %1208 = vperm.xlu0 %1207, %v1170
      %v1209 = vpop.permute.xlu0 %1208
      %1212 = vset.pattern.permute.xlu0 0
      %1213 = vperm.xlu0 %1212, %v1171
      %v1214 = vpop.permute.xlu0 %1213
      %1217 = vset.pattern.permute.xlu0 0
      %1218 = vperm.xlu0 %1217, %v1172
      %v1219 = vpop.permute.xlu0 %1218
      %1222 = vset.pattern.permute.xlu0 0
      %1223 = vperm.xlu0 %1222, %v1173
      %v1224 = vpop.permute.xlu0 %1223
      %1227 = vset.pattern.permute.xlu0 0
      %1228 = vperm.xlu0 %1227, %v1174
      %v1229 = vpop.permute.xlu0 %1228
      %1232 = vset.pattern.permute.xlu0 0
      %1233 = vperm.xlu0 %1232, %v1175
      %v1234 = vpop.permute.xlu0 %1233
      %1237 = vset.pattern.permute.xlu0 0
      %1238 = vperm.xlu0 %1237, %v1176
      %v1239 = vpop.permute.xlu0 %1238
      %1242 = vset.pattern.permute.xlu0 0
      %1243 = vperm.xlu0 %1242, %v1177
      %v1244 = vpop.permute.xlu0 %1243
      %1247 = vset.pattern.permute.xlu0 0
      %1248 = vperm.xlu0 %1247, %v1178
      %v1249 = vpop.permute.xlu0 %1248
      %1252 = vset.pattern.permute.xlu0 0
      %1253 = vperm.xlu0 %1252, %v1179
      %v1254 = vpop.permute.xlu0 %1253
      %1257 = vset.pattern.permute.xlu0 0
      %1258 = vperm.xlu0 %1257, %v1180
      %v1259 = vpop.permute.xlu0 %1258
      %v1261 = vmul.f32 %v1103, %v1184
      %v1262 = vmul.f32 %v1106, %v1189
      %v1263 = vmul.f32 %v1111, %v1194
      %v1264 = vmul.f32 %v1114, %v1199
      %v1265 = vmul.f32 %v1119, %v1204
      %v1266 = vmul.f32 %v1122, %v1209
      %v1267 = vmul.f32 %v1127, %v1214
      %v1268 = vmul.f32 %v1130, %v1219
      %v1269 = vmul.f32 %v1135, %v1224
      %v1270 = vmul.f32 %v1138, %v1229
      %v1271 = vmul.f32 %v1143, %v1234
      %v1272 = vmul.f32 %v1146, %v1239
      %v1273 = vmul.f32 %v1151, %v1244
      %v1274 = vmul.f32 %v1154, %v1249
      %v1275 = vmul.f32 %v1159, %v1254
      %v1276 = vmul.f32 %v1162, %v1259
      %v1277 = vpack.c.bf16 %v1262, %v1261
      %v1278 = vpack.c.bf16 %v1264, %v1263
      %v1279 = vpack.c.bf16 %v1266, %v1265
      %v1280 = vpack.c.bf16 %v1268, %v1267
      %v1281 = vpack.c.bf16 %v1270, %v1269
      %v1282 = vpack.c.bf16 %v1272, %v1271
      %v1283 = vpack.c.bf16 %v1274, %v1273
      %v1284 = vpack.c.bf16 %v1276, %v1275
      %v1293 = vunpack.c.l.b16 %v1277
      %v1294 = vunpack.c.h.b16 %v1277
      %v1295 = vunpack.c.l.b16 %v1278
      %v1296 = vunpack.c.h.b16 %v1278
      %v1297 = vunpack.c.l.b16 %v1279
      %v1298 = vunpack.c.h.b16 %v1279
      %v1299 = vunpack.c.l.b16 %v1280
      %v1300 = vunpack.c.h.b16 %v1280
      %v1301 = vunpack.c.l.b16 %v1281
      %v1302 = vunpack.c.h.b16 %v1281
      %v1303 = vunpack.c.l.b16 %v1282
      %v1304 = vunpack.c.h.b16 %v1282
      %v1305 = vunpack.c.l.b16 %v1283
      %v1306 = vunpack.c.h.b16 %v1283
      %v1307 = vunpack.c.l.b16 %v1284
      %v1308 = vunpack.c.h.b16 %v1284
      %v1309 = vpack.c.b16 %v1293, %v1293
      %v1310 = vpack.c.b16 %v1294, %v1294
      %v1311 = vpack.c.b16 %v1295, %v1295
      %v1312 = vpack.c.b16 %v1296, %v1296
      %v1313 = vpack.c.b16 %v1297, %v1297
      %v1314 = vpack.c.b16 %v1298, %v1298
      %v1315 = vpack.c.b16 %v1299, %v1299
      %v1316 = vpack.c.b16 %v1300, %v1300
      %v1317 = vpack.c.b16 %v1301, %v1301
      %v1318 = vpack.c.b16 %v1302, %v1302
      %v1319 = vpack.c.b16 %v1303, %v1303
      %v1320 = vpack.c.b16 %v1304, %v1304
      %v1321 = vpack.c.b16 %v1305, %v1305
      %v1322 = vpack.c.b16 %v1306, %v1306
      %v1323 = vpack.c.b16 %v1307, %v1307
      %v1324 = vpack.c.b16 %v1308, %v1308
      %vm1341 = vcmask 519168
      %1342 = vst.msk [vmem:[%s318] sm:$0xf] %vm1341, %v1309
      %1343 = vst.msk [vmem:[%s318 + $0x4] sm:$0xf] %vm1341, %v1310
      %1344 = vst.msk [vmem:[%s318 + $0x8] sm:$0xf] %vm1341, %v1311
      %1345 = vst.msk [vmem:[%s318 + $0xc] sm:$0xf] %vm1341, %v1312
      %1346 = vst.msk [vmem:[%s318 + $0x10] sm:$0xf] %vm1341, %v1313
      %1347 = vst.msk [vmem:[%s318 + $0x14] sm:$0xf] %vm1341, %v1314
      %1348 = vst.msk [vmem:[%s318 + $0x18] sm:$0xf] %vm1341, %v1315
      %1349 = vst.msk [vmem:[%s318 + $0x1c] sm:$0xf] %vm1341, %v1316
      %1350 = vst.msk [vmem:[%s318 + $0x20] sm:$0xf] %vm1341, %v1317
      %1351 = vst.msk [vmem:[%s318 + $0x24] sm:$0xf] %vm1341, %v1318
      %1352 = vst.msk [vmem:[%s318 + $0x28] sm:$0xf] %vm1341, %v1319
      %1353 = vst.msk [vmem:[%s318 + $0x2c] sm:$0xf] %vm1341, %v1320
      %1354 = vst.msk [vmem:[%s318 + $0x30] sm:$0xf] %vm1341, %v1321
      %1355 = vst.msk [vmem:[%s318 + $0x34] sm:$0xf] %vm1341, %v1322
      %1356 = vst.msk [vmem:[%s318 + $0x38] sm:$0xf] %vm1341, %v1323
      %1357 = vst.msk [vmem:[%s318 + $0x3c] sm:$0xf] %vm1341, %v1324
      %s1358 = smul.u32 16, %s21
      %p1359 = scmp.lt.s32.totalorder %s20, 3
      %s1360 = scalar_select %p1359, %s20, 3
      %p1361 = scmp.lt.s32.totalorder %s1358, 63
      %s1362 = scalar_select %p1361, %s1358, 63
      %s1363 = smul.addr %s1360, 64
      %s1364 = sadd.s32 %s1362, %s1363
      %s1365 = smul.addr %s1364, 4
      %s1366 = scalar_lea.vmem %s5, %s1365
      // Predicated region
      $region41: #{edsr_forward.10} parent=39 // pred_check
        %p1367 = pneg %p172
      $region42: #{edsr_forward.10} parent=39 // pred_check_branch
        %1369 = sbr.rel (%p1367) target = $region44
      $region43: #{edsr_forward.10} parent=39 // pred_region
        %s1370 = smul.u32 16, %s21
      $region44: #{edsr_forward.10} parent=39 // pred_fallthru
        _
    $region40: #{edsr_forward.10} parent=5 // pred_fallthru
      _
    %p1371 = scmp.le.s32.totalorder 2, %s11
    // Predicated region
    $region45: #{edsr_forward.10} parent=5 // pred_check
      %p1372 = pneg %p1371
    $region46: #{edsr_forward.10} parent=5 // pred_check_branch
      %1374 = sbr.rel (%p1372) target = $region48
    $region47: #{edsr_forward.10} parent=5 // pred_region
      %s1375 = ssub.s32 %s11, 2
      // Predicated region
      $region49: #{edsr_forward.10} parent=47 // pred_check
        %p1376 = pneg %p178
      $region50: #{edsr_forward.10} parent=47 // pred_check_branch
        %1378 = sbr.rel (%p1376) target = $region52
      $region51: #{edsr_forward.10} parent=47 // pred_region
        %s1379 = smul.u32 16, %s23
        %p1380 = scmp.lt.s32.totalorder %s22, 3
        %s1381 = scalar_select %p1380, %s22, 3
        %p1382 = scmp.lt.s32.totalorder %s1379, 63
        %s1383 = scalar_select %p1382, %s1379, 63
        %s1384 = smul.addr %s1381, 64
        %s1385 = sadd.s32 %s1383, %s1384
        %s1386 = smul.addr %s1385, 4
        %s1387 = scalar_lea.vmem %s5, %s1386
      $region52: #{edsr_forward.10} parent=47 // pred_fallthru
        _
    $region48: #{edsr_forward.10} parent=5 // pred_fallthru
      _
  $region6: #{edsr_forward.10} parent=0 // loop_footer
    %s15 = sadd.s32 1, %s11
  $region7: #{edsr_forward.10} parent=0 // loop_footer_branch
    %10 = sbr.rel target = $region3
  $region8: #{edsr_forward.10} parent=0 // loop_exit
    _

// kernel: edsr_forward.11
$region0: #{edsr_forward.11}
  #allocation0 [shape = 'u32[]', space=smem, size = 0x4, offset = 0x4, fixed_abs, tag = 'smem constant byte address 0x4 - core index']
  #allocation1 [shape = 'u32[144,128]{1,0:T(1,128)}', space=vmem, size = 0x12000, scoped, tag = 'internal scratch']
  %s0 = inlined_call_operand.vmem [shape: bf16[4,1408,16], index: 0, kind: input, shape index: {}]
  %s1 = inlined_call_operand.vmem [shape: bf16[4,11,74,16], index: 1, kind: input, shape index: {}]
  %s2 = inlined_call_operand.vmem [shape: f32[1408,1], index: 2, kind: input, shape index: {}]
  %s3 = inlined_call_operand.vmem [shape: bf16[144,4], index: 3, kind: input, shape index: {}]
  %s4 = inlined_call_operand.vmem [shape: f32[1,4], index: 4, kind: input, shape index: {}]
  %s5 = inlined_call_operand.vmem [shape: bf16[4,1408,4], index: 5, kind: output, shape index: {}]
  %s6 = sld [smem:[#allocation0]]
  $region53: #{edsr_forward.11} parent=0
    _
  %s8 = ssub.s32 1, %s6
  %s9 = scalar_select 0, %s8, %s6
  loop: start=0, step=1, limit=46
  $region2: #{edsr_forward.11} parent=0 // loop_pre_header
    _
  $region3: #{edsr_forward.11} parent=0 // loop_header
    %s11 = sphi 0, %s15
    %p12 = scmp.ge.s32.totalorder %s11, 46
    %s18 = sphi 0, %s30
    %s19 = sphi 0, %s26
    %s20 = sphi 0, %s18
    %s21 = sphi 0, %s19
    %s22 = sphi 0, %s20
    %s23 = sphi 0, %s21
    %s35 = sphi 0, %s37
    %s38 = sphi 0, %s35
    %s39 = sphi 0, %s38
    %s55 = sphi 0, %s39
    %s63 = sphi 0, %s65
    %s66 = sphi 0, %s63
    %s67 = sphi 0, %s66
    %s83 = sphi 0, %s67
    %s89 = sphi 0, %s91
    %s92 = sphi 0, %s89
    %s93 = sphi 0, %s92
    %s109 = sphi 0, %s93
    %s113 = sphi 0, %s113
    %s115 = sphi 0, %s113
    %s116 = sphi 0, %s115
    %s130 = sphi 0, %s116
    %s134 = sphi 0, %s134
    %s136 = sphi 0, %s134
    %s137 = sphi 0, %s136
    %s151 = sphi 0, %s137
    %s159 = sphi 0, %s161
    %s162 = sphi 0, %s159
    %s163 = sphi 0, %s162
    %s179 = sphi 0, %s163
  $region4: #{edsr_forward.11} parent=0 // loop_header_branch
    %14 = sbr.rel (%p12) target = $region8
  $region5: #{edsr_forward.11} parent=0 // loop_body
    %s16 = ssub.s32 %s11, 1
    %s17 = ssub.s32 %s11, 2
    %s24 = sadd.s32 1, %s19
    %p25 = scmp.ge.s32.totalorder %s24, 11
    %s26 = scalar_select %p25, 0, %s24
    %s27 = sadd.s32 1, %s18
    %s28 = scalar_select %p25, %s27, %s18
    %p29 = scmp.ge.s32.totalorder %s28, 4
    %s30 = scalar_select %p29, 0, %s28
    %s31 = ssub.s32 %s18, %s30
    %s32 = ssub.s32 %s19, %s26
    %s33 = sor.u32 %s31, %s32
    %p34 = scmp.eq.s32.totalorder %s33, 0
    %s36 = sadd.s32 %s35, 1
    %s37 = scalar_select %p34, %s35, %s36
    %p40 = pneg %p34
    %p41 = scmp.eq.s32.totalorder %s11, 43
    %p42 = por %p40, %p41
    %p43 = scmp.ne.s32.totalorder %s35, %s38
    %p44 = scmp.eq.s32.totalorder %s11, 0
    %p45 = por %p43, %p44
    %p46 = scmp.ne.s32.totalorder %s35, %s38
    %p47 = scmp.eq.s32.totalorder %s16, 43
    %p48 = por %p46, %p47
    %p49 = scmp.ne.s32.totalorder %s38, %s39
    %p50 = scmp.eq.s32.totalorder %s16, 0
    %p51 = por %p49, %p50
    %p52 = scmp.ne.s32.totalorder %s38, %s39
    %p53 = scmp.eq.s32.totalorder %s17, 43
    %p54 = por %p52, %p53
    %p56 = scmp.ne.s32.totalorder %s39, %s55
    %p57 = scmp.eq.s32.totalorder %s17, 0
    %p58 = por %p56, %p57
    %s59 = ssub.s32 %s18, %s30
    %s60 = ssub.s32 %s19, %s26
    %s61 = sor.u32 %s59, %s60
    %p62 = scmp.eq.s32.totalorder %s61, 0
    %s64 = sadd.s32 %s63, 1
    %s65 = scalar_select %p62, %s63, %s64
    %p68 = pneg %p62
    %p69 = scmp.eq.s32.totalorder %s11, 43
    %p70 = por %p68, %p69
    %p71 = scmp.ne.s32.totalorder %s63, %s66
    %p72 = scmp.eq.s32.totalorder %s11, 0
    %p73 = por %p71, %p72
    %p74 = scmp.ne.s32.totalorder %s63, %s66
    %p75 = scmp.eq.s32.totalorder %s16, 43
    %p76 = por %p74, %p75
    %p77 = scmp.ne.s32.totalorder %s66, %s67
    %p78 = scmp.eq.s32.totalorder %s16, 0
    %p79 = por %p77, %p78
    %p80 = scmp.ne.s32.totalorder %s66, %s67
    %p81 = scmp.eq.s32.totalorder %s17, 43
    %p82 = por %p80, %p81
    %p84 = scmp.ne.s32.totalorder %s67, %s83
    %p85 = scmp.eq.s32.totalorder %s17, 0
    %p86 = por %p84, %p85
    %s87 = ssub.s32 %s19, %s26
    %p88 = scmp.eq.s32.totalorder %s87, 0
    %s90 = sadd.s32 %s89, 1
    %s91 = scalar_select %p88, %s89, %s90
    %p94 = pneg %p88
    %p95 = scmp.eq.s32.totalorder %s11, 43
    %p96 = por %p94, %p95
    %p97 = scmp.ne.s32.totalorder %s89, %s92
    %p98 = scmp.eq.s32.totalorder %s11, 0
    %p99 = por %p97, %p98
    %p100 = scmp.ne.s32.totalorder %s89, %s92
    %p101 = scmp.eq.s32.totalorder %s16, 43
    %p102 = por %p100, %p101
    %p103 = scmp.ne.s32.totalorder %s92, %s93
    %p104 = scmp.eq.s32.totalorder %s16, 0
    %p105 = por %p103, %p104
    %p106 = scmp.ne.s32.totalorder %s92, %s93
    %p107 = scmp.eq.s32.totalorder %s17, 43
    %p108 = por %p106, %p107
    %p110 = scmp.ne.s32.totalorder %s93, %s109
    %p111 = scmp.eq.s32.totalorder %s17, 0
    %p112 = por %p110, %p111
    %s114 = sadd.s32 %s113, 1
    %p117 = scmp.eq.s32.totalorder %s11, 43
    %p118 = scmp.ne.s32.totalorder %s113, %s115
    %p119 = scmp.eq.s32.totalorder %s11, 0
    %p120 = por %p118, %p119
    %p121 = scmp.ne.s32.totalorder %s113, %s115
    %p122 = scmp.eq.s32.totalorder %s16, 43
    %p123 = por %p121, %p122
    %p124 = scmp.ne.s32.totalorder %s115, %s116
    %p125 = scmp.eq.s32.totalorder %s16, 0
    %p126 = por %p124, %p125
    %p127 = scmp.ne.s32.totalorder %s115, %s116
    %p128 = scmp.eq.s32.totalorder %s17, 43
    %p129 = por %p127, %p128
    %p131 = scmp.ne.s32.totalorder %s116, %s130
    %p132 = scmp.eq.s32.totalorder %s17, 0
    %p133 = por %p131, %p132
    %s135 = sadd.s32 %s134, 1
    %p138 = scmp.eq.s32.totalorder %s11, 43
    %p139 = scmp.ne.s32.totalorder %s134, %s136
    %p140 = scmp.eq.s32.totalorder %s11, 0
    %p141 = por %p139, %p140
    %p142 = scmp.ne.s32.totalorder %s134, %s136
    %p143 = scmp.eq.s32.totalorder %s16, 43
    %p144 = por %p142, %p143
    %p145 = scmp.ne.s32.totalorder %s136, %s137
    %p146 = scmp.eq.s32.totalorder %s16, 0
    %p147 = por %p145, %p146
    %p148 = scmp.ne.s32.totalorder %s136, %s137
    %p149 = scmp.eq.s32.totalorder %s17, 43
    %p150 = por %p148, %p149
    %p152 = scmp.ne.s32.totalorder %s137, %s151
    %p153 = scmp.eq.s32.totalorder %s17, 0
    %p154 = por %p152, %p153
    %s155 = ssub.s32 %s18, %s30
    %s156 = ssub.s32 %s19, %s26
    %s157 = sor.u32 %s155, %s156
    %p158 = scmp.eq.s32.totalorder %s157, 0
    %s160 = sadd.s32 %s159, 1
    %s161 = scalar_select %p158, %s159, %s160
    %p164 = pneg %p158
    %p165 = scmp.eq.s32.totalorder %s11, 43
    %p166 = por %p164, %p165
    %p167 = scmp.ne.s32.totalorder %s159, %s162
    %p168 = scmp.eq.s32.totalorder %s11, 0
    %p169 = por %p167, %p168
    %p170 = scmp.ne.s32.totalorder %s159, %s162
    %p171 = scmp.eq.s32.totalorder %s16, 43
    %p172 = por %p170, %p171
    %p173 = scmp.ne.s32.totalorder %s162, %s163
    %p174 = scmp.eq.s32.totalorder %s16, 0
    %p175 = por %p173, %p174
    %p176 = scmp.ne.s32.totalorder %s162, %s163
    %p177 = scmp.eq.s32.totalorder %s17, 43
    %p178 = por %p176, %p177
    %p180 = scmp.ne.s32.totalorder %s163, %s179
    %p181 = scmp.eq.s32.totalorder %s17, 0
    %p182 = por %p180, %p181
    %p183 = scmp.le.s32.totalorder 1, %s11
    %p184 = scmp.lt.s32.totalorder %s11, 45
    %p185 = pnand %p183, %p184
    %p186 = pneg %p185
    // Predicated region
    $region9: #{edsr_forward.11} parent=5 // pred_check
      _
    $region10: #{edsr_forward.11} parent=5 // pred_check_branch
      %188 = sbr.rel (%p185) target = $region12
    $region11: #{edsr_forward.11} parent=5 // pred_region
      %s189 = ssub.s32 %s11, 1
      // Predicated region
      $region13: #{edsr_forward.11} parent=11 // pred_check
        %p190 = pneg %p126
      $region14: #{edsr_forward.11} parent=11 // pred_check_branch
        %192 = sbr.rel (%p190) target = $region16
      $region15: #{edsr_forward.11} parent=11 // pred_region
        _
      $region16: #{edsr_forward.11} parent=11 // pred_fallthru
        _
      // Predicated region
      $region17: #{edsr_forward.11} parent=11 // pred_check
        %p193 = pneg %p147
      $region18: #{edsr_forward.11} parent=11 // pred_check_branch
        %195 = sbr.rel (%p193) target = $region20
      $region19: #{edsr_forward.11} parent=11 // pred_region
        _
      $region20: #{edsr_forward.11} parent=11 // pred_fallthru
        _
    $region12: #{edsr_forward.11} parent=5 // pred_fallthru
      _
    %p196 = scmp.lt.s32.totalorder %s11, 44
    // Predicated region
    $region21: #{edsr_forward.11} parent=5 // pred_check
      %p197 = pneg %p196
    $region22: #{edsr_forward.11} parent=5 // pred_check_branch
      %199 = sbr.rel (%p197) target = $region24
    $region23: #{edsr_forward.11} parent=5 // pred_region
      // Predicated region
      $region25: #{edsr_forward.11} parent=23 // pred_check
        %p200 = pneg %p45
      $region26: #{edsr_forward.11} parent=23 // pred_check_branch
        %202 = sbr.rel (%p200) target = $region28
      $region27: #{edsr_forward.11} parent=23 // pred_region
        %s203 = smul.u32 16, %s19
        %p204 = scmp.lt.s32.totalorder %s18, 3
        %s205 = scalar_select %p204, %s18, 3
        %p206 = scmp.lt.s32.totalorder %s203, 175
        %s207 = scalar_select %p206, %s203, 175
        %s208 = smul.addr %s205, 176
        %s209 = sadd.s32 %s207, %s208
        %s210 = smul.addr %s209, 4
        %s211 = scalar_lea.vmem %s0, %s210
        %s212 = smul.u32 16, %s19
      $region28: #{edsr_forward.11} parent=23 // pred_fallthru
        _
      // Predicated region
      $region29: #{edsr_forward.11} parent=23 // pred_check
        %p213 = pneg %p73
      $region30: #{edsr_forward.11} parent=23 // pred_check_branch
        %215 = sbr.rel (%p213) target = $region32
      $region31: #{edsr_forward.11} parent=23 // pred_region
        %p216 = scmp.lt.s32.totalorder %s18, 3
        %s217 = scalar_select %p216, %s18, 3
        %p218 = scmp.lt.s32.totalorder %s19, 10
        %s219 = scalar_select %p218, %s19, 10
        %s220 = smul.addr %s219, 10
        %s221 = smul.addr %s217, 110
        %s222 = sadd.s32 %s220, %s221
        %s223 = smul.addr %s222, 4
        %s224 = scalar_lea.vmem %s1, %s223
      $region32: #{edsr_forward.11} parent=23 // pred_fallthru
        _
      // Predicated region
      $region33: #{edsr_forward.11} parent=23 // pred_check
        %p225 = pneg %p99
      $region34: #{edsr_forward.11} parent=23 // pred_check_branch
        %227 = sbr.rel (%p225) target = $region36
      $region35: #{edsr_forward.11} parent=23 // pred_region
        %s228 = smul.u32 16, %s19
        %p229 = scmp.lt.s32.totalorder %s228, 175
        %s230 = scalar_select %p229, %s228, 175
        %s231 = smul.addr %s230, 8
        %s232 = scalar_lea.vmem %s2, %s231
        %s233 = smul.u32 16, %s19
      $region36: #{edsr_forward.11} parent=23 // pred_fallthru
        _
    $region24: #{edsr_forward.11} parent=5 // pred_fallthru
      _
    %p234 = scmp.le.s32.totalorder 1, %s11
    %p235 = scmp.lt.s32.totalorder %s11, 45
    %p236 = pnand %p234, %p235
    %p237 = pneg %p236
    // Predicated region
    $region37: #{edsr_forward.11} parent=5 // pred_check
      _
    $region38: #{edsr_forward.11} parent=5 // pred_check_branch
      %239 = sbr.rel (%p236) target = $region40
    $region39: #{edsr_forward.11} parent=5 // pred_region
      %s240 = ssub.s32 %s11, 1
      %s241 = smul.u32 16, %s21
      %p242 = scmp.lt.s32.totalorder %s20, 3
      %s243 = scalar_select %p242, %s20, 3
      %p244 = scmp.lt.s32.totalorder %s241, 175
      %s245 = scalar_select %p244, %s241, 175
      %s246 = smul.addr %s243, 176
      %s247 = sadd.s32 %s245, %s246
      %s248 = smul.addr %s247, 4
      %s249 = scalar_lea.vmem %s0, %s248
      %p250 = pneg %p51
      %p251 = pneg %p48
      %p252 = scmp.lt.s32.totalorder %s20, 3
      %s253 = scalar_select %p252, %s20, 3
      %p254 = scmp.lt.s32.totalorder %s21, 10
      %s255 = scalar_select %p254, %s21, 10
      %s256 = smul.addr %s255, 10
      %s257 = smul.addr %s253, 110
      %s258 = sadd.s32 %s256, %s257
      %s259 = smul.addr %s258, 4
      %s260 = scalar_lea.vmem %s1, %s259
      %p261 = pneg %p79
      %p262 = pneg %p76
      %s263 = smul.u32 16, %s21
      %p264 = scmp.lt.s32.totalorder %s263, 175
      %s265 = scalar_select %p264, %s263, 175
      %s266 = smul.addr %s265, 8
      %s267 = scalar_lea.vmem %s2, %s266
      %p268 = pneg %p105
      %p269 = pneg %p102
      %p270 = pneg %p126
      %p271 = pneg %p123
      %p272 = pneg %p147
      %p273 = pneg %p144
      %p274 = pneg %p175
      %p275 = pneg %p172
      %s276 = smul.u32 16, %s21
      %p277 = scmp.lt.s32.totalorder %s20, 3
      %s278 = scalar_select %p277, %s20, 3
      %p279 = scmp.lt.s32.totalorder %s276, 175
      %s280 = scalar_select %p279, %s276, 175
      %s281 = smul.addr %s278, 176
      %s282 = sadd.s32 %s280, %s281
      %s283 = smul.addr %s282, 4
      %s284 = scalar_lea.vmem %s5, %s283
      %s285 = smul.u32 16, %s21
      %p286 = scmp.lt.s32.totalorder %s20, 3
      %s287 = scalar_select %p286, %s20, 3
      %p288 = scmp.lt.s32.totalorder %s285, 175
      %s289 = scalar_select %p288, %s285, 175
      %s290 = smul.addr %s287, 176
      %s291 = sadd.s32 %s289, %s290
      %s292 = smul.addr %s291, 4
      %s293 = scalar_lea.vmem %s0, %s292
      %s294 = smul.u32 16, %s21
      %p295 = scmp.lt.s32.totalorder %s20, 3
      %s296 = scalar_select %p295, %s20, 3
      %p297 = scmp.lt.s32.totalorder %s21, 10
      %s298 = scalar_select %p297, %s21, 10
      %s299 = smul.addr %s298, 10
      %s300 = smul.addr %s296, 110
      %s301 = sadd.s32 %s299, %s300
      %s302 = smul.addr %s301, 4
      %s303 = scalar_lea.vmem %s1, %s302
      %s304 = smul.u32 16, %s21
      %p305 = scmp.lt.s32.totalorder %s304, 175
      %s306 = scalar_select %p305, %s304, 175
      %s307 = smul.addr %s306, 8
      %s308 = scalar_lea.vmem %s2, %s307
      %s309 = smul.u32 16, %s21
      %s310 = smul.u32 16, %s21
      %p311 = scmp.lt.s32.totalorder %s20, 3
      %s312 = scalar_select %p311, %s20, 3
      %p313 = scmp.lt.s32.totalorder %s310, 175
      %s314 = scalar_select %p313, %s310, 175
      %s315 = smul.addr %s312, 176
      %s316 = sadd.s32 %s314, %s315
      %s317 = smul.addr %s316, 4
      %s318 = scalar_lea.vmem %s5, %s317
      %s319 = smul.u32 16, %s21
      %v321 = vld [vmem:[%s303] sm:$0xf]
      %v322 = vld [vmem:[%s303 + $0x4] sm:$0xf]
      %v323 = vld [vmem:[%s303 + $0x8] sm:$0xf]
      %v324 = vld [vmem:[%s303 + $0xc] sm:$0xf]
      %v325 = vld [vmem:[%s303 + $0x10] sm:$0x7]
      %v326 = vld [vmem:[%s293] sm:$0xf]
      %v327 = vld [vmem:[%s293 + $0x4] sm:$0xf]
      %v328 = vld [vmem:[%s293 + $0x8] sm:$0xf]
      %v329 = vld [vmem:[%s293 + $0xc] sm:$0xf]
      %v330 = vld [vmem:[%s293 + $0x10] sm:$0xf]
      %v331 = vld [vmem:[%s293 + $0x14] sm:$0xf]
      %v332 = vld [vmem:[%s293 + $0x18] sm:$0xf]
      %v333 = vld [vmem:[%s293 + $0x1c] sm:$0xf]
      %v334 = vld [vmem:[%s293 + $0x20] sm:$0xf]
      %v335 = vld [vmem:[%s293 + $0x24] sm:$0xf]
      %v336 = vld [vmem:[%s293 + $0x28] sm:$0xf]
      %v337 = vld [vmem:[%s293 + $0x2c] sm:$0xf]
      %v338 = vld [vmem:[%s293 + $0x30] sm:$0xf]
      %v339 = vld [vmem:[%s293 + $0x34] sm:$0xf]
      %v340 = vld [vmem:[%s293 + $0x38] sm:$0xf]
      %v341 = vld [vmem:[%s293 + $0x3c] sm:$0xf]
      %v342 = vld [vmem:[%s303 + $0x10] sm:$0xc]
      %v343 = vld [vmem:[%s303 + $0x14] sm:$0xf]
      %v344 = vld [vmem:[%s303 + $0x18] sm:$0xf]
      %v345 = vld [vmem:[%s303 + $0x1c] sm:$0xf]
      %v346 = vld [vmem:[%s303 + $0x20] sm:$0xf]
      %v347 = vld [vmem:[%s303 + $0x24] sm:$0x1]
      %v353 = vunpack.c.l.b16 %v321
      %v354 = vunpack.c.l.b16 %v322
      %v355 = vunpack.c.l.b16 %v323
      %v356 = vunpack.c.l.b16 %v324
      %v357 = vunpack.c.l.b16 %v325
      %v358 = vpack.c.b16 %v354, %v353
      %v359 = vpack.c.b16 %v356, %v355
      %v360 = vpack.c.b16 %v357, %v357
      %v378 = vunpack.c.l.b16 %v326
      %v379 = vunpack.c.l.b16 %v327
      %v380 = vunpack.c.l.b16 %v328
      %v381 = vunpack.c.l.b16 %v329
      %v382 = vunpack.c.l.b16 %v330
      %v383 = vunpack.c.l.b16 %v331
      %v384 = vunpack.c.l.b16 %v332
      %v385 = vunpack.c.l.b16 %v333
      %v386 = vunpack.c.l.b16 %v334
      %v387 = vunpack.c.l.b16 %v335
      %v388 = vunpack.c.l.b16 %v336
      %v389 = vunpack.c.l.b16 %v337
      %v390 = vunpack.c.l.b16 %v338
      %v391 = vunpack.c.l.b16 %v339
      %v392 = vunpack.c.l.b16 %v340
      %v393 = vunpack.c.l.b16 %v341
      %v394 = vpack.c.b16 %v379, %v378
      %v395 = vpack.c.b16 %v381, %v380
      %v396 = vpack.c.b16 %v383, %v382
      %v397 = vpack.c.b16 %v385, %v384
      %v398 = vpack.c.b16 %v387, %v386
      %v399 = vpack.c.b16 %v389, %v388
      %v400 = vpack.c.b16 %v391, %v390
      %v401 = vpack.c.b16 %v393, %v392
      %vm402 = vsmask.f32 2304
      %v404 = vshrl.u32 %v394, 16
      %v406 = vrot.slane %v404, 5
      %v407 = vshll.u32 %v394, 16
      %v409 = vrot.slane %v407, 6
      %v410 = vor.u32 %v406, %v409
      %v412 = vshrl.u32 %v395, 16
      %v414 = vrot.slane %v412, 5
      %v415 = vshll.u32 %v395, 16
      %v417 = vrot.slane %v415, 6
      %v418 = vor.u32 %v414, %v417
      %v419 = vsel %vm402, %v410, %v418
      %v421 = vshrl.u32 %v396, 16
      %v423 = vrot.slane %v421, 5
      %v424 = vshll.u32 %v396, 16
      %v426 = vrot.slane %v424, 6
      %v427 = vor.u32 %v423, %v426
      %v428 = vsel %vm402, %v418, %v427
      %v430 = vshrl.u32 %v397, 16
      %v432 = vrot.slane %v430, 5
      %v433 = vshll.u32 %v397, 16
      %v435 = vrot.slane %v433, 6
      %v436 = vor.u32 %v432, %v435
      %v437 = vsel %vm402, %v427, %v436
      %v439 = vshrl.u32 %v398, 16
      %v441 = vrot.slane %v439, 5
      %v442 = vshll.u32 %v398, 16
      %v444 = vrot.slane %v442, 6
      %v445 = vor.u32 %v441, %v444
      %v446 = vsel %vm402, %v436, %v445
      %v448 = vshrl.u32 %v399, 16
      %v450 = vrot.slane %v448, 5
      %v451 = vshll.u32 %v399, 16
      %v453 = vrot.slane %v451, 6
      %v454 = vor.u32 %v450, %v453
      %v455 = vsel %vm402, %v445, %v454
      %v457 = vshrl.u32 %v400, 16
      %v459 = vrot.slane %v457, 5
      %v460 = vshll.u32 %v400, 16
      %v462 = vrot.slane %v460, 6
      %v463 = vor.u32 %v459, %v462
      %v464 = vsel %vm402, %v454, %v463
      %v466 = vshrl.u32 %v401, 16
      %v468 = vrot.slane %v466, 5
      %v469 = vshll.u32 %v401, 16
      %v471 = vrot.slane %v469, 6
      %v472 = vor.u32 %v468, %v471
      %v473 = vsel %vm402, %v463, %v472
      %v482 = vunpack.c.l.b16 %v342
      %v483 = vunpack.c.l.b16 %v343
      %v484 = vunpack.c.l.b16 %v344
      %v485 = vunpack.c.l.b16 %v345
      %v486 = vunpack.c.l.b16 %v346
      %v487 = vunpack.c.l.b16 %v347
      %v488 = vpack.c.b16 %v483, %v482
      %v489 = vpack.c.b16 %v485, %v484
      %v490 = vpack.c.b16 %v487, %v486
      %vm492 = vcmask 1042432
      %vm493 = vmand %vm492, %vm402
      %v494 = vsel %vm493, %v360, %v410
      %v495 = vsel %vm493, %v472, %v488
      %vm496 = vsmask.f32 7424
      %v498 = vshrl.u32 %v358, 16
      %v500 = vshll.u32 %v358, 16
      %v502 = vrot.slane %v500, 1
      %v503 = vor.u32 %v498, %v502
      %v505 = vshll.u32 %v359, 16
      %v507 = vrot.slane %v505, 1
      %v508 = vsel %vm496, %v503, %v507
      %v509 = vshrl.u32 %v359, 16
      %v511 = vor.u32 %v509, %v507
      %v513 = vshll.u32 %v494, 16
      %v515 = vrot.slane %v513, 1
      %v516 = vsel %vm496, %v511, %v515
      %v517 = vshrl.u32 %v494, 16
      %v519 = vor.u32 %v517, %v515
      %v521 = vshll.u32 %v419, 16
      %v523 = vrot.slane %v521, 1
      %v524 = vsel %vm496, %v519, %v523
      %v525 = vshrl.u32 %v419, 16
      %v527 = vor.u32 %v525, %v523
      %v529 = vshll.u32 %v428, 16
      %v531 = vrot.slane %v529, 1
      %v532 = vsel %vm496, %v527, %v531
      %v533 = vshrl.u32 %v428, 16
      %v535 = vor.u32 %v533, %v531
      %v537 = vshll.u32 %v437, 16
      %v539 = vrot.slane %v537, 1
      %v540 = vsel %vm496, %v535, %v539
      %v541 = vshrl.u32 %v437, 16
      %v543 = vor.u32 %v541, %v539
      %v545 = vshll.u32 %v446, 16
      %v547 = vrot.slane %v545, 1
      %v548 = vsel %vm496, %v543, %v547
      %v549 = vshrl.u32 %v446, 16
      %v551 = vor.u32 %v549, %v547
      %v553 = vshll.u32 %v455, 16
      %v555 = vrot.slane %v553, 1
      %v556 = vsel %vm496, %v551, %v555
      %v557 = vshrl.u32 %v455, 16
      %v559 = vor.u32 %v557, %v555
      %v561 = vshll.u32 %v464, 16
      %v563 = vrot.slane %v561, 1
      %v564 = vsel %vm496, %v559, %v563
      %565 = vrot.lane.b32.xlu0 %v508, 16
      %v566 = vpop.permute.xlu0 %565
      %567 = vrot.lane.b32.xlu0 %v516, 16
      %v568 = vpop.permute.xlu0 %567
      %569 = vrot.lane.b32.xlu0 %v524, 16
      %v570 = vpop.permute.xlu0 %569
      %571 = vrot.lane.b32.xlu0 %v532, 16
      %v572 = vpop.permute.xlu0 %571
      %573 = vrot.lane.b32.xlu0 %v540, 16
      %v574 = vpop.permute.xlu0 %573
      %575 = vrot.lane.b32.xlu0 %v548, 16
      %v576 = vpop.permute.xlu0 %575
      %577 = vrot.lane.b32.xlu0 %v556, 16
      %v578 = vpop.permute.xlu0 %577
      %579 = vrot.lane.b32.xlu0 %v564, 16
      %v580 = vpop.permute.xlu0 %579
      %vm582 = vcmask 1046528
      %v583 = vrot.slane %v358, 1
      %v584 = vrot.slane %v359, 1
      %v585 = vsel %vm582, %v583, %v584
      %v586 = vrot.slane %v494, 1
      %v587 = vsel %vm582, %v584, %v586
      %v588 = vrot.slane %v419, 1
      %v589 = vsel %vm582, %v586, %v588
      %v590 = vrot.slane %v428, 1
      %v591 = vsel %vm582, %v588, %v590
      %v592 = vrot.slane %v437, 1
      %v593 = vsel %vm582, %v590, %v592
      %v594 = vrot.slane %v446, 1
      %v595 = vsel %vm582, %v592, %v594
      %v596 = vrot.slane %v455, 1
      %v597 = vsel %vm582, %v594, %v596
      %v598 = vrot.slane %v464, 1
      %v599 = vsel %vm582, %v596, %v598
      %600 = vrot.lane.b32.xlu0 %v585, 32
      %v601 = vpop.permute.xlu0 %600
      %602 = vrot.lane.b32.xlu0 %v587, 32
      %v603 = vpop.permute.xlu0 %602
      %604 = vrot.lane.b32.xlu0 %v589, 32
      %v605 = vpop.permute.xlu0 %604
      %606 = vrot.lane.b32.xlu0 %v591, 32
      %v607 = vpop.permute.xlu0 %606
      %608 = vrot.lane.b32.xlu0 %v593, 32
      %v609 = vpop.permute.xlu0 %608
      %610 = vrot.lane.b32.xlu0 %v595, 32
      %v611 = vpop.permute.xlu0 %610
      %612 = vrot.lane.b32.xlu0 %v597, 32
      %v613 = vpop.permute.xlu0 %612
      %614 = vrot.lane.b32.xlu0 %v599, 32
      %v615 = vpop.permute.xlu0 %614
      %vm617 = vcmask 1045504
      %v618 = vrot.slane %v494, 2
      %v619 = vrot.slane %v419, 2
      %v620 = vsel %vm617, %v618, %v619
      %v621 = vrot.slane %v428, 2
      %v622 = vsel %vm617, %v619, %v621
      %v623 = vrot.slane %v437, 2
      %v624 = vsel %vm617, %v621, %v623
      %v625 = vrot.slane %v446, 2
      %v626 = vsel %vm617, %v623, %v625
      %v627 = vrot.slane %v455, 2
      %v628 = vsel %vm617, %v625, %v627
      %v629 = vrot.slane %v464, 2
      %v630 = vsel %vm617, %v627, %v629
      %v631 = vrot.slane %v473, 2
      %v632 = vsel %vm617, %v629, %v631
      %v633 = vrot.slane %v495, 2
      %v634 = vsel %vm617, %v631, %v633
      %635 = vrot.lane.b32.xlu0 %v620, 48
      %v636 = vpop.permute.xlu0 %635
      %637 = vrot.lane.b32.xlu0 %v622, 48
      %v638 = vpop.permute.xlu0 %637
      %639 = vrot.lane.b32.xlu0 %v624, 48
      %v640 = vpop.permute.xlu0 %639
      %641 = vrot.lane.b32.xlu0 %v626, 48
      %v642 = vpop.permute.xlu0 %641
      %643 = vrot.lane.b32.xlu0 %v628, 48
      %v644 = vpop.permute.xlu0 %643
      %645 = vrot.lane.b32.xlu0 %v630, 48
      %v646 = vpop.permute.xlu0 %645
      %647 = vrot.lane.b32.xlu0 %v632, 48
      %v648 = vpop.permute.xlu0 %647
      %649 = vrot.lane.b32.xlu0 %v634, 48
      %v650 = vpop.permute.xlu0 %649
      %vm651 = vsmask.f32 5376
      %v652 = vrot.slane %v517, 2
      %v653 = vrot.slane %v513, 3
      %v654 = vor.u32 %v652, %v653
      %v655 = vrot.slane %v525, 2
      %v656 = vrot.slane %v521, 3
      %v657 = vor.u32 %v655, %v656
      %v658 = vsel %vm651, %v654, %v657
      %v659 = vrot.slane %v533, 2
      %v660 = vrot.slane %v529, 3
      %v661 = vor.u32 %v659, %v660
      %v662 = vsel %vm651, %v657, %v661
      %v663 = vrot.slane %v541, 2
      %v664 = vrot.slane %v537, 3
      %v665 = vor.u32 %v663, %v664
      %v666 = vsel %vm651, %v661, %v665
      %v667 = vrot.slane %v549, 2
      %v668 = vrot.slane %v545, 3
      %v669 = vor.u32 %v667, %v668
      %v670 = vsel %vm651, %v665, %v669
      %v671 = vrot.slane %v557, 2
      %v672 = vrot.slane %v553, 3
      %v673 = vor.u32 %v671, %v672
      %v674 = vsel %vm651, %v669, %v673
      %v675 = vshrl.u32 %v464, 16
      %v677 = vrot.slane %v675, 2
      %v678 = vrot.slane %v561, 3
      %v679 = vor.u32 %v677, %v678
      %v680 = vsel %vm651, %v673, %v679
      %v682 = vshrl.u32 %v473, 16
      %v684 = vrot.slane %v682, 2
      %v685 = vshll.u32 %v473, 16
      %v687 = vrot.slane %v685, 3
      %v688 = vor.u32 %v684, %v687
      %v689 = vsel %vm651, %v679, %v688
      %v691 = vshrl.u32 %v495, 16
      %v693 = vrot.slane %v691, 2
      %v694 = vshll.u32 %v495, 16
      %v696 = vrot.slane %v694, 3
      %v697 = vor.u32 %v693, %v696
      %v698 = vsel %vm651, %v688, %v697
      %699 = vrot.lane.b32.xlu0 %v658, 64
      %v700 = vpop.permute.xlu0 %699
      %701 = vrot.lane.b32.xlu0 %v662, 64
      %v702 = vpop.permute.xlu0 %701
      %703 = vrot.lane.b32.xlu0 %v666, 64
      %v704 = vpop.permute.xlu0 %703
      %705 = vrot.lane.b32.xlu0 %v670, 64
      %v706 = vpop.permute.xlu0 %705
      %707 = vrot.lane.b32.xlu0 %v674, 64
      %v708 = vpop.permute.xlu0 %707
      %709 = vrot.lane.b32.xlu0 %v680, 64
      %v710 = vpop.permute.xlu0 %709
      %711 = vrot.lane.b32.xlu0 %v689, 64
      %v712 = vpop.permute.xlu0 %711
      %713 = vrot.lane.b32.xlu0 %v698, 64
      %v714 = vpop.permute.xlu0 %713
      %vm715 = vcmask 1044480
      %v716 = vrot.slane %v494, 3
      %v717 = vrot.slane %v419, 3
      %v718 = vsel %vm715, %v716, %v717
      %v719 = vrot.slane %v428, 3
      %v720 = vsel %vm715, %v717, %v719
      %v721 = vrot.slane %v437, 3
      %v722 = vsel %vm715, %v719, %v721
      %v723 = vrot.slane %v446, 3
      %v724 = vsel %vm715, %v721, %v723
      %v725 = vrot.slane %v455, 3
      %v726 = vsel %vm715, %v723, %v725
      %v727 = vrot.slane %v464, 3
      %v728 = vsel %vm715, %v725, %v727
      %v729 = vrot.slane %v473, 3
      %v730 = vsel %vm715, %v727, %v729
      %v731 = vrot.slane %v495, 3
      %v732 = vsel %vm715, %v729, %v731
      %733 = vrot.lane.b32.xlu0 %v718, 80
      %v734 = vpop.permute.xlu0 %733
      %735 = vrot.lane.b32.xlu0 %v720, 80
      %v736 = vpop.permute.xlu0 %735
      %737 = vrot.lane.b32.xlu0 %v722, 80
      %v738 = vpop.permute.xlu0 %737
      %739 = vrot.lane.b32.xlu0 %v724, 80
      %v740 = vpop.permute.xlu0 %739
      %741 = vrot.lane.b32.xlu0 %v726, 80
      %v742 = vpop.permute.xlu0 %741
      %743 = vrot.lane.b32.xlu0 %v728, 80
      %v744 = vpop.permute.xlu0 %743
      %745 = vrot.lane.b32.xlu0 %v730, 80
      %v746 = vpop.permute.xlu0 %745
      %747 = vrot.lane.b32.xlu0 %v732, 80
      %v748 = vpop.permute.xlu0 %747
      %vm749 = vcmask 1043456
      %v750 = vrot.slane %v428, 4
      %v751 = vrot.slane %v437, 4
      %v752 = vsel %vm749, %v750, %v751
      %v753 = vrot.slane %v446, 4
      %v754 = vsel %vm749, %v751, %v753
      %v755 = vrot.slane %v455, 4
      %v756 = vsel %vm749, %v753, %v755
      %v757 = vrot.slane %v464, 4
      %v758 = vsel %vm749, %v755, %v757
      %v759 = vrot.slane %v473, 4
      %v760 = vsel %vm749, %v757, %v759
      %v761 = vrot.slane %v495, 4
      %v762 = vsel %vm749, %v759, %v761
      %v763 = vrot.slane %v489, 4
      %v764 = vsel %vm749, %v761, %v763
      %v765 = vrot.slane %v490, 4
      %v766 = vsel %vm749, %v763, %v765
      %767 = vrot.lane.b32.xlu0 %v752, 96
      %v768 = vpop.permute.xlu0 %767
      %769 = vrot.lane.b32.xlu0 %v754, 96
      %v770 = vpop.permute.xlu0 %769
      %771 = vrot.lane.b32.xlu0 %v756, 96
      %v772 = vpop.permute.xlu0 %771
      %773 = vrot.lane.b32.xlu0 %v758, 96
      %v774 = vpop.permute.xlu0 %773
      %775 = vrot.lane.b32.xlu0 %v760, 96
      %v776 = vpop.permute.xlu0 %775
      %777 = vrot.lane.b32.xlu0 %v762, 96
      %v778 = vpop.permute.xlu0 %777
      %779 = vrot.lane.b32.xlu0 %v764, 96
      %v780 = vpop.permute.xlu0 %779
      %781 = vrot.lane.b32.xlu0 %v766, 96
      %v782 = vpop.permute.xlu0 %781
      %vm783 = vsmask.f32 3328
      %v784 = vrot.slane %v533, 4
      %v785 = vrot.slane %v529, 5
      %v786 = vor.u32 %v784, %v785
      %v787 = vrot.slane %v541, 4
      %v788 = vrot.slane %v537, 5
      %v789 = vor.u32 %v787, %v788
      %v790 = vsel %vm783, %v786, %v789
      %v791 = vrot.slane %v549, 4
      %v792 = vrot.slane %v545, 5
      %v793 = vor.u32 %v791, %v792
      %v794 = vsel %vm783, %v789, %v793
      %v795 = vrot.slane %v557, 4
      %v796 = vrot.slane %v553, 5
      %v797 = vor.u32 %v795, %v796
      %v798 = vsel %vm783, %v793, %v797
      %v799 = vrot.slane %v675, 4
      %v800 = vrot.slane %v561, 5
      %v801 = vor.u32 %v799, %v800
      %v802 = vsel %vm783, %v797, %v801
      %v803 = vrot.slane %v682, 4
      %v804 = vrot.slane %v685, 5
      %v805 = vor.u32 %v803, %v804
      %v806 = vsel %vm783, %v801, %v805
      %v807 = vrot.slane %v691, 4
      %v808 = vrot.slane %v694, 5
      %v809 = vor.u32 %v807, %v808
      %v810 = vsel %vm783, %v805, %v809
      %v812 = vshrl.u32 %v489, 16
      %v814 = vrot.slane %v812, 4
      %v815 = vshll.u32 %v489, 16
      %v817 = vrot.slane %v815, 5
      %v818 = vor.u32 %v814, %v817
      %v819 = vsel %vm783, %v809, %v818
      %v821 = vshrl.u32 %v490, 16
      %v823 = vrot.slane %v821, 4
      %v824 = vshll.u32 %v490, 16
      %v826 = vrot.slane %v824, 5
      %v827 = vor.u32 %v823, %v826
      %v828 = vsel %vm783, %v818, %v827
      %829 = vrot.lane.b32.xlu0 %v790, 112
      %v830 = vpop.permute.xlu0 %829
      %831 = vrot.lane.b32.xlu0 %v794, 112
      %v832 = vpop.permute.xlu0 %831
      %833 = vrot.lane.b32.xlu0 %v798, 112
      %v834 = vpop.permute.xlu0 %833
      %835 = vrot.lane.b32.xlu0 %v802, 112
      %v836 = vpop.permute.xlu0 %835
      %837 = vrot.lane.b32.xlu0 %v806, 112
      %v838 = vpop.permute.xlu0 %837
      %839 = vrot.lane.b32.xlu0 %v810, 112
      %v840 = vpop.permute.xlu0 %839
      %841 = vrot.lane.b32.xlu0 %v819, 112
      %v842 = vpop.permute.xlu0 %841
      %843 = vrot.lane.b32.xlu0 %v828, 112
      %v844 = vpop.permute.xlu0 %843
      %v845 = vrot.slane %v428, 5
      %v846 = vrot.slane %v437, 5
      %v847 = vsel %vm492, %v845, %v846
      %v848 = vrot.slane %v446, 5
      %v849 = vsel %vm492, %v846, %v848
      %v850 = vrot.slane %v455, 5
      %v851 = vsel %vm492, %v848, %v850
      %v852 = vrot.slane %v464, 5
      %v853 = vsel %vm492, %v850, %v852
      %v854 = vrot.slane %v473, 5
      %v855 = vsel %vm492, %v852, %v854
      %v856 = vrot.slane %v495, 5
      %v857 = vsel %vm492, %v854, %v856
      %v858 = vrot.slane %v489, 5
      %v859 = vsel %vm492, %v856, %v858
      %v860 = vrot.slane %v490, 5
      %v861 = vsel %vm492, %v858, %v860
      %vm862 = vcmask 130048
      %v864 = vsel %vm862, %v358, %v566
      %v866 = vsel %vm862, %v359, %v568
      %v868 = vsel %vm862, %v494, %v570
      %v870 = vsel %vm862, %v419, %v572
      %v872 = vsel %vm862, %v428, %v574
      %v874 = vsel %vm862, %v437, %v576
      %v876 = vsel %vm862, %v446, %v578
      %v878 = vsel %vm862, %v455, %v580
      %vm879 = vcmask 261120
      %v881 = vsel %vm879, %v864, %v601
      %v883 = vsel %vm879, %v866, %v603
      %v885 = vsel %vm879, %v868, %v605
      %v887 = vsel %vm879, %v870, %v607
      %v889 = vsel %vm879, %v872, %v609
      %v891 = vsel %vm879, %v874, %v611
      %v893 = vsel %vm879, %v876, %v613
      %v895 = vsel %vm879, %v878, %v615
      %vm896 = vcmask 392192
      %v898 = vsel %vm896, %v881, %v636
      %v900 = vsel %vm896, %v883, %v638
      %v902 = vsel %vm896, %v885, %v640
      %v904 = vsel %vm896, %v887, %v642
      %v906 = vsel %vm896, %v889, %v644
      %v908 = vsel %vm896, %v891, %v646
      %v910 = vsel %vm896, %v893, %v648
      %v912 = vsel %vm896, %v895, %v650
      %vm913 = vcmask 523264
      %v915 = vsel %vm913, %v898, %v700
      %v917 = vsel %vm913, %v900, %v702
      %v919 = vsel %vm913, %v902, %v704
      %v921 = vsel %vm913, %v904, %v706
      %v923 = vsel %vm913, %v906, %v708
      %v925 = vsel %vm913, %v908, %v710
      %v927 = vsel %vm913, %v910, %v712
      %v929 = vsel %vm913, %v912, %v714
      %vm930 = vcmask 654336
      %v932 = vsel %vm930, %v915, %v734
      %v934 = vsel %vm930, %v917, %v736
      %v936 = vsel %vm930, %v919, %v738
      %v938 = vsel %vm930, %v921, %v740
      %v940 = vsel %vm930, %v923, %v742
      %v942 = vsel %vm930, %v925, %v744
      %v944 = vsel %vm930, %v927, %v746
      %v946 = vsel %vm930, %v929, %v748
      %vm947 = vcmask 785408
      %v949 = vsel %vm947, %v932, %v768
      %v951 = vsel %vm947, %v934, %v770
      %v953 = vsel %vm947, %v936, %v772
      %v955 = vsel %vm947, %v938, %v774
      %v957 = vsel %vm947, %v940, %v776
      %v959 = vsel %vm947, %v942, %v778
      %v961 = vsel %vm947, %v944, %v780
      %v963 = vsel %vm947, %v946, %v782
      %vm964 = vcmask 916480
      %v966 = vsel %vm964, %v949, %v830
      %v969 = vsel %vm964, %v951, %v832
      %v972 = vsel %vm964, %v953, %v834
      %v975 = vsel %vm964, %v955, %v836
      %v978 = vsel %vm964, %v957, %v838
      %v981 = vsel %vm964, %v959, %v840
      %v984 = vsel %vm964, %v961, %v842
      %v987 = vsel %vm964, %v963, %v844
      %v989 = vld [vmem:[%s3] sm:$0xf]
      %v990 = vld [vmem:[%s3 + $0x4] sm:$0xf]
      %v991 = vld [vmem:[%s3 + $0x8] sm:$0xf]
      %v992 = vld [vmem:[%s3 + $0xc] sm:$0xf]
      %v993 = vld [vmem:[%s3 + $0x10] sm:$0xf]
      %v994 = vld [vmem:[%s3 + $0x14] sm:$0xf]
      %v995 = vld [vmem:[%s3 + $0x18] sm:$0xf]
      %v996 = vld [vmem:[%s3 + $0x1c] sm:$0xf]
      %v997 = vld [vmem:[%s3 + $0x20] sm:$0xf]
      %v998 = vld [vmem:[%s3 + $0x24] sm:$0xf]
      %v999 = vld [vmem:[%s3 + $0x28] sm:$0xf]
      %v1000 = vld [vmem:[%s3 + $0x2c] sm:$0xf]
      %v1001 = vld [vmem:[%s3 + $0x30] sm:$0xf]
      %v1002 = vld [vmem:[%s3 + $0x34] sm:$0xf]
      %v1003 = vld [vmem:[%s3 + $0x38] sm:$0xf]
      %v1004 = vld [vmem:[%s3 + $0x3c] sm:$0xf]
      %v1005 = vld [vmem:[%s3 + $0x40] sm:$0xf]
      %v1006 = vld [vmem:[%s3 + $0x44] sm:$0xf]
      %v1007 = vld [vmem:[%s4] sm:$0x1]
      %v1009 = vlaneseq
      %v1010 = vshrl.u32 %v1009, 7
      %v1011 = vsub.s32 0, %v1010
      %v1012 = vrot.slane %v1007, %v1011
      %v1032 = vunpack.c.l.b16 %v989
      %v1033 = vunpack.c.l.b16 %v990
      %v1034 = vunpack.c.l.b16 %v991
      %v1035 = vunpack.c.l.b16 %v992
      %v1036 = vunpack.c.l.b16 %v993
      %v1037 = vunpack.c.l.b16 %v994
      %v1038 = vunpack.c.l.b16 %v995
      %v1039 = vunpack.c.l.b16 %v996
      %v1040 = vunpack.c.l.b16 %v997
      %v1041 = vunpack.c.l.b16 %v998
      %v1042 = vunpack.c.l.b16 %v999
      %v1043 = vunpack.c.l.b16 %v1000
      %v1044 = vunpack.c.l.b16 %v1001
      %v1045 = vunpack.c.l.b16 %v1002
      %v1046 = vunpack.c.l.b16 %v1003
      %v1047 = vunpack.c.l.b16 %v1004
      %v1048 = vunpack.c.l.b16 %v1005
      %v1049 = vunpack.c.l.b16 %v1006
      %v1050 = vpack.c.b16 %v1033, %v1032
      %v1051 = vpack.c.b16 %v1035, %v1034
      %v1052 = vpack.c.b16 %v1037, %v1036
      %v1053 = vpack.c.b16 %v1039, %v1038
      %v1054 = vpack.c.b16 %v1041, %v1040
      %v1055 = vpack.c.b16 %v1043, %v1042
      %v1056 = vpack.c.b16 %v1045, %v1044
      %v1057 = vpack.c.b16 %v1047, %v1046
      %v1058 = vpack.c.b16 %v1049, %v1048
      %v1069 = vsel %vm862, %v847, 0
      %v1072 = vsel %vm862, %v849, 0
      %v1075 = vsel %vm862, %v851, 0
      %v1078 = vsel %vm862, %v853, 0
      %v1081 = vsel %vm862, %v855, 0
      %v1084 = vsel %vm862, %v857, 0
      %v1087 = vsel %vm862, %v859, 0
      %v1090 = vsel %vm862, %v861, 0
      %1092 = vmatprep.subr.bf16.mxu0 0
      %1093 = vmatpush1.bf16.msra.mxu0 %v1050
      %1094 = vmatprep.subr.bf16.mxu0 0
      %1095 = vmatpush1.bf16.msra.mxu0 %v1051
      %1096 = vmatprep.subr.bf16.mxu0 0
      %1097 = vmatpush1.bf16.msra.mxu0 %v1052
      %1098 = vmatprep.subr.bf16.mxu0 0
      %1099 = vmatpush1.bf16.msra.mxu0 %v1053
      %1100 = vmatprep.subr.bf16.mxu0 0
      %1101 = vmatpush1.bf16.msra.mxu0 %v1054
      %1102 = vmatprep.subr.bf16.mxu0 0
      %1103 = vmatpush1.bf16.msra.mxu0 %v1055
      %1104 = vmatprep.subr.bf16.mxu0 0
      %1105 = vmatpush1.bf16.msra.mxu0 %v1056
      %1106 = vmatprep.subr.bf16.mxu0 0
      %1107 = vmatpush1.bf16.msra.mxu0 %v1057
      %1108 = vmatprep.subr.bf16.mxu0 0
      %1109 = vmatpush1.bf16.msra.mxu0 %v1058
      %1110 = vmatprep.subr.bf16.mxu0 0
      %1111 = vmatpush1.bf16.msra.mxu0 0
      %1112 = vmatprep.subr.bf16.mxu0 0
      %1113 = vmatpush1.bf16.msra.mxu0 0
      %1114 = vmatprep.subr.bf16.mxu0 0
      %1115 = vmatpush1.bf16.msra.mxu0 0
      %1116 = vmatprep.subr.bf16.mxu0 0
      %1117 = vmatpush1.bf16.msra.mxu0 0
      %1118 = vmatprep.subr.bf16.mxu0 0
      %1119 = vmatpush1.bf16.msra.mxu0 0
      %1120 = vmatprep.subr.bf16.mxu0 0
      %1121 = vmatpush1.bf16.msra.mxu0 0
      %1122 = vmatprep.subr.bf16.mxu0 0
      %1123 = vmatpush1.bf16.msra.mxu0 0
      %1124 = vmatprep.mubr.bf16.mxu0 %v1069
      %1125 = vmatmul.mubr.bf16.gmra.mrb[0].mxu0 %v966
      %v1126 = vpop.f32.mrb[0].mxu0
      %v1127 = vadd.f32 %v1012, %v1126
      %v1128 = vpop.f32.mrb[0].mxu0
      %v1129 = vpop.f32.mrb[0].mxu0
      %v1130 = vadd.f32 %v1012, %v1129
      %v1131 = vpop.f32.mrb[0].mxu0
      %1132 = vmatprep.mubr.bf16.mxu0 %v1072
      %1133 = vmatmul.mubr.bf16.gmra.mrb[0].mxu0 %v969
      %v1134 = vpop.f32.mrb[0].mxu0
      %v1135 = vadd.f32 %v1012, %v1134
      %v1136 = vpop.f32.mrb[0].mxu0
      %v1137 = vpop.f32.mrb[0].mxu0
      %v1138 = vadd.f32 %v1012, %v1137
      %v1139 = vpop.f32.mrb[0].mxu0
      %1140 = vmatprep.mubr.bf16.mxu0 %v1075
      %1141 = vmatmul.mubr.bf16.gmra.mrb[0].mxu0 %v972
      %v1142 = vpop.f32.mrb[0].mxu0
      %v1143 = vadd.f32 %v1012, %v1142
      %v1144 = vpop.f32.mrb[0].mxu0
      %v1145 = vpop.f32.mrb[0].mxu0
      %v1146 = vadd.f32 %v1012, %v1145
      %v1147 = vpop.f32.mrb[0].mxu0
      %1148 = vmatprep.mubr.bf16.mxu0 %v1078
      %1149 = vmatmul.mubr.bf16.gmra.mrb[0].mxu0 %v975
      %v1150 = vpop.f32.mrb[0].mxu0
      %v1151 = vadd.f32 %v1012, %v1150
      %v1152 = vpop.f32.mrb[0].mxu0
      %v1153 = vpop.f32.mrb[0].mxu0
      %v1154 = vadd.f32 %v1012, %v1153
      %v1155 = vpop.f32.mrb[0].mxu0
      %1156 = vmatprep.mubr.bf16.mxu0 %v1081
      %1157 = vmatmul.mubr.bf16.gmra.mrb[0].mxu0 %v978
      %v1158 = vpop.f32.mrb[0].mxu0
      %v1159 = vadd.f32 %v1012, %v1158
      %v1160 = vpop.f32.mrb[0].mxu0
      %v1161 = vpop.f32.mrb[0].mxu0
      %v1162 = vadd.f32 %v1012, %v1161
      %v1163 = vpop.f32.mrb[0].mxu0
      %1164 = vmatprep.mubr.bf16.mxu0 %v1084
      %1165 = vmatmul.mubr.bf16.gmra.mrb[0].mxu0 %v981
      %v1166 = vpop.f32.mrb[0].mxu0
      %v1167 = vadd.f32 %v1012, %v1166
      %v1168 = vpop.f32.mrb[0].mxu0
      %v1169 = vpop.f32.mrb[0].mxu0
      %v1170 = vadd.f32 %v1012, %v1169
      %v1171 = vpop.f32.mrb[0].mxu0
      %1172 = vmatprep.mubr.bf16.mxu0 %v1087
      %1173 = vmatmul.mubr.bf16.gmra.mrb[0].mxu0 %v984
      %v1174 = vpop.f32.mrb[0].mxu0
      %v1175 = vadd.f32 %v1012, %v1174
      %v1176 = vpop.f32.mrb[0].mxu0
      %v1177 = vpop.f32.mrb[0].mxu0
      %v1178 = vadd.f32 %v1012, %v1177
      %v1179 = vpop.f32.mrb[0].mxu0
      %1180 = vmatprep.mubr.bf16.mxu0 %v1090
      %1181 = vmatmul.mubr.bf16.gmra.mrb[0].mxu0 %v987
      %v1182 = vpop.f32.mrb[0].mxu0
      %v1183 = vadd.f32 %v1012, %v1182
      %v1184 = vpop.f32.mrb[0].mxu0
      %v1185 = vpop.f32.mrb[0].mxu0
      %v1186 = vadd.f32 %v1012, %v1185
      %v1187 = vpop.f32.mrb[0].mxu0
      %1188 = vdwg.mxu0
      %v1189 = vld [vmem:[%s308] sm:$0xff]
      %v1190 = vld [vmem:[%s308 + $0x8] sm:$0xff]
      %v1191 = vld [vmem:[%s308 + $0x10] sm:$0xff]
      %v1192 = vld [vmem:[%s308 + $0x18] sm:$0xff]
      %v1193 = vld [vmem:[%s308 + $0x20] sm:$0xff]
      %v1194 = vld [vmem:[%s308 + $0x28] sm:$0xff]
      %v1195 = vld [vmem:[%s308 + $0x30] sm:$0xff]
      %v1196 = vld [vmem:[%s308 + $0x38] sm:$0xff]
      %v1197 = vld [vmem:[%s308 + $0x40] sm:$0xff]
      %v1198 = vld [vmem:[%s308 + $0x48] sm:$0xff]
      %v1199 = vld [vmem:[%s308 + $0x50] sm:$0xff]
      %v1200 = vld [vmem:[%s308 + $0x58] sm:$0xff]
      %v1201 = vld [vmem:[%s308 + $0x60] sm:$0xff]
      %v1202 = vld [vmem:[%s308 + $0x68] sm:$0xff]
      %v1203 = vld [vmem:[%s308 + $0x70] sm:$0xff]
      %v1204 = vld [vmem:[%s308 + $0x78] sm:$0xff]
      %1206 = vset.pattern.permute.xlu0 0
      %1207 = vperm.xlu0 %1206, %v1189
      %v1208 = vpop.permute.xlu0 %1207
      %1211 = vset.pattern.permute.xlu0 0
      %1212 = vperm.xlu0 %1211, %v1190
      %v1213 = vpop.permute.xlu0 %1212
      %1216 = vset.pattern.permute.xlu0 0
      %1217 = vperm.xlu0 %1216, %v1191
      %v1218 = vpop.permute.xlu0 %1217
      %1221 = vset.pattern.permute.xlu0 0
      %1222 = vperm.xlu0 %1221, %v1192
      %v1223 = vpop.permute.xlu0 %1222
      %1226 = vset.pattern.permute.xlu0 0
      %1227 = vperm.xlu0 %1226, %v1193
      %v1228 = vpop.permute.xlu0 %1227
      %1231 = vset.pattern.permute.xlu0 0
      %1232 = vperm.xlu0 %1231, %v1194
      %v1233 = vpop.permute.xlu0 %1232
      %1236 = vset.pattern.permute.xlu0 0
      %1237 = vperm.xlu0 %1236, %v1195
      %v1238 = vpop.permute.xlu0 %1237
      %1241 = vset.pattern.permute.xlu0 0
      %1242 = vperm.xlu0 %1241, %v1196
      %v1243 = vpop.permute.xlu0 %1242
      %1246 = vset.pattern.permute.xlu0 0
      %1247 = vperm.xlu0 %1246, %v1197
      %v1248 = vpop.permute.xlu0 %1247
      %1251 = vset.pattern.permute.xlu0 0
      %1252 = vperm.xlu0 %1251, %v1198
      %v1253 = vpop.permute.xlu0 %1252
      %1256 = vset.pattern.permute.xlu0 0
      %1257 = vperm.xlu0 %1256, %v1199
      %v1258 = vpop.permute.xlu0 %1257
      %1261 = vset.pattern.permute.xlu0 0
      %1262 = vperm.xlu0 %1261, %v1200
      %v1263 = vpop.permute.xlu0 %1262
      %1266 = vset.pattern.permute.xlu0 0
      %1267 = vperm.xlu0 %1266, %v1201
      %v1268 = vpop.permute.xlu0 %1267
      %1271 = vset.pattern.permute.xlu0 0
      %1272 = vperm.xlu0 %1271, %v1202
      %v1273 = vpop.permute.xlu0 %1272
      %1276 = vset.pattern.permute.xlu0 0
      %1277 = vperm.xlu0 %1276, %v1203
      %v1278 = vpop.permute.xlu0 %1277
      %1281 = vset.pattern.permute.xlu0 0
      %1282 = vperm.xlu0 %1281, %v1204
      %v1283 = vpop.permute.xlu0 %1282
      %v1285 = vmul.f32 %v1127, %v1208
      %v1286 = vmul.f32 %v1130, %v1213
      %v1287 = vmul.f32 %v1135, %v1218
      %v1288 = vmul.f32 %v1138, %v1223
      %v1289 = vmul.f32 %v1143, %v1228
      %v1290 = vmul.f32 %v1146, %v1233
      %v1291 = vmul.f32 %v1151, %v1238
      %v1292 = vmul.f32 %v1154, %v1243
      %v1293 = vmul.f32 %v1159, %v1248
      %v1294 = vmul.f32 %v1162, %v1253
      %v1295 = vmul.f32 %v1167, %v1258
      %v1296 = vmul.f32 %v1170, %v1263
      %v1297 = vmul.f32 %v1175, %v1268
      %v1298 = vmul.f32 %v1178, %v1273
      %v1299 = vmul.f32 %v1183, %v1278
      %v1300 = vmul.f32 %v1186, %v1283
      %v1301 = vpack.c.bf16 %v1286, %v1285
      %v1302 = vpack.c.bf16 %v1288, %v1287
      %v1303 = vpack.c.bf16 %v1290, %v1289
      %v1304 = vpack.c.bf16 %v1292, %v1291
      %v1305 = vpack.c.bf16 %v1294, %v1293
      %v1306 = vpack.c.bf16 %v1296, %v1295
      %v1307 = vpack.c.bf16 %v1298, %v1297
      %v1308 = vpack.c.bf16 %v1300, %v1299
      %v1317 = vunpack.c.l.b16 %v1301
      %v1318 = vunpack.c.h.b16 %v1301
      %v1319 = vunpack.c.l.b16 %v1302
      %v1320 = vunpack.c.h.b16 %v1302
      %v1321 = vunpack.c.l.b16 %v1303
      %v1322 = vunpack.c.h.b16 %v1303
      %v1323 = vunpack.c.l.b16 %v1304
      %v1324 = vunpack.c.h.b16 %v1304
      %v1325 = vunpack.c.l.b16 %v1305
      %v1326 = vunpack.c.h.b16 %v1305
      %v1327 = vunpack.c.l.b16 %v1306
      %v1328 = vunpack.c.h.b16 %v1306
      %v1329 = vunpack.c.l.b16 %v1307
      %v1330 = vunpack.c.h.b16 %v1307
      %v1331 = vunpack.c.l.b16 %v1308
      %v1332 = vunpack.c.h.b16 %v1308
      %v1333 = vpack.c.b16 %v1317, %v1317
      %v1334 = vpack.c.b16 %v1318, %v1318
      %v1335 = vpack.c.b16 %v1319, %v1319
      %v1336 = vpack.c.b16 %v1320, %v1320
      %v1337 = vpack.c.b16 %v1321, %v1321
      %v1338 = vpack.c.b16 %v1322, %v1322
      %v1339 = vpack.c.b16 %v1323, %v1323
      %v1340 = vpack.c.b16 %v1324, %v1324
      %v1341 = vpack.c.b16 %v1325, %v1325
      %v1342 = vpack.c.b16 %v1326, %v1326
      %v1343 = vpack.c.b16 %v1327, %v1327
      %v1344 = vpack.c.b16 %v1328, %v1328
      %v1345 = vpack.c.b16 %v1329, %v1329
      %v1346 = vpack.c.b16 %v1330, %v1330
      %v1347 = vpack.c.b16 %v1331, %v1331
      %v1348 = vpack.c.b16 %v1332, %v1332
      %vm1365 = vcmask 27648
      %1366 = vst.msk [vmem:[%s318] sm:$0xf] %vm1365, %v1333
      %1367 = vst.msk [vmem:[%s318 + $0x4] sm:$0xf] %vm1365, %v1334
      %1368 = vst.msk [vmem:[%s318 + $0x8] sm:$0xf] %vm1365, %v1335
      %1369 = vst.msk [vmem:[%s318 + $0xc] sm:$0xf] %vm1365, %v1336
      %1370 = vst.msk [vmem:[%s318 + $0x10] sm:$0xf] %vm1365, %v1337
      %1371 = vst.msk [vmem:[%s318 + $0x14] sm:$0xf] %vm1365, %v1338
      %1372 = vst.msk [vmem:[%s318 + $0x18] sm:$0xf] %vm1365, %v1339
      %1373 = vst.msk [vmem:[%s318 + $0x1c] sm:$0xf] %vm1365, %v1340
      %1374 = vst.msk [vmem:[%s318 + $0x20] sm:$0xf] %vm1365, %v1341
      %1375 = vst.msk [vmem:[%s318 + $0x24] sm:$0xf] %vm1365, %v1342
      %1376 = vst.msk [vmem:[%s318 + $0x28] sm:$0xf] %vm1365, %v1343
      %1377 = vst.msk [vmem:[%s318 + $0x2c] sm:$0xf] %vm1365, %v1344
      %1378 = vst.msk [vmem:[%s318 + $0x30] sm:$0xf] %vm1365, %v1345
      %1379 = vst.msk [vmem:[%s318 + $0x34] sm:$0xf] %vm1365, %v1346
      %1380 = vst.msk [vmem:[%s318 + $0x38] sm:$0xf] %vm1365, %v1347
      %1381 = vst.msk [vmem:[%s318 + $0x3c] sm:$0xf] %vm1365, %v1348
      %s1382 = smul.u32 16, %s21
      %p1383 = scmp.lt.s32.totalorder %s20, 3
      %s1384 = scalar_select %p1383, %s20, 3
      %p1385 = scmp.lt.s32.totalorder %s1382, 175
      %s1386 = scalar_select %p1385, %s1382, 175
      %s1387 = smul.addr %s1384, 176
      %s1388 = sadd.s32 %s1386, %s1387
      %s1389 = smul.addr %s1388, 4
      %s1390 = scalar_lea.vmem %s5, %s1389
      // Predicated region
      $region41: #{edsr_forward.11} parent=39 // pred_check
        %p1391 = pneg %p172
      $region42: #{edsr_forward.11} parent=39 // pred_check_branch
        %1393 = sbr.rel (%p1391) target = $region44
      $region43: #{edsr_forward.11} parent=39 // pred_region
        %s1394 = smul.u32 16, %s21
      $region44: #{edsr_forward.11} parent=39 // pred_fallthru
        _
    $region40: #{edsr_forward.11} parent=5 // pred_fallthru
      _
    %p1395 = scmp.le.s32.totalorder 2, %s11
    // Predicated region
    $region45: #{edsr_forward.11} parent=5 // pred_check
      %p1396 = pneg %p1395
    $region46: #{edsr_forward.11} parent=5 // pred_check_branch
      %1398 = sbr.rel (%p1396) target = $region48
    $region47: #{edsr_forward.11} parent=5 // pred_region
      %s1399 = ssub.s32 %s11, 2
      // Predicated region
      $region49: #{edsr_forward.11} parent=47 // pred_check
        %p1400 = pneg %p178
      $region50: #{edsr_forward.11} parent=47 // pred_check_branch
        %1402 = sbr.rel (%p1400) target = $region52
      $region51: #{edsr_forward.11} parent=47 // pred_region
        %s1403 = smul.u32 16, %s23
        %p1404 = scmp.lt.s32.totalorder %s22, 3
        %s1405 = scalar_select %p1404, %s22, 3
        %p1406 = scmp.lt.s32.totalorder %s1403, 175
        %s1407 = scalar_select %p1406, %s1403, 175
        %s1408 = smul.addr %s1405, 176
        %s1409 = sadd.s32 %s1407, %s1408
        %s1410 = smul.addr %s1409, 4
        %s1411 = scalar_lea.vmem %s5, %s1410
      $region52: #{edsr_forward.11} parent=47 // pred_fallthru
        _
    $region48: #{edsr_forward.11} parent=5 // pred_fallthru
      _
  $region6: #{edsr_forward.11} parent=0 // loop_footer
    %s15 = sadd.s32 1, %s11
  $region7: #{edsr_forward.11} parent=0 // loop_footer_branch
    %10 = sbr.rel target = $region3
  $region8: #{edsr_forward.11} parent=0 // loop_exit
    _

</llo_original>
